<compile_context>
chip_gen: v5e
topology: v5e:2x2
jax: 0.10.0
libtpu: 0.0.40
codegen_flags: <defaults>
</compile_context>

<pallas_src>
import functools

import jax
import jax.numpy as jnp
from jax.experimental import pallas as pl
from jax.experimental.pallas import tpu as pltpu


# ----------------------------------------------------------------------------
# Kernel 1: fused multi-head self-attention + residual (feature-major tokens)
#           One grid step per batch element; all n frames handled in-kernel.
# ----------------------------------------------------------------------------
def _mhsa_kernel(x_ref, wqkv_ref, bqkv_ref, wo_ref, bo_ref, o_ref,
                 *, num_heads, head_dim):
    n = x_ref.shape[1]
    seq = x_ref.shape[-1]
    hd = num_heads * head_dim

    wqkv = wqkv_ref[...]                                   # (3HD, C)  loaded once
    bqkv = bqkv_ref[...]                                   # (3HD, 1)
    wo = wo_ref[...]                                       # (C, HD)
    bo = bo_ref[...]                                       # (C, 1)

    for ni in range(n):                                    # unrolled (n is small)
        x_cf = x_ref[0, ni]                                # (C, S)

        # Fused QKV projection: one GEMM (scale already folded into Q rows).
        qkv = jnp.dot(wqkv, x_cf,
                      preferred_element_type=jnp.float32) + bqkv     # (3HD, S)

        q = qkv[0 * hd:1 * hd].reshape(num_heads, head_dim, seq)     # (H, Dh, S)
        k = qkv[1 * hd:2 * hd].reshape(num_heads, head_dim, seq)
        v = qkv[2 * hd:3 * hd].reshape(num_heads, head_dim, seq)

        # Batched-head attention; einsum orders picked so no transposes are
        # needed: dot_general outputs land directly in the consumed layout.
        s = jnp.einsum('hdq,hdk->hqk', q, k,
                       preferred_element_type=jnp.float32)           # (H, S, S)
        s = s - jnp.max(s, axis=-1, keepdims=True)
        p = jnp.exp(s)
        p = p * pl.reciprocal(jnp.sum(p, axis=-1, keepdims=True), approx=True)
        ctx = jnp.einsum('hdk,hqk->hdq', v, p,
                         preferred_element_type=jnp.float32)         # (H, Dh, S)
        ctx = ctx.reshape(hd, seq)                                   # (HD, S)

        # Output projection + bias + fused residual, lane-dense (C, S) store.
        out = (jnp.dot(wo, ctx, preferred_element_type=jnp.float32)
               + bo + x_cf)
        o_ref[0, ni] = out


def mhsa_residual(x, wqkv, bqkv, wo, bo, *, num_heads):
    b, n, c, s = x.shape
    hd3 = wqkv.shape[0]
    hd = hd3 // 3
    head_dim = hd // num_heads
    kern = functools.partial(_mhsa_kernel, num_heads=num_heads, head_dim=head_dim)
    return pl.pallas_call(
        kern,
        out_shape=jax.ShapeDtypeStruct((b, n, c, s), jnp.float32),
        grid=(b,),
        in_specs=[
            pl.BlockSpec((1, n, c, s), lambda bi: (bi, 0, 0, 0)),
            pl.BlockSpec((hd3, c), lambda bi: (0, 0)),
            pl.BlockSpec((hd3, 1), lambda bi: (0, 0)),
            pl.BlockSpec((c, hd), lambda bi: (0, 0)),
            pl.BlockSpec((c, 1), lambda bi: (0, 0)),
        ],
        out_specs=pl.BlockSpec((1, n, c, s), lambda bi: (bi, 0, 0, 0)),
        compiler_params=pltpu.CompilerParams(
            dimension_semantics=("parallel",),
            vmem_limit_bytes=32 * 1024 * 1024),
    )(x, wqkv, bqkv, wo, bo)


# ----------------------------------------------------------------------------
# Kernel 2: ConvBlock conv + BN-folded downsample conv + final add (one GEMM
#           per frame).  One grid step per batch element; frames unrolled.
# ----------------------------------------------------------------------------
def _conv_fuse_kernel(xs_ref, w_ref, bcb_ref, bid_ref, o_ref,
                      *, stride, c_out, ho, wo):
    n = xs_ref.shape[1]
    cin = xs_ref.shape[-1]
    m = ho * wo
    bcb = bcb_ref[...]                                     # (c_out, 1), loaded once

    for ni in range(n):                                    # unrolled (n is small)
        xpar = xs_ref[0, ni]                               # (PP, Hq, Wq, C)

        # In-VMEM im2col: 9 shifted windows -> (M, 9*C). No HBM patch tensor.
        cols = []
        for dy in range(3):
            for dx in range(3):
                if stride == 2:
                    ay, py = divmod(dy, 2)
                    ax, px = divmod(dx, 2)
                    win = xpar[py * 2 + px, ay:ay + ho, ax:ax + wo, :]
                else:
                    win = xpar[0, dy:dy + ho, dx:dx + wo, :]
                cols.append(win.reshape(m, cin))
        patches = jnp.concatenate(cols, axis=1)            # (M, 9*C)

        # One GEMM covers BOTH paths: [ConvBlock | s_n * downsample_conv_n].
        z = jnp.dot(patches, w_ref[ni],
                    preferred_element_type=jnp.float32)    # (M, 2*c_out)
        zt = z.T                                           # (2*c_out, M)
        cb = jnp.maximum(zt[:c_out] + bcb, 0.0)            # ConvBlock + ReLU
        ident = zt[c_out:] + bid_ref[ni]                   # BN-folded ds conv
        o_ref[0, ni] = cb + ident                          # fused residual add


def conv_fuse(xs, w_stack, bcb, b_ident, *, stride, c_out, ho, wo):
    b, n, pp, hq, wq, cin = xs.shape
    kc = 9 * cin
    m = ho * wo
    kern = functools.partial(_conv_fuse_kernel, stride=stride,
                             c_out=c_out, ho=ho, wo=wo)
    return pl.pallas_call(
        kern,
        out_shape=jax.ShapeDtypeStruct((b, n, c_out, m), jnp.float32),
        grid=(b,),
        in_specs=[
            pl.BlockSpec((1, n, pp, hq, wq, cin),
                         lambda bi: (bi, 0, 0, 0, 0, 0)),
            pl.BlockSpec((n, kc, 2 * c_out), lambda bi: (0, 0, 0)),
            pl.BlockSpec((c_out, 1), lambda bi: (0, 0)),
            pl.BlockSpec((n, c_out, m), lambda bi: (0, 0, 0)),
        ],
        out_specs=pl.BlockSpec((1, n, c_out, m), lambda bi: (bi, 0, 0, 0)),
        compiler_params=pltpu.CompilerParams(
            dimension_semantics=("parallel",),
            vmem_limit_bytes=32 * 1024 * 1024),
    )(xs, w_stack, bcb, b_ident)


# ----------------------------------------------------------------------------
# Plain-JAX glue (tiny, weight-sized preprocessing only)
# ----------------------------------------------------------------------------
def _mask_patches(h, w, stride):
    # Pm[(ky*3+kx), m] = 1 iff tap (ky,kx) of output pixel m hits a real pixel.
    hp, wp = h + 2, w + 2
    ho = (h + 2 - 3) // stride + 1
    wo = (w + 2 - 3) // stride + 1
    msk = jnp.zeros((hp, wp), jnp.float32).at[1:h + 1, 1:w + 1].set(1.0)
    taps = []
    for dy in range(3):
        for dx in range(3):
            win = msk[dy:dy + stride * (ho - 1) + 1:stride,
                      dx:dx + stride * (wo - 1) + 1:stride]
            taps.append(win.reshape(1, ho * wo))
    return jnp.concatenate(taps, axis=0)                 # (9, Ho*Wo)


def vit_encoder_forward(x, params, *, stride, c_expand, num_heads, eps=1e-5):
    b, n, c, h, w = x.shape
    c_out = c_expand * c
    s = h * w

    # --- fold 1/sqrt(Dh) into the Q rows of the fused QKV weight/bias ---------
    hd = params["wo"].shape[1]
    head_dim = hd // num_heads
    scale = 1.0 / (head_dim ** 0.5)
    row_scale = jnp.concatenate(
        [jnp.full((hd,), scale, jnp.float32),
         jnp.ones((2 * hd,), jnp.float32)])[:, None]                 # (3HD, 1)
    wqkv = params["wqkv"] * row_scale
    bqkv = params["bqkv"] * row_scale

    # --- x = SelfAtt(x) + x  (one fused kernel, lane-dense (C,S) blocks) -----
    att = mhsa_residual(x.reshape(b, n, c, s), wqkv, bqkv,
                        params["wo"], params["bo"],
                        num_heads=num_heads)                         # (b, n, c, S)

    # --- BatchNorm3d(fp_num): tiny per-n reduction, folded into conv weights.
    #     (training-mode batch statistics, matching the prior implementation) -
    mean = jnp.mean(att, axis=(0, 2, 3))                             # (n,)
    var = jnp.var(att, axis=(0, 2, 3))                               # biased
    bn_s = params["bn_gamma"] * jax.lax.rsqrt(var + eps)             # (n,)
    bn_t = params["bn_beta"] - bn_s * mean                           # (n,)

    # --- shared 3x3 / pad=1 / stride=s conv geometry --------------------------
    ho = (h + 2 - 3) // stride + 1
    wo = (w + 2 - 3) // stride + 1
    m = ho * wo
    kc = 9 * c

    # Zero-pad once; parity-split (stride 2) + channels-last so the in-kernel
    # patch build needs only contiguous slices (no strided loads, no 9x HBM blowup).
    att_sp = att.reshape(b, n, c, h, w)
    x_pad = jnp.pad(att_sp, ((0, 0), (0, 0), (0, 0), (1, 1), (1, 1)))
    hp, wp = h + 2, w + 2
    if stride == 2:
        xs = x_pad.reshape(b, n, c, hp // 2, 2, wp // 2, 2)
        xs = xs.transpose(0, 1, 4, 6, 3, 5, 2)                       # (b,n,py,px,r,s,c)
        xs = xs.reshape(b, n, 4, hp // 2, wp // 2, c)
    else:
        xs = x_pad.transpose(0, 1, 3, 4, 2).reshape(b, n, 1, hp, wp, c)

    # --- weight prep (weight-sized only): stack ConvBlock | s_n * ds_conv_n ---
    wcb_k = params["cb_w"].transpose(2, 3, 1, 0).reshape(kc, c_out)          # K=(ky,kx,c)
    wds_k = params["ds_w"].transpose(0, 3, 4, 2, 1).reshape(n, kc, c_out)
    w_stack = jnp.concatenate(
        [jnp.broadcast_to(wcb_k[None], (n, kc, c_out)),
         bn_s[:, None, None] * wds_k], axis=-1)                              # (n, kc, 2*c_out)

    # Border-exact BN fold:
    #   conv_n(zero_pad(BN_n(x))) = (s_n*W_n) * conv(zero_pad(x))
    #                               + t_n * (W_n * interior_mask) + b_n
    pm = _mask_patches(h, w, stride)                                         # (9, M)
    wsum = jnp.sum(params["ds_w"], axis=2).reshape(n, c_out, 9)
    b_ident = (jnp.einsum('nok,km->nom', bn_t[:, None, None] * wsum, pm)
               + params["ds_b"][:, :, None])                                 # (n, c_out, M)
    bcb = params["cb_b"].reshape(c_out, 1)

    # --- x = ConvBlock(x) + downsample(BN(identity))  (one fused kernel) ------
    out = conv_fuse(xs, w_stack, bcb, b_ident,
                    stride=stride, c_out=c_out, ho=ho, wo=wo)                # (b,n,c_out,M)
    return out.reshape(b, n, c_out, ho, wo)


def init_params(key, *, in_channels, fp_num, num_heads, sa_head, c_expand):
    c = in_channels
    hd = num_heads * sa_head
    c_out = c_expand * c
    ks = jax.random.split(key, 8)
    sd = 0.1
    return {
        # synthesized SA params, stored directly in fused / feature-major layout
        "wqkv": jax.random.normal(ks[0], (3 * hd, c), jnp.float32) * sd,
        "bqkv": jax.random.normal(ks[1], (3 * hd, 1), jnp.float32) * sd,
        "wo":   jax.random.normal(ks[2], (c, hd), jnp.float32) * sd,
        "bo":   jax.random.normal(ks[3], (c, 1), jnp.float32) * sd,
        # BatchNorm3d(fp_num)
        "bn_gamma": jnp.ones((fp_num,), jnp.float32),
        "bn_beta": jnp.zeros((fp_num,), jnp.float32),
        # per-frame downsample convs (3x3, stride, pad 1)
        "ds_w": jax.random.normal(ks[4], (fp_num, c_out, c, 3, 3), jnp.float32) * sd,
        "ds_b": jax.random.normal(ks[5], (fp_num, c_out), jnp.float32) * sd,
        # synthesized ConvBlock: shared 3x3 conv (stride, pad 1) + ReLU
        "cb_w": jax.random.normal(ks[6], (c_out, c, 3, 3), jnp.float32) * sd,
        "cb_b": jax.random.normal(ks[7], (c_out,), jnp.float32) * sd,
    }
    # TODO(synk): BatchNorm3d running stats (eval mode) are not modeled; batch stats are used.


if __name__ == "__main__":
    b, fp_num, in_channels, h, w = 2, 4, 4, 16, 16
    stride, c_expand = 2, 2
    num_heads, sa_head = 2, 8

    key = jax.random.PRNGKey(0)
    k_x, k_p = jax.random.split(key)
    x = jax.random.normal(k_x, (b, fp_num, in_channels, h, w), jnp.float32)
    params = init_params(k_p, in_channels=in_channels, fp_num=fp_num,
                         num_heads=num_heads, sa_head=sa_head, c_expand=c_expand)

    fwd = jax.jit(functools.partial(vit_encoder_forward, stride=stride,
                                    c_expand=c_expand, num_heads=num_heads))
    out = jax.block_until_ready(fwd(x, params))

    expected = (b, fp_num, c_expand * in_channels, (h + 1) // 2, (w + 1) // 2)
    assert out.shape == expected, (out.shape, expected)
    assert bool(jnp.all(jnp.isfinite(out)))
    print("KERNEL_OK")
</pallas_src>

<mosaic_0001>
module attributes {stable_mosaic.version = 11 : i64} {
  func.func @_mhsa_kernel(%arg0: i32, %arg1: memref<1x4x4x256xf32, #tpu.memory_space<vmem>>, %arg2: memref<48x4xf32, #tpu.memory_space<vmem>>, %arg3: memref<48x1xf32, #tpu.memory_space<vmem>>, %arg4: memref<4x16xf32, #tpu.memory_space<vmem>>, %arg5: memref<4x1xf32, #tpu.memory_space<vmem>>, %arg6: memref<1x4x4x256xf32, #tpu.memory_space<vmem>>) attributes {dimension_semantics = [#tpu.dimension_semantics<parallel>], iteration_bounds = array<i64: 2>, scalar_prefetch = 0 : i64, scratch_operands = 0 : i64, tpu.core_type = #tpu.core_type<tc>, window_params = [{transform_indices = @transform_0, window_bounds = array<i64: 1, 4, 4, 256>}, {pipeline_mode = #tpu.pipeline_mode<synchronous>, transform_indices = @transform_1, window_bounds = array<i64: 48, 4>}, {pipeline_mode = #tpu.pipeline_mode<synchronous>, transform_indices = @transform_2, window_bounds = array<i64: 48, 1>}, {pipeline_mode = #tpu.pipeline_mode<synchronous>, transform_indices = @transform_3, window_bounds = array<i64: 4, 16>}, {pipeline_mode = #tpu.pipeline_mode<synchronous>, transform_indices = @transform_4, window_bounds = array<i64: 4, 1>}, {transform_indices = @transform_5, window_bounds = array<i64: 1, 4, 4, 256>}]} {
    %c0 = arith.constant 0 : index
    %c0_0 = arith.constant 0 : index
    %0 = vector.load %arg2[%c0, %c0_0] : memref<48x4xf32, #tpu.memory_space<vmem>>, vector<48x4xf32>
    %c0_1 = arith.constant 0 : index
    %c0_2 = arith.constant 0 : index
    %1 = vector.load %arg3[%c0_1, %c0_2] : memref<48x1xf32, #tpu.memory_space<vmem>>, vector<48x1xf32>
    %c0_3 = arith.constant 0 : index
    %c0_4 = arith.constant 0 : index
    %2 = vector.load %arg4[%c0_3, %c0_4] : memref<4x16xf32, #tpu.memory_space<vmem>>, vector<4x16xf32>
    %c0_5 = arith.constant 0 : index
    %c0_6 = arith.constant 0 : index
    %3 = vector.load %arg5[%c0_5, %c0_6] : memref<4x1xf32, #tpu.memory_space<vmem>>, vector<4x1xf32>
    %c0_7 = arith.constant 0 : index
    %c0_8 = arith.constant 0 : index
    %c0_9 = arith.constant 0 : index
    %c0_10 = arith.constant 0 : index
    %4 = vector.load %arg1[%c0_7, %c0_8, %c0_9, %c0_10] : memref<1x4x4x256xf32, #tpu.memory_space<vmem>>, vector<1x1x4x256xf32>
    %5 = vector.shape_cast %4 : vector<1x1x4x256xf32> to vector<4x256xf32>
    %cst = arith.constant dense<0.000000e+00> : vector<48x256xf32>
    %6 = tpu.matmul %0, %5, %cst {dimension_numbers = #tpu.dot_dimension_numbers<[1], [0], [0], [1], [0, 0, 1, 1], [], []>} : vector<48x4xf32>, vector<4x256xf32>, vector<48x256xf32> -> vector<48x256xf32>
    %7 = vector.broadcast %1 : vector<48x1xf32> to vector<48x256xf32>
    %8 = arith.addf %6, %7 : vector<48x256xf32>
    %9 = vector.extract_strided_slice %8 {offsets = [0, 0], sizes = [16, 256], strides = [1, 1]} : vector<48x256xf32> to vector<16x256xf32>
    %10 = vector.shape_cast %9 : vector<16x256xf32> to vector<2x8x256xf32>
    %11 = vector.extract_strided_slice %8 {offsets = [16, 0], sizes = [16, 256], strides = [1, 1]} : vector<48x256xf32> to vector<16x256xf32>
    %12 = vector.shape_cast %11 : vector<16x256xf32> to vector<2x8x256xf32>
    %13 = vector.extract_strided_slice %8 {offsets = [32, 0], sizes = [16, 256], strides = [1, 1]} : vector<48x256xf32> to vector<16x256xf32>
    %14 = vector.shape_cast %13 : vector<16x256xf32> to vector<2x8x256xf32>
    "tpu.trace_start"() <{level = 10 : i32, message = "hdq,hdk->hqk"}> : () -> ()
    %cst_11 = arith.constant dense<0.000000e+00> : vector<2x256x256xf32>
    %15 = tpu.matmul %10, %12, %cst_11 {dimension_numbers = #tpu.dot_dimension_numbers<[1], [1], [2], [2], [0, 0, 0, 2, 1, 2], [0], [0]>} : vector<2x8x256xf32>, vector<2x8x256xf32>, vector<2x256x256xf32> -> vector<2x256x256xf32>
    "tpu.trace_stop"() : () -> ()
    %cst_12 = arith.constant dense<0xFF800000> : vector<2x256xf32>
    %16 = vector.multi_reduction <maximumf>, %15, %cst_12 [2] : vector<2x256x256xf32> to vector<2x256xf32>
    %17 = vector.shape_cast %16 : vector<2x256xf32> to vector<2x256x1xf32>
    %18 = vector.broadcast %17 : vector<2x256x1xf32> to vector<2x256x256xf32>
    %19 = arith.subf %15, %18 : vector<2x256x256xf32>
    %20 = math.exp %19 : vector<2x256x256xf32>
    %cst_13 = arith.constant dense<0.000000e+00> : vector<2x256xf32>
    %21 = vector.multi_reduction <add>, %20, %cst_13 [2] : vector<2x256x256xf32> to vector<2x256xf32>
    %22 = vector.shape_cast %21 : vector<2x256xf32> to vector<2x256x1xf32>
    %23 = tpu.reciprocal %22 {approx = true} : vector<2x256x1xf32> -> vector<2x256x1xf32>
    %24 = vector.broadcast %23 : vector<2x256x1xf32> to vector<2x256x256xf32>
    %25 = arith.mulf %20, %24 : vector<2x256x256xf32>
    "tpu.trace_start"() <{level = 10 : i32, message = "hdk,hqk->hdq"}> : () -> ()
    %cst_14 = arith.constant dense<0.000000e+00> : vector<2x8x256xf32>
    %26 = tpu.matmul %14, %25, %cst_14 {dimension_numbers = #tpu.dot_dimension_numbers<[2], [2], [1], [1], [0, 0, 0, 1, 1, 1], [0], [0]>} : vector<2x8x256xf32>, vector<2x256x256xf32>, vector<2x8x256xf32> -> vector<2x8x256xf32>
    "tpu.trace_stop"() : () -> ()
    %27 = vector.shape_cast %26 : vector<2x8x256xf32> to vector<16x256xf32>
    %cst_15 = arith.constant dense<0.000000e+00> : vector<4x256xf32>
    %28 = tpu.matmul %2, %27, %cst_15 {dimension_numbers = #tpu.dot_dimension_numbers<[1], [0], [0], [1], [0, 0, 1, 1], [], []>} : vector<4x16xf32>, vector<16x256xf32>, vector<4x256xf32> -> vector<4x256xf32>
    %29 = vector.broadcast %3 : vector<4x1xf32> to vector<4x256xf32>
    %30 = arith.addf %28, %29 : vector<4x256xf32>
    %31 = arith.addf %30, %5 : vector<4x256xf32>
    %c0_16 = arith.constant 0 : index
    %c0_17 = arith.constant 0 : index
    %c0_18 = arith.constant 0 : index
    %c0_19 = arith.constant 0 : index
    %32 = vector.load %arg6[%c0_16, %c0_17, %c0_18, %c0_19] : memref<1x4x4x256xf32, #tpu.memory_space<vmem>>, vector<1x1x4x256xf32>
    %33 = vector.shape_cast %32 : vector<1x1x4x256xf32> to vector<4x256xf32>
    %34 = vector.shape_cast %31 : vector<4x256xf32> to vector<1x1x4x256xf32>
    tpu.vector_store %arg6[%c0_16, %c0_17, %c0_18, %c0_19], %34 {strides = array<i32>} : memref<1x4x4x256xf32, #tpu.memory_space<vmem>>, vector<1x1x4x256xf32>,
    %c0_20 = arith.constant 0 : index
    %c1 = arith.constant 1 : index
    %c0_21 = arith.constant 0 : index
    %c0_22 = arith.constant 0 : index
    %35 = vector.load %arg1[%c0_20, %c1, %c0_21, %c0_22] : memref<1x4x4x256xf32, #tpu.memory_space<vmem>>, vector<1x1x4x256xf32>
    %36 = vector.shape_cast %35 : vector<1x1x4x256xf32> to vector<4x256xf32>
    %cst_23 = arith.constant dense<0.000000e+00> : vector<48x256xf32>
    %37 = tpu.matmul %0, %36, %cst_23 {dimension_numbers = #tpu.dot_dimension_numbers<[1], [0], [0], [1], [0, 0, 1, 1], [], []>} : vector<48x4xf32>, vector<4x256xf32>, vector<48x256xf32> -> vector<48x256xf32>
    %38 = vector.broadcast %1 : vector<48x1xf32> to vector<48x256xf32>
    %39 = arith.addf %37, %38 : vector<48x256xf32>
    %40 = vector.extract_strided_slice %39 {offsets = [0, 0], sizes = [16, 256], strides = [1, 1]} : vector<48x256xf32> to vector<16x256xf32>
    %41 = vector.shape_cast %40 : vector<16x256xf32> to vector<2x8x256xf32>
    %42 = vector.extract_strided_slice %39 {offsets = [16, 0], sizes = [16, 256], strides = [1, 1]} : vector<48x256xf32> to vector<16x256xf32>
    %43 = vector.shape_cast %42 : vector<16x256xf32> to vector<2x8x256xf32>
    %44 = vector.extract_strided_slice %39 {offsets = [32, 0], sizes = [16, 256], strides = [1, 1]} : vector<48x256xf32> to vector<16x256xf32>
    %45 = vector.shape_cast %44 : vector<16x256xf32> to vector<2x8x256xf32>
    "tpu.trace_start"() <{level = 10 : i32, message = "hdq,hdk->hqk"}> : () -> ()
    %cst_24 = arith.constant dense<0.000000e+00> : vector<2x256x256xf32>
    %46 = tpu.matmul %41, %43, %cst_24 {dimension_numbers = #tpu.dot_dimension_numbers<[1], [1], [2], [2], [0, 0, 0, 2, 1, 2], [0], [0]>} : vector<2x8x256xf32>, vector<2x8x256xf32>, vector<2x256x256xf32> -> vector<2x256x256xf32>
    "tpu.trace_stop"() : () -> ()
    %cst_25 = arith.constant dense<0xFF800000> : vector<2x256xf32>
    %47 = vector.multi_reduction <maximumf>, %46, %cst_25 [2] : vector<2x256x256xf32> to vector<2x256xf32>
    %48 = vector.shape_cast %47 : vector<2x256xf32> to vector<2x256x1xf32>
    %49 = vector.broadcast %48 : vector<2x256x1xf32> to vector<2x256x256xf32>
    %50 = arith.subf %46, %49 : vector<2x256x256xf32>
    %51 = math.exp %50 : vector<2x256x256xf32>
    %cst_26 = arith.constant dense<0.000000e+00> : vector<2x256xf32>
    %52 = vector.multi_reduction <add>, %51, %cst_26 [2] : vector<2x256x256xf32> to vector<2x256xf32>
    %53 = vector.shape_cast %52 : vector<2x256xf32> to vector<2x256x1xf32>
    %54 = tpu.reciprocal %53 {approx = true} : vector<2x256x1xf32> -> vector<2x256x1xf32>
    %55 = vector.broadcast %54 : vector<2x256x1xf32> to vector<2x256x256xf32>
    %56 = arith.mulf %51, %55 : vector<2x256x256xf32>
    "tpu.trace_start"() <{level = 10 : i32, message = "hdk,hqk->hdq"}> : () -> ()
    %cst_27 = arith.constant dense<0.000000e+00> : vector<2x8x256xf32>
    %57 = tpu.matmul %45, %56, %cst_27 {dimension_numbers = #tpu.dot_dimension_numbers<[2], [2], [1], [1], [0, 0, 0, 1, 1, 1], [0], [0]>} : vector<2x8x256xf32>, vector<2x256x256xf32>, vector<2x8x256xf32> -> vector<2x8x256xf32>
    "tpu.trace_stop"() : () -> ()
    %58 = vector.shape_cast %57 : vector<2x8x256xf32> to vector<16x256xf32>
    %cst_28 = arith.constant dense<0.000000e+00> : vector<4x256xf32>
    %59 = tpu.matmul %2, %58, %cst_28 {dimension_numbers = #tpu.dot_dimension_numbers<[1], [0], [0], [1], [0, 0, 1, 1], [], []>} : vector<4x16xf32>, vector<16x256xf32>, vector<4x256xf32> -> vector<4x256xf32>
    %60 = vector.broadcast %3 : vector<4x1xf32> to vector<4x256xf32>
    %61 = arith.addf %59, %60 : vector<4x256xf32>
    %62 = arith.addf %61, %36 : vector<4x256xf32>
    %c0_29 = arith.constant 0 : index
    %c1_30 = arith.constant 1 : index
    %c0_31 = arith.constant 0 : index
    %c0_32 = arith.constant 0 : index
    %63 = vector.load %arg6[%c0_29, %c1_30, %c0_31, %c0_32] : memref<1x4x4x256xf32, #tpu.memory_space<vmem>>, vector<1x1x4x256xf32>
    %64 = vector.shape_cast %63 : vector<1x1x4x256xf32> to vector<4x256xf32>
    %65 = vector.shape_cast %62 : vector<4x256xf32> to vector<1x1x4x256xf32>
    tpu.vector_store %arg6[%c0_29, %c1_30, %c0_31, %c0_32], %65 {strides = array<i32>} : memref<1x4x4x256xf32, #tpu.memory_space<vmem>>, vector<1x1x4x256xf32>,
    %c0_33 = arith.constant 0 : index
    %c2 = arith.constant 2 : index
    %c0_34 = arith.constant 0 : index
    %c0_35 = arith.constant 0 : index
    %66 = vector.load %arg1[%c0_33, %c2, %c0_34, %c0_35] : memref<1x4x4x256xf32, #tpu.memory_space<vmem>>, vector<1x1x4x256xf32>
    %67 = vector.shape_cast %66 : vector<1x1x4x256xf32> to vector<4x256xf32>
    %cst_36 = arith.constant dense<0.000000e+00> : vector<48x256xf32>
    %68 = tpu.matmul %0, %67, %cst_36 {dimension_numbers = #tpu.dot_dimension_numbers<[1], [0], [0], [1], [0, 0, 1, 1], [], []>} : vector<48x4xf32>, vector<4x256xf32>, vector<48x256xf32> -> vector<48x256xf32>
    %69 = vector.broadcast %1 : vector<48x1xf32> to vector<48x256xf32>
    %70 = arith.addf %68, %69 : vector<48x256xf32>
    %71 = vector.extract_strided_slice %70 {offsets = [0, 0], sizes = [16, 256], strides = [1, 1]} : vector<48x256xf32> to vector<16x256xf32>
    %72 = vector.shape_cast %71 : vector<16x256xf32> to vector<2x8x256xf32>
    %73 = vector.extract_strided_slice %70 {offsets = [16, 0], sizes = [16, 256], strides = [1, 1]} : vector<48x256xf32> to vector<16x256xf32>
    %74 = vector.shape_cast %73 : vector<16x256xf32> to vector<2x8x256xf32>
    %75 = vector.extract_strided_slice %70 {offsets = [32, 0], sizes = [16, 256], strides = [1, 1]} : vector<48x256xf32> to vector<16x256xf32>
    %76 = vector.shape_cast %75 : vector<16x256xf32> to vector<2x8x256xf32>
    "tpu.trace_start"() <{level = 10 : i32, message = "hdq,hdk->hqk"}> : () -> ()
    %cst_37 = arith.constant dense<0.000000e+00> : vector<2x256x256xf32>
    %77 = tpu.matmul %72, %74, %cst_37 {dimension_numbers = #tpu.dot_dimension_numbers<[1], [1], [2], [2], [0, 0, 0, 2, 1, 2], [0], [0]>} : vector<2x8x256xf32>, vector<2x8x256xf32>, vector<2x256x256xf32> -> vector<2x256x256xf32>
    "tpu.trace_stop"() : () -> ()
    %cst_38 = arith.constant dense<0xFF800000> : vector<2x256xf32>
    %78 = vector.multi_reduction <maximumf>, %77, %cst_38 [2] : vector<2x256x256xf32> to vector<2x256xf32>
    %79 = vector.shape_cast %78 : vector<2x256xf32> to vector<2x256x1xf32>
    %80 = vector.broadcast %79 : vector<2x256x1xf32> to vector<2x256x256xf32>
    %81 = arith.subf %77, %80 : vector<2x256x256xf32>
    %82 = math.exp %81 : vector<2x256x256xf32>
    %cst_39 = arith.constant dense<0.000000e+00> : vector<2x256xf32>
    %83 = vector.multi_reduction <add>, %82, %cst_39 [2] : vector<2x256x256xf32> to vector<2x256xf32>
    %84 = vector.shape_cast %83 : vector<2x256xf32> to vector<2x256x1xf32>
    %85 = tpu.reciprocal %84 {approx = true} : vector<2x256x1xf32> -> vector<2x256x1xf32>
    %86 = vector.broadcast %85 : vector<2x256x1xf32> to vector<2x256x256xf32>
    %87 = arith.mulf %82, %86 : vector<2x256x256xf32>
    "tpu.trace_start"() <{level = 10 : i32, message = "hdk,hqk->hdq"}> : () -> ()
    %cst_40 = arith.constant dense<0.000000e+00> : vector<2x8x256xf32>
    %88 = tpu.matmul %76, %87, %cst_40 {dimension_numbers = #tpu.dot_dimension_numbers<[2], [2], [1], [1], [0, 0, 0, 1, 1, 1], [0], [0]>} : vector<2x8x256xf32>, vector<2x256x256xf32>, vector<2x8x256xf32> -> vector<2x8x256xf32>
    "tpu.trace_stop"() : () -> ()
    %89 = vector.shape_cast %88 : vector<2x8x256xf32> to vector<16x256xf32>
    %cst_41 = arith.constant dense<0.000000e+00> : vector<4x256xf32>
    %90 = tpu.matmul %2, %89, %cst_41 {dimension_numbers = #tpu.dot_dimension_numbers<[1], [0], [0], [1], [0, 0, 1, 1], [], []>} : vector<4x16xf32>, vector<16x256xf32>, vector<4x256xf32> -> vector<4x256xf32>
    %91 = vector.broadcast %3 : vector<4x1xf32> to vector<4x256xf32>
    %92 = arith.addf %90, %91 : vector<4x256xf32>
    %93 = arith.addf %92, %67 : vector<4x256xf32>
    %c0_42 = arith.constant 0 : index
    %c2_43 = arith.constant 2 : index
    %c0_44 = arith.constant 0 : index
    %c0_45 = arith.constant 0 : index
    %94 = vector.load %arg6[%c0_42, %c2_43, %c0_44, %c0_45] : memref<1x4x4x256xf32, #tpu.memory_space<vmem>>, vector<1x1x4x256xf32>
    %95 = vector.shape_cast %94 : vector<1x1x4x256xf32> to vector<4x256xf32>
    %96 = vector.shape_cast %93 : vector<4x256xf32> to vector<1x1x4x256xf32>
    tpu.vector_store %arg6[%c0_42, %c2_43, %c0_44, %c0_45], %96 {strides = array<i32>} : memref<1x4x4x256xf32, #tpu.memory_space<vmem>>, vector<1x1x4x256xf32>,
    %c0_46 = arith.constant 0 : index
    %c3 = arith.constant 3 : index
    %c0_47 = arith.constant 0 : index
    %c0_48 = arith.constant 0 : index
    %97 = vector.load %arg1[%c0_46, %c3, %c0_47, %c0_48] : memref<1x4x4x256xf32, #tpu.memory_space<vmem>>, vector<1x1x4x256xf32>
    %98 = vector.shape_cast %97 : vector<1x1x4x256xf32> to vector<4x256xf32>
    %cst_49 = arith.constant dense<0.000000e+00> : vector<48x256xf32>
    %99 = tpu.matmul %0, %98, %cst_49 {dimension_numbers = #tpu.dot_dimension_numbers<[1], [0], [0], [1], [0, 0, 1, 1], [], []>} : vector<48x4xf32>, vector<4x256xf32>, vector<48x256xf32> -> vector<48x256xf32>
    %100 = vector.broadcast %1 : vector<48x1xf32> to vector<48x256xf32>
    %101 = arith.addf %99, %100 : vector<48x256xf32>
    %102 = vector.extract_strided_slice %101 {offsets = [0, 0], sizes = [16, 256], strides = [1, 1]} : vector<48x256xf32> to vector<16x256xf32>
    %103 = vector.shape_cast %102 : vector<16x256xf32> to vector<2x8x256xf32>
    %104 = vector.extract_strided_slice %101 {offsets = [16, 0], sizes = [16, 256], strides = [1, 1]} : vector<48x256xf32> to vector<16x256xf32>
    %105 = vector.shape_cast %104 : vector<16x256xf32> to vector<2x8x256xf32>
    %106 = vector.extract_strided_slice %101 {offsets = [32, 0], sizes = [16, 256], strides = [1, 1]} : vector<48x256xf32> to vector<16x256xf32>
    %107 = vector.shape_cast %106 : vector<16x256xf32> to vector<2x8x256xf32>
    "tpu.trace_start"() <{level = 10 : i32, message = "hdq,hdk->hqk"}> : () -> ()
    %cst_50 = arith.constant dense<0.000000e+00> : vector<2x256x256xf32>
    %108 = tpu.matmul %103, %105, %cst_50 {dimension_numbers = #tpu.dot_dimension_numbers<[1], [1], [2], [2], [0, 0, 0, 2, 1, 2], [0], [0]>} : vector<2x8x256xf32>, vector<2x8x256xf32>, vector<2x256x256xf32> -> vector<2x256x256xf32>
    "tpu.trace_stop"() : () -> ()
    %cst_51 = arith.constant dense<0xFF800000> : vector<2x256xf32>
    %109 = vector.multi_reduction <maximumf>, %108, %cst_51 [2] : vector<2x256x256xf32> to vector<2x256xf32>
    %110 = vector.shape_cast %109 : vector<2x256xf32> to vector<2x256x1xf32>
    %111 = vector.broadcast %110 : vector<2x256x1xf32> to vector<2x256x256xf32>
    %112 = arith.subf %108, %111 : vector<2x256x256xf32>
    %113 = math.exp %112 : vector<2x256x256xf32>
    %cst_52 = arith.constant dense<0.000000e+00> : vector<2x256xf32>
    %114 = vector.multi_reduction <add>, %113, %cst_52 [2] : vector<2x256x256xf32> to vector<2x256xf32>
    %115 = vector.shape_cast %114 : vector<2x256xf32> to vector<2x256x1xf32>
    %116 = tpu.reciprocal %115 {approx = true} : vector<2x256x1xf32> -> vector<2x256x1xf32>
    %117 = vector.broadcast %116 : vector<2x256x1xf32> to vector<2x256x256xf32>
    %118 = arith.mulf %113, %117 : vector<2x256x256xf32>
    "tpu.trace_start"() <{level = 10 : i32, message = "hdk,hqk->hdq"}> : () -> ()
    %cst_53 = arith.constant dense<0.000000e+00> : vector<2x8x256xf32>
    %119 = tpu.matmul %107, %118, %cst_53 {dimension_numbers = #tpu.dot_dimension_numbers<[2], [2], [1], [1], [0, 0, 0, 1, 1, 1], [0], [0]>} : vector<2x8x256xf32>, vector<2x256x256xf32>, vector<2x8x256xf32> -> vector<2x8x256xf32>
    "tpu.trace_stop"() : () -> ()
    %120 = vector.shape_cast %119 : vector<2x8x256xf32> to vector<16x256xf32>
    %cst_54 = arith.constant dense<0.000000e+00> : vector<4x256xf32>
    %121 = tpu.matmul %2, %120, %cst_54 {dimension_numbers = #tpu.dot_dimension_numbers<[1], [0], [0], [1], [0, 0, 1, 1], [], []>} : vector<4x16xf32>, vector<16x256xf32>, vector<4x256xf32> -> vector<4x256xf32>
    %122 = vector.broadcast %3 : vector<4x1xf32> to vector<4x256xf32>
    %123 = arith.addf %121, %122 : vector<4x256xf32>
    %124 = arith.addf %123, %98 : vector<4x256xf32>
    %c0_55 = arith.constant 0 : index
    %c3_56 = arith.constant 3 : index
    %c0_57 = arith.constant 0 : index
    %c0_58 = arith.constant 0 : index
    %125 = vector.load %arg6[%c0_55, %c3_56, %c0_57, %c0_58] : memref<1x4x4x256xf32, #tpu.memory_space<vmem>>, vector<1x1x4x256xf32>
    %126 = vector.shape_cast %125 : vector<1x1x4x256xf32> to vector<4x256xf32>
    %127 = vector.shape_cast %124 : vector<4x256xf32> to vector<1x1x4x256xf32>
    tpu.vector_store %arg6[%c0_55, %c3_56, %c0_57, %c0_58], %127 {strides = array<i32>} : memref<1x4x4x256xf32, #tpu.memory_space<vmem>>, vector<1x1x4x256xf32>,
    return
  }
  func.func @transform_0(%arg0: i32) -> (i32, i32, i32, i32) {
    %c0_i32 = arith.constant 0 : i32
    %c0_i32_0 = arith.constant 0 : i32
    %c0_i32_1 = arith.constant 0 : i32
    %c0_i32_2 = arith.constant 0 : i32
    return %arg0, %c0_i32, %c0_i32_0, %c0_i32_1 : i32, i32, i32, i32
  }
  func.func @transform_1(%arg0: i32) -> (i32, i32) {
    %c0_i32 = arith.constant 0 : i32
    %c0_i32_0 = arith.constant 0 : i32
    %c0_i32_1 = arith.constant 0 : i32
    return %c0_i32, %c0_i32_0 : i32, i32
  }
  func.func @transform_2(%arg0: i32) -> (i32, i32) {
    %c0_i32 = arith.constant 0 : i32
    %c0_i32_0 = arith.constant 0 : i32
    %c0_i32_1 = arith.constant 0 : i32
    return %c0_i32, %c0_i32_0 : i32, i32
  }
  func.func @transform_3(%arg0: i32) -> (i32, i32) {
    %c0_i32 = arith.constant 0 : i32
    %c0_i32_0 = arith.constant 0 : i32
    %c0_i32_1 = arith.constant 0 : i32
    return %c0_i32, %c0_i32_0 : i32, i32
  }
  func.func @transform_4(%arg0: i32) -> (i32, i32) {
    %c0_i32 = arith.constant 0 : i32
    %c0_i32_0 = arith.constant 0 : i32
    %c0_i32_1 = arith.constant 0 : i32
    return %c0_i32, %c0_i32_0 : i32, i32
  }
  func.func @transform_5(%arg0: i32) -> (i32, i32, i32, i32) {
    %c0_i32 = arith.constant 0 : i32
    %c0_i32_0 = arith.constant 0 : i32
    %c0_i32_1 = arith.constant 0 : i32
    %c0_i32_2 = arith.constant 0 : i32
    return %arg0, %c0_i32, %c0_i32_0, %c0_i32_1 : i32, i32, i32, i32
  }
}

module attributes {stable_mosaic.version = 11 : i64} {
  func.func @_conv_fuse_kernel(%arg0: i32, %arg1: memref<1x4x4x9x9x4xf32, #tpu.memory_space<vmem>>, %arg2: memref<4x36x16xf32, #tpu.memory_space<vmem>>, %arg3: memref<8x1xf32, #tpu.memory_space<vmem>>, %arg4: memref<4x8x64xf32, #tpu.memory_space<vmem>>, %arg5: memref<1x4x8x64xf32, #tpu.memory_space<vmem>>) attributes {dimension_semantics = [#tpu.dimension_semantics<parallel>], iteration_bounds = array<i64: 2>, scalar_prefetch = 0 : i64, scratch_operands = 0 : i64, tpu.core_type = #tpu.core_type<tc>, window_params = [{transform_indices = @transform_0, window_bounds = array<i64: 1, 4, 4, 9, 9, 4>}, {pipeline_mode = #tpu.pipeline_mode<synchronous>, transform_indices = @transform_1, window_bounds = array<i64: 4, 36, 16>}, {pipeline_mode = #tpu.pipeline_mode<synchronous>, transform_indices = @transform_2, window_bounds = array<i64: 8, 1>}, {pipeline_mode = #tpu.pipeline_mode<synchronous>, transform_indices = @transform_3, window_bounds = array<i64: 4, 8, 64>}, {transform_indices = @transform_4, window_bounds = array<i64: 1, 4, 8, 64>}]} {
    %c0 = arith.constant 0 : index
    %c0_0 = arith.constant 0 : index
    %0 = vector.load %arg3[%c0, %c0_0] : memref<8x1xf32, #tpu.memory_space<vmem>>, vector<8x1xf32>
    %c0_1 = arith.constant 0 : index
    %c0_2 = arith.constant 0 : index
    %c0_3 = arith.constant 0 : index
    %c0_4 = arith.constant 0 : index
    %c0_5 = arith.constant 0 : index
    %c0_6 = arith.constant 0 : index
    %1 = vector.load %arg1[%c0_1, %c0_2, %c0_3, %c0_4, %c0_5, %c0_6] : memref<1x4x4x9x9x4xf32, #tpu.memory_space<vmem>>, vector<1x1x4x9x9x4xf32>
    %2 = vector.shape_cast %1 : vector<1x1x4x9x9x4xf32> to vector<4x9x9x4xf32>
    %3 = vector.extract_strided_slice %2 {offsets = [0, 0, 0, 0], sizes = [1, 8, 8, 4], strides = [1, 1, 1, 1]} : vector<4x9x9x4xf32> to vector<1x8x8x4xf32>
    %4 = vector.shape_cast %3 : vector<1x8x8x4xf32> to vector<8x8x4xf32>
    %5 = vector.shape_cast %4 : vector<8x8x4xf32> to vector<64x4xf32>
    %6 = vector.extract_strided_slice %2 {offsets = [1, 0, 0, 0], sizes = [1, 8, 8, 4], strides = [1, 1, 1, 1]} : vector<4x9x9x4xf32> to vector<1x8x8x4xf32>
    %7 = vector.shape_cast %6 : vector<1x8x8x4xf32> to vector<8x8x4xf32>
    %8 = vector.shape_cast %7 : vector<8x8x4xf32> to vector<64x4xf32>
    %9 = vector.extract_strided_slice %2 {offsets = [0, 0, 1, 0], sizes = [1, 8, 8, 4], strides = [1, 1, 1, 1]} : vector<4x9x9x4xf32> to vector<1x8x8x4xf32>
    %10 = vector.shape_cast %9 : vector<1x8x8x4xf32> to vector<8x8x4xf32>
    %11 = vector.shape_cast %10 : vector<8x8x4xf32> to vector<64x4xf32>
    %12 = vector.extract_strided_slice %2 {offsets = [2, 0, 0, 0], sizes = [1, 8, 8, 4], strides = [1, 1, 1, 1]} : vector<4x9x9x4xf32> to vector<1x8x8x4xf32>
    %13 = vector.shape_cast %12 : vector<1x8x8x4xf32> to vector<8x8x4xf32>
    %14 = vector.shape_cast %13 : vector<8x8x4xf32> to vector<64x4xf32>
    %15 = vector.extract_strided_slice %2 {offsets = [3, 0, 0, 0], sizes = [1, 8, 8, 4], strides = [1, 1, 1, 1]} : vector<4x9x9x4xf32> to vector<1x8x8x4xf32>
    %16 = vector.shape_cast %15 : vector<1x8x8x4xf32> to vector<8x8x4xf32>
    %17 = vector.shape_cast %16 : vector<8x8x4xf32> to vector<64x4xf32>
    %18 = vector.extract_strided_slice %2 {offsets = [2, 0, 1, 0], sizes = [1, 8, 8, 4], strides = [1, 1, 1, 1]} : vector<4x9x9x4xf32> to vector<1x8x8x4xf32>
    %19 = vector.shape_cast %18 : vector<1x8x8x4xf32> to vector<8x8x4xf32>
    %20 = vector.shape_cast %19 : vector<8x8x4xf32> to vector<64x4xf32>
    %21 = vector.extract_strided_slice %2 {offsets = [0, 1, 0, 0], sizes = [1, 8, 8, 4], strides = [1, 1, 1, 1]} : vector<4x9x9x4xf32> to vector<1x8x8x4xf32>
    %22 = vector.shape_cast %21 : vector<1x8x8x4xf32> to vector<8x8x4xf32>
    %23 = vector.shape_cast %22 : vector<8x8x4xf32> to vector<64x4xf32>
    %24 = vector.extract_strided_slice %2 {offsets = [1, 1, 0, 0], sizes = [1, 8, 8, 4], strides = [1, 1, 1, 1]} : vector<4x9x9x4xf32> to vector<1x8x8x4xf32>
    %25 = vector.shape_cast %24 : vector<1x8x8x4xf32> to vector<8x8x4xf32>
    %26 = vector.shape_cast %25 : vector<8x8x4xf32> to vector<64x4xf32>
    %27 = vector.extract_strided_slice %2 {offsets = [0, 1, 1, 0], sizes = [1, 8, 8, 4], strides = [1, 1, 1, 1]} : vector<4x9x9x4xf32> to vector<1x8x8x4xf32>
    %28 = vector.shape_cast %27 : vector<1x8x8x4xf32> to vector<8x8x4xf32>
    %29 = vector.shape_cast %28 : vector<8x8x4xf32> to vector<64x4xf32>
    %30 = tpu.concatenate %5, %8, %11, %14, %17, %20, %23, %26, %29 in 1 : vector<64x4xf32>, vector<64x4xf32>, vector<64x4xf32>, vector<64x4xf32>, vector<64x4xf32>, vector<64x4xf32>, vector<64x4xf32>, vector<64x4xf32>, vector<64x4xf32> -> vector<64x36xf32>
    %c0_7 = arith.constant 0 : index
    %c0_8 = arith.constant 0 : index
    %c0_9 = arith.constant 0 : index
    %31 = vector.load %arg2[%c0_7, %c0_8, %c0_9] : memref<4x36x16xf32, #tpu.memory_space<vmem>>, vector<1x36x16xf32>
    %32 = vector.shape_cast %31 : vector<1x36x16xf32> to vector<36x16xf32>
    %cst = arith.constant dense<0.000000e+00> : vector<64x16xf32>
    %33 = tpu.matmul %30, %32, %cst {dimension_numbers = #tpu.dot_dimension_numbers<[1], [0], [0], [1], [0, 0, 1, 1], [], []>} : vector<64x36xf32>, vector<36x16xf32>, vector<64x16xf32> -> vector<64x16xf32>
    %34 = tpu.transpose %33, [1, 0] : vector<64x16xf32> -> vector<16x64xf32>
    %35 = vector.extract_strided_slice %34 {offsets = [0, 0], sizes = [8, 64], strides = [1, 1]} : vector<16x64xf32> to vector<8x64xf32>
    %36 = vector.broadcast %0 : vector<8x1xf32> to vector<8x64xf32>
    %37 = arith.addf %35, %36 : vector<8x64xf32>
    %cst_10 = arith.constant 0.000000e+00 : f32
    %38 = vector.broadcast %cst_10 : f32 to vector<8x64xf32>
    %39 = arith.maximumf %37, %38 : vector<8x64xf32>
    %40 = vector.extract_strided_slice %34 {offsets = [8, 0], sizes = [8, 64], strides = [1, 1]} : vector<16x64xf32> to vector<8x64xf32>
    %c0_11 = arith.constant 0 : index
    %c0_12 = arith.constant 0 : index
    %c0_13 = arith.constant 0 : index
    %41 = vector.load %arg4[%c0_11, %c0_12, %c0_13] : memref<4x8x64xf32, #tpu.memory_space<vmem>>, vector<1x8x64xf32>
    %42 = vector.shape_cast %41 : vector<1x8x64xf32> to vector<8x64xf32>
    %43 = arith.addf %40, %42 : vector<8x64xf32>
    %44 = arith.addf %39, %43 : vector<8x64xf32>
    %c0_14 = arith.constant 0 : index
    %c0_15 = arith.constant 0 : index
    %c0_16 = arith.constant 0 : index
    %c0_17 = arith.constant 0 : index
    %45 = vector.load %arg5[%c0_14, %c0_15, %c0_16, %c0_17] : memref<1x4x8x64xf32, #tpu.memory_space<vmem>>, vector<1x1x8x64xf32>
    %46 = vector.shape_cast %45 : vector<1x1x8x64xf32> to vector<8x64xf32>
    %47 = vector.shape_cast %44 : vector<8x64xf32> to vector<1x1x8x64xf32>
    tpu.vector_store %arg5[%c0_14, %c0_15, %c0_16, %c0_17], %47 {strides = array<i32>} : memref<1x4x8x64xf32, #tpu.memory_space<vmem>>, vector<1x1x8x64xf32>,
    %c0_18 = arith.constant 0 : index
    %c1 = arith.constant 1 : index
    %c0_19 = arith.constant 0 : index
    %c0_20 = arith.constant 0 : index
    %c0_21 = arith.constant 0 : index
    %c0_22 = arith.constant 0 : index
    %48 = vector.load %arg1[%c0_18, %c1, %c0_19, %c0_20, %c0_21, %c0_22] : memref<1x4x4x9x9x4xf32, #tpu.memory_space<vmem>>, vector<1x1x4x9x9x4xf32>
    %49 = vector.shape_cast %48 : vector<1x1x4x9x9x4xf32> to vector<4x9x9x4xf32>
    %50 = vector.extract_strided_slice %49 {offsets = [0, 0, 0, 0], sizes = [1, 8, 8, 4], strides = [1, 1, 1, 1]} : vector<4x9x9x4xf32> to vector<1x8x8x4xf32>
    %51 = vector.shape_cast %50 : vector<1x8x8x4xf32> to vector<8x8x4xf32>
    %52 = vector.shape_cast %51 : vector<8x8x4xf32> to vector<64x4xf32>
    %53 = vector.extract_strided_slice %49 {offsets = [1, 0, 0, 0], sizes = [1, 8, 8, 4], strides = [1, 1, 1, 1]} : vector<4x9x9x4xf32> to vector<1x8x8x4xf32>
    %54 = vector.shape_cast %53 : vector<1x8x8x4xf32> to vector<8x8x4xf32>
    %55 = vector.shape_cast %54 : vector<8x8x4xf32> to vector<64x4xf32>
    %56 = vector.extract_strided_slice %49 {offsets = [0, 0, 1, 0], sizes = [1, 8, 8, 4], strides = [1, 1, 1, 1]} : vector<4x9x9x4xf32> to vector<1x8x8x4xf32>
    %57 = vector.shape_cast %56 : vector<1x8x8x4xf32> to vector<8x8x4xf32>
    %58 = vector.shape_cast %57 : vector<8x8x4xf32> to vector<64x4xf32>
    %59 = vector.extract_strided_slice %49 {offsets = [2, 0, 0, 0], sizes = [1, 8, 8, 4], strides = [1, 1, 1, 1]} : vector<4x9x9x4xf32> to vector<1x8x8x4xf32>
    %60 = vector.shape_cast %59 : vector<1x8x8x4xf32> to vector<8x8x4xf32>
    %61 = vector.shape_cast %60 : vector<8x8x4xf32> to vector<64x4xf32>
    %62 = vector.extract_strided_slice %49 {offsets = [3, 0, 0, 0], sizes = [1, 8, 8, 4], strides = [1, 1, 1, 1]} : vector<4x9x9x4xf32> to vector<1x8x8x4xf32>
    %63 = vector.shape_cast %62 : vector<1x8x8x4xf32> to vector<8x8x4xf32>
    %64 = vector.shape_cast %63 : vector<8x8x4xf32> to vector<64x4xf32>
    %65 = vector.extract_strided_slice %49 {offsets = [2, 0, 1, 0], sizes = [1, 8, 8, 4], strides = [1, 1, 1, 1]} : vector<4x9x9x4xf32> to vector<1x8x8x4xf32>
    %66 = vector.shape_cast %65 : vector<1x8x8x4xf32> to vector<8x8x4xf32>
    %67 = vector.shape_cast %66 : vector<8x8x4xf32> to vector<64x4xf32>
    %68 = vector.extract_strided_slice %49 {offsets = [0, 1, 0, 0], sizes = [1, 8, 8, 4], strides = [1, 1, 1, 1]} : vector<4x9x9x4xf32> to vector<1x8x8x4xf32>
    %69 = vector.shape_cast %68 : vector<1x8x8x4xf32> to vector<8x8x4xf32>
    %70 = vector.shape_cast %69 : vector<8x8x4xf32> to vector<64x4xf32>
    %71 = vector.extract_strided_slice %49 {offsets = [1, 1, 0, 0], sizes = [1, 8, 8, 4], strides = [1, 1, 1, 1]} : vector<4x9x9x4xf32> to vector<1x8x8x4xf32>
    %72 = vector.shape_cast %71 : vector<1x8x8x4xf32> to vector<8x8x4xf32>
    %73 = vector.shape_cast %72 : vector<8x8x4xf32> to vector<64x4xf32>
    %74 = vector.extract_strided_slice %49 {offsets = [0, 1, 1, 0], sizes = [1, 8, 8, 4], strides = [1, 1, 1, 1]} : vector<4x9x9x4xf32> to vector<1x8x8x4xf32>
    %75 = vector.shape_cast %74 : vector<1x8x8x4xf32> to vector<8x8x4xf32>
    %76 = vector.shape_cast %75 : vector<8x8x4xf32> to vector<64x4xf32>
    %77 = tpu.concatenate %52, %55, %58, %61, %64, %67, %70, %73, %76 in 1 : vector<64x4xf32>, vector<64x4xf32>, vector<64x4xf32>, vector<64x4xf32>, vector<64x4xf32>, vector<64x4xf32>, vector<64x4xf32>, vector<64x4xf32>, vector<64x4xf32> -> vector<64x36xf32>
    %c1_23 = arith.constant 1 : index
    %c0_24 = arith.constant 0 : index
    %c0_25 = arith.constant 0 : index
    %78 = vector.load %arg2[%c1_23, %c0_24, %c0_25] : memref<4x36x16xf32, #tpu.memory_space<vmem>>, vector<1x36x16xf32>
    %79 = vector.shape_cast %78 : vector<1x36x16xf32> to vector<36x16xf32>
    %cst_26 = arith.constant dense<0.000000e+00> : vector<64x16xf32>
    %80 = tpu.matmul %77, %79, %cst_26 {dimension_numbers = #tpu.dot_dimension_numbers<[1], [0], [0], [1], [0, 0, 1, 1], [], []>} : vector<64x36xf32>, vector<36x16xf32>, vector<64x16xf32> -> vector<64x16xf32>
    %81 = tpu.transpose %80, [1, 0] : vector<64x16xf32> -> vector<16x64xf32>
    %82 = vector.extract_strided_slice %81 {offsets = [0, 0], sizes = [8, 64], strides = [1, 1]} : vector<16x64xf32> to vector<8x64xf32>
    %83 = vector.broadcast %0 : vector<8x1xf32> to vector<8x64xf32>
    %84 = arith.addf %82, %83 : vector<8x64xf32>
    %cst_27 = arith.constant 0.000000e+00 : f32
    %85 = vector.broadcast %cst_27 : f32 to vector<8x64xf32>
    %86 = arith.maximumf %84, %85 : vector<8x64xf32>
    %87 = vector.extract_strided_slice %81 {offsets = [8, 0], sizes = [8, 64], strides = [1, 1]} : vector<16x64xf32> to vector<8x64xf32>
    %c1_28 = arith.constant 1 : index
    %c0_29 = arith.constant 0 : index
    %c0_30 = arith.constant 0 : index
    %88 = vector.load %arg4[%c1_28, %c0_29, %c0_30] : memref<4x8x64xf32, #tpu.memory_space<vmem>>, vector<1x8x64xf32>
    %89 = vector.shape_cast %88 : vector<1x8x64xf32> to vector<8x64xf32>
    %90 = arith.addf %87, %89 : vector<8x64xf32>
    %91 = arith.addf %86, %90 : vector<8x64xf32>
    %c0_31 = arith.constant 0 : index
    %c1_32 = arith.constant 1 : index
    %c0_33 = arith.constant 0 : index
    %c0_34 = arith.constant 0 : index
    %92 = vector.load %arg5[%c0_31, %c1_32, %c0_33, %c0_34] : memref<1x4x8x64xf32, #tpu.memory_space<vmem>>, vector<1x1x8x64xf32>
    %93 = vector.shape_cast %92 : vector<1x1x8x64xf32> to vector<8x64xf32>
    %94 = vector.shape_cast %91 : vector<8x64xf32> to vector<1x1x8x64xf32>
    tpu.vector_store %arg5[%c0_31, %c1_32, %c0_33, %c0_34], %94 {strides = array<i32>} : memref<1x4x8x64xf32, #tpu.memory_space<vmem>>, vector<1x1x8x64xf32>,
    %c0_35 = arith.constant 0 : index
    %c2 = arith.constant 2 : index
    %c0_36 = arith.constant 0 : index
    %c0_37 = arith.constant 0 : index
    %c0_38 = arith.constant 0 : index
    %c0_39 = arith.constant 0 : index
    %95 = vector.load %arg1[%c0_35, %c2, %c0_36, %c0_37, %c0_38, %c0_39] : memref<1x4x4x9x9x4xf32, #tpu.memory_space<vmem>>, vector<1x1x4x9x9x4xf32>
    %96 = vector.shape_cast %95 : vector<1x1x4x9x9x4xf32> to vector<4x9x9x4xf32>
    %97 = vector.extract_strided_slice %96 {offsets = [0, 0, 0, 0], sizes = [1, 8, 8, 4], strides = [1, 1, 1, 1]} : vector<4x9x9x4xf32> to vector<1x8x8x4xf32>
    %98 = vector.shape_cast %97 : vector<1x8x8x4xf32> to vector<8x8x4xf32>
    %99 = vector.shape_cast %98 : vector<8x8x4xf32> to vector<64x4xf32>
    %100 = vector.extract_strided_slice %96 {offsets = [1, 0, 0, 0], sizes = [1, 8, 8, 4], strides = [1, 1, 1, 1]} : vector<4x9x9x4xf32> to vector<1x8x8x4xf32>
    %101 = vector.shape_cast %100 : vector<1x8x8x4xf32> to vector<8x8x4xf32>
    %102 = vector.shape_cast %101 : vector<8x8x4xf32> to vector<64x4xf32>
    %103 = vector.extract_strided_slice %96 {offsets = [0, 0, 1, 0], sizes = [1, 8, 8, 4], strides = [1, 1, 1, 1]} : vector<4x9x9x4xf32> to vector<1x8x8x4xf32>
    %104 = vector.shape_cast %103 : vector<1x8x8x4xf32> to vector<8x8x4xf32>
    %105 = vector.shape_cast %104 : vector<8x8x4xf32> to vector<64x4xf32>
    %106 = vector.extract_strided_slice %96 {offsets = [2, 0, 0, 0], sizes = [1, 8, 8, 4], strides = [1, 1, 1, 1]} : vector<4x9x9x4xf32> to vector<1x8x8x4xf32>
    %107 = vector.shape_cast %106 : vector<1x8x8x4xf32> to vector<8x8x4xf32>
    %108 = vector.shape_cast %107 : vector<8x8x4xf32> to vector<64x4xf32>
    %109 = vector.extract_strided_slice %96 {offsets = [3, 0, 0, 0], sizes = [1, 8, 8, 4], strides = [1, 1, 1, 1]} : vector<4x9x9x4xf32> to vector<1x8x8x4xf32>
    %110 = vector.shape_cast %109 : vector<1x8x8x4xf32> to vector<8x8x4xf32>
    %111 = vector.shape_cast %110 : vector<8x8x4xf32> to vector<64x4xf32>
    %112 = vector.extract_strided_slice %96 {offsets = [2, 0, 1, 0], sizes = [1, 8, 8, 4], strides = [1, 1, 1, 1]} : vector<4x9x9x4xf32> to vector<1x8x8x4xf32>
    %113 = vector.shape_cast %112 : vector<1x8x8x4xf32> to vector<8x8x4xf32>
    %114 = vector.shape_cast %113 : vector<8x8x4xf32> to vector<64x4xf32>
    %115 = vector.extract_strided_slice %96 {offsets = [0, 1, 0, 0], sizes = [1, 8, 8, 4], strides = [1, 1, 1, 1]} : vector<4x9x9x4xf32> to vector<1x8x8x4xf32>
    %116 = vector.shape_cast %115 : vector<1x8x8x4xf32> to vector<8x8x4xf32>
    %117 = vector.shape_cast %116 : vector<8x8x4xf32> to vector<64x4xf32>
    %118 = vector.extract_strided_slice %96 {offsets = [1, 1, 0, 0], sizes = [1, 8, 8, 4], strides = [1, 1, 1, 1]} : vector<4x9x9x4xf32> to vector<1x8x8x4xf32>
    %119 = vector.shape_cast %118 : vector<1x8x8x4xf32> to vector<8x8x4xf32>
    %120 = vector.shape_cast %119 : vector<8x8x4xf32> to vector<64x4xf32>
    %121 = vector.extract_strided_slice %96 {offsets = [0, 1, 1, 0], sizes = [1, 8, 8, 4], strides = [1, 1, 1, 1]} : vector<4x9x9x4xf32> to vector<1x8x8x4xf32>
    %122 = vector.shape_cast %121 : vector<1x8x8x4xf32> to vector<8x8x4xf32>
    %123 = vector.shape_cast %122 : vector<8x8x4xf32> to vector<64x4xf32>
    %124 = tpu.concatenate %99, %102, %105, %108, %111, %114, %117, %120, %123 in 1 : vector<64x4xf32>, vector<64x4xf32>, vector<64x4xf32>, vector<64x4xf32>, vector<64x4xf32>, vector<64x4xf32>, vector<64x4xf32>, vector<64x4xf32>, vector<64x4xf32> -> vector<64x36xf32>
    %c2_40 = arith.constant 2 : index
    %c0_41 = arith.constant 0 : index
    %c0_42 = arith.constant 0 : index
    %125 = vector.load %arg2[%c2_40, %c0_41, %c0_42] : memref<4x36x16xf32, #tpu.memory_space<vmem>>, vector<1x36x16xf32>
    %126 = vector.shape_cast %125 : vector<1x36x16xf32> to vector<36x16xf32>
    %cst_43 = arith.constant dense<0.000000e+00> : vector<64x16xf32>
    %127 = tpu.matmul %124, %126, %cst_43 {dimension_numbers = #tpu.dot_dimension_numbers<[1], [0], [0], [1], [0, 0, 1, 1], [], []>} : vector<64x36xf32>, vector<36x16xf32>, vector<64x16xf32> -> vector<64x16xf32>
    %128 = tpu.transpose %127, [1, 0] : vector<64x16xf32> -> vector<16x64xf32>
    %129 = vector.extract_strided_slice %128 {offsets = [0, 0], sizes = [8, 64], strides = [1, 1]} : vector<16x64xf32> to vector<8x64xf32>
    %130 = vector.broadcast %0 : vector<8x1xf32> to vector<8x64xf32>
    %131 = arith.addf %129, %130 : vector<8x64xf32>
    %cst_44 = arith.constant 0.000000e+00 : f32
    %132 = vector.broadcast %cst_44 : f32 to vector<8x64xf32>
    %133 = arith.maximumf %131, %132 : vector<8x64xf32>
    %134 = vector.extract_strided_slice %128 {offsets = [8, 0], sizes = [8, 64], strides = [1, 1]} : vector<16x64xf32> to vector<8x64xf32>
    %c2_45 = arith.constant 2 : index
    %c0_46 = arith.constant 0 : index
    %c0_47 = arith.constant 0 : index
    %135 = vector.load %arg4[%c2_45, %c0_46, %c0_47] : memref<4x8x64xf32, #tpu.memory_space<vmem>>, vector<1x8x64xf32>
    %136 = vector.shape_cast %135 : vector<1x8x64xf32> to vector<8x64xf32>
    %137 = arith.addf %134, %136 : vector<8x64xf32>
    %138 = arith.addf %133, %137 : vector<8x64xf32>
    %c0_48 = arith.constant 0 : index
    %c2_49 = arith.constant 2 : index
    %c0_50 = arith.constant 0 : index
    %c0_51 = arith.constant 0 : index
    %139 = vector.load %arg5[%c0_48, %c2_49, %c0_50, %c0_51] : memref<1x4x8x64xf32, #tpu.memory_space<vmem>>, vector<1x1x8x64xf32>
    %140 = vector.shape_cast %139 : vector<1x1x8x64xf32> to vector<8x64xf32>
    %141 = vector.shape_cast %138 : vector<8x64xf32> to vector<1x1x8x64xf32>
    tpu.vector_store %arg5[%c0_48, %c2_49, %c0_50, %c0_51], %141 {strides = array<i32>} : memref<1x4x8x64xf32, #tpu.memory_space<vmem>>, vector<1x1x8x64xf32>,
    %c0_52 = arith.constant 0 : index
    %c3 = arith.constant 3 : index
    %c0_53 = arith.constant 0 : index
    %c0_54 = arith.constant 0 : index
    %c0_55 = arith.constant 0 : index
    %c0_56 = arith.constant 0 : index
    %142 = vector.load %arg1[%c0_52, %c3, %c0_53, %c0_54, %c0_55, %c0_56] : memref<1x4x4x9x9x4xf32, #tpu.memory_space<vmem>>, vector<1x1x4x9x9x4xf32>
    %143 = vector.shape_cast %142 : vector<1x1x4x9x9x4xf32> to vector<4x9x9x4xf32>
    %144 = vector.extract_strided_slice %143 {offsets = [0, 0, 0, 0], sizes = [1, 8, 8, 4], strides = [1, 1, 1, 1]} : vector<4x9x9x4xf32> to vector<1x8x8x4xf32>
    %145 = vector.shape_cast %144 : vector<1x8x8x4xf32> to vector<8x8x4xf32>
    %146 = vector.shape_cast %145 : vector<8x8x4xf32> to vector<64x4xf32>
    %147 = vector.extract_strided_slice %143 {offsets = [1, 0, 0, 0], sizes = [1, 8, 8, 4], strides = [1, 1, 1, 1]} : vector<4x9x9x4xf32> to vector<1x8x8x4xf32>
    %148 = vector.shape_cast %147 : vector<1x8x8x4xf32> to vector<8x8x4xf32>
    %149 = vector.shape_cast %148 : vector<8x8x4xf32> to vector<64x4xf32>
    %150 = vector.extract_strided_slice %143 {offsets = [0, 0, 1, 0], sizes = [1, 8, 8, 4], strides = [1, 1, 1, 1]} : vector<4x9x9x4xf32> to vector<1x8x8x4xf32>
    %151 = vector.shape_cast %150 : vector<1x8x8x4xf32> to vector<8x8x4xf32>
    %152 = vector.shape_cast %151 : vector<8x8x4xf32> to vector<64x4xf32>
    %153 = vector.extract_strided_slice %143 {offsets = [2, 0, 0, 0], sizes = [1, 8, 8, 4], strides = [1, 1, 1, 1]} : vector<4x9x9x4xf32> to vector<1x8x8x4xf32>
    %154 = vector.shape_cast %153 : vector<1x8x8x4xf32> to vector<8x8x4xf32>
    %155 = vector.shape_cast %154 : vector<8x8x4xf32> to vector<64x4xf32>
    %156 = vector.extract_strided_slice %143 {offsets = [3, 0, 0, 0], sizes = [1, 8, 8, 4], strides = [1, 1, 1, 1]} : vector<4x9x9x4xf32> to vector<1x8x8x4xf32>
    %157 = vector.shape_cast %156 : vector<1x8x8x4xf32> to vector<8x8x4xf32>
    %158 = vector.shape_cast %157 : vector<8x8x4xf32> to vector<64x4xf32>
    %159 = vector.extract_strided_slice %143 {offsets = [2, 0, 1, 0], sizes = [1, 8, 8, 4], strides = [1, 1, 1, 1]} : vector<4x9x9x4xf32> to vector<1x8x8x4xf32>
    %160 = vector.shape_cast %159 : vector<1x8x8x4xf32> to vector<8x8x4xf32>
    %161 = vector.shape_cast %160 : vector<8x8x4xf32> to vector<64x4xf32>
    %162 = vector.extract_strided_slice %143 {offsets = [0, 1, 0, 0], sizes = [1, 8, 8, 4], strides = [1, 1, 1, 1]} : vector<4x9x9x4xf32> to vector<1x8x8x4xf32>
    %163 = vector.shape_cast %162 : vector<1x8x8x4xf32> to vector<8x8x4xf32>
    %164 = vector.shape_cast %163 : vector<8x8x4xf32> to vector<64x4xf32>
    %165 = vector.extract_strided_slice %143 {offsets = [1, 1, 0, 0], sizes = [1, 8, 8, 4], strides = [1, 1, 1, 1]} : vector<4x9x9x4xf32> to vector<1x8x8x4xf32>
    %166 = vector.shape_cast %165 : vector<1x8x8x4xf32> to vector<8x8x4xf32>
    %167 = vector.shape_cast %166 : vector<8x8x4xf32> to vector<64x4xf32>
    %168 = vector.extract_strided_slice %143 {offsets = [0, 1, 1, 0], sizes = [1, 8, 8, 4], strides = [1, 1, 1, 1]} : vector<4x9x9x4xf32> to vector<1x8x8x4xf32>
    %169 = vector.shape_cast %168 : vector<1x8x8x4xf32> to vector<8x8x4xf32>
    %170 = vector.shape_cast %169 : vector<8x8x4xf32> to vector<64x4xf32>
    %171 = tpu.concatenate %146, %149, %152, %155, %158, %161, %164, %167, %170 in 1 : vector<64x4xf32>, vector<64x4xf32>, vector<64x4xf32>, vector<64x4xf32>, vector<64x4xf32>, vector<64x4xf32>, vector<64x4xf32>, vector<64x4xf32>, vector<64x4xf32> -> vector<64x36xf32>
    %c3_57 = arith.constant 3 : index
    %c0_58 = arith.constant 0 : index
    %c0_59 = arith.constant 0 : index
    %172 = vector.load %arg2[%c3_57, %c0_58, %c0_59] : memref<4x36x16xf32, #tpu.memory_space<vmem>>, vector<1x36x16xf32>
    %173 = vector.shape_cast %172 : vector<1x36x16xf32> to vector<36x16xf32>
    %cst_60 = arith.constant dense<0.000000e+00> : vector<64x16xf32>
    %174 = tpu.matmul %171, %173, %cst_60 {dimension_numbers = #tpu.dot_dimension_numbers<[1], [0], [0], [1], [0, 0, 1, 1], [], []>} : vector<64x36xf32>, vector<36x16xf32>, vector<64x16xf32> -> vector<64x16xf32>
    %175 = tpu.transpose %174, [1, 0] : vector<64x16xf32> -> vector<16x64xf32>
    %176 = vector.extract_strided_slice %175 {offsets = [0, 0], sizes = [8, 64], strides = [1, 1]} : vector<16x64xf32> to vector<8x64xf32>
    %177 = vector.broadcast %0 : vector<8x1xf32> to vector<8x64xf32>
    %178 = arith.addf %176, %177 : vector<8x64xf32>
    %cst_61 = arith.constant 0.000000e+00 : f32
    %179 = vector.broadcast %cst_61 : f32 to vector<8x64xf32>
    %180 = arith.maximumf %178, %179 : vector<8x64xf32>
    %181 = vector.extract_strided_slice %175 {offsets = [8, 0], sizes = [8, 64], strides = [1, 1]} : vector<16x64xf32> to vector<8x64xf32>
    %c3_62 = arith.constant 3 : index
    %c0_63 = arith.constant 0 : index
    %c0_64 = arith.constant 0 : index
    %182 = vector.load %arg4[%c3_62, %c0_63, %c0_64] : memref<4x8x64xf32, #tpu.memory_space<vmem>>, vector<1x8x64xf32>
    %183 = vector.shape_cast %182 : vector<1x8x64xf32> to vector<8x64xf32>
    %184 = arith.addf %181, %183 : vector<8x64xf32>
    %185 = arith.addf %180, %184 : vector<8x64xf32>
    %c0_65 = arith.constant 0 : index
    %c3_66 = arith.constant 3 : index
    %c0_67 = arith.constant 0 : index
    %c0_68 = arith.constant 0 : index
    %186 = vector.load %arg5[%c0_65, %c3_66, %c0_67, %c0_68] : memref<1x4x8x64xf32, #tpu.memory_space<vmem>>, vector<1x1x8x64xf32>
    %187 = vector.shape_cast %186 : vector<1x1x8x64xf32> to vector<8x64xf32>
    %188 = vector.shape_cast %185 : vector<8x64xf32> to vector<1x1x8x64xf32>
    tpu.vector_store %arg5[%c0_65, %c3_66, %c0_67, %c0_68], %188 {strides = array<i32>} : memref<1x4x8x64xf32, #tpu.memory_space<vmem>>, vector<1x1x8x64xf32>,
    return
  }
  func.func @transform_0(%arg0: i32) -> (i32, i32, i32, i32, i32, i32) {
    %c0_i32 = arith.constant 0 : i32
    %c0_i32_0 = arith.constant 0 : i32
    %c0_i32_1 = arith.constant 0 : i32
    %c0_i32_2 = arith.constant 0 : i32
    %c0_i32_3 = arith.constant 0 : i32
    %c0_i32_4 = arith.constant 0 : i32
    return %arg0, %c0_i32, %c0_i32_0, %c0_i32_1, %c0_i32_2, %c0_i32_3 : i32, i32, i32, i32, i32, i32
  }
  func.func @transform_1(%arg0: i32) -> (i32, i32, i32) {
    %c0_i32 = arith.constant 0 : i32
    %c0_i32_0 = arith.constant 0 : i32
    %c0_i32_1 = arith.constant 0 : i32
    %c0_i32_2 = arith.constant 0 : i32
    return %c0_i32, %c0_i32_0, %c0_i32_1 : i32, i32, i32
  }
  func.func @transform_2(%arg0: i32) -> (i32, i32) {
    %c0_i32 = arith.constant 0 : i32
    %c0_i32_0 = arith.constant 0 : i32
    %c0_i32_1 = arith.constant 0 : i32
    return %c0_i32, %c0_i32_0 : i32, i32
  }
  func.func @transform_3(%arg0: i32) -> (i32, i32, i32) {
    %c0_i32 = arith.constant 0 : i32
    %c0_i32_0 = arith.constant 0 : i32
    %c0_i32_1 = arith.constant 0 : i32
    %c0_i32_2 = arith.constant 0 : i32
    return %c0_i32, %c0_i32_0, %c0_i32_1 : i32, i32, i32
  }
  func.func @transform_4(%arg0: i32) -> (i32, i32, i32, i32) {
    %c0_i32 = arith.constant 0 : i32
    %c0_i32_0 = arith.constant 0 : i32
    %c0_i32_1 = arith.constant 0 : i32
    %c0_i32_2 = arith.constant 0 : i32
    return %arg0, %c0_i32, %c0_i32_0, %c0_i32_1 : i32, i32, i32, i32
  }
}

</mosaic_0001>

<llo_original>
// kernel: mul.19
$region0: #{mul.19}
  #allocation0 [shape = 's32[1]{0}', space=sflag, size = 0x4, scoped, tag = 'scoped memory for mul.19']
  %s0 = inlined_call_operand.vmem [shape: f32[48,1], index: 0, kind: input, shape index: {}]
  %s1 = inlined_call_operand.vmem [shape: f32[48,1], index: 1, kind: input, shape index: {}]
  %s2 = inlined_call_operand.vmem [shape: f32[48,1], index: 2, kind: output, shape index: {}]
  %v3 = vld [vmem:[%s0] sm:$0xff]
  %v4 = vld [vmem:[%s1] sm:$0xff]
  %5 = xla_tuple %v3, %v4
  %6 = xla_tuple %5
  %v7 = vmul.f32 %v3, %v4
  %8 = xla_tuple %v7
  %9 = vst [vmem:[%s2] sm:$0xff] %v7
  %s10 = scalar_lea.vmem %s0, 8
  %v11 = vld [vmem:[%s10] sm:$0xff]
  %s12 = scalar_lea.vmem %s1, 8
  %v13 = vld [vmem:[%s12] sm:$0xff]
  %14 = xla_tuple %v11, %v13
  %15 = xla_tuple %14
  %v16 = vmul.f32 %v11, %v13
  %17 = xla_tuple %v16
  %s18 = scalar_lea.vmem %s2, 8
  %19 = vst [vmem:[%s18] sm:$0xff] %v16
  %s20 = scalar_lea.vmem %s0, 16
  %v21 = vld [vmem:[%s20] sm:$0xff]
  %s22 = scalar_lea.vmem %s1, 16
  %v23 = vld [vmem:[%s22] sm:$0xff]
  %24 = xla_tuple %v21, %v23
  %25 = xla_tuple %24
  %v26 = vmul.f32 %v21, %v23
  %27 = xla_tuple %v26
  %s28 = scalar_lea.vmem %s2, 16
  %29 = vst [vmem:[%s28] sm:$0xff] %v26
  %s30 = scalar_lea.vmem %s0, 24
  %v31 = vld [vmem:[%s30] sm:$0xff]
  %s32 = scalar_lea.vmem %s1, 24
  %v33 = vld [vmem:[%s32] sm:$0xff]
  %34 = xla_tuple %v31, %v33
  %35 = xla_tuple %34
  %v36 = vmul.f32 %v31, %v33
  %37 = xla_tuple %v36
  %s38 = scalar_lea.vmem %s2, 24
  %39 = vst [vmem:[%s38] sm:$0xff] %v36
  %s40 = scalar_lea.vmem %s0, 32
  %v41 = vld [vmem:[%s40] sm:$0xff]
  %s42 = scalar_lea.vmem %s1, 32
  %v43 = vld [vmem:[%s42] sm:$0xff]
  %44 = xla_tuple %v41, %v43
  %45 = xla_tuple %44
  %v46 = vmul.f32 %v41, %v43
  %47 = xla_tuple %v46
  %s48 = scalar_lea.vmem %s2, 32
  %49 = vst [vmem:[%s48] sm:$0xff] %v46
  %s50 = scalar_lea.vmem %s0, 40
  %v51 = vld [vmem:[%s50] sm:$0xff]
  %s52 = scalar_lea.vmem %s1, 40
  %v53 = vld [vmem:[%s52] sm:$0xff]
  %54 = xla_tuple %v51, %v53
  %55 = xla_tuple %54
  %v56 = vmul.f32 %v51, %v53
  %57 = xla_tuple %v56
  %s58 = scalar_lea.vmem %s2, 40
  %59 = vst [vmem:[%s58] sm:$0xff] %v56

// kernel: vit_encoder_forward.2
$region0: #{vit_encoder_forward.2}
  #allocation0 [shape = 'u32[]', space=smem, size = 0x4, offset = 0x4, fixed_abs, tag = 'smem constant byte address 0x4 - core index']
  #allocation1 [shape = 'u32[72,128]{1,0:T(1,128)}', space=vmem, size = 0x9000, scoped, tag = 'internal scratch']
  %s0 = inlined_call_operand.vmem [shape: f32[2,4,4,256], index: 0, kind: input, shape index: {}]
  %s1 = inlined_call_operand.vmem [shape: f32[48,4], index: 1, kind: input, shape index: {}]
  %s2 = inlined_call_operand.vmem [shape: f32[48,1], index: 2, kind: input, shape index: {}]
  %s3 = inlined_call_operand.hbm [shape: f32[4,16], index: 3, kind: input, shape index: {}]
  %s4 = inlined_call_operand.vmem [shape: f32[4,1], index: 4, kind: input, shape index: {}]
  %s5 = inlined_call_operand.vmem [shape: f32[2,4,4,256], index: 5, kind: output, shape index: {}]
  %s6 = sld [smem:[#allocation0]]
  $region57: #{vit_encoder_forward.2} parent=0
    _
  %s8 = ssub.s32 1, %s6
  %s9 = scalar_select 0, %s8, %s6
  $region1: #{vit_encoder_forward.2} parent=0
    #allocation2 [shape = 'u8[2048]{0}', space=vmem, size = 0x800, scoped, tag = 'input window, operand 3, single buffered']
    #allocation3 [shape = 's32[2]{0}', space=sflag, size = 0x8, scoped, tag = 'scoped memory for vit_encoder_forward.2']
    %10 = vsyncpa [#allocation3], 0
    loop: start=0, step=1, limit=4
    $region2: #{vit_encoder_forward.2} parent=1 // loop_pre_header
      _
    $region3: #{vit_encoder_forward.2} parent=1 // loop_header
      %s12 = sphi 0, %s16
      %p13 = scmp.ge.s32.totalorder %s12, 4
      %s22 = sphi 0, %s24
      %s25 = sphi 0, %s22
      %s26 = sphi 0, %s25
      %s42 = sphi 0, %s26
      %s46 = sphi 0, %s46
      %s48 = sphi 0, %s46
      %s49 = sphi 0, %s48
      %s63 = sphi 0, %s49
      %s67 = sphi 0, %s67
      %s69 = sphi 0, %s67
      %s70 = sphi 0, %s69
      %s84 = sphi 0, %s70
      %s88 = sphi 0, %s88
      %s90 = sphi 0, %s88
      %s91 = sphi 0, %s90
      %s105 = sphi 0, %s91
      %s109 = sphi 0, %s109
      %s111 = sphi 0, %s109
      %s112 = sphi 0, %s111
      %s126 = sphi 0, %s112
      %s132 = sphi 0, %s134
      %s135 = sphi 0, %s132
      %s136 = sphi 0, %s135
      %s152 = sphi 0, %s136
    $region4: #{vit_encoder_forward.2} parent=1 // loop_header_branch
      %15 = sbr.rel (%p13) target = $region8
    $region5: #{vit_encoder_forward.2} parent=1 // loop_body
      %s17 = ssub.s32 %s12, 1
      %s18 = ssub.s32 %s12, 2
      %s19 = sadd.s32 %s12, 1
      %s20 = ssub.s32 %s12, %s19
      %p21 = scmp.eq.s32.totalorder %s20, 0
      %s23 = sadd.s32 %s22, 1
      %s24 = scalar_select %p21, %s22, %s23
      %p27 = pneg %p21
      %p28 = scmp.eq.s32.totalorder %s12, 1
      %p29 = por %p27, %p28
      %p30 = scmp.ne.s32.totalorder %s22, %s25
      %p31 = scmp.eq.s32.totalorder %s12, 0
      %p32 = por %p30, %p31
      %p33 = scmp.ne.s32.totalorder %s22, %s25
      %p34 = scmp.eq.s32.totalorder %s17, 1
      %p35 = por %p33, %p34
      %p36 = scmp.ne.s32.totalorder %s25, %s26
      %p37 = scmp.eq.s32.totalorder %s17, 0
      %p38 = por %p36, %p37
      %p39 = scmp.ne.s32.totalorder %s25, %s26
      %p40 = scmp.eq.s32.totalorder %s18, 1
      %p41 = por %p39, %p40
      %p43 = scmp.ne.s32.totalorder %s26, %s42
      %p44 = scmp.eq.s32.totalorder %s18, 0
      %p45 = por %p43, %p44
      %s47 = sadd.s32 %s46, 1
      %p50 = scmp.eq.s32.totalorder %s12, 1
      %p51 = scmp.ne.s32.totalorder %s46, %s48
      %p52 = scmp.eq.s32.totalorder %s12, 0
      %p53 = por %p51, %p52
      %p54 = scmp.ne.s32.totalorder %s46, %s48
      %p55 = scmp.eq.s32.totalorder %s17, 1
      %p56 = por %p54, %p55
      %p57 = scmp.ne.s32.totalorder %s48, %s49
      %p58 = scmp.eq.s32.totalorder %s17, 0
      %p59 = por %p57, %p58
      %p60 = scmp.ne.s32.totalorder %s48, %s49
      %p61 = scmp.eq.s32.totalorder %s18, 1
      %p62 = por %p60, %p61
      %p64 = scmp.ne.s32.totalorder %s49, %s63
      %p65 = scmp.eq.s32.totalorder %s18, 0
      %p66 = por %p64, %p65
      %s68 = sadd.s32 %s67, 1
      %p71 = scmp.eq.s32.totalorder %s12, 1
      %p72 = scmp.ne.s32.totalorder %s67, %s69
      %p73 = scmp.eq.s32.totalorder %s12, 0
      %p74 = por %p72, %p73
      %p75 = scmp.ne.s32.totalorder %s67, %s69
      %p76 = scmp.eq.s32.totalorder %s17, 1
      %p77 = por %p75, %p76
      %p78 = scmp.ne.s32.totalorder %s69, %s70
      %p79 = scmp.eq.s32.totalorder %s17, 0
      %p80 = por %p78, %p79
      %p81 = scmp.ne.s32.totalorder %s69, %s70
      %p82 = scmp.eq.s32.totalorder %s18, 1
      %p83 = por %p81, %p82
      %p85 = scmp.ne.s32.totalorder %s70, %s84
      %p86 = scmp.eq.s32.totalorder %s18, 0
      %p87 = por %p85, %p86
      %s89 = sadd.s32 %s88, 1
      %p92 = scmp.eq.s32.totalorder %s12, 1
      %p93 = scmp.ne.s32.totalorder %s88, %s90
      %p94 = scmp.eq.s32.totalorder %s12, 0
      %p95 = por %p93, %p94
      %p96 = scmp.ne.s32.totalorder %s88, %s90
      %p97 = scmp.eq.s32.totalorder %s17, 1
      %p98 = por %p96, %p97
      %p99 = scmp.ne.s32.totalorder %s90, %s91
      %p100 = scmp.eq.s32.totalorder %s17, 0
      %p101 = por %p99, %p100
      %p102 = scmp.ne.s32.totalorder %s90, %s91
      %p103 = scmp.eq.s32.totalorder %s18, 1
      %p104 = por %p102, %p103
      %p106 = scmp.ne.s32.totalorder %s91, %s105
      %p107 = scmp.eq.s32.totalorder %s18, 0
      %p108 = por %p106, %p107
      %s110 = sadd.s32 %s109, 1
      %p113 = scmp.eq.s32.totalorder %s12, 1
      %p114 = scmp.ne.s32.totalorder %s109, %s111
      %p115 = scmp.eq.s32.totalorder %s12, 0
      %p116 = por %p114, %p115
      %p117 = scmp.ne.s32.totalorder %s109, %s111
      %p118 = scmp.eq.s32.totalorder %s17, 1
      %p119 = por %p117, %p118
      %p120 = scmp.ne.s32.totalorder %s111, %s112
      %p121 = scmp.eq.s32.totalorder %s17, 0
      %p122 = por %p120, %p121
      %p123 = scmp.ne.s32.totalorder %s111, %s112
      %p124 = scmp.eq.s32.totalorder %s18, 1
      %p125 = por %p123, %p124
      %p127 = scmp.ne.s32.totalorder %s112, %s126
      %p128 = scmp.eq.s32.totalorder %s18, 0
      %p129 = por %p127, %p128
      %s130 = ssub.s32 %s12, %s19
      %p131 = scmp.eq.s32.totalorder %s130, 0
      %s133 = sadd.s32 %s132, 1
      %s134 = scalar_select %p131, %s132, %s133
      %p137 = pneg %p131
      %p138 = scmp.eq.s32.totalorder %s12, 1
      %p139 = por %p137, %p138
      %p140 = scmp.ne.s32.totalorder %s132, %s135
      %p141 = scmp.eq.s32.totalorder %s12, 0
      %p142 = por %p140, %p141
      %p143 = scmp.ne.s32.totalorder %s132, %s135
      %p144 = scmp.eq.s32.totalorder %s17, 1
      %p145 = por %p143, %p144
      %p146 = scmp.ne.s32.totalorder %s135, %s136
      %p147 = scmp.eq.s32.totalorder %s17, 0
      %p148 = por %p146, %p147
      %p149 = scmp.ne.s32.totalorder %s135, %s136
      %p150 = scmp.eq.s32.totalorder %s18, 1
      %p151 = por %p149, %p150
      %p153 = scmp.ne.s32.totalorder %s136, %s152
      %p154 = scmp.eq.s32.totalorder %s18, 0
      %p155 = por %p153, %p154
      %p156 = scmp.le.s32.totalorder 1, %s12
      %p157 = scmp.lt.s32.totalorder %s12, 3
      %p158 = pnand %p156, %p157
      %p159 = pneg %p158
      // Predicated region
      $region9: #{vit_encoder_forward.2} parent=5 // pred_check
        _
      $region10: #{vit_encoder_forward.2} parent=5 // pred_check_branch
        %161 = sbr.rel (%p158) target = $region12
      $region11: #{vit_encoder_forward.2} parent=5 // pred_region
        %s162 = ssub.s32 %s12, 1
        // Predicated region
        $region13: #{vit_encoder_forward.2} parent=11 // pred_check
          %p163 = pneg %p59
        $region14: #{vit_encoder_forward.2} parent=11 // pred_check_branch
          %165 = sbr.rel (%p163) target = $region16
        $region15: #{vit_encoder_forward.2} parent=11 // pred_region
          _
        $region16: #{vit_encoder_forward.2} parent=11 // pred_fallthru
          _
        // Predicated region
        $region17: #{vit_encoder_forward.2} parent=11 // pred_check
          %p166 = pneg %p80
        $region18: #{vit_encoder_forward.2} parent=11 // pred_check_branch
          %168 = sbr.rel (%p166) target = $region20
        $region19: #{vit_encoder_forward.2} parent=11 // pred_region
          _
        $region20: #{vit_encoder_forward.2} parent=11 // pred_fallthru
          _
        // Predicated region
        $region21: #{vit_encoder_forward.2} parent=11 // pred_check
          %p169 = pneg %p101
        $region22: #{vit_encoder_forward.2} parent=11 // pred_check_branch
          %171 = sbr.rel (%p169) target = $region24
        $region23: #{vit_encoder_forward.2} parent=11 // pred_region
          %173 = vsyncadd [#allocation3], 0
          %s175 = sshll.u32 %s3, 4
          %s176 = int_to_ptr.hbm [resolvable:$true] %s175
          %s177 = sshll.u32 [#allocation2], 4
          %s178 = int_to_ptr.vmem [resolvable:$true] %s177
          %180 = dma.hbm_to_vmem [thread:$0]  %s176, 64, %s178, [#allocation3]
        $region24: #{vit_encoder_forward.2} parent=11 // pred_fallthru
          _
        // Predicated region
        $region25: #{vit_encoder_forward.2} parent=11 // pred_check
          %p181 = pneg %p122
        $region26: #{vit_encoder_forward.2} parent=11 // pred_check_branch
          %183 = sbr.rel (%p181) target = $region28
        $region27: #{vit_encoder_forward.2} parent=11 // pred_region
          _
        $region28: #{vit_encoder_forward.2} parent=11 // pred_fallthru
          _
      $region12: #{vit_encoder_forward.2} parent=5 // pred_fallthru
        _
      %p184 = scmp.lt.s32.totalorder %s12, 2
      // Predicated region
      $region29: #{vit_encoder_forward.2} parent=5 // pred_check
        %p185 = pneg %p184
      $region30: #{vit_encoder_forward.2} parent=5 // pred_check_branch
        %187 = sbr.rel (%p185) target = $region32
      $region31: #{vit_encoder_forward.2} parent=5 // pred_region
        // Predicated region
        $region33: #{vit_encoder_forward.2} parent=31 // pred_check
          %p188 = pneg %p32
        $region34: #{vit_encoder_forward.2} parent=31 // pred_check_branch
          %190 = sbr.rel (%p188) target = $region36
        $region35: #{vit_encoder_forward.2} parent=31 // pred_region
          %p191 = scmp.lt.s32.totalorder %s12, 1
          %s192 = scalar_select %p191, %s12, 1
          %s193 = smul.addr %s192, 8
          %s194 = smul.addr %s193, 4
          %s195 = scalar_lea.vmem %s0, %s194
        $region36: #{vit_encoder_forward.2} parent=31 // pred_fallthru
          _
      $region32: #{vit_encoder_forward.2} parent=5 // pred_fallthru
        _
      %p196 = scmp.le.s32.totalorder 1, %s12
      %p197 = scmp.lt.s32.totalorder %s12, 3
      %p198 = pnand %p196, %p197
      %p199 = pneg %p198
      // Predicated region
      $region37: #{vit_encoder_forward.2} parent=5 // pred_check
        _
      $region38: #{vit_encoder_forward.2} parent=5 // pred_check_branch
        %201 = sbr.rel (%p198) target = $region40
      $region39: #{vit_encoder_forward.2} parent=5 // pred_region
        %s202 = ssub.s32 %s12, 1
        // Predicated region
        $region41: #{vit_encoder_forward.2} parent=39 // pred_check
          %p203 = pneg %p101
        $region42: #{vit_encoder_forward.2} parent=39 // pred_check_branch
          %205 = sbr.rel (%p203) target = $region44
        $region43: #{vit_encoder_forward.2} parent=39 // pred_region
          %207 = dma.done [#allocation3], 64
        $region44: #{vit_encoder_forward.2} parent=39 // pred_fallthru
          _
        %p208 = scmp.lt.s32.totalorder %s17, 1
        %s209 = scalar_select %p208, %s17, 1
        %s210 = smul.addr %s209, 8
        %s211 = smul.addr %s210, 4
        %s212 = scalar_lea.vmem %s0, %s211
        %p213 = pneg %p38
        %p214 = pneg %p35
        %p215 = pneg %p59
        %p216 = pneg %p56
        %p217 = pneg %p80
        %p218 = pneg %p77
        %p219 = pneg %p101
        %p220 = pneg %p98
        %p221 = pneg %p122
        %p222 = pneg %p119
        %p223 = pneg %p148
        %p224 = pneg %p145
        %p225 = scmp.lt.s32.totalorder %s17, 1
        %s226 = scalar_select %p225, %s17, 1
        %s227 = smul.addr %s226, 8
        %s228 = smul.addr %s227, 4
        %s229 = scalar_lea.vmem %s5, %s228
        %p230 = scmp.lt.s32.totalorder %s17, 1
        %s231 = scalar_select %p230, %s17, 1
        %s232 = smul.addr %s231, 8
        %s233 = smul.addr %s232, 4
        %s234 = scalar_lea.vmem %s0, %s233
        %p235 = scmp.lt.s32.totalorder %s17, 1
        %s236 = scalar_select %p235, %s17, 1
        %s237 = smul.addr %s236, 8
        %s238 = smul.addr %s237, 4
        %s239 = scalar_lea.vmem %s5, %s238
        %v240 = vld [vmem:[%s1] sm:$0xff]
        %v241 = vld [vmem:[%s1 + $0x8] sm:$0xff]
        %v242 = vld [vmem:[%s1 + $0x10] sm:$0xff]
        %v243 = vld [vmem:[%s1 + $0x18] sm:$0xff]
        %v244 = vld [vmem:[%s1 + $0x20] sm:$0xff]
        %v245 = vld [vmem:[%s1 + $0x28] sm:$0xff]
        %v246 = vld [vmem:[%s2] sm:$0xff]
        %v247 = vld [vmem:[%s2 + $0x8] sm:$0xff]
        %v248 = vld [vmem:[%s2 + $0x10] sm:$0xff]
        %v249 = vld [vmem:[%s2 + $0x18] sm:$0xff]
        %v250 = vld [vmem:[%s2 + $0x20] sm:$0xff]
        %v251 = vld [vmem:[%s2 + $0x28] sm:$0xff]
        %v252 = vld [vmem:[#allocation2] sm:$0xf]
        %v253 = vld [vmem:[%s4] sm:$0xf]
        %v254 = vld [vmem:[%s234] sm:$0xff]
        %256 = vset.pattern.permute.xlu0 0
        %257 = vperm.xlu0 %256, %v246
        %v258 = vpop.permute.xlu0 %257
        %261 = vset.pattern.permute.xlu0 0
        %262 = vperm.xlu0 %261, %v247
        %v263 = vpop.permute.xlu0 %262
        %266 = vset.pattern.permute.xlu0 0
        %267 = vperm.xlu0 %266, %v248
        %v268 = vpop.permute.xlu0 %267
        %271 = vset.pattern.permute.xlu0 0
        %272 = vperm.xlu0 %271, %v249
        %v273 = vpop.permute.xlu0 %272
        %276 = vset.pattern.permute.xlu0 0
        %277 = vperm.xlu0 %276, %v250
        %v278 = vpop.permute.xlu0 %277
        %281 = vset.pattern.permute.xlu0 0
        %282 = vperm.xlu0 %281, %v251
        %v283 = vpop.permute.xlu0 %282
        %286 = vst [vmem:[#allocation1] ss:$2 sm:$0xff] %v254
        %v287 = vld.sshfl [vmem:[#allocation1] sm:$0xff pattern:$0x75316420]
        %v288 = vld.sshfl [vmem:[#allocation1 + $0x8] sm:$0xff pattern:$0x75316420]
        %vm289 = vcmask 31744
        %v291 = vsel %vm289, %v240, 0
        %v294 = vsel %vm289, %v241, 0
        %v297 = vsel %vm289, %v242, 0
        %v300 = vsel %vm289, %v243, 0
        %v303 = vsel %vm289, %v244, 0
        %v306 = vsel %vm289, %v245, 0
        %vm308 = vcmask 1043456
        %v309 = vsel %vm308, %v287, 0
        %v311 = vsel %vm308, %v288, 0
        %313 = vmatpush.msra.mxu0 0.0
        %314 = vmatpush.msra.mxu0 0.0
        %315 = vmatpush.msra.mxu0 0.0
        %316 = vmatpush.msra.mxu0 0.0
        %317 = vmatpush.msra.mxu0 0.0
        %318 = vmatpush.msra.mxu0 0.0
        %319 = vmatpush.msra.mxu0 0.0
        %320 = vmatpush.msra.mxu0 0.0
        %321 = vmatpush.msra.mxu0 0.0
        %322 = vmatpush.msra.mxu0 0.0
        %323 = vmatpush.msra.mxu0 0.0
        %324 = vmatpush.msra.mxu0 0.0
        %325 = vmatpush.msra.mxu0 0.0
        %326 = vmatpush.msra.mxu0 0.0
        %327 = vmatpush.msra.mxu0 0.0
        %328 = vmatpush.msra.mxu0 %v309
        %329 = vmatmul.f32.gmra.mxu0 %v291
        %v330 = vpop.f32.mrf.mxu0
        %v331 = vadd.f32 %v258, %v330
        %332 = vmatmul.f32.gmra.mxu0 %v294
        %v333 = vpop.f32.mrf.mxu0
        %v334 = vadd.f32 %v263, %v333
        %335 = vmatmul.f32.gmra.mxu0 %v297
        %v336 = vpop.f32.mrf.mxu0
        %v337 = vadd.f32 %v268, %v336
        %338 = vmatmul.f32.gmra.mxu0 %v300
        %v339 = vpop.f32.mrf.mxu0
        %v340 = vadd.f32 %v273, %v339
        %341 = vmatmul.f32.gmra.mxu0 %v303
        %v342 = vpop.f32.mrf.mxu0
        %v343 = vadd.f32 %v278, %v342
        %344 = vmatmul.f32.gmra.mxu0 %v306
        %v345 = vpop.f32.mrf.mxu0
        %v346 = vadd.f32 %v283, %v345
        %347 = vdwg.mxu0
        %348 = vmatpush.msra.mxu0 0.0
        %349 = vmatpush.msra.mxu0 0.0
        %350 = vmatpush.msra.mxu0 0.0
        %351 = vmatpush.msra.mxu0 0.0
        %352 = vmatpush.msra.mxu0 0.0
        %353 = vmatpush.msra.mxu0 0.0
        %354 = vmatpush.msra.mxu0 0.0
        %355 = vmatpush.msra.mxu0 0.0
        %356 = vmatpush.msra.mxu0 0.0
        %357 = vmatpush.msra.mxu0 0.0
        %358 = vmatpush.msra.mxu0 0.0
        %359 = vmatpush.msra.mxu0 0.0
        %360 = vmatpush.msra.mxu0 0.0
        %361 = vmatpush.msra.mxu0 0.0
        %362 = vmatpush.msra.mxu0 0.0
        %363 = vmatpush.msra.mxu0 %v311
        %364 = vmatmul.f32.gmra.mxu0 %v291
        %v365 = vpop.f32.mrf.mxu0
        %v366 = vadd.f32 %v258, %v365
        %367 = vmatmul.f32.gmra.mxu0 %v294
        %v368 = vpop.f32.mrf.mxu0
        %v369 = vadd.f32 %v263, %v368
        %370 = vmatmul.f32.gmra.mxu0 %v297
        %v371 = vpop.f32.mrf.mxu0
        %v372 = vadd.f32 %v268, %v371
        %373 = vmatmul.f32.gmra.mxu0 %v300
        %v374 = vpop.f32.mrf.mxu0
        %v375 = vadd.f32 %v273, %v374
        %376 = vmatmul.f32.gmra.mxu0 %v303
        %v377 = vpop.f32.mrf.mxu0
        %v378 = vadd.f32 %v278, %v377
        %379 = vmatmul.f32.gmra.mxu0 %v306
        %v380 = vpop.f32.mrf.mxu0
        %v381 = vadd.f32 %v283, %v380
        %382 = vdwg.mxu0
        %383 = vxpose.xlu0.b32.start [1/16] %v331, 128
        %384 = vxpose.xlu0.b32.cont [2/16] 0.0, 128
        %385 = vxpose.xlu0.b32.cont [3/16] 0.0, 128
        %386 = vxpose.xlu0.b32.cont [4/16] 0.0, 128
        %387 = vxpose.xlu0.b32.cont [5/16] 0.0, 128
        %388 = vxpose.xlu0.b32.cont [6/16] 0.0, 128
        %389 = vxpose.xlu0.b32.cont [7/16] 0.0, 128
        %390 = vxpose.xlu0.b32.cont [8/16] 0.0, 128
        %391 = vxpose.xlu0.b32.cont [9/16] 0.0, 128
        %392 = vxpose.xlu0.b32.cont [10/16] 0.0, 128
        %393 = vxpose.xlu0.b32.cont [11/16] 0.0, 128
        %394 = vxpose.xlu0.b32.cont [12/16] 0.0, 128
        %395 = vxpose.xlu0.b32.cont [13/16] 0.0, 128
        %396 = vxpose.xlu0.b32.cont [14/16] 0.0, 128
        %397 = vxpose.xlu0.b32.cont [15/16] 0.0, 128
        %398 = vxpose.xlu0.b32.end [16/16] 0.0, 128
        %v399 = vpop.trf.xlu0
        %v400 = vpop.trf.xlu0
        %v401 = vpop.trf.xlu0
        %v402 = vpop.trf.xlu0
        %v403 = vpop.trf.xlu0
        %v404 = vpop.trf.xlu0
        %v405 = vpop.trf.xlu0
        %v406 = vpop.trf.xlu0
        %v407 = vpop.trf.xlu0
        %v408 = vpop.trf.xlu0
        %v409 = vpop.trf.xlu0
        %v410 = vpop.trf.xlu0
        %v411 = vpop.trf.xlu0
        %v412 = vpop.trf.xlu0
        %v413 = vpop.trf.xlu0
        %v414 = vpop.trf.xlu0
        %415 = vxpose.xlu0.b32.start [1/16] %v366, 128
        %416 = vxpose.xlu0.b32.cont [2/16] 0.0, 128
        %417 = vxpose.xlu0.b32.cont [3/16] 0.0, 128
        %418 = vxpose.xlu0.b32.cont [4/16] 0.0, 128
        %419 = vxpose.xlu0.b32.cont [5/16] 0.0, 128
        %420 = vxpose.xlu0.b32.cont [6/16] 0.0, 128
        %421 = vxpose.xlu0.b32.cont [7/16] 0.0, 128
        %422 = vxpose.xlu0.b32.cont [8/16] 0.0, 128
        %423 = vxpose.xlu0.b32.cont [9/16] 0.0, 128
        %424 = vxpose.xlu0.b32.cont [10/16] 0.0, 128
        %425 = vxpose.xlu0.b32.cont [11/16] 0.0, 128
        %426 = vxpose.xlu0.b32.cont [12/16] 0.0, 128
        %427 = vxpose.xlu0.b32.cont [13/16] 0.0, 128
        %428 = vxpose.xlu0.b32.cont [14/16] 0.0, 128
        %429 = vxpose.xlu0.b32.cont [15/16] 0.0, 128
        %430 = vxpose.xlu0.b32.end [16/16] 0.0, 128
        %v431 = vpop.trf.xlu0
        %v432 = vpop.trf.xlu0
        %v433 = vpop.trf.xlu0
        %v434 = vpop.trf.xlu0
        %v435 = vpop.trf.xlu0
        %v436 = vpop.trf.xlu0
        %v437 = vpop.trf.xlu0
        %v438 = vpop.trf.xlu0
        %v439 = vpop.trf.xlu0
        %v440 = vpop.trf.xlu0
        %v441 = vpop.trf.xlu0
        %v442 = vpop.trf.xlu0
        %v443 = vpop.trf.xlu0
        %v444 = vpop.trf.xlu0
        %v445 = vpop.trf.xlu0
        %v446 = vpop.trf.xlu0
        %vm447 = vcmask 64512
        %v449 = vsel %vm447, %v399, 0
        %v452 = vsel %vm447, %v400, 0
        %v455 = vsel %vm447, %v401, 0
        %v458 = vsel %vm447, %v402, 0
        %v461 = vsel %vm447, %v403, 0
        %v464 = vsel %vm447, %v404, 0
        %v467 = vsel %vm447, %v405, 0
        %v470 = vsel %vm447, %v406, 0
        %v473 = vsel %vm447, %v407, 0
        %v476 = vsel %vm447, %v408, 0
        %v479 = vsel %vm447, %v409, 0
        %v482 = vsel %vm447, %v410, 0
        %v485 = vsel %vm447, %v411, 0
        %v488 = vsel %vm447, %v412, 0
        %v491 = vsel %vm447, %v413, 0
        %v494 = vsel %vm447, %v414, 0
        %v497 = vsel %vm447, %v431, 0
        %v500 = vsel %vm447, %v432, 0
        %v503 = vsel %vm447, %v433, 0
        %v506 = vsel %vm447, %v434, 0
        %v509 = vsel %vm447, %v435, 0
        %v512 = vsel %vm447, %v436, 0
        %v515 = vsel %vm447, %v437, 0
        %v518 = vsel %vm447, %v438, 0
        %v521 = vsel %vm447, %v439, 0
        %v524 = vsel %vm447, %v440, 0
        %v527 = vsel %vm447, %v441, 0
        %v530 = vsel %vm447, %v442, 0
        %v533 = vsel %vm447, %v443, 0
        %v536 = vsel %vm447, %v444, 0
        %v539 = vsel %vm447, %v445, 0
        %v542 = vsel %vm447, %v446, 0
        %544 = vmatpush.msra.mxu0 0.0
        %545 = vmatpush.msra.mxu0 0.0
        %546 = vmatpush.msra.mxu0 0.0
        %547 = vmatpush.msra.mxu0 0.0
        %548 = vmatpush.msra.mxu0 0.0
        %549 = vmatpush.msra.mxu0 0.0
        %550 = vmatpush.msra.mxu0 0.0
        %551 = vmatpush.msra.mxu0 0.0
        %552 = vmatpush.msra.mxu0 0.0
        %553 = vmatpush.msra.mxu0 0.0
        %554 = vmatpush.msra.mxu0 0.0
        %555 = vmatpush.msra.mxu0 0.0
        %556 = vmatpush.msra.mxu0 0.0
        %557 = vmatpush.msra.mxu0 0.0
        %558 = vmatpush.msra.mxu0 0.0
        %559 = vmatpush.msra.mxu0 %v337
        %560 = vmatmul.f32.gmra.mxu0 %v449
        %v561 = vpop.f32.mrf.mxu0
        %v562 = vadd.f32 0.0, %v561
        %563 = vmatmul.f32.gmra.mxu0 %v452
        %v564 = vpop.f32.mrf.mxu0
        %v565 = vadd.f32 0.0, %v564
        %566 = vmatmul.f32.gmra.mxu0 %v455
        %v567 = vpop.f32.mrf.mxu0
        %v568 = vadd.f32 0.0, %v567
        %569 = vmatmul.f32.gmra.mxu0 %v458
        %v570 = vpop.f32.mrf.mxu0
        %v571 = vadd.f32 0.0, %v570
        %572 = vmatmul.f32.gmra.mxu0 %v461
        %v573 = vpop.f32.mrf.mxu0
        %v574 = vadd.f32 0.0, %v573
        %575 = vmatmul.f32.gmra.mxu0 %v464
        %v576 = vpop.f32.mrf.mxu0
        %v577 = vadd.f32 0.0, %v576
        %578 = vmatmul.f32.gmra.mxu0 %v467
        %v579 = vpop.f32.mrf.mxu0
        %v580 = vadd.f32 0.0, %v579
        %581 = vmatmul.f32.gmra.mxu0 %v470
        %v582 = vpop.f32.mrf.mxu0
        %v583 = vadd.f32 0.0, %v582
        %584 = vmatmul.f32.gmra.mxu0 %v473
        %v585 = vpop.f32.mrf.mxu0
        %v586 = vadd.f32 0.0, %v585
        %587 = vmatmul.f32.gmra.mxu0 %v476
        %v588 = vpop.f32.mrf.mxu0
        %v589 = vadd.f32 0.0, %v588
        %590 = vmatmul.f32.gmra.mxu0 %v479
        %v591 = vpop.f32.mrf.mxu0
        %v592 = vadd.f32 0.0, %v591
        %593 = vmatmul.f32.gmra.mxu0 %v482
        %v594 = vpop.f32.mrf.mxu0
        %v595 = vadd.f32 0.0, %v594
        %596 = vmatmul.f32.gmra.mxu0 %v485
        %v597 = vpop.f32.mrf.mxu0
        %v598 = vadd.f32 0.0, %v597
        %599 = vmatmul.f32.gmra.mxu0 %v488
        %v600 = vpop.f32.mrf.mxu0
        %v601 = vadd.f32 0.0, %v600
        %602 = vmatmul.f32.gmra.mxu0 %v491
        %v603 = vpop.f32.mrf.mxu0
        %v604 = vadd.f32 0.0, %v603
        %605 = vmatmul.f32.gmra.mxu0 %v494
        %v606 = vpop.f32.mrf.mxu0
        %v607 = vadd.f32 0.0, %v606
        %608 = vmatmul.f32.gmra.mxu0 %v497
        %v609 = vpop.f32.mrf.mxu0
        %v610 = vadd.f32 0.0, %v609
        %611 = vmatmul.f32.gmra.mxu0 %v500
        %v612 = vpop.f32.mrf.mxu0
        %v613 = vadd.f32 0.0, %v612
        %614 = vmatmul.f32.gmra.mxu0 %v503
        %v615 = vpop.f32.mrf.mxu0
        %v616 = vadd.f32 0.0, %v615
        %617 = vmatmul.f32.gmra.mxu0 %v506
        %v618 = vpop.f32.mrf.mxu0
        %v619 = vadd.f32 0.0, %v618
        %620 = vmatmul.f32.gmra.mxu0 %v509
        %v621 = vpop.f32.mrf.mxu0
        %v622 = vadd.f32 0.0, %v621
        %623 = vmatmul.f32.gmra.mxu0 %v512
        %v624 = vpop.f32.mrf.mxu0
        %v625 = vadd.f32 0.0, %v624
        %626 = vmatmul.f32.gmra.mxu0 %v515
        %v627 = vpop.f32.mrf.mxu0
        %v628 = vadd.f32 0.0, %v627
        %629 = vmatmul.f32.gmra.mxu0 %v518
        %v630 = vpop.f32.mrf.mxu0
        %v631 = vadd.f32 0.0, %v630
        %632 = vmatmul.f32.gmra.mxu0 %v521
        %v633 = vpop.f32.mrf.mxu0
        %v634 = vadd.f32 0.0, %v633
        %635 = vmatmul.f32.gmra.mxu0 %v524
        %v636 = vpop.f32.mrf.mxu0
        %v637 = vadd.f32 0.0, %v636
        %638 = vmatmul.f32.gmra.mxu0 %v527
        %v639 = vpop.f32.mrf.mxu0
        %v640 = vadd.f32 0.0, %v639
        %641 = vmatmul.f32.gmra.mxu0 %v530
        %v642 = vpop.f32.mrf.mxu0
        %v643 = vadd.f32 0.0, %v642
        %644 = vmatmul.f32.gmra.mxu0 %v533
        %v645 = vpop.f32.mrf.mxu0
        %v646 = vadd.f32 0.0, %v645
        %647 = vmatmul.f32.gmra.mxu0 %v536
        %v648 = vpop.f32.mrf.mxu0
        %v649 = vadd.f32 0.0, %v648
        %650 = vmatmul.f32.gmra.mxu0 %v539
        %v651 = vpop.f32.mrf.mxu0
        %v652 = vadd.f32 0.0, %v651
        %653 = vmatmul.f32.gmra.mxu0 %v542
        %v654 = vpop.f32.mrf.mxu0
        %v655 = vadd.f32 0.0, %v654
        %656 = vdwg.mxu0
        %657 = vmatpush.msra.mxu0 0.0
        %658 = vmatpush.msra.mxu0 0.0
        %659 = vmatpush.msra.mxu0 0.0
        %660 = vmatpush.msra.mxu0 0.0
        %661 = vmatpush.msra.mxu0 0.0
        %662 = vmatpush.msra.mxu0 0.0
        %663 = vmatpush.msra.mxu0 0.0
        %664 = vmatpush.msra.mxu0 0.0
        %665 = vmatpush.msra.mxu0 0.0
        %666 = vmatpush.msra.mxu0 0.0
        %667 = vmatpush.msra.mxu0 0.0
        %668 = vmatpush.msra.mxu0 0.0
        %669 = vmatpush.msra.mxu0 0.0
        %670 = vmatpush.msra.mxu0 0.0
        %671 = vmatpush.msra.mxu0 0.0
        %672 = vmatpush.msra.mxu0 %v372
        %673 = vmatmul.f32.gmra.mxu0 %v449
        %v674 = vpop.f32.mrf.mxu0
        %v675 = vadd.f32 0.0, %v674
        %676 = vmatmul.f32.gmra.mxu0 %v452
        %v677 = vpop.f32.mrf.mxu0
        %v678 = vadd.f32 0.0, %v677
        %679 = vmatmul.f32.gmra.mxu0 %v455
        %v680 = vpop.f32.mrf.mxu0
        %v681 = vadd.f32 0.0, %v680
        %682 = vmatmul.f32.gmra.mxu0 %v458
        %v683 = vpop.f32.mrf.mxu0
        %v684 = vadd.f32 0.0, %v683
        %685 = vmatmul.f32.gmra.mxu0 %v461
        %v686 = vpop.f32.mrf.mxu0
        %v687 = vadd.f32 0.0, %v686
        %688 = vmatmul.f32.gmra.mxu0 %v464
        %v689 = vpop.f32.mrf.mxu0
        %v690 = vadd.f32 0.0, %v689
        %691 = vmatmul.f32.gmra.mxu0 %v467
        %v692 = vpop.f32.mrf.mxu0
        %v693 = vadd.f32 0.0, %v692
        %694 = vmatmul.f32.gmra.mxu0 %v470
        %v695 = vpop.f32.mrf.mxu0
        %v696 = vadd.f32 0.0, %v695
        %697 = vmatmul.f32.gmra.mxu0 %v473
        %v698 = vpop.f32.mrf.mxu0
        %v699 = vadd.f32 0.0, %v698
        %700 = vmatmul.f32.gmra.mxu0 %v476
        %v701 = vpop.f32.mrf.mxu0
        %v702 = vadd.f32 0.0, %v701
        %703 = vmatmul.f32.gmra.mxu0 %v479
        %v704 = vpop.f32.mrf.mxu0
        %v705 = vadd.f32 0.0, %v704
        %706 = vmatmul.f32.gmra.mxu0 %v482
        %v707 = vpop.f32.mrf.mxu0
        %v708 = vadd.f32 0.0, %v707
        %709 = vmatmul.f32.gmra.mxu0 %v485
        %v710 = vpop.f32.mrf.mxu0
        %v711 = vadd.f32 0.0, %v710
        %712 = vmatmul.f32.gmra.mxu0 %v488
        %v713 = vpop.f32.mrf.mxu0
        %v714 = vadd.f32 0.0, %v713
        %715 = vmatmul.f32.gmra.mxu0 %v491
        %v716 = vpop.f32.mrf.mxu0
        %v717 = vadd.f32 0.0, %v716
        %718 = vmatmul.f32.gmra.mxu0 %v494
        %v719 = vpop.f32.mrf.mxu0
        %v720 = vadd.f32 0.0, %v719
        %721 = vmatmul.f32.gmra.mxu0 %v497
        %v722 = vpop.f32.mrf.mxu0
        %v723 = vadd.f32 0.0, %v722
        %724 = vmatmul.f32.gmra.mxu0 %v500
        %v725 = vpop.f32.mrf.mxu0
        %v726 = vadd.f32 0.0, %v725
        %727 = vmatmul.f32.gmra.mxu0 %v503
        %v728 = vpop.f32.mrf.mxu0
        %v729 = vadd.f32 0.0, %v728
        %730 = vmatmul.f32.gmra.mxu0 %v506
        %v731 = vpop.f32.mrf.mxu0
        %v732 = vadd.f32 0.0, %v731
        %733 = vmatmul.f32.gmra.mxu0 %v509
        %v734 = vpop.f32.mrf.mxu0
        %v735 = vadd.f32 0.0, %v734
        %736 = vmatmul.f32.gmra.mxu0 %v512
        %v737 = vpop.f32.mrf.mxu0
        %v738 = vadd.f32 0.0, %v737
        %739 = vmatmul.f32.gmra.mxu0 %v515
        %v740 = vpop.f32.mrf.mxu0
        %v741 = vadd.f32 0.0, %v740
        %742 = vmatmul.f32.gmra.mxu0 %v518
        %v743 = vpop.f32.mrf.mxu0
        %v744 = vadd.f32 0.0, %v743
        %745 = vmatmul.f32.gmra.mxu0 %v521
        %v746 = vpop.f32.mrf.mxu0
        %v747 = vadd.f32 0.0, %v746
        %748 = vmatmul.f32.gmra.mxu0 %v524
        %v749 = vpop.f32.mrf.mxu0
        %v750 = vadd.f32 0.0, %v749
        %751 = vmatmul.f32.gmra.mxu0 %v527
        %v752 = vpop.f32.mrf.mxu0
        %v753 = vadd.f32 0.0, %v752
        %754 = vmatmul.f32.gmra.mxu0 %v530
        %v755 = vpop.f32.mrf.mxu0
        %v756 = vadd.f32 0.0, %v755
        %757 = vmatmul.f32.gmra.mxu0 %v533
        %v758 = vpop.f32.mrf.mxu0
        %v759 = vadd.f32 0.0, %v758
        %760 = vmatmul.f32.gmra.mxu0 %v536
        %v761 = vpop.f32.mrf.mxu0
        %v762 = vadd.f32 0.0, %v761
        %763 = vmatmul.f32.gmra.mxu0 %v539
        %v764 = vpop.f32.mrf.mxu0
        %v765 = vadd.f32 0.0, %v764
        %766 = vmatmul.f32.gmra.mxu0 %v542
        %v767 = vpop.f32.mrf.mxu0
        %v768 = vadd.f32 0.0, %v767
        %769 = vdwg.mxu0
        %770 = vxpose.xlu0.b32.start [1/16] %v334, 128
        %771 = vxpose.xlu0.b32.cont [2/16] 0.0, 128
        %772 = vxpose.xlu0.b32.cont [3/16] 0.0, 128
        %773 = vxpose.xlu0.b32.cont [4/16] 0.0, 128
        %774 = vxpose.xlu0.b32.cont [5/16] 0.0, 128
        %775 = vxpose.xlu0.b32.cont [6/16] 0.0, 128
        %776 = vxpose.xlu0.b32.cont [7/16] 0.0, 128
        %777 = vxpose.xlu0.b32.cont [8/16] 0.0, 128
        %778 = vxpose.xlu0.b32.cont [9/16] 0.0, 128
        %779 = vxpose.xlu0.b32.cont [10/16] 0.0, 128
        %780 = vxpose.xlu0.b32.cont [11/16] 0.0, 128
        %781 = vxpose.xlu0.b32.cont [12/16] 0.0, 128
        %782 = vxpose.xlu0.b32.cont [13/16] 0.0, 128
        %783 = vxpose.xlu0.b32.cont [14/16] 0.0, 128
        %784 = vxpose.xlu0.b32.cont [15/16] 0.0, 128
        %785 = vxpose.xlu0.b32.end [16/16] 0.0, 128
        %v786 = vpop.trf.xlu0
        %v787 = vpop.trf.xlu0
        %v788 = vpop.trf.xlu0
        %v789 = vpop.trf.xlu0
        %v790 = vpop.trf.xlu0
        %v791 = vpop.trf.xlu0
        %v792 = vpop.trf.xlu0
        %v793 = vpop.trf.xlu0
        %v794 = vpop.trf.xlu0
        %v795 = vpop.trf.xlu0
        %v796 = vpop.trf.xlu0
        %v797 = vpop.trf.xlu0
        %v798 = vpop.trf.xlu0
        %v799 = vpop.trf.xlu0
        %v800 = vpop.trf.xlu0
        %v801 = vpop.trf.xlu0
        %802 = vxpose.xlu0.b32.start [1/16] %v369, 128
        %803 = vxpose.xlu0.b32.cont [2/16] 0.0, 128
        %804 = vxpose.xlu0.b32.cont [3/16] 0.0, 128
        %805 = vxpose.xlu0.b32.cont [4/16] 0.0, 128
        %806 = vxpose.xlu0.b32.cont [5/16] 0.0, 128
        %807 = vxpose.xlu0.b32.cont [6/16] 0.0, 128
        %808 = vxpose.xlu0.b32.cont [7/16] 0.0, 128
        %809 = vxpose.xlu0.b32.cont [8/16] 0.0, 128
        %810 = vxpose.xlu0.b32.cont [9/16] 0.0, 128
        %811 = vxpose.xlu0.b32.cont [10/16] 0.0, 128
        %812 = vxpose.xlu0.b32.cont [11/16] 0.0, 128
        %813 = vxpose.xlu0.b32.cont [12/16] 0.0, 128
        %814 = vxpose.xlu0.b32.cont [13/16] 0.0, 128
        %815 = vxpose.xlu0.b32.cont [14/16] 0.0, 128
        %816 = vxpose.xlu0.b32.cont [15/16] 0.0, 128
        %817 = vxpose.xlu0.b32.end [16/16] 0.0, 128
        %v818 = vpop.trf.xlu0
        %v819 = vpop.trf.xlu0
        %v820 = vpop.trf.xlu0
        %v821 = vpop.trf.xlu0
        %v822 = vpop.trf.xlu0
        %v823 = vpop.trf.xlu0
        %v824 = vpop.trf.xlu0
        %v825 = vpop.trf.xlu0
        %v826 = vpop.trf.xlu0
        %v827 = vpop.trf.xlu0
        %v828 = vpop.trf.xlu0
        %v829 = vpop.trf.xlu0
        %v830 = vpop.trf.xlu0
        %v831 = vpop.trf.xlu0
        %v832 = vpop.trf.xlu0
        %v833 = vpop.trf.xlu0
        %v835 = vsel %vm447, %v786, 0
        %v838 = vsel %vm447, %v787, 0
        %v841 = vsel %vm447, %v788, 0
        %v844 = vsel %vm447, %v789, 0
        %v847 = vsel %vm447, %v790, 0
        %v850 = vsel %vm447, %v791, 0
        %v853 = vsel %vm447, %v792, 0
        %v856 = vsel %vm447, %v793, 0
        %v859 = vsel %vm447, %v794, 0
        %v862 = vsel %vm447, %v795, 0
        %v865 = vsel %vm447, %v796, 0
        %v868 = vsel %vm447, %v797, 0
        %v871 = vsel %vm447, %v798, 0
        %v874 = vsel %vm447, %v799, 0
        %v877 = vsel %vm447, %v800, 0
        %v880 = vsel %vm447, %v801, 0
        %v883 = vsel %vm447, %v818, 0
        %v886 = vsel %vm447, %v819, 0
        %v889 = vsel %vm447, %v820, 0
        %v892 = vsel %vm447, %v821, 0
        %v895 = vsel %vm447, %v822, 0
        %v898 = vsel %vm447, %v823, 0
        %v901 = vsel %vm447, %v824, 0
        %v904 = vsel %vm447, %v825, 0
        %v907 = vsel %vm447, %v826, 0
        %v910 = vsel %vm447, %v827, 0
        %v913 = vsel %vm447, %v828, 0
        %v916 = vsel %vm447, %v829, 0
        %v919 = vsel %vm447, %v830, 0
        %v922 = vsel %vm447, %v831, 0
        %v925 = vsel %vm447, %v832, 0
        %v928 = vsel %vm447, %v833, 0
        %930 = vmatpush.msra.mxu0 0.0
        %931 = vmatpush.msra.mxu0 0.0
        %932 = vmatpush.msra.mxu0 0.0
        %933 = vmatpush.msra.mxu0 0.0
        %934 = vmatpush.msra.mxu0 0.0
        %935 = vmatpush.msra.mxu0 0.0
        %936 = vmatpush.msra.mxu0 0.0
        %937 = vmatpush.msra.mxu0 0.0
        %938 = vmatpush.msra.mxu0 0.0
        %939 = vmatpush.msra.mxu0 0.0
        %940 = vmatpush.msra.mxu0 0.0
        %941 = vmatpush.msra.mxu0 0.0
        %942 = vmatpush.msra.mxu0 0.0
        %943 = vmatpush.msra.mxu0 0.0
        %944 = vmatpush.msra.mxu0 0.0
        %945 = vmatpush.msra.mxu0 %v340
        %946 = vmatmul.f32.gmra.mxu0 %v835
        %v947 = vpop.f32.mrf.mxu0
        %v948 = vadd.f32 0.0, %v947
        %949 = vmatmul.f32.gmra.mxu0 %v838
        %v950 = vpop.f32.mrf.mxu0
        %v951 = vadd.f32 0.0, %v950
        %952 = vmatmul.f32.gmra.mxu0 %v841
        %v953 = vpop.f32.mrf.mxu0
        %v954 = vadd.f32 0.0, %v953
        %955 = vmatmul.f32.gmra.mxu0 %v844
        %v956 = vpop.f32.mrf.mxu0
        %v957 = vadd.f32 0.0, %v956
        %958 = vmatmul.f32.gmra.mxu0 %v847
        %v959 = vpop.f32.mrf.mxu0
        %v960 = vadd.f32 0.0, %v959
        %961 = vmatmul.f32.gmra.mxu0 %v850
        %v962 = vpop.f32.mrf.mxu0
        %v963 = vadd.f32 0.0, %v962
        %964 = vmatmul.f32.gmra.mxu0 %v853
        %v965 = vpop.f32.mrf.mxu0
        %v966 = vadd.f32 0.0, %v965
        %967 = vmatmul.f32.gmra.mxu0 %v856
        %v968 = vpop.f32.mrf.mxu0
        %v969 = vadd.f32 0.0, %v968
        %970 = vmatmul.f32.gmra.mxu0 %v859
        %v971 = vpop.f32.mrf.mxu0
        %v972 = vadd.f32 0.0, %v971
        %973 = vmatmul.f32.gmra.mxu0 %v862
        %v974 = vpop.f32.mrf.mxu0
        %v975 = vadd.f32 0.0, %v974
        %976 = vmatmul.f32.gmra.mxu0 %v865
        %v977 = vpop.f32.mrf.mxu0
        %v978 = vadd.f32 0.0, %v977
        %979 = vmatmul.f32.gmra.mxu0 %v868
        %v980 = vpop.f32.mrf.mxu0
        %v981 = vadd.f32 0.0, %v980
        %982 = vmatmul.f32.gmra.mxu0 %v871
        %v983 = vpop.f32.mrf.mxu0
        %v984 = vadd.f32 0.0, %v983
        %985 = vmatmul.f32.gmra.mxu0 %v874
        %v986 = vpop.f32.mrf.mxu0
        %v987 = vadd.f32 0.0, %v986
        %988 = vmatmul.f32.gmra.mxu0 %v877
        %v989 = vpop.f32.mrf.mxu0
        %v990 = vadd.f32 0.0, %v989
        %991 = vmatmul.f32.gmra.mxu0 %v880
        %v992 = vpop.f32.mrf.mxu0
        %v993 = vadd.f32 0.0, %v992
        %994 = vmatmul.f32.gmra.mxu0 %v883
        %v995 = vpop.f32.mrf.mxu0
        %v996 = vadd.f32 0.0, %v995
        %997 = vmatmul.f32.gmra.mxu0 %v886
        %v998 = vpop.f32.mrf.mxu0
        %v999 = vadd.f32 0.0, %v998
        %1000 = vmatmul.f32.gmra.mxu0 %v889
        %v1001 = vpop.f32.mrf.mxu0
        %v1002 = vadd.f32 0.0, %v1001
        %1003 = vmatmul.f32.gmra.mxu0 %v892
        %v1004 = vpop.f32.mrf.mxu0
        %v1005 = vadd.f32 0.0, %v1004
        %1006 = vmatmul.f32.gmra.mxu0 %v895
        %v1007 = vpop.f32.mrf.mxu0
        %v1008 = vadd.f32 0.0, %v1007
        %1009 = vmatmul.f32.gmra.mxu0 %v898
        %v1010 = vpop.f32.mrf.mxu0
        %v1011 = vadd.f32 0.0, %v1010
        %1012 = vmatmul.f32.gmra.mxu0 %v901
        %v1013 = vpop.f32.mrf.mxu0
        %v1014 = vadd.f32 0.0, %v1013
        %1015 = vmatmul.f32.gmra.mxu0 %v904
        %v1016 = vpop.f32.mrf.mxu0
        %v1017 = vadd.f32 0.0, %v1016
        %1018 = vmatmul.f32.gmra.mxu0 %v907
        %v1019 = vpop.f32.mrf.mxu0
        %v1020 = vadd.f32 0.0, %v1019
        %1021 = vmatmul.f32.gmra.mxu0 %v910
        %v1022 = vpop.f32.mrf.mxu0
        %v1023 = vadd.f32 0.0, %v1022
        %1024 = vmatmul.f32.gmra.mxu0 %v913
        %v1025 = vpop.f32.mrf.mxu0
        %v1026 = vadd.f32 0.0, %v1025
        %1027 = vmatmul.f32.gmra.mxu0 %v916
        %v1028 = vpop.f32.mrf.mxu0
        %v1029 = vadd.f32 0.0, %v1028
        %1030 = vmatmul.f32.gmra.mxu0 %v919
        %v1031 = vpop.f32.mrf.mxu0
        %v1032 = vadd.f32 0.0, %v1031
        %1033 = vmatmul.f32.gmra.mxu0 %v922
        %v1034 = vpop.f32.mrf.mxu0
        %v1035 = vadd.f32 0.0, %v1034
        %1036 = vmatmul.f32.gmra.mxu0 %v925
        %v1037 = vpop.f32.mrf.mxu0
        %v1038 = vadd.f32 0.0, %v1037
        %1039 = vmatmul.f32.gmra.mxu0 %v928
        %v1040 = vpop.f32.mrf.mxu0
        %v1041 = vadd.f32 0.0, %v1040
        %1042 = vdwg.mxu0
        %1043 = vmatpush.msra.mxu0 0.0
        %1044 = vmatpush.msra.mxu0 0.0
        %1045 = vmatpush.msra.mxu0 0.0
        %1046 = vmatpush.msra.mxu0 0.0
        %1047 = vmatpush.msra.mxu0 0.0
        %1048 = vmatpush.msra.mxu0 0.0
        %1049 = vmatpush.msra.mxu0 0.0
        %1050 = vmatpush.msra.mxu0 0.0
        %1051 = vmatpush.msra.mxu0 0.0
        %1052 = vmatpush.msra.mxu0 0.0
        %1053 = vmatpush.msra.mxu0 0.0
        %1054 = vmatpush.msra.mxu0 0.0
        %1055 = vmatpush.msra.mxu0 0.0
        %1056 = vmatpush.msra.mxu0 0.0
        %1057 = vmatpush.msra.mxu0 0.0
        %1058 = vmatpush.msra.mxu0 %v375
        %1059 = vmatmul.f32.gmra.mxu0 %v835
        %v1060 = vpop.f32.mrf.mxu0
        %v1061 = vadd.f32 0.0, %v1060
        %1062 = vmatmul.f32.gmra.mxu0 %v838
        %v1063 = vpop.f32.mrf.mxu0
        %v1064 = vadd.f32 0.0, %v1063
        %1065 = vmatmul.f32.gmra.mxu0 %v841
        %v1066 = vpop.f32.mrf.mxu0
        %v1067 = vadd.f32 0.0, %v1066
        %1068 = vmatmul.f32.gmra.mxu0 %v844
        %v1069 = vpop.f32.mrf.mxu0
        %v1070 = vadd.f32 0.0, %v1069
        %1071 = vmatmul.f32.gmra.mxu0 %v847
        %v1072 = vpop.f32.mrf.mxu0
        %v1073 = vadd.f32 0.0, %v1072
        %1074 = vmatmul.f32.gmra.mxu0 %v850
        %v1075 = vpop.f32.mrf.mxu0
        %v1076 = vadd.f32 0.0, %v1075
        %1077 = vmatmul.f32.gmra.mxu0 %v853
        %v1078 = vpop.f32.mrf.mxu0
        %v1079 = vadd.f32 0.0, %v1078
        %1080 = vmatmul.f32.gmra.mxu0 %v856
        %v1081 = vpop.f32.mrf.mxu0
        %v1082 = vadd.f32 0.0, %v1081
        %1083 = vmatmul.f32.gmra.mxu0 %v859
        %v1084 = vpop.f32.mrf.mxu0
        %v1085 = vadd.f32 0.0, %v1084
        %1086 = vmatmul.f32.gmra.mxu0 %v862
        %v1087 = vpop.f32.mrf.mxu0
        %v1088 = vadd.f32 0.0, %v1087
        %1089 = vmatmul.f32.gmra.mxu0 %v865
        %v1090 = vpop.f32.mrf.mxu0
        %v1091 = vadd.f32 0.0, %v1090
        %1092 = vmatmul.f32.gmra.mxu0 %v868
        %v1093 = vpop.f32.mrf.mxu0
        %v1094 = vadd.f32 0.0, %v1093
        %1095 = vmatmul.f32.gmra.mxu0 %v871
        %v1096 = vpop.f32.mrf.mxu0
        %v1097 = vadd.f32 0.0, %v1096
        %1098 = vmatmul.f32.gmra.mxu0 %v874
        %v1099 = vpop.f32.mrf.mxu0
        %v1100 = vadd.f32 0.0, %v1099
        %1101 = vmatmul.f32.gmra.mxu0 %v877
        %v1102 = vpop.f32.mrf.mxu0
        %v1103 = vadd.f32 0.0, %v1102
        %1104 = vmatmul.f32.gmra.mxu0 %v880
        %v1105 = vpop.f32.mrf.mxu0
        %v1106 = vadd.f32 0.0, %v1105
        %1107 = vmatmul.f32.gmra.mxu0 %v883
        %v1108 = vpop.f32.mrf.mxu0
        %v1109 = vadd.f32 0.0, %v1108
        %1110 = vmatmul.f32.gmra.mxu0 %v886
        %v1111 = vpop.f32.mrf.mxu0
        %v1112 = vadd.f32 0.0, %v1111
        %1113 = vmatmul.f32.gmra.mxu0 %v889
        %v1114 = vpop.f32.mrf.mxu0
        %v1115 = vadd.f32 0.0, %v1114
        %1116 = vmatmul.f32.gmra.mxu0 %v892
        %v1117 = vpop.f32.mrf.mxu0
        %v1118 = vadd.f32 0.0, %v1117
        %1119 = vmatmul.f32.gmra.mxu0 %v895
        %v1120 = vpop.f32.mrf.mxu0
        %v1121 = vadd.f32 0.0, %v1120
        %1122 = vmatmul.f32.gmra.mxu0 %v898
        %v1123 = vpop.f32.mrf.mxu0
        %v1124 = vadd.f32 0.0, %v1123
        %1125 = vmatmul.f32.gmra.mxu0 %v901
        %v1126 = vpop.f32.mrf.mxu0
        %v1127 = vadd.f32 0.0, %v1126
        %1128 = vmatmul.f32.gmra.mxu0 %v904
        %v1129 = vpop.f32.mrf.mxu0
        %v1130 = vadd.f32 0.0, %v1129
        %1131 = vmatmul.f32.gmra.mxu0 %v907
        %v1132 = vpop.f32.mrf.mxu0
        %v1133 = vadd.f32 0.0, %v1132
        %1134 = vmatmul.f32.gmra.mxu0 %v910
        %v1135 = vpop.f32.mrf.mxu0
        %v1136 = vadd.f32 0.0, %v1135
        %1137 = vmatmul.f32.gmra.mxu0 %v913
        %v1138 = vpop.f32.mrf.mxu0
        %v1139 = vadd.f32 0.0, %v1138
        %1140 = vmatmul.f32.gmra.mxu0 %v916
        %v1141 = vpop.f32.mrf.mxu0
        %v1142 = vadd.f32 0.0, %v1141
        %1143 = vmatmul.f32.gmra.mxu0 %v919
        %v1144 = vpop.f32.mrf.mxu0
        %v1145 = vadd.f32 0.0, %v1144
        %1146 = vmatmul.f32.gmra.mxu0 %v922
        %v1147 = vpop.f32.mrf.mxu0
        %v1148 = vadd.f32 0.0, %v1147
        %1149 = vmatmul.f32.gmra.mxu0 %v925
        %v1150 = vpop.f32.mrf.mxu0
        %v1151 = vadd.f32 0.0, %v1150
        %1152 = vmatmul.f32.gmra.mxu0 %v928
        %v1153 = vpop.f32.mrf.mxu0
        %v1154 = vadd.f32 0.0, %v1153
        %1155 = vdwg.mxu0
        %v1156 = vmax.f32 %v562, %v675
        %1157 = vmax.xlane.f32.xlu0 %v1156
        %v1158 = vpop.xlane.xlu0 %1157
        %v1159 = vmax.f32 %v565, %v678
        %1160 = vmax.xlane.f32.xlu0 %v1159
        %v1161 = vpop.xlane.xlu0 %1160
        %v1162 = vmax.f32 %v568, %v681
        %1163 = vmax.xlane.f32.xlu0 %v1162
        %v1164 = vpop.xlane.xlu0 %1163
        %v1165 = vmax.f32 %v571, %v684
        %1166 = vmax.xlane.f32.xlu0 %v1165
        %v1167 = vpop.xlane.xlu0 %1166
        %v1168 = vmax.f32 %v574, %v687
        %1169 = vmax.xlane.f32.xlu0 %v1168
        %v1170 = vpop.xlane.xlu0 %1169
        %v1171 = vmax.f32 %v577, %v690
        %1172 = vmax.xlane.f32.xlu0 %v1171
        %v1173 = vpop.xlane.xlu0 %1172
        %v1174 = vmax.f32 %v580, %v693
        %1175 = vmax.xlane.f32.xlu0 %v1174
        %v1176 = vpop.xlane.xlu0 %1175
        %v1177 = vmax.f32 %v583, %v696
        %1178 = vmax.xlane.f32.xlu0 %v1177
        %v1179 = vpop.xlane.xlu0 %1178
        %v1180 = vmax.f32 %v586, %v699
        %1181 = vmax.xlane.f32.xlu0 %v1180
        %v1182 = vpop.xlane.xlu0 %1181
        %v1183 = vmax.f32 %v589, %v702
        %1184 = vmax.xlane.f32.xlu0 %v1183
        %v1185 = vpop.xlane.xlu0 %1184
        %v1186 = vmax.f32 %v592, %v705
        %1187 = vmax.xlane.f32.xlu0 %v1186
        %v1188 = vpop.xlane.xlu0 %1187
        %v1189 = vmax.f32 %v595, %v708
        %1190 = vmax.xlane.f32.xlu0 %v1189
        %v1191 = vpop.xlane.xlu0 %1190
        %v1192 = vmax.f32 %v598, %v711
        %1193 = vmax.xlane.f32.xlu0 %v1192
        %v1194 = vpop.xlane.xlu0 %1193
        %v1195 = vmax.f32 %v601, %v714
        %1196 = vmax.xlane.f32.xlu0 %v1195
        %v1197 = vpop.xlane.xlu0 %1196
        %v1198 = vmax.f32 %v604, %v717
        %1199 = vmax.xlane.f32.xlu0 %v1198
        %v1200 = vpop.xlane.xlu0 %1199
        %v1201 = vmax.f32 %v607, %v720
        %1202 = vmax.xlane.f32.xlu0 %v1201
        %v1203 = vpop.xlane.xlu0 %1202
        %v1204 = vmax.f32 %v610, %v723
        %1205 = vmax.xlane.f32.xlu0 %v1204
        %v1206 = vpop.xlane.xlu0 %1205
        %v1207 = vmax.f32 %v613, %v726
        %1208 = vmax.xlane.f32.xlu0 %v1207
        %v1209 = vpop.xlane.xlu0 %1208
        %v1210 = vmax.f32 %v616, %v729
        %1211 = vmax.xlane.f32.xlu0 %v1210
        %v1212 = vpop.xlane.xlu0 %1211
        %v1213 = vmax.f32 %v619, %v732
        %1214 = vmax.xlane.f32.xlu0 %v1213
        %v1215 = vpop.xlane.xlu0 %1214
        %v1216 = vmax.f32 %v622, %v735
        %1217 = vmax.xlane.f32.xlu0 %v1216
        %v1218 = vpop.xlane.xlu0 %1217
        %v1219 = vmax.f32 %v625, %v738
        %1220 = vmax.xlane.f32.xlu0 %v1219
        %v1221 = vpop.xlane.xlu0 %1220
        %v1222 = vmax.f32 %v628, %v741
        %1223 = vmax.xlane.f32.xlu0 %v1222
        %v1224 = vpop.xlane.xlu0 %1223
        %v1225 = vmax.f32 %v631, %v744
        %1226 = vmax.xlane.f32.xlu0 %v1225
        %v1227 = vpop.xlane.xlu0 %1226
        %v1228 = vmax.f32 %v634, %v747
        %1229 = vmax.xlane.f32.xlu0 %v1228
        %v1230 = vpop.xlane.xlu0 %1229
        %v1231 = vmax.f32 %v637, %v750
        %1232 = vmax.xlane.f32.xlu0 %v1231
        %v1233 = vpop.xlane.xlu0 %1232
        %v1234 = vmax.f32 %v640, %v753
        %1235 = vmax.xlane.f32.xlu0 %v1234
        %v1236 = vpop.xlane.xlu0 %1235
        %v1237 = vmax.f32 %v643, %v756
        %1238 = vmax.xlane.f32.xlu0 %v1237
        %v1239 = vpop.xlane.xlu0 %1238
        %v1240 = vmax.f32 %v646, %v759
        %1241 = vmax.xlane.f32.xlu0 %v1240
        %v1242 = vpop.xlane.xlu0 %1241
        %v1243 = vmax.f32 %v649, %v762
        %1244 = vmax.xlane.f32.xlu0 %v1243
        %v1245 = vpop.xlane.xlu0 %1244
        %v1246 = vmax.f32 %v652, %v765
        %1247 = vmax.xlane.f32.xlu0 %v1246
        %v1248 = vpop.xlane.xlu0 %1247
        %v1249 = vmax.f32 %v655, %v768
        %1250 = vmax.xlane.f32.xlu0 %v1249
        %v1251 = vpop.xlane.xlu0 %1250
        %v1252 = vmax.f32 %v948, %v1061
        %1253 = vmax.xlane.f32.xlu0 %v1252
        %v1254 = vpop.xlane.xlu0 %1253
        %v1255 = vmax.f32 %v951, %v1064
        %1256 = vmax.xlane.f32.xlu0 %v1255
        %v1257 = vpop.xlane.xlu0 %1256
        %v1258 = vmax.f32 %v954, %v1067
        %1259 = vmax.xlane.f32.xlu0 %v1258
        %v1260 = vpop.xlane.xlu0 %1259
        %v1261 = vmax.f32 %v957, %v1070
        %1262 = vmax.xlane.f32.xlu0 %v1261
        %v1263 = vpop.xlane.xlu0 %1262
        %v1264 = vmax.f32 %v960, %v1073
        %1265 = vmax.xlane.f32.xlu0 %v1264
        %v1266 = vpop.xlane.xlu0 %1265
        %v1267 = vmax.f32 %v963, %v1076
        %1268 = vmax.xlane.f32.xlu0 %v1267
        %v1269 = vpop.xlane.xlu0 %1268
        %v1270 = vmax.f32 %v966, %v1079
        %1271 = vmax.xlane.f32.xlu0 %v1270
        %v1272 = vpop.xlane.xlu0 %1271
        %v1273 = vmax.f32 %v969, %v1082
        %1274 = vmax.xlane.f32.xlu0 %v1273
        %v1275 = vpop.xlane.xlu0 %1274
        %v1276 = vmax.f32 %v972, %v1085
        %1277 = vmax.xlane.f32.xlu0 %v1276
        %v1278 = vpop.xlane.xlu0 %1277
        %v1279 = vmax.f32 %v975, %v1088
        %1280 = vmax.xlane.f32.xlu0 %v1279
        %v1281 = vpop.xlane.xlu0 %1280
        %v1282 = vmax.f32 %v978, %v1091
        %1283 = vmax.xlane.f32.xlu0 %v1282
        %v1284 = vpop.xlane.xlu0 %1283
        %v1285 = vmax.f32 %v981, %v1094
        %1286 = vmax.xlane.f32.xlu0 %v1285
        %v1287 = vpop.xlane.xlu0 %1286
        %v1288 = vmax.f32 %v984, %v1097
        %1289 = vmax.xlane.f32.xlu0 %v1288
        %v1290 = vpop.xlane.xlu0 %1289
        %v1291 = vmax.f32 %v987, %v1100
        %1292 = vmax.xlane.f32.xlu0 %v1291
        %v1293 = vpop.xlane.xlu0 %1292
        %v1294 = vmax.f32 %v990, %v1103
        %1295 = vmax.xlane.f32.xlu0 %v1294
        %v1296 = vpop.xlane.xlu0 %1295
        %v1297 = vmax.f32 %v993, %v1106
        %1298 = vmax.xlane.f32.xlu0 %v1297
        %v1299 = vpop.xlane.xlu0 %1298
        %v1300 = vmax.f32 %v996, %v1109
        %1301 = vmax.xlane.f32.xlu0 %v1300
        %v1302 = vpop.xlane.xlu0 %1301
        %v1303 = vmax.f32 %v999, %v1112
        %1304 = vmax.xlane.f32.xlu0 %v1303
        %v1305 = vpop.xlane.xlu0 %1304
        %v1306 = vmax.f32 %v1002, %v1115
        %1307 = vmax.xlane.f32.xlu0 %v1306
        %v1308 = vpop.xlane.xlu0 %1307
        %v1309 = vmax.f32 %v1005, %v1118
        %1310 = vmax.xlane.f32.xlu0 %v1309
        %v1311 = vpop.xlane.xlu0 %1310
        %v1312 = vmax.f32 %v1008, %v1121
        %1313 = vmax.xlane.f32.xlu0 %v1312
        %v1314 = vpop.xlane.xlu0 %1313
        %v1315 = vmax.f32 %v1011, %v1124
        %1316 = vmax.xlane.f32.xlu0 %v1315
        %v1317 = vpop.xlane.xlu0 %1316
        %v1318 = vmax.f32 %v1014, %v1127
        %1319 = vmax.xlane.f32.xlu0 %v1318
        %v1320 = vpop.xlane.xlu0 %1319
        %v1321 = vmax.f32 %v1017, %v1130
        %1322 = vmax.xlane.f32.xlu0 %v1321
        %v1323 = vpop.xlane.xlu0 %1322
        %v1324 = vmax.f32 %v1020, %v1133
        %1325 = vmax.xlane.f32.xlu0 %v1324
        %v1326 = vpop.xlane.xlu0 %1325
        %v1327 = vmax.f32 %v1023, %v1136
        %1328 = vmax.xlane.f32.xlu0 %v1327
        %v1329 = vpop.xlane.xlu0 %1328
        %v1330 = vmax.f32 %v1026, %v1139
        %1331 = vmax.xlane.f32.xlu0 %v1330
        %v1332 = vpop.xlane.xlu0 %1331
        %v1333 = vmax.f32 %v1029, %v1142
        %1334 = vmax.xlane.f32.xlu0 %v1333
        %v1335 = vpop.xlane.xlu0 %1334
        %v1336 = vmax.f32 %v1032, %v1145
        %1337 = vmax.xlane.f32.xlu0 %v1336
        %v1338 = vpop.xlane.xlu0 %1337
        %v1339 = vmax.f32 %v1035, %v1148
        %1340 = vmax.xlane.f32.xlu0 %v1339
        %v1341 = vpop.xlane.xlu0 %1340
        %v1342 = vmax.f32 %v1038, %v1151
        %1343 = vmax.xlane.f32.xlu0 %v1342
        %v1344 = vpop.xlane.xlu0 %1343
        %v1345 = vmax.f32 %v1041, %v1154
        %1346 = vmax.xlane.f32.xlu0 %v1345
        %v1347 = vpop.xlane.xlu0 %1346
        %v1348 = vsub.f32 %v562, %v1158
        %v1349 = vsub.f32 %v675, %v1158
        %v1350 = vsub.f32 %v565, %v1161
        %v1351 = vsub.f32 %v678, %v1161
        %v1352 = vsub.f32 %v568, %v1164
        %v1353 = vsub.f32 %v681, %v1164
        %v1354 = vsub.f32 %v571, %v1167
        %v1355 = vsub.f32 %v684, %v1167
        %v1356 = vsub.f32 %v574, %v1170
        %v1357 = vsub.f32 %v687, %v1170
        %v1358 = vsub.f32 %v577, %v1173
        %v1359 = vsub.f32 %v690, %v1173
        %v1360 = vsub.f32 %v580, %v1176
        %v1361 = vsub.f32 %v693, %v1176
        %v1362 = vsub.f32 %v583, %v1179
        %v1363 = vsub.f32 %v696, %v1179
        %v1364 = vsub.f32 %v586, %v1182
        %v1365 = vsub.f32 %v699, %v1182
        %v1366 = vsub.f32 %v589, %v1185
        %v1367 = vsub.f32 %v702, %v1185
        %v1368 = vsub.f32 %v592, %v1188
        %v1369 = vsub.f32 %v705, %v1188
        %v1370 = vsub.f32 %v595, %v1191
        %v1371 = vsub.f32 %v708, %v1191
        %v1372 = vsub.f32 %v598, %v1194
        %v1373 = vsub.f32 %v711, %v1194
        %v1374 = vsub.f32 %v601, %v1197
        %v1375 = vsub.f32 %v714, %v1197
        %v1376 = vsub.f32 %v604, %v1200
        %v1377 = vsub.f32 %v717, %v1200
        %v1378 = vsub.f32 %v607, %v1203
        %v1379 = vsub.f32 %v720, %v1203
        %v1380 = vsub.f32 %v610, %v1206
        %v1381 = vsub.f32 %v723, %v1206
        %v1382 = vsub.f32 %v613, %v1209
        %v1383 = vsub.f32 %v726, %v1209
        %v1384 = vsub.f32 %v616, %v1212
        %v1385 = vsub.f32 %v729, %v1212
        %v1386 = vsub.f32 %v619, %v1215
        %v1387 = vsub.f32 %v732, %v1215
        %v1388 = vsub.f32 %v622, %v1218
        %v1389 = vsub.f32 %v735, %v1218
        %v1390 = vsub.f32 %v625, %v1221
        %v1391 = vsub.f32 %v738, %v1221
        %v1392 = vsub.f32 %v628, %v1224
        %v1393 = vsub.f32 %v741, %v1224
        %v1394 = vsub.f32 %v631, %v1227
        %v1395 = vsub.f32 %v744, %v1227
        %v1396 = vsub.f32 %v634, %v1230
        %v1397 = vsub.f32 %v747, %v1230
        %v1398 = vsub.f32 %v637, %v1233
        %v1399 = vsub.f32 %v750, %v1233
        %v1400 = vsub.f32 %v640, %v1236
        %v1401 = vsub.f32 %v753, %v1236
        %v1402 = vsub.f32 %v643, %v1239
        %v1403 = vsub.f32 %v756, %v1239
        %v1404 = vsub.f32 %v646, %v1242
        %v1405 = vsub.f32 %v759, %v1242
        %v1406 = vsub.f32 %v649, %v1245
        %v1407 = vsub.f32 %v762, %v1245
        %v1408 = vsub.f32 %v652, %v1248
        %v1409 = vsub.f32 %v765, %v1248
        %v1410 = vsub.f32 %v655, %v1251
        %v1411 = vsub.f32 %v768, %v1251
        %v1412 = vsub.f32 %v948, %v1254
        %v1413 = vsub.f32 %v1061, %v1254
        %v1414 = vsub.f32 %v951, %v1257
        %v1415 = vsub.f32 %v1064, %v1257
        %v1416 = vsub.f32 %v954, %v1260
        %v1417 = vsub.f32 %v1067, %v1260
        %v1418 = vsub.f32 %v957, %v1263
        %v1419 = vsub.f32 %v1070, %v1263
        %v1420 = vsub.f32 %v960, %v1266
        %v1421 = vsub.f32 %v1073, %v1266
        %v1422 = vsub.f32 %v963, %v1269
        %v1423 = vsub.f32 %v1076, %v1269
        %v1424 = vsub.f32 %v966, %v1272
        %v1425 = vsub.f32 %v1079, %v1272
        %v1426 = vsub.f32 %v969, %v1275
        %v1427 = vsub.f32 %v1082, %v1275
        %v1428 = vsub.f32 %v972, %v1278
        %v1429 = vsub.f32 %v1085, %v1278
        %v1430 = vsub.f32 %v975, %v1281
        %v1431 = vsub.f32 %v1088, %v1281
        %v1432 = vsub.f32 %v978, %v1284
        %v1433 = vsub.f32 %v1091, %v1284
        %v1434 = vsub.f32 %v981, %v1287
        %v1435 = vsub.f32 %v1094, %v1287
        %v1436 = vsub.f32 %v984, %v1290
        %v1437 = vsub.f32 %v1097, %v1290
        %v1438 = vsub.f32 %v987, %v1293
        %v1439 = vsub.f32 %v1100, %v1293
        %v1440 = vsub.f32 %v990, %v1296
        %v1441 = vsub.f32 %v1103, %v1296
        %v1442 = vsub.f32 %v993, %v1299
        %v1443 = vsub.f32 %v1106, %v1299
        %v1444 = vsub.f32 %v996, %v1302
        %v1445 = vsub.f32 %v1109, %v1302
        %v1446 = vsub.f32 %v999, %v1305
        %v1447 = vsub.f32 %v1112, %v1305
        %v1448 = vsub.f32 %v1002, %v1308
        %v1449 = vsub.f32 %v1115, %v1308
        %v1450 = vsub.f32 %v1005, %v1311
        %v1451 = vsub.f32 %v1118, %v1311
        %v1452 = vsub.f32 %v1008, %v1314
        %v1453 = vsub.f32 %v1121, %v1314
        %v1454 = vsub.f32 %v1011, %v1317
        %v1455 = vsub.f32 %v1124, %v1317
        %v1456 = vsub.f32 %v1014, %v1320
        %v1457 = vsub.f32 %v1127, %v1320
        %v1458 = vsub.f32 %v1017, %v1323
        %v1459 = vsub.f32 %v1130, %v1323
        %v1460 = vsub.f32 %v1020, %v1326
        %v1461 = vsub.f32 %v1133, %v1326
        %v1462 = vsub.f32 %v1023, %v1329
        %v1463 = vsub.f32 %v1136, %v1329
        %v1464 = vsub.f32 %v1026, %v1332
        %v1465 = vsub.f32 %v1139, %v1332
        %v1466 = vsub.f32 %v1029, %v1335
        %v1467 = vsub.f32 %v1142, %v1335
        %v1468 = vsub.f32 %v1032, %v1338
        %v1469 = vsub.f32 %v1145, %v1338
        %v1470 = vsub.f32 %v1035, %v1341
        %v1471 = vsub.f32 %v1148, %v1341
        %v1472 = vsub.f32 %v1038, %v1344
        %v1473 = vsub.f32 %v1151, %v1344
        %v1474 = vsub.f32 %v1041, %v1347
        %v1475 = vsub.f32 %v1154, %v1347
        %v1476 = vmul.f32 %v1348, 1.442695
        %v1477 = vpow.pop %v1476
        %v1478 = vmul.f32 %v1349, 1.442695
        %v1479 = vpow.pop %v1478
        %v1480 = vmul.f32 %v1350, 1.442695
        %v1481 = vpow.pop %v1480
        %v1482 = vmul.f32 %v1351, 1.442695
        %v1483 = vpow.pop %v1482
        %v1484 = vmul.f32 %v1352, 1.442695
        %v1485 = vpow.pop %v1484
        %v1486 = vmul.f32 %v1353, 1.442695
        %v1487 = vpow.pop %v1486
        %v1488 = vmul.f32 %v1354, 1.442695
        %v1489 = vpow.pop %v1488
        %v1490 = vmul.f32 %v1355, 1.442695
        %v1491 = vpow.pop %v1490
        %v1492 = vmul.f32 %v1356, 1.442695
        %v1493 = vpow.pop %v1492
        %v1494 = vmul.f32 %v1357, 1.442695
        %v1495 = vpow.pop %v1494
        %v1496 = vmul.f32 %v1358, 1.442695
        %v1497 = vpow.pop %v1496
        %v1498 = vmul.f32 %v1359, 1.442695
        %v1499 = vpow.pop %v1498
        %v1500 = vmul.f32 %v1360, 1.442695
        %v1501 = vpow.pop %v1500
        %v1502 = vmul.f32 %v1361, 1.442695
        %v1503 = vpow.pop %v1502
        %v1504 = vmul.f32 %v1362, 1.442695
        %v1505 = vpow.pop %v1504
        %v1506 = vmul.f32 %v1363, 1.442695
        %v1507 = vpow.pop %v1506
        %v1508 = vmul.f32 %v1364, 1.442695
        %v1509 = vpow.pop %v1508
        %v1510 = vmul.f32 %v1365, 1.442695
        %v1511 = vpow.pop %v1510
        %v1512 = vmul.f32 %v1366, 1.442695
        %v1513 = vpow.pop %v1512
        %v1514 = vmul.f32 %v1367, 1.442695
        %v1515 = vpow.pop %v1514
        %v1516 = vmul.f32 %v1368, 1.442695
        %v1517 = vpow.pop %v1516
        %v1518 = vmul.f32 %v1369, 1.442695
        %v1519 = vpow.pop %v1518
        %v1520 = vmul.f32 %v1370, 1.442695
        %v1521 = vpow.pop %v1520
        %v1522 = vmul.f32 %v1371, 1.442695
        %v1523 = vpow.pop %v1522
        %v1524 = vmul.f32 %v1372, 1.442695
        %v1525 = vpow.pop %v1524
        %v1526 = vmul.f32 %v1373, 1.442695
        %v1527 = vpow.pop %v1526
        %v1528 = vmul.f32 %v1374, 1.442695
        %v1529 = vpow.pop %v1528
        %v1530 = vmul.f32 %v1375, 1.442695
        %v1531 = vpow.pop %v1530
        %v1532 = vmul.f32 %v1376, 1.442695
        %v1533 = vpow.pop %v1532
        %v1534 = vmul.f32 %v1377, 1.442695
        %v1535 = vpow.pop %v1534
        %v1536 = vmul.f32 %v1378, 1.442695
        %v1537 = vpow.pop %v1536
        %v1538 = vmul.f32 %v1379, 1.442695
        %v1539 = vpow.pop %v1538
        %v1540 = vmul.f32 %v1380, 1.442695
        %v1541 = vpow.pop %v1540
        %v1542 = vmul.f32 %v1381, 1.442695
        %v1543 = vpow.pop %v1542
        %v1544 = vmul.f32 %v1382, 1.442695
        %v1545 = vpow.pop %v1544
        %v1546 = vmul.f32 %v1383, 1.442695
        %v1547 = vpow.pop %v1546
        %v1548 = vmul.f32 %v1384, 1.442695
        %v1549 = vpow.pop %v1548
        %v1550 = vmul.f32 %v1385, 1.442695
        %v1551 = vpow.pop %v1550
        %v1552 = vmul.f32 %v1386, 1.442695
        %v1553 = vpow.pop %v1552
        %v1554 = vmul.f32 %v1387, 1.442695
        %v1555 = vpow.pop %v1554
        %v1556 = vmul.f32 %v1388, 1.442695
        %v1557 = vpow.pop %v1556
        %v1558 = vmul.f32 %v1389, 1.442695
        %v1559 = vpow.pop %v1558
        %v1560 = vmul.f32 %v1390, 1.442695
        %v1561 = vpow.pop %v1560
        %v1562 = vmul.f32 %v1391, 1.442695
        %v1563 = vpow.pop %v1562
        %v1564 = vmul.f32 %v1392, 1.442695
        %v1565 = vpow.pop %v1564
        %v1566 = vmul.f32 %v1393, 1.442695
        %v1567 = vpow.pop %v1566
        %v1568 = vmul.f32 %v1394, 1.442695
        %v1569 = vpow.pop %v1568
        %v1570 = vmul.f32 %v1395, 1.442695
        %v1571 = vpow.pop %v1570
        %v1572 = vmul.f32 %v1396, 1.442695
        %v1573 = vpow.pop %v1572
        %v1574 = vmul.f32 %v1397, 1.442695
        %v1575 = vpow.pop %v1574
        %v1576 = vmul.f32 %v1398, 1.442695
        %v1577 = vpow.pop %v1576
        %v1578 = vmul.f32 %v1399, 1.442695
        %v1579 = vpow.pop %v1578
        %v1580 = vmul.f32 %v1400, 1.442695
        %v1581 = vpow.pop %v1580
        %v1582 = vmul.f32 %v1401, 1.442695
        %v1583 = vpow.pop %v1582
        %v1584 = vmul.f32 %v1402, 1.442695
        %v1585 = vpow.pop %v1584
        %v1586 = vmul.f32 %v1403, 1.442695
        %v1587 = vpow.pop %v1586
        %v1588 = vmul.f32 %v1404, 1.442695
        %v1589 = vpow.pop %v1588
        %v1590 = vmul.f32 %v1405, 1.442695
        %v1591 = vpow.pop %v1590
        %v1592 = vmul.f32 %v1406, 1.442695
        %v1593 = vpow.pop %v1592
        %v1594 = vmul.f32 %v1407, 1.442695
        %v1595 = vpow.pop %v1594
        %v1596 = vmul.f32 %v1408, 1.442695
        %v1597 = vpow.pop %v1596
        %v1598 = vmul.f32 %v1409, 1.442695
        %v1599 = vpow.pop %v1598
        %v1600 = vmul.f32 %v1410, 1.442695
        %v1601 = vpow.pop %v1600
        %v1602 = vmul.f32 %v1411, 1.442695
        %v1603 = vpow.pop %v1602
        %v1604 = vmul.f32 %v1412, 1.442695
        %v1605 = vpow.pop %v1604
        %v1606 = vmul.f32 %v1413, 1.442695
        %v1607 = vpow.pop %v1606
        %v1608 = vmul.f32 %v1414, 1.442695
        %v1609 = vpow.pop %v1608
        %v1610 = vmul.f32 %v1415, 1.442695
        %v1611 = vpow.pop %v1610
        %v1612 = vmul.f32 %v1416, 1.442695
        %v1613 = vpow.pop %v1612
        %v1614 = vmul.f32 %v1417, 1.442695
        %v1615 = vpow.pop %v1614
        %v1616 = vmul.f32 %v1418, 1.442695
        %v1617 = vpow.pop %v1616
        %v1618 = vmul.f32 %v1419, 1.442695
        %v1619 = vpow.pop %v1618
        %v1620 = vmul.f32 %v1420, 1.442695
        %v1621 = vpow.pop %v1620
        %v1622 = vmul.f32 %v1421, 1.442695
        %v1623 = vpow.pop %v1622
        %v1624 = vmul.f32 %v1422, 1.442695
        %v1625 = vpow.pop %v1624
        %v1626 = vmul.f32 %v1423, 1.442695
        %v1627 = vpow.pop %v1626
        %v1628 = vmul.f32 %v1424, 1.442695
        %v1629 = vpow.pop %v1628
        %v1630 = vmul.f32 %v1425, 1.442695
        %v1631 = vpow.pop %v1630
        %v1632 = vmul.f32 %v1426, 1.442695
        %v1633 = vpow.pop %v1632
        %v1634 = vmul.f32 %v1427, 1.442695
        %v1635 = vpow.pop %v1634
        %v1636 = vmul.f32 %v1428, 1.442695
        %v1637 = vpow.pop %v1636
        %v1638 = vmul.f32 %v1429, 1.442695
        %v1639 = vpow.pop %v1638
        %v1640 = vmul.f32 %v1430, 1.442695
        %v1641 = vpow.pop %v1640
        %v1642 = vmul.f32 %v1431, 1.442695
        %v1643 = vpow.pop %v1642
        %v1644 = vmul.f32 %v1432, 1.442695
        %v1645 = vpow.pop %v1644
        %v1646 = vmul.f32 %v1433, 1.442695
        %v1647 = vpow.pop %v1646
        %v1648 = vmul.f32 %v1434, 1.442695
        %v1649 = vpow.pop %v1648
        %v1650 = vmul.f32 %v1435, 1.442695
        %v1651 = vpow.pop %v1650
        %v1652 = vmul.f32 %v1436, 1.442695
        %v1653 = vpow.pop %v1652
        %v1654 = vmul.f32 %v1437, 1.442695
        %v1655 = vpow.pop %v1654
        %v1656 = vmul.f32 %v1438, 1.442695
        %v1657 = vpow.pop %v1656
        %v1658 = vmul.f32 %v1439, 1.442695
        %v1659 = vpow.pop %v1658
        %v1660 = vmul.f32 %v1440, 1.442695
        %v1661 = vpow.pop %v1660
        %v1662 = vmul.f32 %v1441, 1.442695
        %v1663 = vpow.pop %v1662
        %v1664 = vmul.f32 %v1442, 1.442695
        %v1665 = vpow.pop %v1664
        %v1666 = vmul.f32 %v1443, 1.442695
        %v1667 = vpow.pop %v1666
        %v1668 = vmul.f32 %v1444, 1.442695
        %v1669 = vpow.pop %v1668
        %v1670 = vmul.f32 %v1445, 1.442695
        %v1671 = vpow.pop %v1670
        %v1672 = vmul.f32 %v1446, 1.442695
        %v1673 = vpow.pop %v1672
        %v1674 = vmul.f32 %v1447, 1.442695
        %v1675 = vpow.pop %v1674
        %v1676 = vmul.f32 %v1448, 1.442695
        %v1677 = vpow.pop %v1676
        %v1678 = vmul.f32 %v1449, 1.442695
        %v1679 = vpow.pop %v1678
        %v1680 = vmul.f32 %v1450, 1.442695
        %v1681 = vpow.pop %v1680
        %v1682 = vmul.f32 %v1451, 1.442695
        %v1683 = vpow.pop %v1682
        %v1684 = vmul.f32 %v1452, 1.442695
        %v1685 = vpow.pop %v1684
        %v1686 = vmul.f32 %v1453, 1.442695
        %v1687 = vpow.pop %v1686
        %v1688 = vmul.f32 %v1454, 1.442695
        %v1689 = vpow.pop %v1688
        %v1690 = vmul.f32 %v1455, 1.442695
        %v1691 = vpow.pop %v1690
        %v1692 = vmul.f32 %v1456, 1.442695
        %v1693 = vpow.pop %v1692
        %v1694 = vmul.f32 %v1457, 1.442695
        %v1695 = vpow.pop %v1694
        %v1696 = vmul.f32 %v1458, 1.442695
        %v1697 = vpow.pop %v1696
        %v1698 = vmul.f32 %v1459, 1.442695
        %v1699 = vpow.pop %v1698
        %v1700 = vmul.f32 %v1460, 1.442695
        %v1701 = vpow.pop %v1700
        %v1702 = vmul.f32 %v1461, 1.442695
        %v1703 = vpow.pop %v1702
        %v1704 = vmul.f32 %v1462, 1.442695
        %v1705 = vpow.pop %v1704
        %v1706 = vmul.f32 %v1463, 1.442695
        %v1707 = vpow.pop %v1706
        %v1708 = vmul.f32 %v1464, 1.442695
        %v1709 = vpow.pop %v1708
        %v1710 = vmul.f32 %v1465, 1.442695
        %v1711 = vpow.pop %v1710
        %v1712 = vmul.f32 %v1466, 1.442695
        %v1713 = vpow.pop %v1712
        %v1714 = vmul.f32 %v1467, 1.442695
        %v1715 = vpow.pop %v1714
        %v1716 = vmul.f32 %v1468, 1.442695
        %v1717 = vpow.pop %v1716
        %v1718 = vmul.f32 %v1469, 1.442695
        %v1719 = vpow.pop %v1718
        %v1720 = vmul.f32 %v1470, 1.442695
        %v1721 = vpow.pop %v1720
        %v1722 = vmul.f32 %v1471, 1.442695
        %v1723 = vpow.pop %v1722
        %v1724 = vmul.f32 %v1472, 1.442695
        %v1725 = vpow.pop %v1724
        %v1726 = vmul.f32 %v1473, 1.442695
        %v1727 = vpow.pop %v1726
        %v1728 = vmul.f32 %v1474, 1.442695
        %v1729 = vpow.pop %v1728
        %v1730 = vmul.f32 %v1475, 1.442695
        %v1731 = vpow.pop %v1730
        %v1732 = vadd.f32 %v1477, %v1479
        %1733 = vadd.xlane.f32.xlu0 %v1732
        %v1734 = vpop.xlane.xlu0 %1733
        %v1735 = vadd.f32 %v1481, %v1483
        %1736 = vadd.xlane.f32.xlu0 %v1735
        %v1737 = vpop.xlane.xlu0 %1736
        %v1738 = vadd.f32 %v1485, %v1487
        %1739 = vadd.xlane.f32.xlu0 %v1738
        %v1740 = vpop.xlane.xlu0 %1739
        %v1741 = vadd.f32 %v1489, %v1491
        %1742 = vadd.xlane.f32.xlu0 %v1741
        %v1743 = vpop.xlane.xlu0 %1742
        %v1744 = vadd.f32 %v1493, %v1495
        %1745 = vadd.xlane.f32.xlu0 %v1744
        %v1746 = vpop.xlane.xlu0 %1745
        %v1747 = vadd.f32 %v1497, %v1499
        %1748 = vadd.xlane.f32.xlu0 %v1747
        %v1749 = vpop.xlane.xlu0 %1748
        %v1750 = vadd.f32 %v1501, %v1503
        %1751 = vadd.xlane.f32.xlu0 %v1750
        %v1752 = vpop.xlane.xlu0 %1751
        %v1753 = vadd.f32 %v1505, %v1507
        %1754 = vadd.xlane.f32.xlu0 %v1753
        %v1755 = vpop.xlane.xlu0 %1754
        %v1756 = vadd.f32 %v1509, %v1511
        %1757 = vadd.xlane.f32.xlu0 %v1756
        %v1758 = vpop.xlane.xlu0 %1757
        %v1759 = vadd.f32 %v1513, %v1515
        %1760 = vadd.xlane.f32.xlu0 %v1759
        %v1761 = vpop.xlane.xlu0 %1760
        %v1762 = vadd.f32 %v1517, %v1519
        %1763 = vadd.xlane.f32.xlu0 %v1762
        %v1764 = vpop.xlane.xlu0 %1763
        %v1765 = vadd.f32 %v1521, %v1523
        %1766 = vadd.xlane.f32.xlu0 %v1765
        %v1767 = vpop.xlane.xlu0 %1766
        %v1768 = vadd.f32 %v1525, %v1527
        %1769 = vadd.xlane.f32.xlu0 %v1768
        %v1770 = vpop.xlane.xlu0 %1769
        %v1771 = vadd.f32 %v1529, %v1531
        %1772 = vadd.xlane.f32.xlu0 %v1771
        %v1773 = vpop.xlane.xlu0 %1772
        %v1774 = vadd.f32 %v1533, %v1535
        %1775 = vadd.xlane.f32.xlu0 %v1774
        %v1776 = vpop.xlane.xlu0 %1775
        %v1777 = vadd.f32 %v1537, %v1539
        %1778 = vadd.xlane.f32.xlu0 %v1777
        %v1779 = vpop.xlane.xlu0 %1778
        %v1780 = vadd.f32 %v1541, %v1543
        %1781 = vadd.xlane.f32.xlu0 %v1780
        %v1782 = vpop.xlane.xlu0 %1781
        %v1783 = vadd.f32 %v1545, %v1547
        %1784 = vadd.xlane.f32.xlu0 %v1783
        %v1785 = vpop.xlane.xlu0 %1784
        %v1786 = vadd.f32 %v1549, %v1551
        %1787 = vadd.xlane.f32.xlu0 %v1786
        %v1788 = vpop.xlane.xlu0 %1787
        %v1789 = vadd.f32 %v1553, %v1555
        %1790 = vadd.xlane.f32.xlu0 %v1789
        %v1791 = vpop.xlane.xlu0 %1790
        %v1792 = vadd.f32 %v1557, %v1559
        %1793 = vadd.xlane.f32.xlu0 %v1792
        %v1794 = vpop.xlane.xlu0 %1793
        %v1795 = vadd.f32 %v1561, %v1563
        %1796 = vadd.xlane.f32.xlu0 %v1795
        %v1797 = vpop.xlane.xlu0 %1796
        %v1798 = vadd.f32 %v1565, %v1567
        %1799 = vadd.xlane.f32.xlu0 %v1798
        %v1800 = vpop.xlane.xlu0 %1799
        %v1801 = vadd.f32 %v1569, %v1571
        %1802 = vadd.xlane.f32.xlu0 %v1801
        %v1803 = vpop.xlane.xlu0 %1802
        %v1804 = vadd.f32 %v1573, %v1575
        %1805 = vadd.xlane.f32.xlu0 %v1804
        %v1806 = vpop.xlane.xlu0 %1805
        %v1807 = vadd.f32 %v1577, %v1579
        %1808 = vadd.xlane.f32.xlu0 %v1807
        %v1809 = vpop.xlane.xlu0 %1808
        %v1810 = vadd.f32 %v1581, %v1583
        %1811 = vadd.xlane.f32.xlu0 %v1810
        %v1812 = vpop.xlane.xlu0 %1811
        %v1813 = vadd.f32 %v1585, %v1587
        %1814 = vadd.xlane.f32.xlu0 %v1813
        %v1815 = vpop.xlane.xlu0 %1814
        %v1816 = vadd.f32 %v1589, %v1591
        %1817 = vadd.xlane.f32.xlu0 %v1816
        %v1818 = vpop.xlane.xlu0 %1817
        %v1819 = vadd.f32 %v1593, %v1595
        %1820 = vadd.xlane.f32.xlu0 %v1819
        %v1821 = vpop.xlane.xlu0 %1820
        %v1822 = vadd.f32 %v1597, %v1599
        %1823 = vadd.xlane.f32.xlu0 %v1822
        %v1824 = vpop.xlane.xlu0 %1823
        %v1825 = vadd.f32 %v1601, %v1603
        %1826 = vadd.xlane.f32.xlu0 %v1825
        %v1827 = vpop.xlane.xlu0 %1826
        %v1828 = vadd.f32 %v1605, %v1607
        %1829 = vadd.xlane.f32.xlu0 %v1828
        %v1830 = vpop.xlane.xlu0 %1829
        %v1831 = vadd.f32 %v1609, %v1611
        %1832 = vadd.xlane.f32.xlu0 %v1831
        %v1833 = vpop.xlane.xlu0 %1832
        %v1834 = vadd.f32 %v1613, %v1615
        %1835 = vadd.xlane.f32.xlu0 %v1834
        %v1836 = vpop.xlane.xlu0 %1835
        %v1837 = vadd.f32 %v1617, %v1619
        %1838 = vadd.xlane.f32.xlu0 %v1837
        %v1839 = vpop.xlane.xlu0 %1838
        %v1840 = vadd.f32 %v1621, %v1623
        %1841 = vadd.xlane.f32.xlu0 %v1840
        %v1842 = vpop.xlane.xlu0 %1841
        %v1843 = vadd.f32 %v1625, %v1627
        %1844 = vadd.xlane.f32.xlu0 %v1843
        %v1845 = vpop.xlane.xlu0 %1844
        %v1846 = vadd.f32 %v1629, %v1631
        %1847 = vadd.xlane.f32.xlu0 %v1846
        %v1848 = vpop.xlane.xlu0 %1847
        %v1849 = vadd.f32 %v1633, %v1635
        %1850 = vadd.xlane.f32.xlu0 %v1849
        %v1851 = vpop.xlane.xlu0 %1850
        %v1852 = vadd.f32 %v1637, %v1639
        %1853 = vadd.xlane.f32.xlu0 %v1852
        %v1854 = vpop.xlane.xlu0 %1853
        %v1855 = vadd.f32 %v1641, %v1643
        %1856 = vadd.xlane.f32.xlu0 %v1855
        %v1857 = vpop.xlane.xlu0 %1856
        %v1858 = vadd.f32 %v1645, %v1647
        %1859 = vadd.xlane.f32.xlu0 %v1858
        %v1860 = vpop.xlane.xlu0 %1859
        %v1861 = vadd.f32 %v1649, %v1651
        %1862 = vadd.xlane.f32.xlu0 %v1861
        %v1863 = vpop.xlane.xlu0 %1862
        %v1864 = vadd.f32 %v1653, %v1655
        %1865 = vadd.xlane.f32.xlu0 %v1864
        %v1866 = vpop.xlane.xlu0 %1865
        %v1867 = vadd.f32 %v1657, %v1659
        %1868 = vadd.xlane.f32.xlu0 %v1867
        %v1869 = vpop.xlane.xlu0 %1868
        %v1870 = vadd.f32 %v1661, %v1663
        %1871 = vadd.xlane.f32.xlu0 %v1870
        %v1872 = vpop.xlane.xlu0 %1871
        %v1873 = vadd.f32 %v1665, %v1667
        %1874 = vadd.xlane.f32.xlu0 %v1873
        %v1875 = vpop.xlane.xlu0 %1874
        %v1876 = vadd.f32 %v1669, %v1671
        %1877 = vadd.xlane.f32.xlu0 %v1876
        %v1878 = vpop.xlane.xlu0 %1877
        %v1879 = vadd.f32 %v1673, %v1675
        %1880 = vadd.xlane.f32.xlu0 %v1879
        %v1881 = vpop.xlane.xlu0 %1880
        %v1882 = vadd.f32 %v1677, %v1679
        %1883 = vadd.xlane.f32.xlu0 %v1882
        %v1884 = vpop.xlane.xlu0 %1883
        %v1885 = vadd.f32 %v1681, %v1683
        %1886 = vadd.xlane.f32.xlu0 %v1885
        %v1887 = vpop.xlane.xlu0 %1886
        %v1888 = vadd.f32 %v1685, %v1687
        %1889 = vadd.xlane.f32.xlu0 %v1888
        %v1890 = vpop.xlane.xlu0 %1889
        %v1891 = vadd.f32 %v1689, %v1691
        %1892 = vadd.xlane.f32.xlu0 %v1891
        %v1893 = vpop.xlane.xlu0 %1892
        %v1894 = vadd.f32 %v1693, %v1695
        %1895 = vadd.xlane.f32.xlu0 %v1894
        %v1896 = vpop.xlane.xlu0 %1895
        %v1897 = vadd.f32 %v1697, %v1699
        %1898 = vadd.xlane.f32.xlu0 %v1897
        %v1899 = vpop.xlane.xlu0 %1898
        %v1900 = vadd.f32 %v1701, %v1703
        %1901 = vadd.xlane.f32.xlu0 %v1900
        %v1902 = vpop.xlane.xlu0 %1901
        %v1903 = vadd.f32 %v1705, %v1707
        %1904 = vadd.xlane.f32.xlu0 %v1903
        %v1905 = vpop.xlane.xlu0 %1904
        %v1906 = vadd.f32 %v1709, %v1711
        %1907 = vadd.xlane.f32.xlu0 %v1906
        %v1908 = vpop.xlane.xlu0 %1907
        %v1909 = vadd.f32 %v1713, %v1715
        %1910 = vadd.xlane.f32.xlu0 %v1909
        %v1911 = vpop.xlane.xlu0 %1910
        %v1912 = vadd.f32 %v1717, %v1719
        %1913 = vadd.xlane.f32.xlu0 %v1912
        %v1914 = vpop.xlane.xlu0 %1913
        %v1915 = vadd.f32 %v1721, %v1723
        %1916 = vadd.xlane.f32.xlu0 %v1915
        %v1917 = vpop.xlane.xlu0 %1916
        %v1918 = vadd.f32 %v1725, %v1727
        %1919 = vadd.xlane.f32.xlu0 %v1918
        %v1920 = vpop.xlane.xlu0 %1919
        %v1921 = vadd.f32 %v1729, %v1731
        %1922 = vadd.xlane.f32.xlu0 %v1921
        %v1923 = vpop.xlane.xlu0 %1922
        %v1924 = vrcp.pop %v1734
        %v1925 = vrcp.pop %v1737
        %v1926 = vrcp.pop %v1740
        %v1927 = vrcp.pop %v1743
        %v1928 = vrcp.pop %v1746
        %v1929 = vrcp.pop %v1749
        %v1930 = vrcp.pop %v1752
        %v1931 = vrcp.pop %v1755
        %v1932 = vrcp.pop %v1758
        %v1933 = vrcp.pop %v1761
        %v1934 = vrcp.pop %v1764
        %v1935 = vrcp.pop %v1767
        %v1936 = vrcp.pop %v1770
        %v1937 = vrcp.pop %v1773
        %v1938 = vrcp.pop %v1776
        %v1939 = vrcp.pop %v1779
        %v1940 = vrcp.pop %v1782
        %v1941 = vrcp.pop %v1785
        %v1942 = vrcp.pop %v1788
        %v1943 = vrcp.pop %v1791
        %v1944 = vrcp.pop %v1794
        %v1945 = vrcp.pop %v1797
        %v1946 = vrcp.pop %v1800
        %v1947 = vrcp.pop %v1803
        %v1948 = vrcp.pop %v1806
        %v1949 = vrcp.pop %v1809
        %v1950 = vrcp.pop %v1812
        %v1951 = vrcp.pop %v1815
        %v1952 = vrcp.pop %v1818
        %v1953 = vrcp.pop %v1821
        %v1954 = vrcp.pop %v1824
        %v1955 = vrcp.pop %v1827
        %v1956 = vrcp.pop %v1830
        %v1957 = vrcp.pop %v1833
        %v1958 = vrcp.pop %v1836
        %v1959 = vrcp.pop %v1839
        %v1960 = vrcp.pop %v1842
        %v1961 = vrcp.pop %v1845
        %v1962 = vrcp.pop %v1848
        %v1963 = vrcp.pop %v1851
        %v1964 = vrcp.pop %v1854
        %v1965 = vrcp.pop %v1857
        %v1966 = vrcp.pop %v1860
        %v1967 = vrcp.pop %v1863
        %v1968 = vrcp.pop %v1866
        %v1969 = vrcp.pop %v1869
        %v1970 = vrcp.pop %v1872
        %v1971 = vrcp.pop %v1875
        %v1972 = vrcp.pop %v1878
        %v1973 = vrcp.pop %v1881
        %v1974 = vrcp.pop %v1884
        %v1975 = vrcp.pop %v1887
        %v1976 = vrcp.pop %v1890
        %v1977 = vrcp.pop %v1893
        %v1978 = vrcp.pop %v1896
        %v1979 = vrcp.pop %v1899
        %v1980 = vrcp.pop %v1902
        %v1981 = vrcp.pop %v1905
        %v1982 = vrcp.pop %v1908
        %v1983 = vrcp.pop %v1911
        %v1984 = vrcp.pop %v1914
        %v1985 = vrcp.pop %v1917
        %v1986 = vrcp.pop %v1920
        %v1987 = vrcp.pop %v1923
        %v1988 = vmul.f32 %v1477, %v1924
        %v1989 = vmul.f32 %v1479, %v1924
        %v1990 = vmul.f32 %v1481, %v1925
        %v1991 = vmul.f32 %v1483, %v1925
        %v1992 = vmul.f32 %v1485, %v1926
        %v1993 = vmul.f32 %v1487, %v1926
        %v1994 = vmul.f32 %v1489, %v1927
        %v1995 = vmul.f32 %v1491, %v1927
        %v1996 = vmul.f32 %v1493, %v1928
        %v1997 = vmul.f32 %v1495, %v1928
        %v1998 = vmul.f32 %v1497, %v1929
        %v1999 = vmul.f32 %v1499, %v1929
        %v2000 = vmul.f32 %v1501, %v1930
        %v2001 = vmul.f32 %v1503, %v1930
        %v2002 = vmul.f32 %v1505, %v1931
        %v2003 = vmul.f32 %v1507, %v1931
        %v2004 = vmul.f32 %v1509, %v1932
        %v2005 = vmul.f32 %v1511, %v1932
        %v2006 = vmul.f32 %v1513, %v1933
        %v2007 = vmul.f32 %v1515, %v1933
        %v2008 = vmul.f32 %v1517, %v1934
        %v2009 = vmul.f32 %v1519, %v1934
        %v2010 = vmul.f32 %v1521, %v1935
        %v2011 = vmul.f32 %v1523, %v1935
        %v2012 = vmul.f32 %v1525, %v1936
        %v2013 = vmul.f32 %v1527, %v1936
        %v2014 = vmul.f32 %v1529, %v1937
        %v2015 = vmul.f32 %v1531, %v1937
        %v2016 = vmul.f32 %v1533, %v1938
        %v2017 = vmul.f32 %v1535, %v1938
        %v2018 = vmul.f32 %v1537, %v1939
        %v2019 = vmul.f32 %v1539, %v1939
        %v2020 = vmul.f32 %v1541, %v1940
        %v2021 = vmul.f32 %v1543, %v1940
        %v2022 = vmul.f32 %v1545, %v1941
        %v2023 = vmul.f32 %v1547, %v1941
        %v2024 = vmul.f32 %v1549, %v1942
        %v2025 = vmul.f32 %v1551, %v1942
        %v2026 = vmul.f32 %v1553, %v1943
        %v2027 = vmul.f32 %v1555, %v1943
        %v2028 = vmul.f32 %v1557, %v1944
        %v2029 = vmul.f32 %v1559, %v1944
        %v2030 = vmul.f32 %v1561, %v1945
        %v2031 = vmul.f32 %v1563, %v1945
        %v2032 = vmul.f32 %v1565, %v1946
        %v2033 = vmul.f32 %v1567, %v1946
        %v2034 = vmul.f32 %v1569, %v1947
        %v2035 = vmul.f32 %v1571, %v1947
        %v2036 = vmul.f32 %v1573, %v1948
        %v2037 = vmul.f32 %v1575, %v1948
        %v2038 = vmul.f32 %v1577, %v1949
        %v2039 = vmul.f32 %v1579, %v1949
        %v2040 = vmul.f32 %v1581, %v1950
        %v2041 = vmul.f32 %v1583, %v1950
        %v2042 = vmul.f32 %v1585, %v1951
        %v2043 = vmul.f32 %v1587, %v1951
        %v2044 = vmul.f32 %v1589, %v1952
        %v2045 = vmul.f32 %v1591, %v1952
        %v2046 = vmul.f32 %v1593, %v1953
        %v2047 = vmul.f32 %v1595, %v1953
        %v2048 = vmul.f32 %v1597, %v1954
        %v2049 = vmul.f32 %v1599, %v1954
        %v2050 = vmul.f32 %v1601, %v1955
        %v2051 = vmul.f32 %v1603, %v1955
        %v2052 = vmul.f32 %v1605, %v1956
        %v2053 = vmul.f32 %v1607, %v1956
        %v2054 = vmul.f32 %v1609, %v1957
        %v2055 = vmul.f32 %v1611, %v1957
        %v2056 = vmul.f32 %v1613, %v1958
        %v2057 = vmul.f32 %v1615, %v1958
        %v2058 = vmul.f32 %v1617, %v1959
        %v2059 = vmul.f32 %v1619, %v1959
        %v2060 = vmul.f32 %v1621, %v1960
        %v2061 = vmul.f32 %v1623, %v1960
        %v2062 = vmul.f32 %v1625, %v1961
        %v2063 = vmul.f32 %v1627, %v1961
        %v2064 = vmul.f32 %v1629, %v1962
        %v2065 = vmul.f32 %v1631, %v1962
        %v2066 = vmul.f32 %v1633, %v1963
        %v2067 = vmul.f32 %v1635, %v1963
        %v2068 = vmul.f32 %v1637, %v1964
        %v2069 = vmul.f32 %v1639, %v1964
        %v2070 = vmul.f32 %v1641, %v1965
        %v2071 = vmul.f32 %v1643, %v1965
        %v2072 = vmul.f32 %v1645, %v1966
        %v2073 = vmul.f32 %v1647, %v1966
        %v2074 = vmul.f32 %v1649, %v1967
        %v2075 = vmul.f32 %v1651, %v1967
        %v2076 = vmul.f32 %v1653, %v1968
        %v2077 = vmul.f32 %v1655, %v1968
        %v2078 = vmul.f32 %v1657, %v1969
        %v2079 = vmul.f32 %v1659, %v1969
        %v2080 = vmul.f32 %v1661, %v1970
        %v2081 = vmul.f32 %v1663, %v1970
        %v2082 = vmul.f32 %v1665, %v1971
        %v2083 = vmul.f32 %v1667, %v1971
        %v2084 = vmul.f32 %v1669, %v1972
        %v2085 = vmul.f32 %v1671, %v1972
        %v2086 = vmul.f32 %v1673, %v1973
        %v2087 = vmul.f32 %v1675, %v1973
        %v2088 = vmul.f32 %v1677, %v1974
        %v2089 = vmul.f32 %v1679, %v1974
        %v2090 = vmul.f32 %v1681, %v1975
        %v2091 = vmul.f32 %v1683, %v1975
        %v2092 = vmul.f32 %v1685, %v1976
        %v2093 = vmul.f32 %v1687, %v1976
        %v2094 = vmul.f32 %v1689, %v1977
        %v2095 = vmul.f32 %v1691, %v1977
        %v2096 = vmul.f32 %v1693, %v1978
        %v2097 = vmul.f32 %v1695, %v1978
        %v2098 = vmul.f32 %v1697, %v1979
        %v2099 = vmul.f32 %v1699, %v1979
        %v2100 = vmul.f32 %v1701, %v1980
        %v2101 = vmul.f32 %v1703, %v1980
        %v2102 = vmul.f32 %v1705, %v1981
        %v2103 = vmul.f32 %v1707, %v1981
        %v2104 = vmul.f32 %v1709, %v1982
        %v2105 = vmul.f32 %v1711, %v1982
        %v2106 = vmul.f32 %v1713, %v1983
        %v2107 = vmul.f32 %v1715, %v1983
        %v2108 = vmul.f32 %v1717, %v1984
        %v2109 = vmul.f32 %v1719, %v1984
        %v2110 = vmul.f32 %v1721, %v1985
        %v2111 = vmul.f32 %v1723, %v1985
        %v2112 = vmul.f32 %v1725, %v1986
        %v2113 = vmul.f32 %v1727, %v1986
        %v2114 = vmul.f32 %v1729, %v1987
        %v2115 = vmul.f32 %v1731, %v1987
        %2116 = vmatpush.xpose.msra.mxu0 %v2018
        %2117 = vmatpush.xpose.msra.mxu0 %v2016
        %2118 = vmatpush.xpose.msra.mxu0 %v2014
        %2119 = vmatpush.xpose.msra.mxu0 %v2012
        %2120 = vmatpush.xpose.msra.mxu0 %v2010
        %2121 = vmatpush.xpose.msra.mxu0 %v2008
        %2122 = vmatpush.xpose.msra.mxu0 %v2006
        %2123 = vmatpush.xpose.msra.mxu0 %v2004
        %2124 = vmatpush.xpose.msra.mxu0 %v2002
        %2125 = vmatpush.xpose.msra.mxu0 %v2000
        %2126 = vmatpush.xpose.msra.mxu0 %v1998
        %2127 = vmatpush.xpose.msra.mxu0 %v1996
        %2128 = vmatpush.xpose.msra.mxu0 %v1994
        %2129 = vmatpush.xpose.msra.mxu0 %v1992
        %2130 = vmatpush.xpose.msra.mxu0 %v1990
        %2131 = vmatpush.xpose.msra.mxu0 %v1988
        %2132 = vmatmul.f32.gmra.mxu0 %v343
        %v2133 = vpop.f32.mrf.mxu0
        %v2134 = vadd.f32 0.0, %v2133
        %2135 = vdwg.mxu0
        %2136 = vmatpush.xpose.msra.mxu0 %v2019
        %2137 = vmatpush.xpose.msra.mxu0 %v2017
        %2138 = vmatpush.xpose.msra.mxu0 %v2015
        %2139 = vmatpush.xpose.msra.mxu0 %v2013
        %2140 = vmatpush.xpose.msra.mxu0 %v2011
        %2141 = vmatpush.xpose.msra.mxu0 %v2009
        %2142 = vmatpush.xpose.msra.mxu0 %v2007
        %2143 = vmatpush.xpose.msra.mxu0 %v2005
        %2144 = vmatpush.xpose.msra.mxu0 %v2003
        %2145 = vmatpush.xpose.msra.mxu0 %v2001
        %2146 = vmatpush.xpose.msra.mxu0 %v1999
        %2147 = vmatpush.xpose.msra.mxu0 %v1997
        %2148 = vmatpush.xpose.msra.mxu0 %v1995
        %2149 = vmatpush.xpose.msra.mxu0 %v1993
        %2150 = vmatpush.xpose.msra.mxu0 %v1991
        %2151 = vmatpush.xpose.msra.mxu0 %v1989
        %2152 = vmatmul.f32.gmra.mxu0 %v378
        %v2153 = vpop.f32.mrf.mxu0
        %v2154 = vadd.f32 %v2134, %v2153
        %2155 = vdwg.mxu0
        %2156 = vmatpush.xpose.msra.mxu0 %v2050
        %2157 = vmatpush.xpose.msra.mxu0 %v2048
        %2158 = vmatpush.xpose.msra.mxu0 %v2046
        %2159 = vmatpush.xpose.msra.mxu0 %v2044
        %2160 = vmatpush.xpose.msra.mxu0 %v2042
        %2161 = vmatpush.xpose.msra.mxu0 %v2040
        %2162 = vmatpush.xpose.msra.mxu0 %v2038
        %2163 = vmatpush.xpose.msra.mxu0 %v2036
        %2164 = vmatpush.xpose.msra.mxu0 %v2034
        %2165 = vmatpush.xpose.msra.mxu0 %v2032
        %2166 = vmatpush.xpose.msra.mxu0 %v2030
        %2167 = vmatpush.xpose.msra.mxu0 %v2028
        %2168 = vmatpush.xpose.msra.mxu0 %v2026
        %2169 = vmatpush.xpose.msra.mxu0 %v2024
        %2170 = vmatpush.xpose.msra.mxu0 %v2022
        %2171 = vmatpush.xpose.msra.mxu0 %v2020
        %2172 = vmatmul.f32.gmra.mxu0 %v343
        %v2173 = vpop.f32.mrf.mxu0
        %v2174 = vadd.f32 0.0, %v2173
        %2175 = vdwg.mxu0
        %2176 = vmatpush.xpose.msra.mxu0 %v2051
        %2177 = vmatpush.xpose.msra.mxu0 %v2049
        %2178 = vmatpush.xpose.msra.mxu0 %v2047
        %2179 = vmatpush.xpose.msra.mxu0 %v2045
        %2180 = vmatpush.xpose.msra.mxu0 %v2043
        %2181 = vmatpush.xpose.msra.mxu0 %v2041
        %2182 = vmatpush.xpose.msra.mxu0 %v2039
        %2183 = vmatpush.xpose.msra.mxu0 %v2037
        %2184 = vmatpush.xpose.msra.mxu0 %v2035
        %2185 = vmatpush.xpose.msra.mxu0 %v2033
        %2186 = vmatpush.xpose.msra.mxu0 %v2031
        %2187 = vmatpush.xpose.msra.mxu0 %v2029
        %2188 = vmatpush.xpose.msra.mxu0 %v2027
        %2189 = vmatpush.xpose.msra.mxu0 %v2025
        %2190 = vmatpush.xpose.msra.mxu0 %v2023
        %2191 = vmatpush.xpose.msra.mxu0 %v2021
        %2192 = vmatmul.f32.gmra.mxu0 %v378
        %v2193 = vpop.f32.mrf.mxu0
        %v2194 = vadd.f32 %v2174, %v2193
        %2195 = vdwg.mxu0
        %2196 = vmatpush.xpose.msra.mxu0 %v2082
        %2197 = vmatpush.xpose.msra.mxu0 %v2080
        %2198 = vmatpush.xpose.msra.mxu0 %v2078
        %2199 = vmatpush.xpose.msra.mxu0 %v2076
        %2200 = vmatpush.xpose.msra.mxu0 %v2074
        %2201 = vmatpush.xpose.msra.mxu0 %v2072
        %2202 = vmatpush.xpose.msra.mxu0 %v2070
        %2203 = vmatpush.xpose.msra.mxu0 %v2068
        %2204 = vmatpush.xpose.msra.mxu0 %v2066
        %2205 = vmatpush.xpose.msra.mxu0 %v2064
        %2206 = vmatpush.xpose.msra.mxu0 %v2062
        %2207 = vmatpush.xpose.msra.mxu0 %v2060
        %2208 = vmatpush.xpose.msra.mxu0 %v2058
        %2209 = vmatpush.xpose.msra.mxu0 %v2056
        %2210 = vmatpush.xpose.msra.mxu0 %v2054
        %2211 = vmatpush.xpose.msra.mxu0 %v2052
        %2212 = vmatmul.f32.gmra.mxu0 %v346
        %v2213 = vpop.f32.mrf.mxu0
        %v2214 = vadd.f32 0.0, %v2213
        %2215 = vdwg.mxu0
        %2216 = vmatpush.xpose.msra.mxu0 %v2083
        %2217 = vmatpush.xpose.msra.mxu0 %v2081
        %2218 = vmatpush.xpose.msra.mxu0 %v2079
        %2219 = vmatpush.xpose.msra.mxu0 %v2077
        %2220 = vmatpush.xpose.msra.mxu0 %v2075
        %2221 = vmatpush.xpose.msra.mxu0 %v2073
        %2222 = vmatpush.xpose.msra.mxu0 %v2071
        %2223 = vmatpush.xpose.msra.mxu0 %v2069
        %2224 = vmatpush.xpose.msra.mxu0 %v2067
        %2225 = vmatpush.xpose.msra.mxu0 %v2065
        %2226 = vmatpush.xpose.msra.mxu0 %v2063
        %2227 = vmatpush.xpose.msra.mxu0 %v2061
        %2228 = vmatpush.xpose.msra.mxu0 %v2059
        %2229 = vmatpush.xpose.msra.mxu0 %v2057
        %2230 = vmatpush.xpose.msra.mxu0 %v2055
        %2231 = vmatpush.xpose.msra.mxu0 %v2053
        %2232 = vmatmul.f32.gmra.mxu0 %v381
        %v2233 = vpop.f32.mrf.mxu0
        %v2234 = vadd.f32 %v2214, %v2233
        %2235 = vdwg.mxu0
        %2236 = vmatpush.xpose.msra.mxu0 %v2114
        %2237 = vmatpush.xpose.msra.mxu0 %v2112
        %2238 = vmatpush.xpose.msra.mxu0 %v2110
        %2239 = vmatpush.xpose.msra.mxu0 %v2108
        %2240 = vmatpush.xpose.msra.mxu0 %v2106
        %2241 = vmatpush.xpose.msra.mxu0 %v2104
        %2242 = vmatpush.xpose.msra.mxu0 %v2102
        %2243 = vmatpush.xpose.msra.mxu0 %v2100
        %2244 = vmatpush.xpose.msra.mxu0 %v2098
        %2245 = vmatpush.xpose.msra.mxu0 %v2096
        %2246 = vmatpush.xpose.msra.mxu0 %v2094
        %2247 = vmatpush.xpose.msra.mxu0 %v2092
        %2248 = vmatpush.xpose.msra.mxu0 %v2090
        %2249 = vmatpush.xpose.msra.mxu0 %v2088
        %2250 = vmatpush.xpose.msra.mxu0 %v2086
        %2251 = vmatpush.xpose.msra.mxu0 %v2084
        %2252 = vmatmul.f32.gmra.mxu0 %v346
        %v2253 = vpop.f32.mrf.mxu0
        %v2254 = vadd.f32 0.0, %v2253
        %2255 = vdwg.mxu0
        %2256 = vmatpush.xpose.msra.mxu0 %v2115
        %2257 = vmatpush.xpose.msra.mxu0 %v2113
        %2258 = vmatpush.xpose.msra.mxu0 %v2111
        %2259 = vmatpush.xpose.msra.mxu0 %v2109
        %2260 = vmatpush.xpose.msra.mxu0 %v2107
        %2261 = vmatpush.xpose.msra.mxu0 %v2105
        %2262 = vmatpush.xpose.msra.mxu0 %v2103
        %2263 = vmatpush.xpose.msra.mxu0 %v2101
        %2264 = vmatpush.xpose.msra.mxu0 %v2099
        %2265 = vmatpush.xpose.msra.mxu0 %v2097
        %2266 = vmatpush.xpose.msra.mxu0 %v2095
        %2267 = vmatpush.xpose.msra.mxu0 %v2093
        %2268 = vmatpush.xpose.msra.mxu0 %v2091
        %2269 = vmatpush.xpose.msra.mxu0 %v2089
        %2270 = vmatpush.xpose.msra.mxu0 %v2087
        %2271 = vmatpush.xpose.msra.mxu0 %v2085
        %2272 = vmatmul.f32.gmra.mxu0 %v381
        %v2273 = vpop.f32.mrf.mxu0
        %v2274 = vadd.f32 %v2254, %v2273
        %2275 = vdwg.mxu0
        %2277 = vset.pattern.permute.xlu0 0
        %2278 = vperm.xlu0 %2277, %v253
        %v2279 = vpop.permute.xlu0 %2278
        %vm2281 = vcmask 130048
        %v2283 = vsel %vm2281, %v252, 0
        %2285 = vmatpush.msra.mxu0 0.0
        %2286 = vmatpush.msra.mxu0 0.0
        %2287 = vmatpush.msra.mxu0 0.0
        %2288 = vmatpush.msra.mxu0 0.0
        %2289 = vmatpush.msra.mxu0 0.0
        %2290 = vmatpush.msra.mxu0 0.0
        %2291 = vmatpush.msra.mxu0 0.0
        %2292 = vmatpush.msra.mxu0 0.0
        %2293 = vmatpush.msra.mxu0 0.0
        %2294 = vmatpush.msra.mxu0 0.0
        %2295 = vmatpush.msra.mxu0 0.0
        %2296 = vmatpush.msra.mxu0 0.0
        %2297 = vmatpush.msra.mxu0 0.0
        %2298 = vmatpush.msra.mxu0 0.0
        %2299 = vmatpush.msra.mxu0 %v2234
        %2300 = vmatpush.msra.mxu0 %v2154
        %2301 = vmatmul.f32.gmra.mxu0 %v2283
        %v2302 = vpop.f32.mrf.mxu0
        %v2303 = vadd.f32 %v2279, %v2302
        %2304 = vdwg.mxu0
        %2305 = vmatpush.msra.mxu0 0.0
        %2306 = vmatpush.msra.mxu0 0.0
        %2307 = vmatpush.msra.mxu0 0.0
        %2308 = vmatpush.msra.mxu0 0.0
        %2309 = vmatpush.msra.mxu0 0.0
        %2310 = vmatpush.msra.mxu0 0.0
        %2311 = vmatpush.msra.mxu0 0.0
        %2312 = vmatpush.msra.mxu0 0.0
        %2313 = vmatpush.msra.mxu0 0.0
        %2314 = vmatpush.msra.mxu0 0.0
        %2315 = vmatpush.msra.mxu0 0.0
        %2316 = vmatpush.msra.mxu0 0.0
        %2317 = vmatpush.msra.mxu0 0.0
        %2318 = vmatpush.msra.mxu0 0.0
        %2319 = vmatpush.msra.mxu0 %v2274
        %2320 = vmatpush.msra.mxu0 %v2194
        %2321 = vmatmul.f32.gmra.mxu0 %v2283
        %v2322 = vpop.f32.mrf.mxu0
        %v2323 = vadd.f32 %v2279, %v2322
        %2324 = vdwg.mxu0
        %2325 = vst [vmem:[#allocation1] ss:$2 sm:$0xff] %v254
        %v2326 = vld.sshfl [vmem:[#allocation1] sm:$0xff pattern:$0x75316420]
        %v2327 = vld.sshfl [vmem:[#allocation1 + $0x8] sm:$0xff pattern:$0x75316420]
        %v2330 = vadd.f32 %v2303, %v2326
        %v2331 = vadd.f32 %v2323, %v2327
        %v2334 = vrot.slane %v2331, 4
        %v2335 = vsel %vm308, %v2330, %v2334
        %2337 = vst [vmem:[%s239] sm:$0xff] %v2335
        %s2338 = scalar_lea.vmem %s234, 8
        %v2339 = vld [vmem:[%s2338] sm:$0xff]
        %2341 = vst [vmem:[#allocation1] ss:$2 sm:$0xff] %v2339
        %v2342 = vld.sshfl [vmem:[#allocation1] sm:$0xff pattern:$0x75316420]
        %v2343 = vld.sshfl [vmem:[#allocation1 + $0x8] sm:$0xff pattern:$0x75316420]
        %v2344 = vsel %vm308, %v2342, 0
        %v2346 = vsel %vm308, %v2343, 0
        %2348 = vmatpush.msra.mxu0 0.0
        %2349 = vmatpush.msra.mxu0 0.0
        %2350 = vmatpush.msra.mxu0 0.0
        %2351 = vmatpush.msra.mxu0 0.0
        %2352 = vmatpush.msra.mxu0 0.0
        %2353 = vmatpush.msra.mxu0 0.0
        %2354 = vmatpush.msra.mxu0 0.0
        %2355 = vmatpush.msra.mxu0 0.0
        %2356 = vmatpush.msra.mxu0 0.0
        %2357 = vmatpush.msra.mxu0 0.0
        %2358 = vmatpush.msra.mxu0 0.0
        %2359 = vmatpush.msra.mxu0 0.0
        %2360 = vmatpush.msra.mxu0 0.0
        %2361 = vmatpush.msra.mxu0 0.0
        %2362 = vmatpush.msra.mxu0 0.0
        %2363 = vmatpush.msra.mxu0 %v2344
        %2364 = vmatmul.f32.gmra.mxu0 %v291
        %v2365 = vpop.f32.mrf.mxu0
        %v2366 = vadd.f32 %v258, %v2365
        %2367 = vmatmul.f32.gmra.mxu0 %v294
        %v2368 = vpop.f32.mrf.mxu0
        %v2369 = vadd.f32 %v263, %v2368
        %2370 = vmatmul.f32.gmra.mxu0 %v297
        %v2371 = vpop.f32.mrf.mxu0
        %v2372 = vadd.f32 %v268, %v2371
        %2373 = vmatmul.f32.gmra.mxu0 %v300
        %v2374 = vpop.f32.mrf.mxu0
        %v2375 = vadd.f32 %v273, %v2374
        %2376 = vmatmul.f32.gmra.mxu0 %v303
        %v2377 = vpop.f32.mrf.mxu0
        %v2378 = vadd.f32 %v278, %v2377
        %2379 = vmatmul.f32.gmra.mxu0 %v306
        %v2380 = vpop.f32.mrf.mxu0
        %v2381 = vadd.f32 %v283, %v2380
        %2382 = vdwg.mxu0
        %2383 = vmatpush.msra.mxu0 0.0
        %2384 = vmatpush.msra.mxu0 0.0
        %2385 = vmatpush.msra.mxu0 0.0
        %2386 = vmatpush.msra.mxu0 0.0
        %2387 = vmatpush.msra.mxu0 0.0
        %2388 = vmatpush.msra.mxu0 0.0
        %2389 = vmatpush.msra.mxu0 0.0
        %2390 = vmatpush.msra.mxu0 0.0
        %2391 = vmatpush.msra.mxu0 0.0
        %2392 = vmatpush.msra.mxu0 0.0
        %2393 = vmatpush.msra.mxu0 0.0
        %2394 = vmatpush.msra.mxu0 0.0
        %2395 = vmatpush.msra.mxu0 0.0
        %2396 = vmatpush.msra.mxu0 0.0
        %2397 = vmatpush.msra.mxu0 0.0
        %2398 = vmatpush.msra.mxu0 %v2346
        %2399 = vmatmul.f32.gmra.mxu0 %v291
        %v2400 = vpop.f32.mrf.mxu0
        %v2401 = vadd.f32 %v258, %v2400
        %2402 = vmatmul.f32.gmra.mxu0 %v294
        %v2403 = vpop.f32.mrf.mxu0
        %v2404 = vadd.f32 %v263, %v2403
        %2405 = vmatmul.f32.gmra.mxu0 %v297
        %v2406 = vpop.f32.mrf.mxu0
        %v2407 = vadd.f32 %v268, %v2406
        %2408 = vmatmul.f32.gmra.mxu0 %v300
        %v2409 = vpop.f32.mrf.mxu0
        %v2410 = vadd.f32 %v273, %v2409
        %2411 = vmatmul.f32.gmra.mxu0 %v303
        %v2412 = vpop.f32.mrf.mxu0
        %v2413 = vadd.f32 %v278, %v2412
        %2414 = vmatmul.f32.gmra.mxu0 %v306
        %v2415 = vpop.f32.mrf.mxu0
        %v2416 = vadd.f32 %v283, %v2415
        %2417 = vdwg.mxu0
        %2418 = vxpose.xlu0.b32.start [1/16] %v2366, 128
        %2419 = vxpose.xlu0.b32.cont [2/16] 0.0, 128
        %2420 = vxpose.xlu0.b32.cont [3/16] 0.0, 128
        %2421 = vxpose.xlu0.b32.cont [4/16] 0.0, 128
        %2422 = vxpose.xlu0.b32.cont [5/16] 0.0, 128
        %2423 = vxpose.xlu0.b32.cont [6/16] 0.0, 128
        %2424 = vxpose.xlu0.b32.cont [7/16] 0.0, 128
        %2425 = vxpose.xlu0.b32.cont [8/16] 0.0, 128
        %2426 = vxpose.xlu0.b32.cont [9/16] 0.0, 128
        %2427 = vxpose.xlu0.b32.cont [10/16] 0.0, 128
        %2428 = vxpose.xlu0.b32.cont [11/16] 0.0, 128
        %2429 = vxpose.xlu0.b32.cont [12/16] 0.0, 128
        %2430 = vxpose.xlu0.b32.cont [13/16] 0.0, 128
        %2431 = vxpose.xlu0.b32.cont [14/16] 0.0, 128
        %2432 = vxpose.xlu0.b32.cont [15/16] 0.0, 128
        %2433 = vxpose.xlu0.b32.end [16/16] 0.0, 128
        %v2434 = vpop.trf.xlu0
        %v2435 = vpop.trf.xlu0
        %v2436 = vpop.trf.xlu0
        %v2437 = vpop.trf.xlu0
        %v2438 = vpop.trf.xlu0
        %v2439 = vpop.trf.xlu0
        %v2440 = vpop.trf.xlu0
        %v2441 = vpop.trf.xlu0
        %v2442 = vpop.trf.xlu0
        %v2443 = vpop.trf.xlu0
        %v2444 = vpop.trf.xlu0
        %v2445 = vpop.trf.xlu0
        %v2446 = vpop.trf.xlu0
        %v2447 = vpop.trf.xlu0
        %v2448 = vpop.trf.xlu0
        %v2449 = vpop.trf.xlu0
        %2450 = vxpose.xlu0.b32.start [1/16] %v2401, 128
        %2451 = vxpose.xlu0.b32.cont [2/16] 0.0, 128
        %2452 = vxpose.xlu0.b32.cont [3/16] 0.0, 128
        %2453 = vxpose.xlu0.b32.cont [4/16] 0.0, 128
        %2454 = vxpose.xlu0.b32.cont [5/16] 0.0, 128
        %2455 = vxpose.xlu0.b32.cont [6/16] 0.0, 128
        %2456 = vxpose.xlu0.b32.cont [7/16] 0.0, 128
        %2457 = vxpose.xlu0.b32.cont [8/16] 0.0, 128
        %2458 = vxpose.xlu0.b32.cont [9/16] 0.0, 128
        %2459 = vxpose.xlu0.b32.cont [10/16] 0.0, 128
        %2460 = vxpose.xlu0.b32.cont [11/16] 0.0, 128
        %2461 = vxpose.xlu0.b32.cont [12/16] 0.0, 128
        %2462 = vxpose.xlu0.b32.cont [13/16] 0.0, 128
        %2463 = vxpose.xlu0.b32.cont [14/16] 0.0, 128
        %2464 = vxpose.xlu0.b32.cont [15/16] 0.0, 128
        %2465 = vxpose.xlu0.b32.end [16/16] 0.0, 128
        %v2466 = vpop.trf.xlu0
        %v2467 = vpop.trf.xlu0
        %v2468 = vpop.trf.xlu0
        %v2469 = vpop.trf.xlu0
        %v2470 = vpop.trf.xlu0
        %v2471 = vpop.trf.xlu0
        %v2472 = vpop.trf.xlu0
        %v2473 = vpop.trf.xlu0
        %v2474 = vpop.trf.xlu0
        %v2475 = vpop.trf.xlu0
        %v2476 = vpop.trf.xlu0
        %v2477 = vpop.trf.xlu0
        %v2478 = vpop.trf.xlu0
        %v2479 = vpop.trf.xlu0
        %v2480 = vpop.trf.xlu0
        %v2481 = vpop.trf.xlu0
        %v2483 = vsel %vm447, %v2434, 0
        %v2486 = vsel %vm447, %v2435, 0
        %v2489 = vsel %vm447, %v2436, 0
        %v2492 = vsel %vm447, %v2437, 0
        %v2495 = vsel %vm447, %v2438, 0
        %v2498 = vsel %vm447, %v2439, 0
        %v2501 = vsel %vm447, %v2440, 0
        %v2504 = vsel %vm447, %v2441, 0
        %v2507 = vsel %vm447, %v2442, 0
        %v2510 = vsel %vm447, %v2443, 0
        %v2513 = vsel %vm447, %v2444, 0
        %v2516 = vsel %vm447, %v2445, 0
        %v2519 = vsel %vm447, %v2446, 0
        %v2522 = vsel %vm447, %v2447, 0
        %v2525 = vsel %vm447, %v2448, 0
        %v2528 = vsel %vm447, %v2449, 0
        %v2531 = vsel %vm447, %v2466, 0
        %v2534 = vsel %vm447, %v2467, 0
        %v2537 = vsel %vm447, %v2468, 0
        %v2540 = vsel %vm447, %v2469, 0
        %v2543 = vsel %vm447, %v2470, 0
        %v2546 = vsel %vm447, %v2471, 0
        %v2549 = vsel %vm447, %v2472, 0
        %v2552 = vsel %vm447, %v2473, 0
        %v2555 = vsel %vm447, %v2474, 0
        %v2558 = vsel %vm447, %v2475, 0
        %v2561 = vsel %vm447, %v2476, 0
        %v2564 = vsel %vm447, %v2477, 0
        %v2567 = vsel %vm447, %v2478, 0
        %v2570 = vsel %vm447, %v2479, 0
        %v2573 = vsel %vm447, %v2480, 0
        %v2576 = vsel %vm447, %v2481, 0
        %2578 = vmatpush.msra.mxu0 0.0
        %2579 = vmatpush.msra.mxu0 0.0
        %2580 = vmatpush.msra.mxu0 0.0
        %2581 = vmatpush.msra.mxu0 0.0
        %2582 = vmatpush.msra.mxu0 0.0
        %2583 = vmatpush.msra.mxu0 0.0
        %2584 = vmatpush.msra.mxu0 0.0
        %2585 = vmatpush.msra.mxu0 0.0
        %2586 = vmatpush.msra.mxu0 0.0
        %2587 = vmatpush.msra.mxu0 0.0
        %2588 = vmatpush.msra.mxu0 0.0
        %2589 = vmatpush.msra.mxu0 0.0
        %2590 = vmatpush.msra.mxu0 0.0
        %2591 = vmatpush.msra.mxu0 0.0
        %2592 = vmatpush.msra.mxu0 0.0
        %2593 = vmatpush.msra.mxu0 %v2372
        %2594 = vmatmul.f32.gmra.mxu0 %v2483
        %v2595 = vpop.f32.mrf.mxu0
        %v2596 = vadd.f32 0.0, %v2595
        %2597 = vmatmul.f32.gmra.mxu0 %v2486
        %v2598 = vpop.f32.mrf.mxu0
        %v2599 = vadd.f32 0.0, %v2598
        %2600 = vmatmul.f32.gmra.mxu0 %v2489
        %v2601 = vpop.f32.mrf.mxu0
        %v2602 = vadd.f32 0.0, %v2601
        %2603 = vmatmul.f32.gmra.mxu0 %v2492
        %v2604 = vpop.f32.mrf.mxu0
        %v2605 = vadd.f32 0.0, %v2604
        %2606 = vmatmul.f32.gmra.mxu0 %v2495
        %v2607 = vpop.f32.mrf.mxu0
        %v2608 = vadd.f32 0.0, %v2607
        %2609 = vmatmul.f32.gmra.mxu0 %v2498
        %v2610 = vpop.f32.mrf.mxu0
        %v2611 = vadd.f32 0.0, %v2610
        %2612 = vmatmul.f32.gmra.mxu0 %v2501
        %v2613 = vpop.f32.mrf.mxu0
        %v2614 = vadd.f32 0.0, %v2613
        %2615 = vmatmul.f32.gmra.mxu0 %v2504
        %v2616 = vpop.f32.mrf.mxu0
        %v2617 = vadd.f32 0.0, %v2616
        %2618 = vmatmul.f32.gmra.mxu0 %v2507
        %v2619 = vpop.f32.mrf.mxu0
        %v2620 = vadd.f32 0.0, %v2619
        %2621 = vmatmul.f32.gmra.mxu0 %v2510
        %v2622 = vpop.f32.mrf.mxu0
        %v2623 = vadd.f32 0.0, %v2622
        %2624 = vmatmul.f32.gmra.mxu0 %v2513
        %v2625 = vpop.f32.mrf.mxu0
        %v2626 = vadd.f32 0.0, %v2625
        %2627 = vmatmul.f32.gmra.mxu0 %v2516
        %v2628 = vpop.f32.mrf.mxu0
        %v2629 = vadd.f32 0.0, %v2628
        %2630 = vmatmul.f32.gmra.mxu0 %v2519
        %v2631 = vpop.f32.mrf.mxu0
        %v2632 = vadd.f32 0.0, %v2631
        %2633 = vmatmul.f32.gmra.mxu0 %v2522
        %v2634 = vpop.f32.mrf.mxu0
        %v2635 = vadd.f32 0.0, %v2634
        %2636 = vmatmul.f32.gmra.mxu0 %v2525
        %v2637 = vpop.f32.mrf.mxu0
        %v2638 = vadd.f32 0.0, %v2637
        %2639 = vmatmul.f32.gmra.mxu0 %v2528
        %v2640 = vpop.f32.mrf.mxu0
        %v2641 = vadd.f32 0.0, %v2640
        %2642 = vmatmul.f32.gmra.mxu0 %v2531
        %v2643 = vpop.f32.mrf.mxu0
        %v2644 = vadd.f32 0.0, %v2643
        %2645 = vmatmul.f32.gmra.mxu0 %v2534
        %v2646 = vpop.f32.mrf.mxu0
        %v2647 = vadd.f32 0.0, %v2646
        %2648 = vmatmul.f32.gmra.mxu0 %v2537
        %v2649 = vpop.f32.mrf.mxu0
        %v2650 = vadd.f32 0.0, %v2649
        %2651 = vmatmul.f32.gmra.mxu0 %v2540
        %v2652 = vpop.f32.mrf.mxu0
        %v2653 = vadd.f32 0.0, %v2652
        %2654 = vmatmul.f32.gmra.mxu0 %v2543
        %v2655 = vpop.f32.mrf.mxu0
        %v2656 = vadd.f32 0.0, %v2655
        %2657 = vmatmul.f32.gmra.mxu0 %v2546
        %v2658 = vpop.f32.mrf.mxu0
        %v2659 = vadd.f32 0.0, %v2658
        %2660 = vmatmul.f32.gmra.mxu0 %v2549
        %v2661 = vpop.f32.mrf.mxu0
        %v2662 = vadd.f32 0.0, %v2661
        %2663 = vmatmul.f32.gmra.mxu0 %v2552
        %v2664 = vpop.f32.mrf.mxu0
        %v2665 = vadd.f32 0.0, %v2664
        %2666 = vmatmul.f32.gmra.mxu0 %v2555
        %v2667 = vpop.f32.mrf.mxu0
        %v2668 = vadd.f32 0.0, %v2667
        %2669 = vmatmul.f32.gmra.mxu0 %v2558
        %v2670 = vpop.f32.mrf.mxu0
        %v2671 = vadd.f32 0.0, %v2670
        %2672 = vmatmul.f32.gmra.mxu0 %v2561
        %v2673 = vpop.f32.mrf.mxu0
        %v2674 = vadd.f32 0.0, %v2673
        %2675 = vmatmul.f32.gmra.mxu0 %v2564
        %v2676 = vpop.f32.mrf.mxu0
        %v2677 = vadd.f32 0.0, %v2676
        %2678 = vmatmul.f32.gmra.mxu0 %v2567
        %v2679 = vpop.f32.mrf.mxu0
        %v2680 = vadd.f32 0.0, %v2679
        %2681 = vmatmul.f32.gmra.mxu0 %v2570
        %v2682 = vpop.f32.mrf.mxu0
        %v2683 = vadd.f32 0.0, %v2682
        %2684 = vmatmul.f32.gmra.mxu0 %v2573
        %v2685 = vpop.f32.mrf.mxu0
        %v2686 = vadd.f32 0.0, %v2685
        %2687 = vmatmul.f32.gmra.mxu0 %v2576
        %v2688 = vpop.f32.mrf.mxu0
        %v2689 = vadd.f32 0.0, %v2688
        %2690 = vdwg.mxu0
        %2691 = vmatpush.msra.mxu0 0.0
        %2692 = vmatpush.msra.mxu0 0.0
        %2693 = vmatpush.msra.mxu0 0.0
        %2694 = vmatpush.msra.mxu0 0.0
        %2695 = vmatpush.msra.mxu0 0.0
        %2696 = vmatpush.msra.mxu0 0.0
        %2697 = vmatpush.msra.mxu0 0.0
        %2698 = vmatpush.msra.mxu0 0.0
        %2699 = vmatpush.msra.mxu0 0.0
        %2700 = vmatpush.msra.mxu0 0.0
        %2701 = vmatpush.msra.mxu0 0.0
        %2702 = vmatpush.msra.mxu0 0.0
        %2703 = vmatpush.msra.mxu0 0.0
        %2704 = vmatpush.msra.mxu0 0.0
        %2705 = vmatpush.msra.mxu0 0.0
        %2706 = vmatpush.msra.mxu0 %v2407
        %2707 = vmatmul.f32.gmra.mxu0 %v2483
        %v2708 = vpop.f32.mrf.mxu0
        %v2709 = vadd.f32 0.0, %v2708
        %2710 = vmatmul.f32.gmra.mxu0 %v2486
        %v2711 = vpop.f32.mrf.mxu0
        %v2712 = vadd.f32 0.0, %v2711
        %2713 = vmatmul.f32.gmra.mxu0 %v2489
        %v2714 = vpop.f32.mrf.mxu0
        %v2715 = vadd.f32 0.0, %v2714
        %2716 = vmatmul.f32.gmra.mxu0 %v2492
        %v2717 = vpop.f32.mrf.mxu0
        %v2718 = vadd.f32 0.0, %v2717
        %2719 = vmatmul.f32.gmra.mxu0 %v2495
        %v2720 = vpop.f32.mrf.mxu0
        %v2721 = vadd.f32 0.0, %v2720
        %2722 = vmatmul.f32.gmra.mxu0 %v2498
        %v2723 = vpop.f32.mrf.mxu0
        %v2724 = vadd.f32 0.0, %v2723
        %2725 = vmatmul.f32.gmra.mxu0 %v2501
        %v2726 = vpop.f32.mrf.mxu0
        %v2727 = vadd.f32 0.0, %v2726
        %2728 = vmatmul.f32.gmra.mxu0 %v2504
        %v2729 = vpop.f32.mrf.mxu0
        %v2730 = vadd.f32 0.0, %v2729
        %2731 = vmatmul.f32.gmra.mxu0 %v2507
        %v2732 = vpop.f32.mrf.mxu0
        %v2733 = vadd.f32 0.0, %v2732
        %2734 = vmatmul.f32.gmra.mxu0 %v2510
        %v2735 = vpop.f32.mrf.mxu0
        %v2736 = vadd.f32 0.0, %v2735
        %2737 = vmatmul.f32.gmra.mxu0 %v2513
        %v2738 = vpop.f32.mrf.mxu0
        %v2739 = vadd.f32 0.0, %v2738
        %2740 = vmatmul.f32.gmra.mxu0 %v2516
        %v2741 = vpop.f32.mrf.mxu0
        %v2742 = vadd.f32 0.0, %v2741
        %2743 = vmatmul.f32.gmra.mxu0 %v2519
        %v2744 = vpop.f32.mrf.mxu0
        %v2745 = vadd.f32 0.0, %v2744
        %2746 = vmatmul.f32.gmra.mxu0 %v2522
        %v2747 = vpop.f32.mrf.mxu0
        %v2748 = vadd.f32 0.0, %v2747
        %2749 = vmatmul.f32.gmra.mxu0 %v2525
        %v2750 = vpop.f32.mrf.mxu0
        %v2751 = vadd.f32 0.0, %v2750
        %2752 = vmatmul.f32.gmra.mxu0 %v2528
        %v2753 = vpop.f32.mrf.mxu0
        %v2754 = vadd.f32 0.0, %v2753
        %2755 = vmatmul.f32.gmra.mxu0 %v2531
        %v2756 = vpop.f32.mrf.mxu0
        %v2757 = vadd.f32 0.0, %v2756
        %2758 = vmatmul.f32.gmra.mxu0 %v2534
        %v2759 = vpop.f32.mrf.mxu0
        %v2760 = vadd.f32 0.0, %v2759
        %2761 = vmatmul.f32.gmra.mxu0 %v2537
        %v2762 = vpop.f32.mrf.mxu0
        %v2763 = vadd.f32 0.0, %v2762
        %2764 = vmatmul.f32.gmra.mxu0 %v2540
        %v2765 = vpop.f32.mrf.mxu0
        %v2766 = vadd.f32 0.0, %v2765
        %2767 = vmatmul.f32.gmra.mxu0 %v2543
        %v2768 = vpop.f32.mrf.mxu0
        %v2769 = vadd.f32 0.0, %v2768
        %2770 = vmatmul.f32.gmra.mxu0 %v2546
        %v2771 = vpop.f32.mrf.mxu0
        %v2772 = vadd.f32 0.0, %v2771
        %2773 = vmatmul.f32.gmra.mxu0 %v2549
        %v2774 = vpop.f32.mrf.mxu0
        %v2775 = vadd.f32 0.0, %v2774
        %2776 = vmatmul.f32.gmra.mxu0 %v2552
        %v2777 = vpop.f32.mrf.mxu0
        %v2778 = vadd.f32 0.0, %v2777
        %2779 = vmatmul.f32.gmra.mxu0 %v2555
        %v2780 = vpop.f32.mrf.mxu0
        %v2781 = vadd.f32 0.0, %v2780
        %2782 = vmatmul.f32.gmra.mxu0 %v2558
        %v2783 = vpop.f32.mrf.mxu0
        %v2784 = vadd.f32 0.0, %v2783
        %2785 = vmatmul.f32.gmra.mxu0 %v2561
        %v2786 = vpop.f32.mrf.mxu0
        %v2787 = vadd.f32 0.0, %v2786
        %2788 = vmatmul.f32.gmra.mxu0 %v2564
        %v2789 = vpop.f32.mrf.mxu0
        %v2790 = vadd.f32 0.0, %v2789
        %2791 = vmatmul.f32.gmra.mxu0 %v2567
        %v2792 = vpop.f32.mrf.mxu0
        %v2793 = vadd.f32 0.0, %v2792
        %2794 = vmatmul.f32.gmra.mxu0 %v2570
        %v2795 = vpop.f32.mrf.mxu0
        %v2796 = vadd.f32 0.0, %v2795
        %2797 = vmatmul.f32.gmra.mxu0 %v2573
        %v2798 = vpop.f32.mrf.mxu0
        %v2799 = vadd.f32 0.0, %v2798
        %2800 = vmatmul.f32.gmra.mxu0 %v2576
        %v2801 = vpop.f32.mrf.mxu0
        %v2802 = vadd.f32 0.0, %v2801
        %2803 = vdwg.mxu0
        %2804 = vxpose.xlu0.b32.start [1/16] %v2369, 128
        %2805 = vxpose.xlu0.b32.cont [2/16] 0.0, 128
        %2806 = vxpose.xlu0.b32.cont [3/16] 0.0, 128
        %2807 = vxpose.xlu0.b32.cont [4/16] 0.0, 128
        %2808 = vxpose.xlu0.b32.cont [5/16] 0.0, 128
        %2809 = vxpose.xlu0.b32.cont [6/16] 0.0, 128
        %2810 = vxpose.xlu0.b32.cont [7/16] 0.0, 128
        %2811 = vxpose.xlu0.b32.cont [8/16] 0.0, 128
        %2812 = vxpose.xlu0.b32.cont [9/16] 0.0, 128
        %2813 = vxpose.xlu0.b32.cont [10/16] 0.0, 128
        %2814 = vxpose.xlu0.b32.cont [11/16] 0.0, 128
        %2815 = vxpose.xlu0.b32.cont [12/16] 0.0, 128
        %2816 = vxpose.xlu0.b32.cont [13/16] 0.0, 128
        %2817 = vxpose.xlu0.b32.cont [14/16] 0.0, 128
        %2818 = vxpose.xlu0.b32.cont [15/16] 0.0, 128
        %2819 = vxpose.xlu0.b32.end [16/16] 0.0, 128
        %v2820 = vpop.trf.xlu0
        %v2821 = vpop.trf.xlu0
        %v2822 = vpop.trf.xlu0
        %v2823 = vpop.trf.xlu0
        %v2824 = vpop.trf.xlu0
        %v2825 = vpop.trf.xlu0
        %v2826 = vpop.trf.xlu0
        %v2827 = vpop.trf.xlu0
        %v2828 = vpop.trf.xlu0
        %v2829 = vpop.trf.xlu0
        %v2830 = vpop.trf.xlu0
        %v2831 = vpop.trf.xlu0
        %v2832 = vpop.trf.xlu0
        %v2833 = vpop.trf.xlu0
        %v2834 = vpop.trf.xlu0
        %v2835 = vpop.trf.xlu0
        %2836 = vxpose.xlu0.b32.start [1/16] %v2404, 128
        %2837 = vxpose.xlu0.b32.cont [2/16] 0.0, 128
        %2838 = vxpose.xlu0.b32.cont [3/16] 0.0, 128
        %2839 = vxpose.xlu0.b32.cont [4/16] 0.0, 128
        %2840 = vxpose.xlu0.b32.cont [5/16] 0.0, 128
        %2841 = vxpose.xlu0.b32.cont [6/16] 0.0, 128
        %2842 = vxpose.xlu0.b32.cont [7/16] 0.0, 128
        %2843 = vxpose.xlu0.b32.cont [8/16] 0.0, 128
        %2844 = vxpose.xlu0.b32.cont [9/16] 0.0, 128
        %2845 = vxpose.xlu0.b32.cont [10/16] 0.0, 128
        %2846 = vxpose.xlu0.b32.cont [11/16] 0.0, 128
        %2847 = vxpose.xlu0.b32.cont [12/16] 0.0, 128
        %2848 = vxpose.xlu0.b32.cont [13/16] 0.0, 128
        %2849 = vxpose.xlu0.b32.cont [14/16] 0.0, 128
        %2850 = vxpose.xlu0.b32.cont [15/16] 0.0, 128
        %2851 = vxpose.xlu0.b32.end [16/16] 0.0, 128
        %v2852 = vpop.trf.xlu0
        %v2853 = vpop.trf.xlu0
        %v2854 = vpop.trf.xlu0
        %v2855 = vpop.trf.xlu0
        %v2856 = vpop.trf.xlu0
        %v2857 = vpop.trf.xlu0
        %v2858 = vpop.trf.xlu0
        %v2859 = vpop.trf.xlu0
        %v2860 = vpop.trf.xlu0
        %v2861 = vpop.trf.xlu0
        %v2862 = vpop.trf.xlu0
        %v2863 = vpop.trf.xlu0
        %v2864 = vpop.trf.xlu0
        %v2865 = vpop.trf.xlu0
        %v2866 = vpop.trf.xlu0
        %v2867 = vpop.trf.xlu0
        %v2869 = vsel %vm447, %v2820, 0
        %v2872 = vsel %vm447, %v2821, 0
        %v2875 = vsel %vm447, %v2822, 0
        %v2878 = vsel %vm447, %v2823, 0
        %v2881 = vsel %vm447, %v2824, 0
        %v2884 = vsel %vm447, %v2825, 0
        %v2887 = vsel %vm447, %v2826, 0
        %v2890 = vsel %vm447, %v2827, 0
        %v2893 = vsel %vm447, %v2828, 0
        %v2896 = vsel %vm447, %v2829, 0
        %v2899 = vsel %vm447, %v2830, 0
        %v2902 = vsel %vm447, %v2831, 0
        %v2905 = vsel %vm447, %v2832, 0
        %v2908 = vsel %vm447, %v2833, 0
        %v2911 = vsel %vm447, %v2834, 0
        %v2914 = vsel %vm447, %v2835, 0
        %v2917 = vsel %vm447, %v2852, 0
        %v2920 = vsel %vm447, %v2853, 0
        %v2923 = vsel %vm447, %v2854, 0
        %v2926 = vsel %vm447, %v2855, 0
        %v2929 = vsel %vm447, %v2856, 0
        %v2932 = vsel %vm447, %v2857, 0
        %v2935 = vsel %vm447, %v2858, 0
        %v2938 = vsel %vm447, %v2859, 0
        %v2941 = vsel %vm447, %v2860, 0
        %v2944 = vsel %vm447, %v2861, 0
        %v2947 = vsel %vm447, %v2862, 0
        %v2950 = vsel %vm447, %v2863, 0
        %v2953 = vsel %vm447, %v2864, 0
        %v2956 = vsel %vm447, %v2865, 0
        %v2959 = vsel %vm447, %v2866, 0
        %v2962 = vsel %vm447, %v2867, 0
        %2964 = vmatpush.msra.mxu0 0.0
        %2965 = vmatpush.msra.mxu0 0.0
        %2966 = vmatpush.msra.mxu0 0.0
        %2967 = vmatpush.msra.mxu0 0.0
        %2968 = vmatpush.msra.mxu0 0.0
        %2969 = vmatpush.msra.mxu0 0.0
        %2970 = vmatpush.msra.mxu0 0.0
        %2971 = vmatpush.msra.mxu0 0.0
        %2972 = vmatpush.msra.mxu0 0.0
        %2973 = vmatpush.msra.mxu0 0.0
        %2974 = vmatpush.msra.mxu0 0.0
        %2975 = vmatpush.msra.mxu0 0.0
        %2976 = vmatpush.msra.mxu0 0.0
        %2977 = vmatpush.msra.mxu0 0.0
        %2978 = vmatpush.msra.mxu0 0.0
        %2979 = vmatpush.msra.mxu0 %v2375
        %2980 = vmatmul.f32.gmra.mxu0 %v2869
        %v2981 = vpop.f32.mrf.mxu0
        %v2982 = vadd.f32 0.0, %v2981
        %2983 = vmatmul.f32.gmra.mxu0 %v2872
        %v2984 = vpop.f32.mrf.mxu0
        %v2985 = vadd.f32 0.0, %v2984
        %2986 = vmatmul.f32.gmra.mxu0 %v2875
        %v2987 = vpop.f32.mrf.mxu0
        %v2988 = vadd.f32 0.0, %v2987
        %2989 = vmatmul.f32.gmra.mxu0 %v2878
        %v2990 = vpop.f32.mrf.mxu0
        %v2991 = vadd.f32 0.0, %v2990
        %2992 = vmatmul.f32.gmra.mxu0 %v2881
        %v2993 = vpop.f32.mrf.mxu0
        %v2994 = vadd.f32 0.0, %v2993
        %2995 = vmatmul.f32.gmra.mxu0 %v2884
        %v2996 = vpop.f32.mrf.mxu0
        %v2997 = vadd.f32 0.0, %v2996
        %2998 = vmatmul.f32.gmra.mxu0 %v2887
        %v2999 = vpop.f32.mrf.mxu0
        %v3000 = vadd.f32 0.0, %v2999
        %3001 = vmatmul.f32.gmra.mxu0 %v2890
        %v3002 = vpop.f32.mrf.mxu0
        %v3003 = vadd.f32 0.0, %v3002
        %3004 = vmatmul.f32.gmra.mxu0 %v2893
        %v3005 = vpop.f32.mrf.mxu0
        %v3006 = vadd.f32 0.0, %v3005
        %3007 = vmatmul.f32.gmra.mxu0 %v2896
        %v3008 = vpop.f32.mrf.mxu0
        %v3009 = vadd.f32 0.0, %v3008
        %3010 = vmatmul.f32.gmra.mxu0 %v2899
        %v3011 = vpop.f32.mrf.mxu0
        %v3012 = vadd.f32 0.0, %v3011
        %3013 = vmatmul.f32.gmra.mxu0 %v2902
        %v3014 = vpop.f32.mrf.mxu0
        %v3015 = vadd.f32 0.0, %v3014
        %3016 = vmatmul.f32.gmra.mxu0 %v2905
        %v3017 = vpop.f32.mrf.mxu0
        %v3018 = vadd.f32 0.0, %v3017
        %3019 = vmatmul.f32.gmra.mxu0 %v2908
        %v3020 = vpop.f32.mrf.mxu0
        %v3021 = vadd.f32 0.0, %v3020
        %3022 = vmatmul.f32.gmra.mxu0 %v2911
        %v3023 = vpop.f32.mrf.mxu0
        %v3024 = vadd.f32 0.0, %v3023
        %3025 = vmatmul.f32.gmra.mxu0 %v2914
        %v3026 = vpop.f32.mrf.mxu0
        %v3027 = vadd.f32 0.0, %v3026
        %3028 = vmatmul.f32.gmra.mxu0 %v2917
        %v3029 = vpop.f32.mrf.mxu0
        %v3030 = vadd.f32 0.0, %v3029
        %3031 = vmatmul.f32.gmra.mxu0 %v2920
        %v3032 = vpop.f32.mrf.mxu0
        %v3033 = vadd.f32 0.0, %v3032
        %3034 = vmatmul.f32.gmra.mxu0 %v2923
        %v3035 = vpop.f32.mrf.mxu0
        %v3036 = vadd.f32 0.0, %v3035
        %3037 = vmatmul.f32.gmra.mxu0 %v2926
        %v3038 = vpop.f32.mrf.mxu0
        %v3039 = vadd.f32 0.0, %v3038
        %3040 = vmatmul.f32.gmra.mxu0 %v2929
        %v3041 = vpop.f32.mrf.mxu0
        %v3042 = vadd.f32 0.0, %v3041
        %3043 = vmatmul.f32.gmra.mxu0 %v2932
        %v3044 = vpop.f32.mrf.mxu0
        %v3045 = vadd.f32 0.0, %v3044
        %3046 = vmatmul.f32.gmra.mxu0 %v2935
        %v3047 = vpop.f32.mrf.mxu0
        %v3048 = vadd.f32 0.0, %v3047
        %3049 = vmatmul.f32.gmra.mxu0 %v2938
        %v3050 = vpop.f32.mrf.mxu0
        %v3051 = vadd.f32 0.0, %v3050
        %3052 = vmatmul.f32.gmra.mxu0 %v2941
        %v3053 = vpop.f32.mrf.mxu0
        %v3054 = vadd.f32 0.0, %v3053
        %3055 = vmatmul.f32.gmra.mxu0 %v2944
        %v3056 = vpop.f32.mrf.mxu0
        %v3057 = vadd.f32 0.0, %v3056
        %3058 = vmatmul.f32.gmra.mxu0 %v2947
        %v3059 = vpop.f32.mrf.mxu0
        %v3060 = vadd.f32 0.0, %v3059
        %3061 = vmatmul.f32.gmra.mxu0 %v2950
        %v3062 = vpop.f32.mrf.mxu0
        %v3063 = vadd.f32 0.0, %v3062
        %3064 = vmatmul.f32.gmra.mxu0 %v2953
        %v3065 = vpop.f32.mrf.mxu0
        %v3066 = vadd.f32 0.0, %v3065
        %3067 = vmatmul.f32.gmra.mxu0 %v2956
        %v3068 = vpop.f32.mrf.mxu0
        %v3069 = vadd.f32 0.0, %v3068
        %3070 = vmatmul.f32.gmra.mxu0 %v2959
        %v3071 = vpop.f32.mrf.mxu0
        %v3072 = vadd.f32 0.0, %v3071
        %3073 = vmatmul.f32.gmra.mxu0 %v2962
        %v3074 = vpop.f32.mrf.mxu0
        %v3075 = vadd.f32 0.0, %v3074
        %3076 = vdwg.mxu0
        %3077 = vmatpush.msra.mxu0 0.0
        %3078 = vmatpush.msra.mxu0 0.0
        %3079 = vmatpush.msra.mxu0 0.0
        %3080 = vmatpush.msra.mxu0 0.0
        %3081 = vmatpush.msra.mxu0 0.0
        %3082 = vmatpush.msra.mxu0 0.0
        %3083 = vmatpush.msra.mxu0 0.0
        %3084 = vmatpush.msra.mxu0 0.0
        %3085 = vmatpush.msra.mxu0 0.0
        %3086 = vmatpush.msra.mxu0 0.0
        %3087 = vmatpush.msra.mxu0 0.0
        %3088 = vmatpush.msra.mxu0 0.0
        %3089 = vmatpush.msra.mxu0 0.0
        %3090 = vmatpush.msra.mxu0 0.0
        %3091 = vmatpush.msra.mxu0 0.0
        %3092 = vmatpush.msra.mxu0 %v2410
        %3093 = vmatmul.f32.gmra.mxu0 %v2869
        %v3094 = vpop.f32.mrf.mxu0
        %v3095 = vadd.f32 0.0, %v3094
        %3096 = vmatmul.f32.gmra.mxu0 %v2872
        %v3097 = vpop.f32.mrf.mxu0
        %v3098 = vadd.f32 0.0, %v3097
        %3099 = vmatmul.f32.gmra.mxu0 %v2875
        %v3100 = vpop.f32.mrf.mxu0
        %v3101 = vadd.f32 0.0, %v3100
        %3102 = vmatmul.f32.gmra.mxu0 %v2878
        %v3103 = vpop.f32.mrf.mxu0
        %v3104 = vadd.f32 0.0, %v3103
        %3105 = vmatmul.f32.gmra.mxu0 %v2881
        %v3106 = vpop.f32.mrf.mxu0
        %v3107 = vadd.f32 0.0, %v3106
        %3108 = vmatmul.f32.gmra.mxu0 %v2884
        %v3109 = vpop.f32.mrf.mxu0
        %v3110 = vadd.f32 0.0, %v3109
        %3111 = vmatmul.f32.gmra.mxu0 %v2887
        %v3112 = vpop.f32.mrf.mxu0
        %v3113 = vadd.f32 0.0, %v3112
        %3114 = vmatmul.f32.gmra.mxu0 %v2890
        %v3115 = vpop.f32.mrf.mxu0
        %v3116 = vadd.f32 0.0, %v3115
        %3117 = vmatmul.f32.gmra.mxu0 %v2893
        %v3118 = vpop.f32.mrf.mxu0
        %v3119 = vadd.f32 0.0, %v3118
        %3120 = vmatmul.f32.gmra.mxu0 %v2896
        %v3121 = vpop.f32.mrf.mxu0
        %v3122 = vadd.f32 0.0, %v3121
        %3123 = vmatmul.f32.gmra.mxu0 %v2899
        %v3124 = vpop.f32.mrf.mxu0
        %v3125 = vadd.f32 0.0, %v3124
        %3126 = vmatmul.f32.gmra.mxu0 %v2902
        %v3127 = vpop.f32.mrf.mxu0
        %v3128 = vadd.f32 0.0, %v3127
        %3129 = vmatmul.f32.gmra.mxu0 %v2905
        %v3130 = vpop.f32.mrf.mxu0
        %v3131 = vadd.f32 0.0, %v3130
        %3132 = vmatmul.f32.gmra.mxu0 %v2908
        %v3133 = vpop.f32.mrf.mxu0
        %v3134 = vadd.f32 0.0, %v3133
        %3135 = vmatmul.f32.gmra.mxu0 %v2911
        %v3136 = vpop.f32.mrf.mxu0
        %v3137 = vadd.f32 0.0, %v3136
        %3138 = vmatmul.f32.gmra.mxu0 %v2914
        %v3139 = vpop.f32.mrf.mxu0
        %v3140 = vadd.f32 0.0, %v3139
        %3141 = vmatmul.f32.gmra.mxu0 %v2917
        %v3142 = vpop.f32.mrf.mxu0
        %v3143 = vadd.f32 0.0, %v3142
        %3144 = vmatmul.f32.gmra.mxu0 %v2920
        %v3145 = vpop.f32.mrf.mxu0
        %v3146 = vadd.f32 0.0, %v3145
        %3147 = vmatmul.f32.gmra.mxu0 %v2923
        %v3148 = vpop.f32.mrf.mxu0
        %v3149 = vadd.f32 0.0, %v3148
        %3150 = vmatmul.f32.gmra.mxu0 %v2926
        %v3151 = vpop.f32.mrf.mxu0
        %v3152 = vadd.f32 0.0, %v3151
        %3153 = vmatmul.f32.gmra.mxu0 %v2929
        %v3154 = vpop.f32.mrf.mxu0
        %v3155 = vadd.f32 0.0, %v3154
        %3156 = vmatmul.f32.gmra.mxu0 %v2932
        %v3157 = vpop.f32.mrf.mxu0
        %v3158 = vadd.f32 0.0, %v3157
        %3159 = vmatmul.f32.gmra.mxu0 %v2935
        %v3160 = vpop.f32.mrf.mxu0
        %v3161 = vadd.f32 0.0, %v3160
        %3162 = vmatmul.f32.gmra.mxu0 %v2938
        %v3163 = vpop.f32.mrf.mxu0
        %v3164 = vadd.f32 0.0, %v3163
        %3165 = vmatmul.f32.gmra.mxu0 %v2941
        %v3166 = vpop.f32.mrf.mxu0
        %v3167 = vadd.f32 0.0, %v3166
        %3168 = vmatmul.f32.gmra.mxu0 %v2944
        %v3169 = vpop.f32.mrf.mxu0
        %v3170 = vadd.f32 0.0, %v3169
        %3171 = vmatmul.f32.gmra.mxu0 %v2947
        %v3172 = vpop.f32.mrf.mxu0
        %v3173 = vadd.f32 0.0, %v3172
        %3174 = vmatmul.f32.gmra.mxu0 %v2950
        %v3175 = vpop.f32.mrf.mxu0
        %v3176 = vadd.f32 0.0, %v3175
        %3177 = vmatmul.f32.gmra.mxu0 %v2953
        %v3178 = vpop.f32.mrf.mxu0
        %v3179 = vadd.f32 0.0, %v3178
        %3180 = vmatmul.f32.gmra.mxu0 %v2956
        %v3181 = vpop.f32.mrf.mxu0
        %v3182 = vadd.f32 0.0, %v3181
        %3183 = vmatmul.f32.gmra.mxu0 %v2959
        %v3184 = vpop.f32.mrf.mxu0
        %v3185 = vadd.f32 0.0, %v3184
        %3186 = vmatmul.f32.gmra.mxu0 %v2962
        %v3187 = vpop.f32.mrf.mxu0
        %v3188 = vadd.f32 0.0, %v3187
        %3189 = vdwg.mxu0
        %v3190 = vmax.f32 %v2596, %v2709
        %3191 = vmax.xlane.f32.xlu0 %v3190
        %v3192 = vpop.xlane.xlu0 %3191
        %v3193 = vmax.f32 %v2599, %v2712
        %3194 = vmax.xlane.f32.xlu0 %v3193
        %v3195 = vpop.xlane.xlu0 %3194
        %v3196 = vmax.f32 %v2602, %v2715
        %3197 = vmax.xlane.f32.xlu0 %v3196
        %v3198 = vpop.xlane.xlu0 %3197
        %v3199 = vmax.f32 %v2605, %v2718
        %3200 = vmax.xlane.f32.xlu0 %v3199
        %v3201 = vpop.xlane.xlu0 %3200
        %v3202 = vmax.f32 %v2608, %v2721
        %3203 = vmax.xlane.f32.xlu0 %v3202
        %v3204 = vpop.xlane.xlu0 %3203
        %v3205 = vmax.f32 %v2611, %v2724
        %3206 = vmax.xlane.f32.xlu0 %v3205
        %v3207 = vpop.xlane.xlu0 %3206
        %v3208 = vmax.f32 %v2614, %v2727
        %3209 = vmax.xlane.f32.xlu0 %v3208
        %v3210 = vpop.xlane.xlu0 %3209
        %v3211 = vmax.f32 %v2617, %v2730
        %3212 = vmax.xlane.f32.xlu0 %v3211
        %v3213 = vpop.xlane.xlu0 %3212
        %v3214 = vmax.f32 %v2620, %v2733
        %3215 = vmax.xlane.f32.xlu0 %v3214
        %v3216 = vpop.xlane.xlu0 %3215
        %v3217 = vmax.f32 %v2623, %v2736
        %3218 = vmax.xlane.f32.xlu0 %v3217
        %v3219 = vpop.xlane.xlu0 %3218
        %v3220 = vmax.f32 %v2626, %v2739
        %3221 = vmax.xlane.f32.xlu0 %v3220
        %v3222 = vpop.xlane.xlu0 %3221
        %v3223 = vmax.f32 %v2629, %v2742
        %3224 = vmax.xlane.f32.xlu0 %v3223
        %v3225 = vpop.xlane.xlu0 %3224
        %v3226 = vmax.f32 %v2632, %v2745
        %3227 = vmax.xlane.f32.xlu0 %v3226
        %v3228 = vpop.xlane.xlu0 %3227
        %v3229 = vmax.f32 %v2635, %v2748
        %3230 = vmax.xlane.f32.xlu0 %v3229
        %v3231 = vpop.xlane.xlu0 %3230
        %v3232 = vmax.f32 %v2638, %v2751
        %3233 = vmax.xlane.f32.xlu0 %v3232
        %v3234 = vpop.xlane.xlu0 %3233
        %v3235 = vmax.f32 %v2641, %v2754
        %3236 = vmax.xlane.f32.xlu0 %v3235
        %v3237 = vpop.xlane.xlu0 %3236
        %v3238 = vmax.f32 %v2644, %v2757
        %3239 = vmax.xlane.f32.xlu0 %v3238
        %v3240 = vpop.xlane.xlu0 %3239
        %v3241 = vmax.f32 %v2647, %v2760
        %3242 = vmax.xlane.f32.xlu0 %v3241
        %v3243 = vpop.xlane.xlu0 %3242
        %v3244 = vmax.f32 %v2650, %v2763
        %3245 = vmax.xlane.f32.xlu0 %v3244
        %v3246 = vpop.xlane.xlu0 %3245
        %v3247 = vmax.f32 %v2653, %v2766
        %3248 = vmax.xlane.f32.xlu0 %v3247
        %v3249 = vpop.xlane.xlu0 %3248
        %v3250 = vmax.f32 %v2656, %v2769
        %3251 = vmax.xlane.f32.xlu0 %v3250
        %v3252 = vpop.xlane.xlu0 %3251
        %v3253 = vmax.f32 %v2659, %v2772
        %3254 = vmax.xlane.f32.xlu0 %v3253
        %v3255 = vpop.xlane.xlu0 %3254
        %v3256 = vmax.f32 %v2662, %v2775
        %3257 = vmax.xlane.f32.xlu0 %v3256
        %v3258 = vpop.xlane.xlu0 %3257
        %v3259 = vmax.f32 %v2665, %v2778
        %3260 = vmax.xlane.f32.xlu0 %v3259
        %v3261 = vpop.xlane.xlu0 %3260
        %v3262 = vmax.f32 %v2668, %v2781
        %3263 = vmax.xlane.f32.xlu0 %v3262
        %v3264 = vpop.xlane.xlu0 %3263
        %v3265 = vmax.f32 %v2671, %v2784
        %3266 = vmax.xlane.f32.xlu0 %v3265
        %v3267 = vpop.xlane.xlu0 %3266
        %v3268 = vmax.f32 %v2674, %v2787
        %3269 = vmax.xlane.f32.xlu0 %v3268
        %v3270 = vpop.xlane.xlu0 %3269
        %v3271 = vmax.f32 %v2677, %v2790
        %3272 = vmax.xlane.f32.xlu0 %v3271
        %v3273 = vpop.xlane.xlu0 %3272
        %v3274 = vmax.f32 %v2680, %v2793
        %3275 = vmax.xlane.f32.xlu0 %v3274
        %v3276 = vpop.xlane.xlu0 %3275
        %v3277 = vmax.f32 %v2683, %v2796
        %3278 = vmax.xlane.f32.xlu0 %v3277
        %v3279 = vpop.xlane.xlu0 %3278
        %v3280 = vmax.f32 %v2686, %v2799
        %3281 = vmax.xlane.f32.xlu0 %v3280
        %v3282 = vpop.xlane.xlu0 %3281
        %v3283 = vmax.f32 %v2689, %v2802
        %3284 = vmax.xlane.f32.xlu0 %v3283
        %v3285 = vpop.xlane.xlu0 %3284
        %v3286 = vmax.f32 %v2982, %v3095
        %3287 = vmax.xlane.f32.xlu0 %v3286
        %v3288 = vpop.xlane.xlu0 %3287
        %v3289 = vmax.f32 %v2985, %v3098
        %3290 = vmax.xlane.f32.xlu0 %v3289
        %v3291 = vpop.xlane.xlu0 %3290
        %v3292 = vmax.f32 %v2988, %v3101
        %3293 = vmax.xlane.f32.xlu0 %v3292
        %v3294 = vpop.xlane.xlu0 %3293
        %v3295 = vmax.f32 %v2991, %v3104
        %3296 = vmax.xlane.f32.xlu0 %v3295
        %v3297 = vpop.xlane.xlu0 %3296
        %v3298 = vmax.f32 %v2994, %v3107
        %3299 = vmax.xlane.f32.xlu0 %v3298
        %v3300 = vpop.xlane.xlu0 %3299
        %v3301 = vmax.f32 %v2997, %v3110
        %3302 = vmax.xlane.f32.xlu0 %v3301
        %v3303 = vpop.xlane.xlu0 %3302
        %v3304 = vmax.f32 %v3000, %v3113
        %3305 = vmax.xlane.f32.xlu0 %v3304
        %v3306 = vpop.xlane.xlu0 %3305
        %v3307 = vmax.f32 %v3003, %v3116
        %3308 = vmax.xlane.f32.xlu0 %v3307
        %v3309 = vpop.xlane.xlu0 %3308
        %v3310 = vmax.f32 %v3006, %v3119
        %3311 = vmax.xlane.f32.xlu0 %v3310
        %v3312 = vpop.xlane.xlu0 %3311
        %v3313 = vmax.f32 %v3009, %v3122
        %3314 = vmax.xlane.f32.xlu0 %v3313
        %v3315 = vpop.xlane.xlu0 %3314
        %v3316 = vmax.f32 %v3012, %v3125
        %3317 = vmax.xlane.f32.xlu0 %v3316
        %v3318 = vpop.xlane.xlu0 %3317
        %v3319 = vmax.f32 %v3015, %v3128
        %3320 = vmax.xlane.f32.xlu0 %v3319
        %v3321 = vpop.xlane.xlu0 %3320
        %v3322 = vmax.f32 %v3018, %v3131
        %3323 = vmax.xlane.f32.xlu0 %v3322
        %v3324 = vpop.xlane.xlu0 %3323
        %v3325 = vmax.f32 %v3021, %v3134
        %3326 = vmax.xlane.f32.xlu0 %v3325
        %v3327 = vpop.xlane.xlu0 %3326
        %v3328 = vmax.f32 %v3024, %v3137
        %3329 = vmax.xlane.f32.xlu0 %v3328
        %v3330 = vpop.xlane.xlu0 %3329
        %v3331 = vmax.f32 %v3027, %v3140
        %3332 = vmax.xlane.f32.xlu0 %v3331
        %v3333 = vpop.xlane.xlu0 %3332
        %v3334 = vmax.f32 %v3030, %v3143
        %3335 = vmax.xlane.f32.xlu0 %v3334
        %v3336 = vpop.xlane.xlu0 %3335
        %v3337 = vmax.f32 %v3033, %v3146
        %3338 = vmax.xlane.f32.xlu0 %v3337
        %v3339 = vpop.xlane.xlu0 %3338
        %v3340 = vmax.f32 %v3036, %v3149
        %3341 = vmax.xlane.f32.xlu0 %v3340
        %v3342 = vpop.xlane.xlu0 %3341
        %v3343 = vmax.f32 %v3039, %v3152
        %3344 = vmax.xlane.f32.xlu0 %v3343
        %v3345 = vpop.xlane.xlu0 %3344
        %v3346 = vmax.f32 %v3042, %v3155
        %3347 = vmax.xlane.f32.xlu0 %v3346
        %v3348 = vpop.xlane.xlu0 %3347
        %v3349 = vmax.f32 %v3045, %v3158
        %3350 = vmax.xlane.f32.xlu0 %v3349
        %v3351 = vpop.xlane.xlu0 %3350
        %v3352 = vmax.f32 %v3048, %v3161
        %3353 = vmax.xlane.f32.xlu0 %v3352
        %v3354 = vpop.xlane.xlu0 %3353
        %v3355 = vmax.f32 %v3051, %v3164
        %3356 = vmax.xlane.f32.xlu0 %v3355
        %v3357 = vpop.xlane.xlu0 %3356
        %v3358 = vmax.f32 %v3054, %v3167
        %3359 = vmax.xlane.f32.xlu0 %v3358
        %v3360 = vpop.xlane.xlu0 %3359
        %v3361 = vmax.f32 %v3057, %v3170
        %3362 = vmax.xlane.f32.xlu0 %v3361
        %v3363 = vpop.xlane.xlu0 %3362
        %v3364 = vmax.f32 %v3060, %v3173
        %3365 = vmax.xlane.f32.xlu0 %v3364
        %v3366 = vpop.xlane.xlu0 %3365
        %v3367 = vmax.f32 %v3063, %v3176
        %3368 = vmax.xlane.f32.xlu0 %v3367
        %v3369 = vpop.xlane.xlu0 %3368
        %v3370 = vmax.f32 %v3066, %v3179
        %3371 = vmax.xlane.f32.xlu0 %v3370
        %v3372 = vpop.xlane.xlu0 %3371
        %v3373 = vmax.f32 %v3069, %v3182
        %3374 = vmax.xlane.f32.xlu0 %v3373
        %v3375 = vpop.xlane.xlu0 %3374
        %v3376 = vmax.f32 %v3072, %v3185
        %3377 = vmax.xlane.f32.xlu0 %v3376
        %v3378 = vpop.xlane.xlu0 %3377
        %v3379 = vmax.f32 %v3075, %v3188
        %3380 = vmax.xlane.f32.xlu0 %v3379
        %v3381 = vpop.xlane.xlu0 %3380
        %v3382 = vsub.f32 %v2596, %v3192
        %v3383 = vsub.f32 %v2709, %v3192
        %v3384 = vsub.f32 %v2599, %v3195
        %v3385 = vsub.f32 %v2712, %v3195
        %v3386 = vsub.f32 %v2602, %v3198
        %v3387 = vsub.f32 %v2715, %v3198
        %v3388 = vsub.f32 %v2605, %v3201
        %v3389 = vsub.f32 %v2718, %v3201
        %v3390 = vsub.f32 %v2608, %v3204
        %v3391 = vsub.f32 %v2721, %v3204
        %v3392 = vsub.f32 %v2611, %v3207
        %v3393 = vsub.f32 %v2724, %v3207
        %v3394 = vsub.f32 %v2614, %v3210
        %v3395 = vsub.f32 %v2727, %v3210
        %v3396 = vsub.f32 %v2617, %v3213
        %v3397 = vsub.f32 %v2730, %v3213
        %v3398 = vsub.f32 %v2620, %v3216
        %v3399 = vsub.f32 %v2733, %v3216
        %v3400 = vsub.f32 %v2623, %v3219
        %v3401 = vsub.f32 %v2736, %v3219
        %v3402 = vsub.f32 %v2626, %v3222
        %v3403 = vsub.f32 %v2739, %v3222
        %v3404 = vsub.f32 %v2629, %v3225
        %v3405 = vsub.f32 %v2742, %v3225
        %v3406 = vsub.f32 %v2632, %v3228
        %v3407 = vsub.f32 %v2745, %v3228
        %v3408 = vsub.f32 %v2635, %v3231
        %v3409 = vsub.f32 %v2748, %v3231
        %v3410 = vsub.f32 %v2638, %v3234
        %v3411 = vsub.f32 %v2751, %v3234
        %v3412 = vsub.f32 %v2641, %v3237
        %v3413 = vsub.f32 %v2754, %v3237
        %v3414 = vsub.f32 %v2644, %v3240
        %v3415 = vsub.f32 %v2757, %v3240
        %v3416 = vsub.f32 %v2647, %v3243
        %v3417 = vsub.f32 %v2760, %v3243
        %v3418 = vsub.f32 %v2650, %v3246
        %v3419 = vsub.f32 %v2763, %v3246
        %v3420 = vsub.f32 %v2653, %v3249
        %v3421 = vsub.f32 %v2766, %v3249
        %v3422 = vsub.f32 %v2656, %v3252
        %v3423 = vsub.f32 %v2769, %v3252
        %v3424 = vsub.f32 %v2659, %v3255
        %v3425 = vsub.f32 %v2772, %v3255
        %v3426 = vsub.f32 %v2662, %v3258
        %v3427 = vsub.f32 %v2775, %v3258
        %v3428 = vsub.f32 %v2665, %v3261
        %v3429 = vsub.f32 %v2778, %v3261
        %v3430 = vsub.f32 %v2668, %v3264
        %v3431 = vsub.f32 %v2781, %v3264
        %v3432 = vsub.f32 %v2671, %v3267
        %v3433 = vsub.f32 %v2784, %v3267
        %v3434 = vsub.f32 %v2674, %v3270
        %v3435 = vsub.f32 %v2787, %v3270
        %v3436 = vsub.f32 %v2677, %v3273
        %v3437 = vsub.f32 %v2790, %v3273
        %v3438 = vsub.f32 %v2680, %v3276
        %v3439 = vsub.f32 %v2793, %v3276
        %v3440 = vsub.f32 %v2683, %v3279
        %v3441 = vsub.f32 %v2796, %v3279
        %v3442 = vsub.f32 %v2686, %v3282
        %v3443 = vsub.f32 %v2799, %v3282
        %v3444 = vsub.f32 %v2689, %v3285
        %v3445 = vsub.f32 %v2802, %v3285
        %v3446 = vsub.f32 %v2982, %v3288
        %v3447 = vsub.f32 %v3095, %v3288
        %v3448 = vsub.f32 %v2985, %v3291
        %v3449 = vsub.f32 %v3098, %v3291
        %v3450 = vsub.f32 %v2988, %v3294
        %v3451 = vsub.f32 %v3101, %v3294
        %v3452 = vsub.f32 %v2991, %v3297
        %v3453 = vsub.f32 %v3104, %v3297
        %v3454 = vsub.f32 %v2994, %v3300
        %v3455 = vsub.f32 %v3107, %v3300
        %v3456 = vsub.f32 %v2997, %v3303
        %v3457 = vsub.f32 %v3110, %v3303
        %v3458 = vsub.f32 %v3000, %v3306
        %v3459 = vsub.f32 %v3113, %v3306
        %v3460 = vsub.f32 %v3003, %v3309
        %v3461 = vsub.f32 %v3116, %v3309
        %v3462 = vsub.f32 %v3006, %v3312
        %v3463 = vsub.f32 %v3119, %v3312
        %v3464 = vsub.f32 %v3009, %v3315
        %v3465 = vsub.f32 %v3122, %v3315
        %v3466 = vsub.f32 %v3012, %v3318
        %v3467 = vsub.f32 %v3125, %v3318
        %v3468 = vsub.f32 %v3015, %v3321
        %v3469 = vsub.f32 %v3128, %v3321
        %v3470 = vsub.f32 %v3018, %v3324
        %v3471 = vsub.f32 %v3131, %v3324
        %v3472 = vsub.f32 %v3021, %v3327
        %v3473 = vsub.f32 %v3134, %v3327
        %v3474 = vsub.f32 %v3024, %v3330
        %v3475 = vsub.f32 %v3137, %v3330
        %v3476 = vsub.f32 %v3027, %v3333
        %v3477 = vsub.f32 %v3140, %v3333
        %v3478 = vsub.f32 %v3030, %v3336
        %v3479 = vsub.f32 %v3143, %v3336
        %v3480 = vsub.f32 %v3033, %v3339
        %v3481 = vsub.f32 %v3146, %v3339
        %v3482 = vsub.f32 %v3036, %v3342
        %v3483 = vsub.f32 %v3149, %v3342
        %v3484 = vsub.f32 %v3039, %v3345
        %v3485 = vsub.f32 %v3152, %v3345
        %v3486 = vsub.f32 %v3042, %v3348
        %v3487 = vsub.f32 %v3155, %v3348
        %v3488 = vsub.f32 %v3045, %v3351
        %v3489 = vsub.f32 %v3158, %v3351
        %v3490 = vsub.f32 %v3048, %v3354
        %v3491 = vsub.f32 %v3161, %v3354
        %v3492 = vsub.f32 %v3051, %v3357
        %v3493 = vsub.f32 %v3164, %v3357
        %v3494 = vsub.f32 %v3054, %v3360
        %v3495 = vsub.f32 %v3167, %v3360
        %v3496 = vsub.f32 %v3057, %v3363
        %v3497 = vsub.f32 %v3170, %v3363
        %v3498 = vsub.f32 %v3060, %v3366
        %v3499 = vsub.f32 %v3173, %v3366
        %v3500 = vsub.f32 %v3063, %v3369
        %v3501 = vsub.f32 %v3176, %v3369
        %v3502 = vsub.f32 %v3066, %v3372
        %v3503 = vsub.f32 %v3179, %v3372
        %v3504 = vsub.f32 %v3069, %v3375
        %v3505 = vsub.f32 %v3182, %v3375
        %v3506 = vsub.f32 %v3072, %v3378
        %v3507 = vsub.f32 %v3185, %v3378
        %v3508 = vsub.f32 %v3075, %v3381
        %v3509 = vsub.f32 %v3188, %v3381
        %v3510 = vmul.f32 %v3382, 1.442695
        %v3511 = vpow.pop %v3510
        %v3512 = vmul.f32 %v3383, 1.442695
        %v3513 = vpow.pop %v3512
        %v3514 = vmul.f32 %v3384, 1.442695
        %v3515 = vpow.pop %v3514
        %v3516 = vmul.f32 %v3385, 1.442695
        %v3517 = vpow.pop %v3516
        %v3518 = vmul.f32 %v3386, 1.442695
        %v3519 = vpow.pop %v3518
        %v3520 = vmul.f32 %v3387, 1.442695
        %v3521 = vpow.pop %v3520
        %v3522 = vmul.f32 %v3388, 1.442695
        %v3523 = vpow.pop %v3522
        %v3524 = vmul.f32 %v3389, 1.442695
        %v3525 = vpow.pop %v3524
        %v3526 = vmul.f32 %v3390, 1.442695
        %v3527 = vpow.pop %v3526
        %v3528 = vmul.f32 %v3391, 1.442695
        %v3529 = vpow.pop %v3528
        %v3530 = vmul.f32 %v3392, 1.442695
        %v3531 = vpow.pop %v3530
        %v3532 = vmul.f32 %v3393, 1.442695
        %v3533 = vpow.pop %v3532
        %v3534 = vmul.f32 %v3394, 1.442695
        %v3535 = vpow.pop %v3534
        %v3536 = vmul.f32 %v3395, 1.442695
        %v3537 = vpow.pop %v3536
        %v3538 = vmul.f32 %v3396, 1.442695
        %v3539 = vpow.pop %v3538
        %v3540 = vmul.f32 %v3397, 1.442695
        %v3541 = vpow.pop %v3540
        %v3542 = vmul.f32 %v3398, 1.442695
        %v3543 = vpow.pop %v3542
        %v3544 = vmul.f32 %v3399, 1.442695
        %v3545 = vpow.pop %v3544
        %v3546 = vmul.f32 %v3400, 1.442695
        %v3547 = vpow.pop %v3546
        %v3548 = vmul.f32 %v3401, 1.442695
        %v3549 = vpow.pop %v3548
        %v3550 = vmul.f32 %v3402, 1.442695
        %v3551 = vpow.pop %v3550
        %v3552 = vmul.f32 %v3403, 1.442695
        %v3553 = vpow.pop %v3552
        %v3554 = vmul.f32 %v3404, 1.442695
        %v3555 = vpow.pop %v3554
        %v3556 = vmul.f32 %v3405, 1.442695
        %v3557 = vpow.pop %v3556
        %v3558 = vmul.f32 %v3406, 1.442695
        %v3559 = vpow.pop %v3558
        %v3560 = vmul.f32 %v3407, 1.442695
        %v3561 = vpow.pop %v3560
        %v3562 = vmul.f32 %v3408, 1.442695
        %v3563 = vpow.pop %v3562
        %v3564 = vmul.f32 %v3409, 1.442695
        %v3565 = vpow.pop %v3564
        %v3566 = vmul.f32 %v3410, 1.442695
        %v3567 = vpow.pop %v3566
        %v3568 = vmul.f32 %v3411, 1.442695
        %v3569 = vpow.pop %v3568
        %v3570 = vmul.f32 %v3412, 1.442695
        %v3571 = vpow.pop %v3570
        %v3572 = vmul.f32 %v3413, 1.442695
        %v3573 = vpow.pop %v3572
        %v3574 = vmul.f32 %v3414, 1.442695
        %v3575 = vpow.pop %v3574
        %v3576 = vmul.f32 %v3415, 1.442695
        %v3577 = vpow.pop %v3576
        %v3578 = vmul.f32 %v3416, 1.442695
        %v3579 = vpow.pop %v3578
        %v3580 = vmul.f32 %v3417, 1.442695
        %v3581 = vpow.pop %v3580
        %v3582 = vmul.f32 %v3418, 1.442695
        %v3583 = vpow.pop %v3582
        %v3584 = vmul.f32 %v3419, 1.442695
        %v3585 = vpow.pop %v3584
        %v3586 = vmul.f32 %v3420, 1.442695
        %v3587 = vpow.pop %v3586
        %v3588 = vmul.f32 %v3421, 1.442695
        %v3589 = vpow.pop %v3588
        %v3590 = vmul.f32 %v3422, 1.442695
        %v3591 = vpow.pop %v3590
        %v3592 = vmul.f32 %v3423, 1.442695
        %v3593 = vpow.pop %v3592
        %v3594 = vmul.f32 %v3424, 1.442695
        %v3595 = vpow.pop %v3594
        %v3596 = vmul.f32 %v3425, 1.442695
        %v3597 = vpow.pop %v3596
        %v3598 = vmul.f32 %v3426, 1.442695
        %v3599 = vpow.pop %v3598
        %v3600 = vmul.f32 %v3427, 1.442695
        %v3601 = vpow.pop %v3600
        %v3602 = vmul.f32 %v3428, 1.442695
        %v3603 = vpow.pop %v3602
        %v3604 = vmul.f32 %v3429, 1.442695
        %v3605 = vpow.pop %v3604
        %v3606 = vmul.f32 %v3430, 1.442695
        %v3607 = vpow.pop %v3606
        %v3608 = vmul.f32 %v3431, 1.442695
        %v3609 = vpow.pop %v3608
        %v3610 = vmul.f32 %v3432, 1.442695
        %v3611 = vpow.pop %v3610
        %v3612 = vmul.f32 %v3433, 1.442695
        %v3613 = vpow.pop %v3612
        %v3614 = vmul.f32 %v3434, 1.442695
        %v3615 = vpow.pop %v3614
        %v3616 = vmul.f32 %v3435, 1.442695
        %v3617 = vpow.pop %v3616
        %v3618 = vmul.f32 %v3436, 1.442695
        %v3619 = vpow.pop %v3618
        %v3620 = vmul.f32 %v3437, 1.442695
        %v3621 = vpow.pop %v3620
        %v3622 = vmul.f32 %v3438, 1.442695
        %v3623 = vpow.pop %v3622
        %v3624 = vmul.f32 %v3439, 1.442695
        %v3625 = vpow.pop %v3624
        %v3626 = vmul.f32 %v3440, 1.442695
        %v3627 = vpow.pop %v3626
        %v3628 = vmul.f32 %v3441, 1.442695
        %v3629 = vpow.pop %v3628
        %v3630 = vmul.f32 %v3442, 1.442695
        %v3631 = vpow.pop %v3630
        %v3632 = vmul.f32 %v3443, 1.442695
        %v3633 = vpow.pop %v3632
        %v3634 = vmul.f32 %v3444, 1.442695
        %v3635 = vpow.pop %v3634
        %v3636 = vmul.f32 %v3445, 1.442695
        %v3637 = vpow.pop %v3636
        %v3638 = vmul.f32 %v3446, 1.442695
        %v3639 = vpow.pop %v3638
        %v3640 = vmul.f32 %v3447, 1.442695
        %v3641 = vpow.pop %v3640
        %v3642 = vmul.f32 %v3448, 1.442695
        %v3643 = vpow.pop %v3642
        %v3644 = vmul.f32 %v3449, 1.442695
        %v3645 = vpow.pop %v3644
        %v3646 = vmul.f32 %v3450, 1.442695
        %v3647 = vpow.pop %v3646
        %v3648 = vmul.f32 %v3451, 1.442695
        %v3649 = vpow.pop %v3648
        %v3650 = vmul.f32 %v3452, 1.442695
        %v3651 = vpow.pop %v3650
        %v3652 = vmul.f32 %v3453, 1.442695
        %v3653 = vpow.pop %v3652
        %v3654 = vmul.f32 %v3454, 1.442695
        %v3655 = vpow.pop %v3654
        %v3656 = vmul.f32 %v3455, 1.442695
        %v3657 = vpow.pop %v3656
        %v3658 = vmul.f32 %v3456, 1.442695
        %v3659 = vpow.pop %v3658
        %v3660 = vmul.f32 %v3457, 1.442695
        %v3661 = vpow.pop %v3660
        %v3662 = vmul.f32 %v3458, 1.442695
        %v3663 = vpow.pop %v3662
        %v3664 = vmul.f32 %v3459, 1.442695
        %v3665 = vpow.pop %v3664
        %v3666 = vmul.f32 %v3460, 1.442695
        %v3667 = vpow.pop %v3666
        %v3668 = vmul.f32 %v3461, 1.442695
        %v3669 = vpow.pop %v3668
        %v3670 = vmul.f32 %v3462, 1.442695
        %v3671 = vpow.pop %v3670
        %v3672 = vmul.f32 %v3463, 1.442695
        %v3673 = vpow.pop %v3672
        %v3674 = vmul.f32 %v3464, 1.442695
        %v3675 = vpow.pop %v3674
        %v3676 = vmul.f32 %v3465, 1.442695
        %v3677 = vpow.pop %v3676
        %v3678 = vmul.f32 %v3466, 1.442695
        %v3679 = vpow.pop %v3678
        %v3680 = vmul.f32 %v3467, 1.442695
        %v3681 = vpow.pop %v3680
        %v3682 = vmul.f32 %v3468, 1.442695
        %v3683 = vpow.pop %v3682
        %v3684 = vmul.f32 %v3469, 1.442695
        %v3685 = vpow.pop %v3684
        %v3686 = vmul.f32 %v3470, 1.442695
        %v3687 = vpow.pop %v3686
        %v3688 = vmul.f32 %v3471, 1.442695
        %v3689 = vpow.pop %v3688
        %v3690 = vmul.f32 %v3472, 1.442695
        %v3691 = vpow.pop %v3690
        %v3692 = vmul.f32 %v3473, 1.442695
        %v3693 = vpow.pop %v3692
        %v3694 = vmul.f32 %v3474, 1.442695
        %v3695 = vpow.pop %v3694
        %v3696 = vmul.f32 %v3475, 1.442695
        %v3697 = vpow.pop %v3696
        %v3698 = vmul.f32 %v3476, 1.442695
        %v3699 = vpow.pop %v3698
        %v3700 = vmul.f32 %v3477, 1.442695
        %v3701 = vpow.pop %v3700
        %v3702 = vmul.f32 %v3478, 1.442695
        %v3703 = vpow.pop %v3702
        %v3704 = vmul.f32 %v3479, 1.442695
        %v3705 = vpow.pop %v3704
        %v3706 = vmul.f32 %v3480, 1.442695
        %v3707 = vpow.pop %v3706
        %v3708 = vmul.f32 %v3481, 1.442695
        %v3709 = vpow.pop %v3708
        %v3710 = vmul.f32 %v3482, 1.442695
        %v3711 = vpow.pop %v3710
        %v3712 = vmul.f32 %v3483, 1.442695
        %v3713 = vpow.pop %v3712
        %v3714 = vmul.f32 %v3484, 1.442695
        %v3715 = vpow.pop %v3714
        %v3716 = vmul.f32 %v3485, 1.442695
        %v3717 = vpow.pop %v3716
        %v3718 = vmul.f32 %v3486, 1.442695
        %v3719 = vpow.pop %v3718
        %v3720 = vmul.f32 %v3487, 1.442695
        %v3721 = vpow.pop %v3720
        %v3722 = vmul.f32 %v3488, 1.442695
        %v3723 = vpow.pop %v3722
        %v3724 = vmul.f32 %v3489, 1.442695
        %v3725 = vpow.pop %v3724
        %v3726 = vmul.f32 %v3490, 1.442695
        %v3727 = vpow.pop %v3726
        %v3728 = vmul.f32 %v3491, 1.442695
        %v3729 = vpow.pop %v3728
        %v3730 = vmul.f32 %v3492, 1.442695
        %v3731 = vpow.pop %v3730
        %v3732 = vmul.f32 %v3493, 1.442695
        %v3733 = vpow.pop %v3732
        %v3734 = vmul.f32 %v3494, 1.442695
        %v3735 = vpow.pop %v3734
        %v3736 = vmul.f32 %v3495, 1.442695
        %v3737 = vpow.pop %v3736
        %v3738 = vmul.f32 %v3496, 1.442695
        %v3739 = vpow.pop %v3738
        %v3740 = vmul.f32 %v3497, 1.442695
        %v3741 = vpow.pop %v3740
        %v3742 = vmul.f32 %v3498, 1.442695
        %v3743 = vpow.pop %v3742
        %v3744 = vmul.f32 %v3499, 1.442695
        %v3745 = vpow.pop %v3744
        %v3746 = vmul.f32 %v3500, 1.442695
        %v3747 = vpow.pop %v3746
        %v3748 = vmul.f32 %v3501, 1.442695
        %v3749 = vpow.pop %v3748
        %v3750 = vmul.f32 %v3502, 1.442695
        %v3751 = vpow.pop %v3750
        %v3752 = vmul.f32 %v3503, 1.442695
        %v3753 = vpow.pop %v3752
        %v3754 = vmul.f32 %v3504, 1.442695
        %v3755 = vpow.pop %v3754
        %v3756 = vmul.f32 %v3505, 1.442695
        %v3757 = vpow.pop %v3756
        %v3758 = vmul.f32 %v3506, 1.442695
        %v3759 = vpow.pop %v3758
        %v3760 = vmul.f32 %v3507, 1.442695
        %v3761 = vpow.pop %v3760
        %v3762 = vmul.f32 %v3508, 1.442695
        %v3763 = vpow.pop %v3762
        %v3764 = vmul.f32 %v3509, 1.442695
        %v3765 = vpow.pop %v3764
        %v3766 = vadd.f32 %v3511, %v3513
        %3767 = vadd.xlane.f32.xlu0 %v3766
        %v3768 = vpop.xlane.xlu0 %3767
        %v3769 = vadd.f32 %v3515, %v3517
        %3770 = vadd.xlane.f32.xlu0 %v3769
        %v3771 = vpop.xlane.xlu0 %3770
        %v3772 = vadd.f32 %v3519, %v3521
        %3773 = vadd.xlane.f32.xlu0 %v3772
        %v3774 = vpop.xlane.xlu0 %3773
        %v3775 = vadd.f32 %v3523, %v3525
        %3776 = vadd.xlane.f32.xlu0 %v3775
        %v3777 = vpop.xlane.xlu0 %3776
        %v3778 = vadd.f32 %v3527, %v3529
        %3779 = vadd.xlane.f32.xlu0 %v3778
        %v3780 = vpop.xlane.xlu0 %3779
        %v3781 = vadd.f32 %v3531, %v3533
        %3782 = vadd.xlane.f32.xlu0 %v3781
        %v3783 = vpop.xlane.xlu0 %3782
        %v3784 = vadd.f32 %v3535, %v3537
        %3785 = vadd.xlane.f32.xlu0 %v3784
        %v3786 = vpop.xlane.xlu0 %3785
        %v3787 = vadd.f32 %v3539, %v3541
        %3788 = vadd.xlane.f32.xlu0 %v3787
        %v3789 = vpop.xlane.xlu0 %3788
        %v3790 = vadd.f32 %v3543, %v3545
        %3791 = vadd.xlane.f32.xlu0 %v3790
        %v3792 = vpop.xlane.xlu0 %3791
        %v3793 = vadd.f32 %v3547, %v3549
        %3794 = vadd.xlane.f32.xlu0 %v3793
        %v3795 = vpop.xlane.xlu0 %3794
        %v3796 = vadd.f32 %v3551, %v3553
        %3797 = vadd.xlane.f32.xlu0 %v3796
        %v3798 = vpop.xlane.xlu0 %3797
        %v3799 = vadd.f32 %v3555, %v3557
        %3800 = vadd.xlane.f32.xlu0 %v3799
        %v3801 = vpop.xlane.xlu0 %3800
        %v3802 = vadd.f32 %v3559, %v3561
        %3803 = vadd.xlane.f32.xlu0 %v3802
        %v3804 = vpop.xlane.xlu0 %3803
        %v3805 = vadd.f32 %v3563, %v3565
        %3806 = vadd.xlane.f32.xlu0 %v3805
        %v3807 = vpop.xlane.xlu0 %3806
        %v3808 = vadd.f32 %v3567, %v3569
        %3809 = vadd.xlane.f32.xlu0 %v3808
        %v3810 = vpop.xlane.xlu0 %3809
        %v3811 = vadd.f32 %v3571, %v3573
        %3812 = vadd.xlane.f32.xlu0 %v3811
        %v3813 = vpop.xlane.xlu0 %3812
        %v3814 = vadd.f32 %v3575, %v3577
        %3815 = vadd.xlane.f32.xlu0 %v3814
        %v3816 = vpop.xlane.xlu0 %3815
        %v3817 = vadd.f32 %v3579, %v3581
        %3818 = vadd.xlane.f32.xlu0 %v3817
        %v3819 = vpop.xlane.xlu0 %3818
        %v3820 = vadd.f32 %v3583, %v3585
        %3821 = vadd.xlane.f32.xlu0 %v3820
        %v3822 = vpop.xlane.xlu0 %3821
        %v3823 = vadd.f32 %v3587, %v3589
        %3824 = vadd.xlane.f32.xlu0 %v3823
        %v3825 = vpop.xlane.xlu0 %3824
        %v3826 = vadd.f32 %v3591, %v3593
        %3827 = vadd.xlane.f32.xlu0 %v3826
        %v3828 = vpop.xlane.xlu0 %3827
        %v3829 = vadd.f32 %v3595, %v3597
        %3830 = vadd.xlane.f32.xlu0 %v3829
        %v3831 = vpop.xlane.xlu0 %3830
        %v3832 = vadd.f32 %v3599, %v3601
        %3833 = vadd.xlane.f32.xlu0 %v3832
        %v3834 = vpop.xlane.xlu0 %3833
        %v3835 = vadd.f32 %v3603, %v3605
        %3836 = vadd.xlane.f32.xlu0 %v3835
        %v3837 = vpop.xlane.xlu0 %3836
        %v3838 = vadd.f32 %v3607, %v3609
        %3839 = vadd.xlane.f32.xlu0 %v3838
        %v3840 = vpop.xlane.xlu0 %3839
        %v3841 = vadd.f32 %v3611, %v3613
        %3842 = vadd.xlane.f32.xlu0 %v3841
        %v3843 = vpop.xlane.xlu0 %3842
        %v3844 = vadd.f32 %v3615, %v3617
        %3845 = vadd.xlane.f32.xlu0 %v3844
        %v3846 = vpop.xlane.xlu0 %3845
        %v3847 = vadd.f32 %v3619, %v3621
        %3848 = vadd.xlane.f32.xlu0 %v3847
        %v3849 = vpop.xlane.xlu0 %3848
        %v3850 = vadd.f32 %v3623, %v3625
        %3851 = vadd.xlane.f32.xlu0 %v3850
        %v3852 = vpop.xlane.xlu0 %3851
        %v3853 = vadd.f32 %v3627, %v3629
        %3854 = vadd.xlane.f32.xlu0 %v3853
        %v3855 = vpop.xlane.xlu0 %3854
        %v3856 = vadd.f32 %v3631, %v3633
        %3857 = vadd.xlane.f32.xlu0 %v3856
        %v3858 = vpop.xlane.xlu0 %3857
        %v3859 = vadd.f32 %v3635, %v3637
        %3860 = vadd.xlane.f32.xlu0 %v3859
        %v3861 = vpop.xlane.xlu0 %3860
        %v3862 = vadd.f32 %v3639, %v3641
        %3863 = vadd.xlane.f32.xlu0 %v3862
        %v3864 = vpop.xlane.xlu0 %3863
        %v3865 = vadd.f32 %v3643, %v3645
        %3866 = vadd.xlane.f32.xlu0 %v3865
        %v3867 = vpop.xlane.xlu0 %3866
        %v3868 = vadd.f32 %v3647, %v3649
        %3869 = vadd.xlane.f32.xlu0 %v3868
        %v3870 = vpop.xlane.xlu0 %3869
        %v3871 = vadd.f32 %v3651, %v3653
        %3872 = vadd.xlane.f32.xlu0 %v3871
        %v3873 = vpop.xlane.xlu0 %3872
        %v3874 = vadd.f32 %v3655, %v3657
        %3875 = vadd.xlane.f32.xlu0 %v3874
        %v3876 = vpop.xlane.xlu0 %3875
        %v3877 = vadd.f32 %v3659, %v3661
        %3878 = vadd.xlane.f32.xlu0 %v3877
        %v3879 = vpop.xlane.xlu0 %3878
        %v3880 = vadd.f32 %v3663, %v3665
        %3881 = vadd.xlane.f32.xlu0 %v3880
        %v3882 = vpop.xlane.xlu0 %3881
        %v3883 = vadd.f32 %v3667, %v3669
        %3884 = vadd.xlane.f32.xlu0 %v3883
        %v3885 = vpop.xlane.xlu0 %3884
        %v3886 = vadd.f32 %v3671, %v3673
        %3887 = vadd.xlane.f32.xlu0 %v3886
        %v3888 = vpop.xlane.xlu0 %3887
        %v3889 = vadd.f32 %v3675, %v3677
        %3890 = vadd.xlane.f32.xlu0 %v3889
        %v3891 = vpop.xlane.xlu0 %3890
        %v3892 = vadd.f32 %v3679, %v3681
        %3893 = vadd.xlane.f32.xlu0 %v3892
        %v3894 = vpop.xlane.xlu0 %3893
        %v3895 = vadd.f32 %v3683, %v3685
        %3896 = vadd.xlane.f32.xlu0 %v3895
        %v3897 = vpop.xlane.xlu0 %3896
        %v3898 = vadd.f32 %v3687, %v3689
        %3899 = vadd.xlane.f32.xlu0 %v3898
        %v3900 = vpop.xlane.xlu0 %3899
        %v3901 = vadd.f32 %v3691, %v3693
        %3902 = vadd.xlane.f32.xlu0 %v3901
        %v3903 = vpop.xlane.xlu0 %3902
        %v3904 = vadd.f32 %v3695, %v3697
        %3905 = vadd.xlane.f32.xlu0 %v3904
        %v3906 = vpop.xlane.xlu0 %3905
        %v3907 = vadd.f32 %v3699, %v3701
        %3908 = vadd.xlane.f32.xlu0 %v3907
        %v3909 = vpop.xlane.xlu0 %3908
        %v3910 = vadd.f32 %v3703, %v3705
        %3911 = vadd.xlane.f32.xlu0 %v3910
        %v3912 = vpop.xlane.xlu0 %3911
        %v3913 = vadd.f32 %v3707, %v3709
        %3914 = vadd.xlane.f32.xlu0 %v3913
        %v3915 = vpop.xlane.xlu0 %3914
        %v3916 = vadd.f32 %v3711, %v3713
        %3917 = vadd.xlane.f32.xlu0 %v3916
        %v3918 = vpop.xlane.xlu0 %3917
        %v3919 = vadd.f32 %v3715, %v3717
        %3920 = vadd.xlane.f32.xlu0 %v3919
        %v3921 = vpop.xlane.xlu0 %3920
        %v3922 = vadd.f32 %v3719, %v3721
        %3923 = vadd.xlane.f32.xlu0 %v3922
        %v3924 = vpop.xlane.xlu0 %3923
        %v3925 = vadd.f32 %v3723, %v3725
        %3926 = vadd.xlane.f32.xlu0 %v3925
        %v3927 = vpop.xlane.xlu0 %3926
        %v3928 = vadd.f32 %v3727, %v3729
        %3929 = vadd.xlane.f32.xlu0 %v3928
        %v3930 = vpop.xlane.xlu0 %3929
        %v3931 = vadd.f32 %v3731, %v3733
        %3932 = vadd.xlane.f32.xlu0 %v3931
        %v3933 = vpop.xlane.xlu0 %3932
        %v3934 = vadd.f32 %v3735, %v3737
        %3935 = vadd.xlane.f32.xlu0 %v3934
        %v3936 = vpop.xlane.xlu0 %3935
        %v3937 = vadd.f32 %v3739, %v3741
        %3938 = vadd.xlane.f32.xlu0 %v3937
        %v3939 = vpop.xlane.xlu0 %3938
        %v3940 = vadd.f32 %v3743, %v3745
        %3941 = vadd.xlane.f32.xlu0 %v3940
        %v3942 = vpop.xlane.xlu0 %3941
        %v3943 = vadd.f32 %v3747, %v3749
        %3944 = vadd.xlane.f32.xlu0 %v3943
        %v3945 = vpop.xlane.xlu0 %3944
        %v3946 = vadd.f32 %v3751, %v3753
        %3947 = vadd.xlane.f32.xlu0 %v3946
        %v3948 = vpop.xlane.xlu0 %3947
        %v3949 = vadd.f32 %v3755, %v3757
        %3950 = vadd.xlane.f32.xlu0 %v3949
        %v3951 = vpop.xlane.xlu0 %3950
        %v3952 = vadd.f32 %v3759, %v3761
        %3953 = vadd.xlane.f32.xlu0 %v3952
        %v3954 = vpop.xlane.xlu0 %3953
        %v3955 = vadd.f32 %v3763, %v3765
        %3956 = vadd.xlane.f32.xlu0 %v3955
        %v3957 = vpop.xlane.xlu0 %3956
        %v3958 = vrcp.pop %v3768
        %v3959 = vrcp.pop %v3771
        %v3960 = vrcp.pop %v3774
        %v3961 = vrcp.pop %v3777
        %v3962 = vrcp.pop %v3780
        %v3963 = vrcp.pop %v3783
        %v3964 = vrcp.pop %v3786
        %v3965 = vrcp.pop %v3789
        %v3966 = vrcp.pop %v3792
        %v3967 = vrcp.pop %v3795
        %v3968 = vrcp.pop %v3798
        %v3969 = vrcp.pop %v3801
        %v3970 = vrcp.pop %v3804
        %v3971 = vrcp.pop %v3807
        %v3972 = vrcp.pop %v3810
        %v3973 = vrcp.pop %v3813
        %v3974 = vrcp.pop %v3816
        %v3975 = vrcp.pop %v3819
        %v3976 = vrcp.pop %v3822
        %v3977 = vrcp.pop %v3825
        %v3978 = vrcp.pop %v3828
        %v3979 = vrcp.pop %v3831
        %v3980 = vrcp.pop %v3834
        %v3981 = vrcp.pop %v3837
        %v3982 = vrcp.pop %v3840
        %v3983 = vrcp.pop %v3843
        %v3984 = vrcp.pop %v3846
        %v3985 = vrcp.pop %v3849
        %v3986 = vrcp.pop %v3852
        %v3987 = vrcp.pop %v3855
        %v3988 = vrcp.pop %v3858
        %v3989 = vrcp.pop %v3861
        %v3990 = vrcp.pop %v3864
        %v3991 = vrcp.pop %v3867
        %v3992 = vrcp.pop %v3870
        %v3993 = vrcp.pop %v3873
        %v3994 = vrcp.pop %v3876
        %v3995 = vrcp.pop %v3879
        %v3996 = vrcp.pop %v3882
        %v3997 = vrcp.pop %v3885
        %v3998 = vrcp.pop %v3888
        %v3999 = vrcp.pop %v3891
        %v4000 = vrcp.pop %v3894
        %v4001 = vrcp.pop %v3897
        %v4002 = vrcp.pop %v3900
        %v4003 = vrcp.pop %v3903
        %v4004 = vrcp.pop %v3906
        %v4005 = vrcp.pop %v3909
        %v4006 = vrcp.pop %v3912
        %v4007 = vrcp.pop %v3915
        %v4008 = vrcp.pop %v3918
        %v4009 = vrcp.pop %v3921
        %v4010 = vrcp.pop %v3924
        %v4011 = vrcp.pop %v3927
        %v4012 = vrcp.pop %v3930
        %v4013 = vrcp.pop %v3933
        %v4014 = vrcp.pop %v3936
        %v4015 = vrcp.pop %v3939
        %v4016 = vrcp.pop %v3942
        %v4017 = vrcp.pop %v3945
        %v4018 = vrcp.pop %v3948
        %v4019 = vrcp.pop %v3951
        %v4020 = vrcp.pop %v3954
        %v4021 = vrcp.pop %v3957
        %v4022 = vmul.f32 %v3511, %v3958
        %v4023 = vmul.f32 %v3513, %v3958
        %v4024 = vmul.f32 %v3515, %v3959
        %v4025 = vmul.f32 %v3517, %v3959
        %v4026 = vmul.f32 %v3519, %v3960
        %v4027 = vmul.f32 %v3521, %v3960
        %v4028 = vmul.f32 %v3523, %v3961
        %v4029 = vmul.f32 %v3525, %v3961
        %v4030 = vmul.f32 %v3527, %v3962
        %v4031 = vmul.f32 %v3529, %v3962
        %v4032 = vmul.f32 %v3531, %v3963
        %v4033 = vmul.f32 %v3533, %v3963
        %v4034 = vmul.f32 %v3535, %v3964
        %v4035 = vmul.f32 %v3537, %v3964
        %v4036 = vmul.f32 %v3539, %v3965
        %v4037 = vmul.f32 %v3541, %v3965
        %v4038 = vmul.f32 %v3543, %v3966
        %v4039 = vmul.f32 %v3545, %v3966
        %v4040 = vmul.f32 %v3547, %v3967
        %v4041 = vmul.f32 %v3549, %v3967
        %v4042 = vmul.f32 %v3551, %v3968
        %v4043 = vmul.f32 %v3553, %v3968
        %v4044 = vmul.f32 %v3555, %v3969
        %v4045 = vmul.f32 %v3557, %v3969
        %v4046 = vmul.f32 %v3559, %v3970
        %v4047 = vmul.f32 %v3561, %v3970
        %v4048 = vmul.f32 %v3563, %v3971
        %v4049 = vmul.f32 %v3565, %v3971
        %v4050 = vmul.f32 %v3567, %v3972
        %v4051 = vmul.f32 %v3569, %v3972
        %v4052 = vmul.f32 %v3571, %v3973
        %v4053 = vmul.f32 %v3573, %v3973
        %v4054 = vmul.f32 %v3575, %v3974
        %v4055 = vmul.f32 %v3577, %v3974
        %v4056 = vmul.f32 %v3579, %v3975
        %v4057 = vmul.f32 %v3581, %v3975
        %v4058 = vmul.f32 %v3583, %v3976
        %v4059 = vmul.f32 %v3585, %v3976
        %v4060 = vmul.f32 %v3587, %v3977
        %v4061 = vmul.f32 %v3589, %v3977
        %v4062 = vmul.f32 %v3591, %v3978
        %v4063 = vmul.f32 %v3593, %v3978
        %v4064 = vmul.f32 %v3595, %v3979
        %v4065 = vmul.f32 %v3597, %v3979
        %v4066 = vmul.f32 %v3599, %v3980
        %v4067 = vmul.f32 %v3601, %v3980
        %v4068 = vmul.f32 %v3603, %v3981
        %v4069 = vmul.f32 %v3605, %v3981
        %v4070 = vmul.f32 %v3607, %v3982
        %v4071 = vmul.f32 %v3609, %v3982
        %v4072 = vmul.f32 %v3611, %v3983
        %v4073 = vmul.f32 %v3613, %v3983
        %v4074 = vmul.f32 %v3615, %v3984
        %v4075 = vmul.f32 %v3617, %v3984
        %v4076 = vmul.f32 %v3619, %v3985
        %v4077 = vmul.f32 %v3621, %v3985
        %v4078 = vmul.f32 %v3623, %v3986
        %v4079 = vmul.f32 %v3625, %v3986
        %v4080 = vmul.f32 %v3627, %v3987
        %v4081 = vmul.f32 %v3629, %v3987
        %v4082 = vmul.f32 %v3631, %v3988
        %v4083 = vmul.f32 %v3633, %v3988
        %v4084 = vmul.f32 %v3635, %v3989
        %v4085 = vmul.f32 %v3637, %v3989
        %v4086 = vmul.f32 %v3639, %v3990
        %v4087 = vmul.f32 %v3641, %v3990
        %v4088 = vmul.f32 %v3643, %v3991
        %v4089 = vmul.f32 %v3645, %v3991
        %v4090 = vmul.f32 %v3647, %v3992
        %v4091 = vmul.f32 %v3649, %v3992
        %v4092 = vmul.f32 %v3651, %v3993
        %v4093 = vmul.f32 %v3653, %v3993
        %v4094 = vmul.f32 %v3655, %v3994
        %v4095 = vmul.f32 %v3657, %v3994
        %v4096 = vmul.f32 %v3659, %v3995
        %v4097 = vmul.f32 %v3661, %v3995
        %v4098 = vmul.f32 %v3663, %v3996
        %v4099 = vmul.f32 %v3665, %v3996
        %v4100 = vmul.f32 %v3667, %v3997
        %v4101 = vmul.f32 %v3669, %v3997
        %v4102 = vmul.f32 %v3671, %v3998
        %v4103 = vmul.f32 %v3673, %v3998
        %v4104 = vmul.f32 %v3675, %v3999
        %v4105 = vmul.f32 %v3677, %v3999
        %v4106 = vmul.f32 %v3679, %v4000
        %v4107 = vmul.f32 %v3681, %v4000
        %v4108 = vmul.f32 %v3683, %v4001
        %v4109 = vmul.f32 %v3685, %v4001
        %v4110 = vmul.f32 %v3687, %v4002
        %v4111 = vmul.f32 %v3689, %v4002
        %v4112 = vmul.f32 %v3691, %v4003
        %v4113 = vmul.f32 %v3693, %v4003
        %v4114 = vmul.f32 %v3695, %v4004
        %v4115 = vmul.f32 %v3697, %v4004
        %v4116 = vmul.f32 %v3699, %v4005
        %v4117 = vmul.f32 %v3701, %v4005
        %v4118 = vmul.f32 %v3703, %v4006
        %v4119 = vmul.f32 %v3705, %v4006
        %v4120 = vmul.f32 %v3707, %v4007
        %v4121 = vmul.f32 %v3709, %v4007
        %v4122 = vmul.f32 %v3711, %v4008
        %v4123 = vmul.f32 %v3713, %v4008
        %v4124 = vmul.f32 %v3715, %v4009
        %v4125 = vmul.f32 %v3717, %v4009
        %v4126 = vmul.f32 %v3719, %v4010
        %v4127 = vmul.f32 %v3721, %v4010
        %v4128 = vmul.f32 %v3723, %v4011
        %v4129 = vmul.f32 %v3725, %v4011
        %v4130 = vmul.f32 %v3727, %v4012
        %v4131 = vmul.f32 %v3729, %v4012
        %v4132 = vmul.f32 %v3731, %v4013
        %v4133 = vmul.f32 %v3733, %v4013
        %v4134 = vmul.f32 %v3735, %v4014
        %v4135 = vmul.f32 %v3737, %v4014
        %v4136 = vmul.f32 %v3739, %v4015
        %v4137 = vmul.f32 %v3741, %v4015
        %v4138 = vmul.f32 %v3743, %v4016
        %v4139 = vmul.f32 %v3745, %v4016
        %v4140 = vmul.f32 %v3747, %v4017
        %v4141 = vmul.f32 %v3749, %v4017
        %v4142 = vmul.f32 %v3751, %v4018
        %v4143 = vmul.f32 %v3753, %v4018
        %v4144 = vmul.f32 %v3755, %v4019
        %v4145 = vmul.f32 %v3757, %v4019
        %v4146 = vmul.f32 %v3759, %v4020
        %v4147 = vmul.f32 %v3761, %v4020
        %v4148 = vmul.f32 %v3763, %v4021
        %v4149 = vmul.f32 %v3765, %v4021
        %4150 = vmatpush.xpose.msra.mxu0 %v4052
        %4151 = vmatpush.xpose.msra.mxu0 %v4050
        %4152 = vmatpush.xpose.msra.mxu0 %v4048
        %4153 = vmatpush.xpose.msra.mxu0 %v4046
        %4154 = vmatpush.xpose.msra.mxu0 %v4044
        %4155 = vmatpush.xpose.msra.mxu0 %v4042
        %4156 = vmatpush.xpose.msra.mxu0 %v4040
        %4157 = vmatpush.xpose.msra.mxu0 %v4038
        %4158 = vmatpush.xpose.msra.mxu0 %v4036
        %4159 = vmatpush.xpose.msra.mxu0 %v4034
        %4160 = vmatpush.xpose.msra.mxu0 %v4032
        %4161 = vmatpush.xpose.msra.mxu0 %v4030
        %4162 = vmatpush.xpose.msra.mxu0 %v4028
        %4163 = vmatpush.xpose.msra.mxu0 %v4026
        %4164 = vmatpush.xpose.msra.mxu0 %v4024
        %4165 = vmatpush.xpose.msra.mxu0 %v4022
        %4166 = vmatmul.f32.gmra.mxu0 %v2378
        %v4167 = vpop.f32.mrf.mxu0
        %v4168 = vadd.f32 0.0, %v4167
        %4169 = vdwg.mxu0
        %4170 = vmatpush.xpose.msra.mxu0 %v4053
        %4171 = vmatpush.xpose.msra.mxu0 %v4051
        %4172 = vmatpush.xpose.msra.mxu0 %v4049
        %4173 = vmatpush.xpose.msra.mxu0 %v4047
        %4174 = vmatpush.xpose.msra.mxu0 %v4045
        %4175 = vmatpush.xpose.msra.mxu0 %v4043
        %4176 = vmatpush.xpose.msra.mxu0 %v4041
        %4177 = vmatpush.xpose.msra.mxu0 %v4039
        %4178 = vmatpush.xpose.msra.mxu0 %v4037
        %4179 = vmatpush.xpose.msra.mxu0 %v4035
        %4180 = vmatpush.xpose.msra.mxu0 %v4033
        %4181 = vmatpush.xpose.msra.mxu0 %v4031
        %4182 = vmatpush.xpose.msra.mxu0 %v4029
        %4183 = vmatpush.xpose.msra.mxu0 %v4027
        %4184 = vmatpush.xpose.msra.mxu0 %v4025
        %4185 = vmatpush.xpose.msra.mxu0 %v4023
        %4186 = vmatmul.f32.gmra.mxu0 %v2413
        %v4187 = vpop.f32.mrf.mxu0
        %v4188 = vadd.f32 %v4168, %v4187
        %4189 = vdwg.mxu0
        %4190 = vmatpush.xpose.msra.mxu0 %v4084
        %4191 = vmatpush.xpose.msra.mxu0 %v4082
        %4192 = vmatpush.xpose.msra.mxu0 %v4080
        %4193 = vmatpush.xpose.msra.mxu0 %v4078
        %4194 = vmatpush.xpose.msra.mxu0 %v4076
        %4195 = vmatpush.xpose.msra.mxu0 %v4074
        %4196 = vmatpush.xpose.msra.mxu0 %v4072
        %4197 = vmatpush.xpose.msra.mxu0 %v4070
        %4198 = vmatpush.xpose.msra.mxu0 %v4068
        %4199 = vmatpush.xpose.msra.mxu0 %v4066
        %4200 = vmatpush.xpose.msra.mxu0 %v4064
        %4201 = vmatpush.xpose.msra.mxu0 %v4062
        %4202 = vmatpush.xpose.msra.mxu0 %v4060
        %4203 = vmatpush.xpose.msra.mxu0 %v4058
        %4204 = vmatpush.xpose.msra.mxu0 %v4056
        %4205 = vmatpush.xpose.msra.mxu0 %v4054
        %4206 = vmatmul.f32.gmra.mxu0 %v2378
        %v4207 = vpop.f32.mrf.mxu0
        %v4208 = vadd.f32 0.0, %v4207
        %4209 = vdwg.mxu0
        %4210 = vmatpush.xpose.msra.mxu0 %v4085
        %4211 = vmatpush.xpose.msra.mxu0 %v4083
        %4212 = vmatpush.xpose.msra.mxu0 %v4081
        %4213 = vmatpush.xpose.msra.mxu0 %v4079
        %4214 = vmatpush.xpose.msra.mxu0 %v4077
        %4215 = vmatpush.xpose.msra.mxu0 %v4075
        %4216 = vmatpush.xpose.msra.mxu0 %v4073
        %4217 = vmatpush.xpose.msra.mxu0 %v4071
        %4218 = vmatpush.xpose.msra.mxu0 %v4069
        %4219 = vmatpush.xpose.msra.mxu0 %v4067
        %4220 = vmatpush.xpose.msra.mxu0 %v4065
        %4221 = vmatpush.xpose.msra.mxu0 %v4063
        %4222 = vmatpush.xpose.msra.mxu0 %v4061
        %4223 = vmatpush.xpose.msra.mxu0 %v4059
        %4224 = vmatpush.xpose.msra.mxu0 %v4057
        %4225 = vmatpush.xpose.msra.mxu0 %v4055
        %4226 = vmatmul.f32.gmra.mxu0 %v2413
        %v4227 = vpop.f32.mrf.mxu0
        %v4228 = vadd.f32 %v4208, %v4227
        %4229 = vdwg.mxu0
        %4230 = vmatpush.xpose.msra.mxu0 %v4116
        %4231 = vmatpush.xpose.msra.mxu0 %v4114
        %4232 = vmatpush.xpose.msra.mxu0 %v4112
        %4233 = vmatpush.xpose.msra.mxu0 %v4110
        %4234 = vmatpush.xpose.msra.mxu0 %v4108
        %4235 = vmatpush.xpose.msra.mxu0 %v4106
        %4236 = vmatpush.xpose.msra.mxu0 %v4104
        %4237 = vmatpush.xpose.msra.mxu0 %v4102
        %4238 = vmatpush.xpose.msra.mxu0 %v4100
        %4239 = vmatpush.xpose.msra.mxu0 %v4098
        %4240 = vmatpush.xpose.msra.mxu0 %v4096
        %4241 = vmatpush.xpose.msra.mxu0 %v4094
        %4242 = vmatpush.xpose.msra.mxu0 %v4092
        %4243 = vmatpush.xpose.msra.mxu0 %v4090
        %4244 = vmatpush.xpose.msra.mxu0 %v4088
        %4245 = vmatpush.xpose.msra.mxu0 %v4086
        %4246 = vmatmul.f32.gmra.mxu0 %v2381
        %v4247 = vpop.f32.mrf.mxu0
        %v4248 = vadd.f32 0.0, %v4247
        %4249 = vdwg.mxu0
        %4250 = vmatpush.xpose.msra.mxu0 %v4117
        %4251 = vmatpush.xpose.msra.mxu0 %v4115
        %4252 = vmatpush.xpose.msra.mxu0 %v4113
        %4253 = vmatpush.xpose.msra.mxu0 %v4111
        %4254 = vmatpush.xpose.msra.mxu0 %v4109
        %4255 = vmatpush.xpose.msra.mxu0 %v4107
        %4256 = vmatpush.xpose.msra.mxu0 %v4105
        %4257 = vmatpush.xpose.msra.mxu0 %v4103
        %4258 = vmatpush.xpose.msra.mxu0 %v4101
        %4259 = vmatpush.xpose.msra.mxu0 %v4099
        %4260 = vmatpush.xpose.msra.mxu0 %v4097
        %4261 = vmatpush.xpose.msra.mxu0 %v4095
        %4262 = vmatpush.xpose.msra.mxu0 %v4093
        %4263 = vmatpush.xpose.msra.mxu0 %v4091
        %4264 = vmatpush.xpose.msra.mxu0 %v4089
        %4265 = vmatpush.xpose.msra.mxu0 %v4087
        %4266 = vmatmul.f32.gmra.mxu0 %v2416
        %v4267 = vpop.f32.mrf.mxu0
        %v4268 = vadd.f32 %v4248, %v4267
        %4269 = vdwg.mxu0
        %4270 = vmatpush.xpose.msra.mxu0 %v4148
        %4271 = vmatpush.xpose.msra.mxu0 %v4146
        %4272 = vmatpush.xpose.msra.mxu0 %v4144
        %4273 = vmatpush.xpose.msra.mxu0 %v4142
        %4274 = vmatpush.xpose.msra.mxu0 %v4140
        %4275 = vmatpush.xpose.msra.mxu0 %v4138
        %4276 = vmatpush.xpose.msra.mxu0 %v4136
        %4277 = vmatpush.xpose.msra.mxu0 %v4134
        %4278 = vmatpush.xpose.msra.mxu0 %v4132
        %4279 = vmatpush.xpose.msra.mxu0 %v4130
        %4280 = vmatpush.xpose.msra.mxu0 %v4128
        %4281 = vmatpush.xpose.msra.mxu0 %v4126
        %4282 = vmatpush.xpose.msra.mxu0 %v4124
        %4283 = vmatpush.xpose.msra.mxu0 %v4122
        %4284 = vmatpush.xpose.msra.mxu0 %v4120
        %4285 = vmatpush.xpose.msra.mxu0 %v4118
        %4286 = vmatmul.f32.gmra.mxu0 %v2381
        %v4287 = vpop.f32.mrf.mxu0
        %v4288 = vadd.f32 0.0, %v4287
        %4289 = vdwg.mxu0
        %4290 = vmatpush.xpose.msra.mxu0 %v4149
        %4291 = vmatpush.xpose.msra.mxu0 %v4147
        %4292 = vmatpush.xpose.msra.mxu0 %v4145
        %4293 = vmatpush.xpose.msra.mxu0 %v4143
        %4294 = vmatpush.xpose.msra.mxu0 %v4141
        %4295 = vmatpush.xpose.msra.mxu0 %v4139
        %4296 = vmatpush.xpose.msra.mxu0 %v4137
        %4297 = vmatpush.xpose.msra.mxu0 %v4135
        %4298 = vmatpush.xpose.msra.mxu0 %v4133
        %4299 = vmatpush.xpose.msra.mxu0 %v4131
        %4300 = vmatpush.xpose.msra.mxu0 %v4129
        %4301 = vmatpush.xpose.msra.mxu0 %v4127
        %4302 = vmatpush.xpose.msra.mxu0 %v4125
        %4303 = vmatpush.xpose.msra.mxu0 %v4123
        %4304 = vmatpush.xpose.msra.mxu0 %v4121
        %4305 = vmatpush.xpose.msra.mxu0 %v4119
        %4306 = vmatmul.f32.gmra.mxu0 %v2416
        %v4307 = vpop.f32.mrf.mxu0
        %v4308 = vadd.f32 %v4288, %v4307
        %4309 = vdwg.mxu0
        %4310 = vmatpush.msra.mxu0 0.0
        %4311 = vmatpush.msra.mxu0 0.0
        %4312 = vmatpush.msra.mxu0 0.0
        %4313 = vmatpush.msra.mxu0 0.0
        %4314 = vmatpush.msra.mxu0 0.0
        %4315 = vmatpush.msra.mxu0 0.0
        %4316 = vmatpush.msra.mxu0 0.0
        %4317 = vmatpush.msra.mxu0 0.0
        %4318 = vmatpush.msra.mxu0 0.0
        %4319 = vmatpush.msra.mxu0 0.0
        %4320 = vmatpush.msra.mxu0 0.0
        %4321 = vmatpush.msra.mxu0 0.0
        %4322 = vmatpush.msra.mxu0 0.0
        %4323 = vmatpush.msra.mxu0 0.0
        %4324 = vmatpush.msra.mxu0 %v4268
        %4325 = vmatpush.msra.mxu0 %v4188
        %4326 = vmatmul.f32.gmra.mxu0 %v2283
        %v4327 = vpop.f32.mrf.mxu0
        %v4328 = vadd.f32 %v2279, %v4327
        %4329 = vdwg.mxu0
        %4330 = vmatpush.msra.mxu0 0.0
        %4331 = vmatpush.msra.mxu0 0.0
        %4332 = vmatpush.msra.mxu0 0.0
        %4333 = vmatpush.msra.mxu0 0.0
        %4334 = vmatpush.msra.mxu0 0.0
        %4335 = vmatpush.msra.mxu0 0.0
        %4336 = vmatpush.msra.mxu0 0.0
        %4337 = vmatpush.msra.mxu0 0.0
        %4338 = vmatpush.msra.mxu0 0.0
        %4339 = vmatpush.msra.mxu0 0.0
        %4340 = vmatpush.msra.mxu0 0.0
        %4341 = vmatpush.msra.mxu0 0.0
        %4342 = vmatpush.msra.mxu0 0.0
        %4343 = vmatpush.msra.mxu0 0.0
        %4344 = vmatpush.msra.mxu0 %v4308
        %4345 = vmatpush.msra.mxu0 %v4228
        %4346 = vmatmul.f32.gmra.mxu0 %v2283
        %v4347 = vpop.f32.mrf.mxu0
        %v4348 = vadd.f32 %v2279, %v4347
        %4349 = vdwg.mxu0
        %4350 = vst [vmem:[#allocation1] ss:$2 sm:$0xff] %v2339
        %v4351 = vld.sshfl [vmem:[#allocation1] sm:$0xff pattern:$0x75316420]
        %v4352 = vld.sshfl [vmem:[#allocation1 + $0x8] sm:$0xff pattern:$0x75316420]
        %v4355 = vadd.f32 %v4328, %v4351
        %v4356 = vadd.f32 %v4348, %v4352
        %v4359 = vrot.slane %v4356, 4
        %v4360 = vsel %vm308, %v4355, %v4359
        %s4362 = scalar_lea.vmem %s239, 8
        %4363 = vst [vmem:[%s4362] sm:$0xff] %v4360
        %s4364 = scalar_lea.vmem %s234, 16
        %v4365 = vld [vmem:[%s4364] sm:$0xff]
        %4367 = vst [vmem:[#allocation1] ss:$2 sm:$0xff] %v4365
        %v4368 = vld.sshfl [vmem:[#allocation1] sm:$0xff pattern:$0x75316420]
        %v4369 = vld.sshfl [vmem:[#allocation1 + $0x8] sm:$0xff pattern:$0x75316420]
        %v4370 = vsel %vm308, %v4368, 0
        %v4372 = vsel %vm308, %v4369, 0
        %4374 = vmatpush.msra.mxu0 0.0
        %4375 = vmatpush.msra.mxu0 0.0
        %4376 = vmatpush.msra.mxu0 0.0
        %4377 = vmatpush.msra.mxu0 0.0
        %4378 = vmatpush.msra.mxu0 0.0
        %4379 = vmatpush.msra.mxu0 0.0
        %4380 = vmatpush.msra.mxu0 0.0
        %4381 = vmatpush.msra.mxu0 0.0
        %4382 = vmatpush.msra.mxu0 0.0
        %4383 = vmatpush.msra.mxu0 0.0
        %4384 = vmatpush.msra.mxu0 0.0
        %4385 = vmatpush.msra.mxu0 0.0
        %4386 = vmatpush.msra.mxu0 0.0
        %4387 = vmatpush.msra.mxu0 0.0
        %4388 = vmatpush.msra.mxu0 0.0
        %4389 = vmatpush.msra.mxu0 %v4370
        %4390 = vmatmul.f32.gmra.mxu0 %v291
        %v4391 = vpop.f32.mrf.mxu0
        %v4392 = vadd.f32 %v258, %v4391
        %4393 = vmatmul.f32.gmra.mxu0 %v294
        %v4394 = vpop.f32.mrf.mxu0
        %v4395 = vadd.f32 %v263, %v4394
        %4396 = vmatmul.f32.gmra.mxu0 %v297
        %v4397 = vpop.f32.mrf.mxu0
        %v4398 = vadd.f32 %v268, %v4397
        %4399 = vmatmul.f32.gmra.mxu0 %v300
        %v4400 = vpop.f32.mrf.mxu0
        %v4401 = vadd.f32 %v273, %v4400
        %4402 = vmatmul.f32.gmra.mxu0 %v303
        %v4403 = vpop.f32.mrf.mxu0
        %v4404 = vadd.f32 %v278, %v4403
        %4405 = vmatmul.f32.gmra.mxu0 %v306
        %v4406 = vpop.f32.mrf.mxu0
        %v4407 = vadd.f32 %v283, %v4406
        %4408 = vdwg.mxu0
        %4409 = vmatpush.msra.mxu0 0.0
        %4410 = vmatpush.msra.mxu0 0.0
        %4411 = vmatpush.msra.mxu0 0.0
        %4412 = vmatpush.msra.mxu0 0.0
        %4413 = vmatpush.msra.mxu0 0.0
        %4414 = vmatpush.msra.mxu0 0.0
        %4415 = vmatpush.msra.mxu0 0.0
        %4416 = vmatpush.msra.mxu0 0.0
        %4417 = vmatpush.msra.mxu0 0.0
        %4418 = vmatpush.msra.mxu0 0.0
        %4419 = vmatpush.msra.mxu0 0.0
        %4420 = vmatpush.msra.mxu0 0.0
        %4421 = vmatpush.msra.mxu0 0.0
        %4422 = vmatpush.msra.mxu0 0.0
        %4423 = vmatpush.msra.mxu0 0.0
        %4424 = vmatpush.msra.mxu0 %v4372
        %4425 = vmatmul.f32.gmra.mxu0 %v291
        %v4426 = vpop.f32.mrf.mxu0
        %v4427 = vadd.f32 %v258, %v4426
        %4428 = vmatmul.f32.gmra.mxu0 %v294
        %v4429 = vpop.f32.mrf.mxu0
        %v4430 = vadd.f32 %v263, %v4429
        %4431 = vmatmul.f32.gmra.mxu0 %v297
        %v4432 = vpop.f32.mrf.mxu0
        %v4433 = vadd.f32 %v268, %v4432
        %4434 = vmatmul.f32.gmra.mxu0 %v300
        %v4435 = vpop.f32.mrf.mxu0
        %v4436 = vadd.f32 %v273, %v4435
        %4437 = vmatmul.f32.gmra.mxu0 %v303
        %v4438 = vpop.f32.mrf.mxu0
        %v4439 = vadd.f32 %v278, %v4438
        %4440 = vmatmul.f32.gmra.mxu0 %v306
        %v4441 = vpop.f32.mrf.mxu0
        %v4442 = vadd.f32 %v283, %v4441
        %4443 = vdwg.mxu0
        %4444 = vxpose.xlu0.b32.start [1/16] %v4392, 128
        %4445 = vxpose.xlu0.b32.cont [2/16] 0.0, 128
        %4446 = vxpose.xlu0.b32.cont [3/16] 0.0, 128
        %4447 = vxpose.xlu0.b32.cont [4/16] 0.0, 128
        %4448 = vxpose.xlu0.b32.cont [5/16] 0.0, 128
        %4449 = vxpose.xlu0.b32.cont [6/16] 0.0, 128
        %4450 = vxpose.xlu0.b32.cont [7/16] 0.0, 128
        %4451 = vxpose.xlu0.b32.cont [8/16] 0.0, 128
        %4452 = vxpose.xlu0.b32.cont [9/16] 0.0, 128
        %4453 = vxpose.xlu0.b32.cont [10/16] 0.0, 128
        %4454 = vxpose.xlu0.b32.cont [11/16] 0.0, 128
        %4455 = vxpose.xlu0.b32.cont [12/16] 0.0, 128
        %4456 = vxpose.xlu0.b32.cont [13/16] 0.0, 128
        %4457 = vxpose.xlu0.b32.cont [14/16] 0.0, 128
        %4458 = vxpose.xlu0.b32.cont [15/16] 0.0, 128
        %4459 = vxpose.xlu0.b32.end [16/16] 0.0, 128
        %v4460 = vpop.trf.xlu0
        %v4461 = vpop.trf.xlu0
        %v4462 = vpop.trf.xlu0
        %v4463 = vpop.trf.xlu0
        %v4464 = vpop.trf.xlu0
        %v4465 = vpop.trf.xlu0
        %v4466 = vpop.trf.xlu0
        %v4467 = vpop.trf.xlu0
        %v4468 = vpop.trf.xlu0
        %v4469 = vpop.trf.xlu0
        %v4470 = vpop.trf.xlu0
        %v4471 = vpop.trf.xlu0
        %v4472 = vpop.trf.xlu0
        %v4473 = vpop.trf.xlu0
        %v4474 = vpop.trf.xlu0
        %v4475 = vpop.trf.xlu0
        %4476 = vxpose.xlu0.b32.start [1/16] %v4427, 128
        %4477 = vxpose.xlu0.b32.cont [2/16] 0.0, 128
        %4478 = vxpose.xlu0.b32.cont [3/16] 0.0, 128
        %4479 = vxpose.xlu0.b32.cont [4/16] 0.0, 128
        %4480 = vxpose.xlu0.b32.cont [5/16] 0.0, 128
        %4481 = vxpose.xlu0.b32.cont [6/16] 0.0, 128
        %4482 = vxpose.xlu0.b32.cont [7/16] 0.0, 128
        %4483 = vxpose.xlu0.b32.cont [8/16] 0.0, 128
        %4484 = vxpose.xlu0.b32.cont [9/16] 0.0, 128
        %4485 = vxpose.xlu0.b32.cont [10/16] 0.0, 128
        %4486 = vxpose.xlu0.b32.cont [11/16] 0.0, 128
        %4487 = vxpose.xlu0.b32.cont [12/16] 0.0, 128
        %4488 = vxpose.xlu0.b32.cont [13/16] 0.0, 128
        %4489 = vxpose.xlu0.b32.cont [14/16] 0.0, 128
        %4490 = vxpose.xlu0.b32.cont [15/16] 0.0, 128
        %4491 = vxpose.xlu0.b32.end [16/16] 0.0, 128
        %v4492 = vpop.trf.xlu0
        %v4493 = vpop.trf.xlu0
        %v4494 = vpop.trf.xlu0
        %v4495 = vpop.trf.xlu0
        %v4496 = vpop.trf.xlu0
        %v4497 = vpop.trf.xlu0
        %v4498 = vpop.trf.xlu0
        %v4499 = vpop.trf.xlu0
        %v4500 = vpop.trf.xlu0
        %v4501 = vpop.trf.xlu0
        %v4502 = vpop.trf.xlu0
        %v4503 = vpop.trf.xlu0
        %v4504 = vpop.trf.xlu0
        %v4505 = vpop.trf.xlu0
        %v4506 = vpop.trf.xlu0
        %v4507 = vpop.trf.xlu0
        %v4509 = vsel %vm447, %v4460, 0
        %v4512 = vsel %vm447, %v4461, 0
        %v4515 = vsel %vm447, %v4462, 0
        %v4518 = vsel %vm447, %v4463, 0
        %v4521 = vsel %vm447, %v4464, 0
        %v4524 = vsel %vm447, %v4465, 0
        %v4527 = vsel %vm447, %v4466, 0
        %v4530 = vsel %vm447, %v4467, 0
        %v4533 = vsel %vm447, %v4468, 0
        %v4536 = vsel %vm447, %v4469, 0
        %v4539 = vsel %vm447, %v4470, 0
        %v4542 = vsel %vm447, %v4471, 0
        %v4545 = vsel %vm447, %v4472, 0
        %v4548 = vsel %vm447, %v4473, 0
        %v4551 = vsel %vm447, %v4474, 0
        %v4554 = vsel %vm447, %v4475, 0
        %v4557 = vsel %vm447, %v4492, 0
        %v4560 = vsel %vm447, %v4493, 0
        %v4563 = vsel %vm447, %v4494, 0
        %v4566 = vsel %vm447, %v4495, 0
        %v4569 = vsel %vm447, %v4496, 0
        %v4572 = vsel %vm447, %v4497, 0
        %v4575 = vsel %vm447, %v4498, 0
        %v4578 = vsel %vm447, %v4499, 0
        %v4581 = vsel %vm447, %v4500, 0
        %v4584 = vsel %vm447, %v4501, 0
        %v4587 = vsel %vm447, %v4502, 0
        %v4590 = vsel %vm447, %v4503, 0
        %v4593 = vsel %vm447, %v4504, 0
        %v4596 = vsel %vm447, %v4505, 0
        %v4599 = vsel %vm447, %v4506, 0
        %v4602 = vsel %vm447, %v4507, 0
        %4604 = vmatpush.msra.mxu0 0.0
        %4605 = vmatpush.msra.mxu0 0.0
        %4606 = vmatpush.msra.mxu0 0.0
        %4607 = vmatpush.msra.mxu0 0.0
        %4608 = vmatpush.msra.mxu0 0.0
        %4609 = vmatpush.msra.mxu0 0.0
        %4610 = vmatpush.msra.mxu0 0.0
        %4611 = vmatpush.msra.mxu0 0.0
        %4612 = vmatpush.msra.mxu0 0.0
        %4613 = vmatpush.msra.mxu0 0.0
        %4614 = vmatpush.msra.mxu0 0.0
        %4615 = vmatpush.msra.mxu0 0.0
        %4616 = vmatpush.msra.mxu0 0.0
        %4617 = vmatpush.msra.mxu0 0.0
        %4618 = vmatpush.msra.mxu0 0.0
        %4619 = vmatpush.msra.mxu0 %v4398
        %4620 = vmatmul.f32.gmra.mxu0 %v4509
        %v4621 = vpop.f32.mrf.mxu0
        %v4622 = vadd.f32 0.0, %v4621
        %4623 = vmatmul.f32.gmra.mxu0 %v4512
        %v4624 = vpop.f32.mrf.mxu0
        %v4625 = vadd.f32 0.0, %v4624
        %4626 = vmatmul.f32.gmra.mxu0 %v4515
        %v4627 = vpop.f32.mrf.mxu0
        %v4628 = vadd.f32 0.0, %v4627
        %4629 = vmatmul.f32.gmra.mxu0 %v4518
        %v4630 = vpop.f32.mrf.mxu0
        %v4631 = vadd.f32 0.0, %v4630
        %4632 = vmatmul.f32.gmra.mxu0 %v4521
        %v4633 = vpop.f32.mrf.mxu0
        %v4634 = vadd.f32 0.0, %v4633
        %4635 = vmatmul.f32.gmra.mxu0 %v4524
        %v4636 = vpop.f32.mrf.mxu0
        %v4637 = vadd.f32 0.0, %v4636
        %4638 = vmatmul.f32.gmra.mxu0 %v4527
        %v4639 = vpop.f32.mrf.mxu0
        %v4640 = vadd.f32 0.0, %v4639
        %4641 = vmatmul.f32.gmra.mxu0 %v4530
        %v4642 = vpop.f32.mrf.mxu0
        %v4643 = vadd.f32 0.0, %v4642
        %4644 = vmatmul.f32.gmra.mxu0 %v4533
        %v4645 = vpop.f32.mrf.mxu0
        %v4646 = vadd.f32 0.0, %v4645
        %4647 = vmatmul.f32.gmra.mxu0 %v4536
        %v4648 = vpop.f32.mrf.mxu0
        %v4649 = vadd.f32 0.0, %v4648
        %4650 = vmatmul.f32.gmra.mxu0 %v4539
        %v4651 = vpop.f32.mrf.mxu0
        %v4652 = vadd.f32 0.0, %v4651
        %4653 = vmatmul.f32.gmra.mxu0 %v4542
        %v4654 = vpop.f32.mrf.mxu0
        %v4655 = vadd.f32 0.0, %v4654
        %4656 = vmatmul.f32.gmra.mxu0 %v4545
        %v4657 = vpop.f32.mrf.mxu0
        %v4658 = vadd.f32 0.0, %v4657
        %4659 = vmatmul.f32.gmra.mxu0 %v4548
        %v4660 = vpop.f32.mrf.mxu0
        %v4661 = vadd.f32 0.0, %v4660
        %4662 = vmatmul.f32.gmra.mxu0 %v4551
        %v4663 = vpop.f32.mrf.mxu0
        %v4664 = vadd.f32 0.0, %v4663
        %4665 = vmatmul.f32.gmra.mxu0 %v4554
        %v4666 = vpop.f32.mrf.mxu0
        %v4667 = vadd.f32 0.0, %v4666
        %4668 = vmatmul.f32.gmra.mxu0 %v4557
        %v4669 = vpop.f32.mrf.mxu0
        %v4670 = vadd.f32 0.0, %v4669
        %4671 = vmatmul.f32.gmra.mxu0 %v4560
        %v4672 = vpop.f32.mrf.mxu0
        %v4673 = vadd.f32 0.0, %v4672
        %4674 = vmatmul.f32.gmra.mxu0 %v4563
        %v4675 = vpop.f32.mrf.mxu0
        %v4676 = vadd.f32 0.0, %v4675
        %4677 = vmatmul.f32.gmra.mxu0 %v4566
        %v4678 = vpop.f32.mrf.mxu0
        %v4679 = vadd.f32 0.0, %v4678
        %4680 = vmatmul.f32.gmra.mxu0 %v4569
        %v4681 = vpop.f32.mrf.mxu0
        %v4682 = vadd.f32 0.0, %v4681
        %4683 = vmatmul.f32.gmra.mxu0 %v4572
        %v4684 = vpop.f32.mrf.mxu0
        %v4685 = vadd.f32 0.0, %v4684
        %4686 = vmatmul.f32.gmra.mxu0 %v4575
        %v4687 = vpop.f32.mrf.mxu0
        %v4688 = vadd.f32 0.0, %v4687
        %4689 = vmatmul.f32.gmra.mxu0 %v4578
        %v4690 = vpop.f32.mrf.mxu0
        %v4691 = vadd.f32 0.0, %v4690
        %4692 = vmatmul.f32.gmra.mxu0 %v4581
        %v4693 = vpop.f32.mrf.mxu0
        %v4694 = vadd.f32 0.0, %v4693
        %4695 = vmatmul.f32.gmra.mxu0 %v4584
        %v4696 = vpop.f32.mrf.mxu0
        %v4697 = vadd.f32 0.0, %v4696
        %4698 = vmatmul.f32.gmra.mxu0 %v4587
        %v4699 = vpop.f32.mrf.mxu0
        %v4700 = vadd.f32 0.0, %v4699
        %4701 = vmatmul.f32.gmra.mxu0 %v4590
        %v4702 = vpop.f32.mrf.mxu0
        %v4703 = vadd.f32 0.0, %v4702
        %4704 = vmatmul.f32.gmra.mxu0 %v4593
        %v4705 = vpop.f32.mrf.mxu0
        %v4706 = vadd.f32 0.0, %v4705
        %4707 = vmatmul.f32.gmra.mxu0 %v4596
        %v4708 = vpop.f32.mrf.mxu0
        %v4709 = vadd.f32 0.0, %v4708
        %4710 = vmatmul.f32.gmra.mxu0 %v4599
        %v4711 = vpop.f32.mrf.mxu0
        %v4712 = vadd.f32 0.0, %v4711
        %4713 = vmatmul.f32.gmra.mxu0 %v4602
        %v4714 = vpop.f32.mrf.mxu0
        %v4715 = vadd.f32 0.0, %v4714
        %4716 = vdwg.mxu0
        %4717 = vmatpush.msra.mxu0 0.0
        %4718 = vmatpush.msra.mxu0 0.0
        %4719 = vmatpush.msra.mxu0 0.0
        %4720 = vmatpush.msra.mxu0 0.0
        %4721 = vmatpush.msra.mxu0 0.0
        %4722 = vmatpush.msra.mxu0 0.0
        %4723 = vmatpush.msra.mxu0 0.0
        %4724 = vmatpush.msra.mxu0 0.0
        %4725 = vmatpush.msra.mxu0 0.0
        %4726 = vmatpush.msra.mxu0 0.0
        %4727 = vmatpush.msra.mxu0 0.0
        %4728 = vmatpush.msra.mxu0 0.0
        %4729 = vmatpush.msra.mxu0 0.0
        %4730 = vmatpush.msra.mxu0 0.0
        %4731 = vmatpush.msra.mxu0 0.0
        %4732 = vmatpush.msra.mxu0 %v4433
        %4733 = vmatmul.f32.gmra.mxu0 %v4509
        %v4734 = vpop.f32.mrf.mxu0
        %v4735 = vadd.f32 0.0, %v4734
        %4736 = vmatmul.f32.gmra.mxu0 %v4512
        %v4737 = vpop.f32.mrf.mxu0
        %v4738 = vadd.f32 0.0, %v4737
        %4739 = vmatmul.f32.gmra.mxu0 %v4515
        %v4740 = vpop.f32.mrf.mxu0
        %v4741 = vadd.f32 0.0, %v4740
        %4742 = vmatmul.f32.gmra.mxu0 %v4518
        %v4743 = vpop.f32.mrf.mxu0
        %v4744 = vadd.f32 0.0, %v4743
        %4745 = vmatmul.f32.gmra.mxu0 %v4521
        %v4746 = vpop.f32.mrf.mxu0
        %v4747 = vadd.f32 0.0, %v4746
        %4748 = vmatmul.f32.gmra.mxu0 %v4524
        %v4749 = vpop.f32.mrf.mxu0
        %v4750 = vadd.f32 0.0, %v4749
        %4751 = vmatmul.f32.gmra.mxu0 %v4527
        %v4752 = vpop.f32.mrf.mxu0
        %v4753 = vadd.f32 0.0, %v4752
        %4754 = vmatmul.f32.gmra.mxu0 %v4530
        %v4755 = vpop.f32.mrf.mxu0
        %v4756 = vadd.f32 0.0, %v4755
        %4757 = vmatmul.f32.gmra.mxu0 %v4533
        %v4758 = vpop.f32.mrf.mxu0
        %v4759 = vadd.f32 0.0, %v4758
        %4760 = vmatmul.f32.gmra.mxu0 %v4536
        %v4761 = vpop.f32.mrf.mxu0
        %v4762 = vadd.f32 0.0, %v4761
        %4763 = vmatmul.f32.gmra.mxu0 %v4539
        %v4764 = vpop.f32.mrf.mxu0
        %v4765 = vadd.f32 0.0, %v4764
        %4766 = vmatmul.f32.gmra.mxu0 %v4542
        %v4767 = vpop.f32.mrf.mxu0
        %v4768 = vadd.f32 0.0, %v4767
        %4769 = vmatmul.f32.gmra.mxu0 %v4545
        %v4770 = vpop.f32.mrf.mxu0
        %v4771 = vadd.f32 0.0, %v4770
        %4772 = vmatmul.f32.gmra.mxu0 %v4548
        %v4773 = vpop.f32.mrf.mxu0
        %v4774 = vadd.f32 0.0, %v4773
        %4775 = vmatmul.f32.gmra.mxu0 %v4551
        %v4776 = vpop.f32.mrf.mxu0
        %v4777 = vadd.f32 0.0, %v4776
        %4778 = vmatmul.f32.gmra.mxu0 %v4554
        %v4779 = vpop.f32.mrf.mxu0
        %v4780 = vadd.f32 0.0, %v4779
        %4781 = vmatmul.f32.gmra.mxu0 %v4557
        %v4782 = vpop.f32.mrf.mxu0
        %v4783 = vadd.f32 0.0, %v4782
        %4784 = vmatmul.f32.gmra.mxu0 %v4560
        %v4785 = vpop.f32.mrf.mxu0
        %v4786 = vadd.f32 0.0, %v4785
        %4787 = vmatmul.f32.gmra.mxu0 %v4563
        %v4788 = vpop.f32.mrf.mxu0
        %v4789 = vadd.f32 0.0, %v4788
        %4790 = vmatmul.f32.gmra.mxu0 %v4566
        %v4791 = vpop.f32.mrf.mxu0
        %v4792 = vadd.f32 0.0, %v4791
        %4793 = vmatmul.f32.gmra.mxu0 %v4569
        %v4794 = vpop.f32.mrf.mxu0
        %v4795 = vadd.f32 0.0, %v4794
        %4796 = vmatmul.f32.gmra.mxu0 %v4572
        %v4797 = vpop.f32.mrf.mxu0
        %v4798 = vadd.f32 0.0, %v4797
        %4799 = vmatmul.f32.gmra.mxu0 %v4575
        %v4800 = vpop.f32.mrf.mxu0
        %v4801 = vadd.f32 0.0, %v4800
        %4802 = vmatmul.f32.gmra.mxu0 %v4578
        %v4803 = vpop.f32.mrf.mxu0
        %v4804 = vadd.f32 0.0, %v4803
        %4805 = vmatmul.f32.gmra.mxu0 %v4581
        %v4806 = vpop.f32.mrf.mxu0
        %v4807 = vadd.f32 0.0, %v4806
        %4808 = vmatmul.f32.gmra.mxu0 %v4584
        %v4809 = vpop.f32.mrf.mxu0
        %v4810 = vadd.f32 0.0, %v4809
        %4811 = vmatmul.f32.gmra.mxu0 %v4587
        %v4812 = vpop.f32.mrf.mxu0
        %v4813 = vadd.f32 0.0, %v4812
        %4814 = vmatmul.f32.gmra.mxu0 %v4590
        %v4815 = vpop.f32.mrf.mxu0
        %v4816 = vadd.f32 0.0, %v4815
        %4817 = vmatmul.f32.gmra.mxu0 %v4593
        %v4818 = vpop.f32.mrf.mxu0
        %v4819 = vadd.f32 0.0, %v4818
        %4820 = vmatmul.f32.gmra.mxu0 %v4596
        %v4821 = vpop.f32.mrf.mxu0
        %v4822 = vadd.f32 0.0, %v4821
        %4823 = vmatmul.f32.gmra.mxu0 %v4599
        %v4824 = vpop.f32.mrf.mxu0
        %v4825 = vadd.f32 0.0, %v4824
        %4826 = vmatmul.f32.gmra.mxu0 %v4602
        %v4827 = vpop.f32.mrf.mxu0
        %v4828 = vadd.f32 0.0, %v4827
        %4829 = vdwg.mxu0
        %4830 = vxpose.xlu0.b32.start [1/16] %v4395, 128
        %4831 = vxpose.xlu0.b32.cont [2/16] 0.0, 128
        %4832 = vxpose.xlu0.b32.cont [3/16] 0.0, 128
        %4833 = vxpose.xlu0.b32.cont [4/16] 0.0, 128
        %4834 = vxpose.xlu0.b32.cont [5/16] 0.0, 128
        %4835 = vxpose.xlu0.b32.cont [6/16] 0.0, 128
        %4836 = vxpose.xlu0.b32.cont [7/16] 0.0, 128
        %4837 = vxpose.xlu0.b32.cont [8/16] 0.0, 128
        %4838 = vxpose.xlu0.b32.cont [9/16] 0.0, 128
        %4839 = vxpose.xlu0.b32.cont [10/16] 0.0, 128
        %4840 = vxpose.xlu0.b32.cont [11/16] 0.0, 128
        %4841 = vxpose.xlu0.b32.cont [12/16] 0.0, 128
        %4842 = vxpose.xlu0.b32.cont [13/16] 0.0, 128
        %4843 = vxpose.xlu0.b32.cont [14/16] 0.0, 128
        %4844 = vxpose.xlu0.b32.cont [15/16] 0.0, 128
        %4845 = vxpose.xlu0.b32.end [16/16] 0.0, 128
        %v4846 = vpop.trf.xlu0
        %v4847 = vpop.trf.xlu0
        %v4848 = vpop.trf.xlu0
        %v4849 = vpop.trf.xlu0
        %v4850 = vpop.trf.xlu0
        %v4851 = vpop.trf.xlu0
        %v4852 = vpop.trf.xlu0
        %v4853 = vpop.trf.xlu0
        %v4854 = vpop.trf.xlu0
        %v4855 = vpop.trf.xlu0
        %v4856 = vpop.trf.xlu0
        %v4857 = vpop.trf.xlu0
        %v4858 = vpop.trf.xlu0
        %v4859 = vpop.trf.xlu0
        %v4860 = vpop.trf.xlu0
        %v4861 = vpop.trf.xlu0
        %4862 = vxpose.xlu0.b32.start [1/16] %v4430, 128
        %4863 = vxpose.xlu0.b32.cont [2/16] 0.0, 128
        %4864 = vxpose.xlu0.b32.cont [3/16] 0.0, 128
        %4865 = vxpose.xlu0.b32.cont [4/16] 0.0, 128
        %4866 = vxpose.xlu0.b32.cont [5/16] 0.0, 128
        %4867 = vxpose.xlu0.b32.cont [6/16] 0.0, 128
        %4868 = vxpose.xlu0.b32.cont [7/16] 0.0, 128
        %4869 = vxpose.xlu0.b32.cont [8/16] 0.0, 128
        %4870 = vxpose.xlu0.b32.cont [9/16] 0.0, 128
        %4871 = vxpose.xlu0.b32.cont [10/16] 0.0, 128
        %4872 = vxpose.xlu0.b32.cont [11/16] 0.0, 128
        %4873 = vxpose.xlu0.b32.cont [12/16] 0.0, 128
        %4874 = vxpose.xlu0.b32.cont [13/16] 0.0, 128
        %4875 = vxpose.xlu0.b32.cont [14/16] 0.0, 128
        %4876 = vxpose.xlu0.b32.cont [15/16] 0.0, 128
        %4877 = vxpose.xlu0.b32.end [16/16] 0.0, 128
        %v4878 = vpop.trf.xlu0
        %v4879 = vpop.trf.xlu0
        %v4880 = vpop.trf.xlu0
        %v4881 = vpop.trf.xlu0
        %v4882 = vpop.trf.xlu0
        %v4883 = vpop.trf.xlu0
        %v4884 = vpop.trf.xlu0
        %v4885 = vpop.trf.xlu0
        %v4886 = vpop.trf.xlu0
        %v4887 = vpop.trf.xlu0
        %v4888 = vpop.trf.xlu0
        %v4889 = vpop.trf.xlu0
        %v4890 = vpop.trf.xlu0
        %v4891 = vpop.trf.xlu0
        %v4892 = vpop.trf.xlu0
        %v4893 = vpop.trf.xlu0
        %v4895 = vsel %vm447, %v4846, 0
        %v4898 = vsel %vm447, %v4847, 0
        %v4901 = vsel %vm447, %v4848, 0
        %v4904 = vsel %vm447, %v4849, 0
        %v4907 = vsel %vm447, %v4850, 0
        %v4910 = vsel %vm447, %v4851, 0
        %v4913 = vsel %vm447, %v4852, 0
        %v4916 = vsel %vm447, %v4853, 0
        %v4919 = vsel %vm447, %v4854, 0
        %v4922 = vsel %vm447, %v4855, 0
        %v4925 = vsel %vm447, %v4856, 0
        %v4928 = vsel %vm447, %v4857, 0
        %v4931 = vsel %vm447, %v4858, 0
        %v4934 = vsel %vm447, %v4859, 0
        %v4937 = vsel %vm447, %v4860, 0
        %v4940 = vsel %vm447, %v4861, 0
        %v4943 = vsel %vm447, %v4878, 0
        %v4946 = vsel %vm447, %v4879, 0
        %v4949 = vsel %vm447, %v4880, 0
        %v4952 = vsel %vm447, %v4881, 0
        %v4955 = vsel %vm447, %v4882, 0
        %v4958 = vsel %vm447, %v4883, 0
        %v4961 = vsel %vm447, %v4884, 0
        %v4964 = vsel %vm447, %v4885, 0
        %v4967 = vsel %vm447, %v4886, 0
        %v4970 = vsel %vm447, %v4887, 0
        %v4973 = vsel %vm447, %v4888, 0
        %v4976 = vsel %vm447, %v4889, 0
        %v4979 = vsel %vm447, %v4890, 0
        %v4982 = vsel %vm447, %v4891, 0
        %v4985 = vsel %vm447, %v4892, 0
        %v4988 = vsel %vm447, %v4893, 0
        %4990 = vmatpush.msra.mxu0 0.0
        %4991 = vmatpush.msra.mxu0 0.0
        %4992 = vmatpush.msra.mxu0 0.0
        %4993 = vmatpush.msra.mxu0 0.0
        %4994 = vmatpush.msra.mxu0 0.0
        %4995 = vmatpush.msra.mxu0 0.0
        %4996 = vmatpush.msra.mxu0 0.0
        %4997 = vmatpush.msra.mxu0 0.0
        %4998 = vmatpush.msra.mxu0 0.0
        %4999 = vmatpush.msra.mxu0 0.0
        %5000 = vmatpush.msra.mxu0 0.0
        %5001 = vmatpush.msra.mxu0 0.0
        %5002 = vmatpush.msra.mxu0 0.0
        %5003 = vmatpush.msra.mxu0 0.0
        %5004 = vmatpush.msra.mxu0 0.0
        %5005 = vmatpush.msra.mxu0 %v4401
        %5006 = vmatmul.f32.gmra.mxu0 %v4895
        %v5007 = vpop.f32.mrf.mxu0
        %v5008 = vadd.f32 0.0, %v5007
        %5009 = vmatmul.f32.gmra.mxu0 %v4898
        %v5010 = vpop.f32.mrf.mxu0
        %v5011 = vadd.f32 0.0, %v5010
        %5012 = vmatmul.f32.gmra.mxu0 %v4901
        %v5013 = vpop.f32.mrf.mxu0
        %v5014 = vadd.f32 0.0, %v5013
        %5015 = vmatmul.f32.gmra.mxu0 %v4904
        %v5016 = vpop.f32.mrf.mxu0
        %v5017 = vadd.f32 0.0, %v5016
        %5018 = vmatmul.f32.gmra.mxu0 %v4907
        %v5019 = vpop.f32.mrf.mxu0
        %v5020 = vadd.f32 0.0, %v5019
        %5021 = vmatmul.f32.gmra.mxu0 %v4910
        %v5022 = vpop.f32.mrf.mxu0
        %v5023 = vadd.f32 0.0, %v5022
        %5024 = vmatmul.f32.gmra.mxu0 %v4913
        %v5025 = vpop.f32.mrf.mxu0
        %v5026 = vadd.f32 0.0, %v5025
        %5027 = vmatmul.f32.gmra.mxu0 %v4916
        %v5028 = vpop.f32.mrf.mxu0
        %v5029 = vadd.f32 0.0, %v5028
        %5030 = vmatmul.f32.gmra.mxu0 %v4919
        %v5031 = vpop.f32.mrf.mxu0
        %v5032 = vadd.f32 0.0, %v5031
        %5033 = vmatmul.f32.gmra.mxu0 %v4922
        %v5034 = vpop.f32.mrf.mxu0
        %v5035 = vadd.f32 0.0, %v5034
        %5036 = vmatmul.f32.gmra.mxu0 %v4925
        %v5037 = vpop.f32.mrf.mxu0
        %v5038 = vadd.f32 0.0, %v5037
        %5039 = vmatmul.f32.gmra.mxu0 %v4928
        %v5040 = vpop.f32.mrf.mxu0
        %v5041 = vadd.f32 0.0, %v5040
        %5042 = vmatmul.f32.gmra.mxu0 %v4931
        %v5043 = vpop.f32.mrf.mxu0
        %v5044 = vadd.f32 0.0, %v5043
        %5045 = vmatmul.f32.gmra.mxu0 %v4934
        %v5046 = vpop.f32.mrf.mxu0
        %v5047 = vadd.f32 0.0, %v5046
        %5048 = vmatmul.f32.gmra.mxu0 %v4937
        %v5049 = vpop.f32.mrf.mxu0
        %v5050 = vadd.f32 0.0, %v5049
        %5051 = vmatmul.f32.gmra.mxu0 %v4940
        %v5052 = vpop.f32.mrf.mxu0
        %v5053 = vadd.f32 0.0, %v5052
        %5054 = vmatmul.f32.gmra.mxu0 %v4943
        %v5055 = vpop.f32.mrf.mxu0
        %v5056 = vadd.f32 0.0, %v5055
        %5057 = vmatmul.f32.gmra.mxu0 %v4946
        %v5058 = vpop.f32.mrf.mxu0
        %v5059 = vadd.f32 0.0, %v5058
        %5060 = vmatmul.f32.gmra.mxu0 %v4949
        %v5061 = vpop.f32.mrf.mxu0
        %v5062 = vadd.f32 0.0, %v5061
        %5063 = vmatmul.f32.gmra.mxu0 %v4952
        %v5064 = vpop.f32.mrf.mxu0
        %v5065 = vadd.f32 0.0, %v5064
        %5066 = vmatmul.f32.gmra.mxu0 %v4955
        %v5067 = vpop.f32.mrf.mxu0
        %v5068 = vadd.f32 0.0, %v5067
        %5069 = vmatmul.f32.gmra.mxu0 %v4958
        %v5070 = vpop.f32.mrf.mxu0
        %v5071 = vadd.f32 0.0, %v5070
        %5072 = vmatmul.f32.gmra.mxu0 %v4961
        %v5073 = vpop.f32.mrf.mxu0
        %v5074 = vadd.f32 0.0, %v5073
        %5075 = vmatmul.f32.gmra.mxu0 %v4964
        %v5076 = vpop.f32.mrf.mxu0
        %v5077 = vadd.f32 0.0, %v5076
        %5078 = vmatmul.f32.gmra.mxu0 %v4967
        %v5079 = vpop.f32.mrf.mxu0
        %v5080 = vadd.f32 0.0, %v5079
        %5081 = vmatmul.f32.gmra.mxu0 %v4970
        %v5082 = vpop.f32.mrf.mxu0
        %v5083 = vadd.f32 0.0, %v5082
        %5084 = vmatmul.f32.gmra.mxu0 %v4973
        %v5085 = vpop.f32.mrf.mxu0
        %v5086 = vadd.f32 0.0, %v5085
        %5087 = vmatmul.f32.gmra.mxu0 %v4976
        %v5088 = vpop.f32.mrf.mxu0
        %v5089 = vadd.f32 0.0, %v5088
        %5090 = vmatmul.f32.gmra.mxu0 %v4979
        %v5091 = vpop.f32.mrf.mxu0
        %v5092 = vadd.f32 0.0, %v5091
        %5093 = vmatmul.f32.gmra.mxu0 %v4982
        %v5094 = vpop.f32.mrf.mxu0
        %v5095 = vadd.f32 0.0, %v5094
        %5096 = vmatmul.f32.gmra.mxu0 %v4985
        %v5097 = vpop.f32.mrf.mxu0
        %v5098 = vadd.f32 0.0, %v5097
        %5099 = vmatmul.f32.gmra.mxu0 %v4988
        %v5100 = vpop.f32.mrf.mxu0
        %v5101 = vadd.f32 0.0, %v5100
        %5102 = vdwg.mxu0
        %5103 = vmatpush.msra.mxu0 0.0
        %5104 = vmatpush.msra.mxu0 0.0
        %5105 = vmatpush.msra.mxu0 0.0
        %5106 = vmatpush.msra.mxu0 0.0
        %5107 = vmatpush.msra.mxu0 0.0
        %5108 = vmatpush.msra.mxu0 0.0
        %5109 = vmatpush.msra.mxu0 0.0
        %5110 = vmatpush.msra.mxu0 0.0
        %5111 = vmatpush.msra.mxu0 0.0
        %5112 = vmatpush.msra.mxu0 0.0
        %5113 = vmatpush.msra.mxu0 0.0
        %5114 = vmatpush.msra.mxu0 0.0
        %5115 = vmatpush.msra.mxu0 0.0
        %5116 = vmatpush.msra.mxu0 0.0
        %5117 = vmatpush.msra.mxu0 0.0
        %5118 = vmatpush.msra.mxu0 %v4436
        %5119 = vmatmul.f32.gmra.mxu0 %v4895
        %v5120 = vpop.f32.mrf.mxu0
        %v5121 = vadd.f32 0.0, %v5120
        %5122 = vmatmul.f32.gmra.mxu0 %v4898
        %v5123 = vpop.f32.mrf.mxu0
        %v5124 = vadd.f32 0.0, %v5123
        %5125 = vmatmul.f32.gmra.mxu0 %v4901
        %v5126 = vpop.f32.mrf.mxu0
        %v5127 = vadd.f32 0.0, %v5126
        %5128 = vmatmul.f32.gmra.mxu0 %v4904
        %v5129 = vpop.f32.mrf.mxu0
        %v5130 = vadd.f32 0.0, %v5129
        %5131 = vmatmul.f32.gmra.mxu0 %v4907
        %v5132 = vpop.f32.mrf.mxu0
        %v5133 = vadd.f32 0.0, %v5132
        %5134 = vmatmul.f32.gmra.mxu0 %v4910
        %v5135 = vpop.f32.mrf.mxu0
        %v5136 = vadd.f32 0.0, %v5135
        %5137 = vmatmul.f32.gmra.mxu0 %v4913
        %v5138 = vpop.f32.mrf.mxu0
        %v5139 = vadd.f32 0.0, %v5138
        %5140 = vmatmul.f32.gmra.mxu0 %v4916
        %v5141 = vpop.f32.mrf.mxu0
        %v5142 = vadd.f32 0.0, %v5141
        %5143 = vmatmul.f32.gmra.mxu0 %v4919
        %v5144 = vpop.f32.mrf.mxu0
        %v5145 = vadd.f32 0.0, %v5144
        %5146 = vmatmul.f32.gmra.mxu0 %v4922
        %v5147 = vpop.f32.mrf.mxu0
        %v5148 = vadd.f32 0.0, %v5147
        %5149 = vmatmul.f32.gmra.mxu0 %v4925
        %v5150 = vpop.f32.mrf.mxu0
        %v5151 = vadd.f32 0.0, %v5150
        %5152 = vmatmul.f32.gmra.mxu0 %v4928
        %v5153 = vpop.f32.mrf.mxu0
        %v5154 = vadd.f32 0.0, %v5153
        %5155 = vmatmul.f32.gmra.mxu0 %v4931
        %v5156 = vpop.f32.mrf.mxu0
        %v5157 = vadd.f32 0.0, %v5156
        %5158 = vmatmul.f32.gmra.mxu0 %v4934
        %v5159 = vpop.f32.mrf.mxu0
        %v5160 = vadd.f32 0.0, %v5159
        %5161 = vmatmul.f32.gmra.mxu0 %v4937
        %v5162 = vpop.f32.mrf.mxu0
        %v5163 = vadd.f32 0.0, %v5162
        %5164 = vmatmul.f32.gmra.mxu0 %v4940
        %v5165 = vpop.f32.mrf.mxu0
        %v5166 = vadd.f32 0.0, %v5165
        %5167 = vmatmul.f32.gmra.mxu0 %v4943
        %v5168 = vpop.f32.mrf.mxu0
        %v5169 = vadd.f32 0.0, %v5168
        %5170 = vmatmul.f32.gmra.mxu0 %v4946
        %v5171 = vpop.f32.mrf.mxu0
        %v5172 = vadd.f32 0.0, %v5171
        %5173 = vmatmul.f32.gmra.mxu0 %v4949
        %v5174 = vpop.f32.mrf.mxu0
        %v5175 = vadd.f32 0.0, %v5174
        %5176 = vmatmul.f32.gmra.mxu0 %v4952
        %v5177 = vpop.f32.mrf.mxu0
        %v5178 = vadd.f32 0.0, %v5177
        %5179 = vmatmul.f32.gmra.mxu0 %v4955
        %v5180 = vpop.f32.mrf.mxu0
        %v5181 = vadd.f32 0.0, %v5180
        %5182 = vmatmul.f32.gmra.mxu0 %v4958
        %v5183 = vpop.f32.mrf.mxu0
        %v5184 = vadd.f32 0.0, %v5183
        %5185 = vmatmul.f32.gmra.mxu0 %v4961
        %v5186 = vpop.f32.mrf.mxu0
        %v5187 = vadd.f32 0.0, %v5186
        %5188 = vmatmul.f32.gmra.mxu0 %v4964
        %v5189 = vpop.f32.mrf.mxu0
        %v5190 = vadd.f32 0.0, %v5189
        %5191 = vmatmul.f32.gmra.mxu0 %v4967
        %v5192 = vpop.f32.mrf.mxu0
        %v5193 = vadd.f32 0.0, %v5192
        %5194 = vmatmul.f32.gmra.mxu0 %v4970
        %v5195 = vpop.f32.mrf.mxu0
        %v5196 = vadd.f32 0.0, %v5195
        %5197 = vmatmul.f32.gmra.mxu0 %v4973
        %v5198 = vpop.f32.mrf.mxu0
        %v5199 = vadd.f32 0.0, %v5198
        %5200 = vmatmul.f32.gmra.mxu0 %v4976
        %v5201 = vpop.f32.mrf.mxu0
        %v5202 = vadd.f32 0.0, %v5201
        %5203 = vmatmul.f32.gmra.mxu0 %v4979
        %v5204 = vpop.f32.mrf.mxu0
        %v5205 = vadd.f32 0.0, %v5204
        %5206 = vmatmul.f32.gmra.mxu0 %v4982
        %v5207 = vpop.f32.mrf.mxu0
        %v5208 = vadd.f32 0.0, %v5207
        %5209 = vmatmul.f32.gmra.mxu0 %v4985
        %v5210 = vpop.f32.mrf.mxu0
        %v5211 = vadd.f32 0.0, %v5210
        %5212 = vmatmul.f32.gmra.mxu0 %v4988
        %v5213 = vpop.f32.mrf.mxu0
        %v5214 = vadd.f32 0.0, %v5213
        %5215 = vdwg.mxu0
        %v5216 = vmax.f32 %v4622, %v4735
        %5217 = vmax.xlane.f32.xlu0 %v5216
        %v5218 = vpop.xlane.xlu0 %5217
        %v5219 = vmax.f32 %v4625, %v4738
        %5220 = vmax.xlane.f32.xlu0 %v5219
        %v5221 = vpop.xlane.xlu0 %5220
        %v5222 = vmax.f32 %v4628, %v4741
        %5223 = vmax.xlane.f32.xlu0 %v5222
        %v5224 = vpop.xlane.xlu0 %5223
        %v5225 = vmax.f32 %v4631, %v4744
        %5226 = vmax.xlane.f32.xlu0 %v5225
        %v5227 = vpop.xlane.xlu0 %5226
        %v5228 = vmax.f32 %v4634, %v4747
        %5229 = vmax.xlane.f32.xlu0 %v5228
        %v5230 = vpop.xlane.xlu0 %5229
        %v5231 = vmax.f32 %v4637, %v4750
        %5232 = vmax.xlane.f32.xlu0 %v5231
        %v5233 = vpop.xlane.xlu0 %5232
        %v5234 = vmax.f32 %v4640, %v4753
        %5235 = vmax.xlane.f32.xlu0 %v5234
        %v5236 = vpop.xlane.xlu0 %5235
        %v5237 = vmax.f32 %v4643, %v4756
        %5238 = vmax.xlane.f32.xlu0 %v5237
        %v5239 = vpop.xlane.xlu0 %5238
        %v5240 = vmax.f32 %v4646, %v4759
        %5241 = vmax.xlane.f32.xlu0 %v5240
        %v5242 = vpop.xlane.xlu0 %5241
        %v5243 = vmax.f32 %v4649, %v4762
        %5244 = vmax.xlane.f32.xlu0 %v5243
        %v5245 = vpop.xlane.xlu0 %5244
        %v5246 = vmax.f32 %v4652, %v4765
        %5247 = vmax.xlane.f32.xlu0 %v5246
        %v5248 = vpop.xlane.xlu0 %5247
        %v5249 = vmax.f32 %v4655, %v4768
        %5250 = vmax.xlane.f32.xlu0 %v5249
        %v5251 = vpop.xlane.xlu0 %5250
        %v5252 = vmax.f32 %v4658, %v4771
        %5253 = vmax.xlane.f32.xlu0 %v5252
        %v5254 = vpop.xlane.xlu0 %5253
        %v5255 = vmax.f32 %v4661, %v4774
        %5256 = vmax.xlane.f32.xlu0 %v5255
        %v5257 = vpop.xlane.xlu0 %5256
        %v5258 = vmax.f32 %v4664, %v4777
        %5259 = vmax.xlane.f32.xlu0 %v5258
        %v5260 = vpop.xlane.xlu0 %5259
        %v5261 = vmax.f32 %v4667, %v4780
        %5262 = vmax.xlane.f32.xlu0 %v5261
        %v5263 = vpop.xlane.xlu0 %5262
        %v5264 = vmax.f32 %v4670, %v4783
        %5265 = vmax.xlane.f32.xlu0 %v5264
        %v5266 = vpop.xlane.xlu0 %5265
        %v5267 = vmax.f32 %v4673, %v4786
        %5268 = vmax.xlane.f32.xlu0 %v5267
        %v5269 = vpop.xlane.xlu0 %5268
        %v5270 = vmax.f32 %v4676, %v4789
        %5271 = vmax.xlane.f32.xlu0 %v5270
        %v5272 = vpop.xlane.xlu0 %5271
        %v5273 = vmax.f32 %v4679, %v4792
        %5274 = vmax.xlane.f32.xlu0 %v5273
        %v5275 = vpop.xlane.xlu0 %5274
        %v5276 = vmax.f32 %v4682, %v4795
        %5277 = vmax.xlane.f32.xlu0 %v5276
        %v5278 = vpop.xlane.xlu0 %5277
        %v5279 = vmax.f32 %v4685, %v4798
        %5280 = vmax.xlane.f32.xlu0 %v5279
        %v5281 = vpop.xlane.xlu0 %5280
        %v5282 = vmax.f32 %v4688, %v4801
        %5283 = vmax.xlane.f32.xlu0 %v5282
        %v5284 = vpop.xlane.xlu0 %5283
        %v5285 = vmax.f32 %v4691, %v4804
        %5286 = vmax.xlane.f32.xlu0 %v5285
        %v5287 = vpop.xlane.xlu0 %5286
        %v5288 = vmax.f32 %v4694, %v4807
        %5289 = vmax.xlane.f32.xlu0 %v5288
        %v5290 = vpop.xlane.xlu0 %5289
        %v5291 = vmax.f32 %v4697, %v4810
        %5292 = vmax.xlane.f32.xlu0 %v5291
        %v5293 = vpop.xlane.xlu0 %5292
        %v5294 = vmax.f32 %v4700, %v4813
        %5295 = vmax.xlane.f32.xlu0 %v5294
        %v5296 = vpop.xlane.xlu0 %5295
        %v5297 = vmax.f32 %v4703, %v4816
        %5298 = vmax.xlane.f32.xlu0 %v5297
        %v5299 = vpop.xlane.xlu0 %5298
        %v5300 = vmax.f32 %v4706, %v4819
        %5301 = vmax.xlane.f32.xlu0 %v5300
        %v5302 = vpop.xlane.xlu0 %5301
        %v5303 = vmax.f32 %v4709, %v4822
        %5304 = vmax.xlane.f32.xlu0 %v5303
        %v5305 = vpop.xlane.xlu0 %5304
        %v5306 = vmax.f32 %v4712, %v4825
        %5307 = vmax.xlane.f32.xlu0 %v5306
        %v5308 = vpop.xlane.xlu0 %5307
        %v5309 = vmax.f32 %v4715, %v4828
        %5310 = vmax.xlane.f32.xlu0 %v5309
        %v5311 = vpop.xlane.xlu0 %5310
        %v5312 = vmax.f32 %v5008, %v5121
        %5313 = vmax.xlane.f32.xlu0 %v5312
        %v5314 = vpop.xlane.xlu0 %5313
        %v5315 = vmax.f32 %v5011, %v5124
        %5316 = vmax.xlane.f32.xlu0 %v5315
        %v5317 = vpop.xlane.xlu0 %5316
        %v5318 = vmax.f32 %v5014, %v5127
        %5319 = vmax.xlane.f32.xlu0 %v5318
        %v5320 = vpop.xlane.xlu0 %5319
        %v5321 = vmax.f32 %v5017, %v5130
        %5322 = vmax.xlane.f32.xlu0 %v5321
        %v5323 = vpop.xlane.xlu0 %5322
        %v5324 = vmax.f32 %v5020, %v5133
        %5325 = vmax.xlane.f32.xlu0 %v5324
        %v5326 = vpop.xlane.xlu0 %5325
        %v5327 = vmax.f32 %v5023, %v5136
        %5328 = vmax.xlane.f32.xlu0 %v5327
        %v5329 = vpop.xlane.xlu0 %5328
        %v5330 = vmax.f32 %v5026, %v5139
        %5331 = vmax.xlane.f32.xlu0 %v5330
        %v5332 = vpop.xlane.xlu0 %5331
        %v5333 = vmax.f32 %v5029, %v5142
        %5334 = vmax.xlane.f32.xlu0 %v5333
        %v5335 = vpop.xlane.xlu0 %5334
        %v5336 = vmax.f32 %v5032, %v5145
        %5337 = vmax.xlane.f32.xlu0 %v5336
        %v5338 = vpop.xlane.xlu0 %5337
        %v5339 = vmax.f32 %v5035, %v5148
        %5340 = vmax.xlane.f32.xlu0 %v5339
        %v5341 = vpop.xlane.xlu0 %5340
        %v5342 = vmax.f32 %v5038, %v5151
        %5343 = vmax.xlane.f32.xlu0 %v5342
        %v5344 = vpop.xlane.xlu0 %5343
        %v5345 = vmax.f32 %v5041, %v5154
        %5346 = vmax.xlane.f32.xlu0 %v5345
        %v5347 = vpop.xlane.xlu0 %5346
        %v5348 = vmax.f32 %v5044, %v5157
        %5349 = vmax.xlane.f32.xlu0 %v5348
        %v5350 = vpop.xlane.xlu0 %5349
        %v5351 = vmax.f32 %v5047, %v5160
        %5352 = vmax.xlane.f32.xlu0 %v5351
        %v5353 = vpop.xlane.xlu0 %5352
        %v5354 = vmax.f32 %v5050, %v5163
        %5355 = vmax.xlane.f32.xlu0 %v5354
        %v5356 = vpop.xlane.xlu0 %5355
        %v5357 = vmax.f32 %v5053, %v5166
        %5358 = vmax.xlane.f32.xlu0 %v5357
        %v5359 = vpop.xlane.xlu0 %5358
        %v5360 = vmax.f32 %v5056, %v5169
        %5361 = vmax.xlane.f32.xlu0 %v5360
        %v5362 = vpop.xlane.xlu0 %5361
        %v5363 = vmax.f32 %v5059, %v5172
        %5364 = vmax.xlane.f32.xlu0 %v5363
        %v5365 = vpop.xlane.xlu0 %5364
        %v5366 = vmax.f32 %v5062, %v5175
        %5367 = vmax.xlane.f32.xlu0 %v5366
        %v5368 = vpop.xlane.xlu0 %5367
        %v5369 = vmax.f32 %v5065, %v5178
        %5370 = vmax.xlane.f32.xlu0 %v5369
        %v5371 = vpop.xlane.xlu0 %5370
        %v5372 = vmax.f32 %v5068, %v5181
        %5373 = vmax.xlane.f32.xlu0 %v5372
        %v5374 = vpop.xlane.xlu0 %5373
        %v5375 = vmax.f32 %v5071, %v5184
        %5376 = vmax.xlane.f32.xlu0 %v5375
        %v5377 = vpop.xlane.xlu0 %5376
        %v5378 = vmax.f32 %v5074, %v5187
        %5379 = vmax.xlane.f32.xlu0 %v5378
        %v5380 = vpop.xlane.xlu0 %5379
        %v5381 = vmax.f32 %v5077, %v5190
        %5382 = vmax.xlane.f32.xlu0 %v5381
        %v5383 = vpop.xlane.xlu0 %5382
        %v5384 = vmax.f32 %v5080, %v5193
        %5385 = vmax.xlane.f32.xlu0 %v5384
        %v5386 = vpop.xlane.xlu0 %5385
        %v5387 = vmax.f32 %v5083, %v5196
        %5388 = vmax.xlane.f32.xlu0 %v5387
        %v5389 = vpop.xlane.xlu0 %5388
        %v5390 = vmax.f32 %v5086, %v5199
        %5391 = vmax.xlane.f32.xlu0 %v5390
        %v5392 = vpop.xlane.xlu0 %5391
        %v5393 = vmax.f32 %v5089, %v5202
        %5394 = vmax.xlane.f32.xlu0 %v5393
        %v5395 = vpop.xlane.xlu0 %5394
        %v5396 = vmax.f32 %v5092, %v5205
        %5397 = vmax.xlane.f32.xlu0 %v5396
        %v5398 = vpop.xlane.xlu0 %5397
        %v5399 = vmax.f32 %v5095, %v5208
        %5400 = vmax.xlane.f32.xlu0 %v5399
        %v5401 = vpop.xlane.xlu0 %5400
        %v5402 = vmax.f32 %v5098, %v5211
        %5403 = vmax.xlane.f32.xlu0 %v5402
        %v5404 = vpop.xlane.xlu0 %5403
        %v5405 = vmax.f32 %v5101, %v5214
        %5406 = vmax.xlane.f32.xlu0 %v5405
        %v5407 = vpop.xlane.xlu0 %5406
        %v5408 = vsub.f32 %v4622, %v5218
        %v5409 = vsub.f32 %v4735, %v5218
        %v5410 = vsub.f32 %v4625, %v5221
        %v5411 = vsub.f32 %v4738, %v5221
        %v5412 = vsub.f32 %v4628, %v5224
        %v5413 = vsub.f32 %v4741, %v5224
        %v5414 = vsub.f32 %v4631, %v5227
        %v5415 = vsub.f32 %v4744, %v5227
        %v5416 = vsub.f32 %v4634, %v5230
        %v5417 = vsub.f32 %v4747, %v5230
        %v5418 = vsub.f32 %v4637, %v5233
        %v5419 = vsub.f32 %v4750, %v5233
        %v5420 = vsub.f32 %v4640, %v5236
        %v5421 = vsub.f32 %v4753, %v5236
        %v5422 = vsub.f32 %v4643, %v5239
        %v5423 = vsub.f32 %v4756, %v5239
        %v5424 = vsub.f32 %v4646, %v5242
        %v5425 = vsub.f32 %v4759, %v5242
        %v5426 = vsub.f32 %v4649, %v5245
        %v5427 = vsub.f32 %v4762, %v5245
        %v5428 = vsub.f32 %v4652, %v5248
        %v5429 = vsub.f32 %v4765, %v5248
        %v5430 = vsub.f32 %v4655, %v5251
        %v5431 = vsub.f32 %v4768, %v5251
        %v5432 = vsub.f32 %v4658, %v5254
        %v5433 = vsub.f32 %v4771, %v5254
        %v5434 = vsub.f32 %v4661, %v5257
        %v5435 = vsub.f32 %v4774, %v5257
        %v5436 = vsub.f32 %v4664, %v5260
        %v5437 = vsub.f32 %v4777, %v5260
        %v5438 = vsub.f32 %v4667, %v5263
        %v5439 = vsub.f32 %v4780, %v5263
        %v5440 = vsub.f32 %v4670, %v5266
        %v5441 = vsub.f32 %v4783, %v5266
        %v5442 = vsub.f32 %v4673, %v5269
        %v5443 = vsub.f32 %v4786, %v5269
        %v5444 = vsub.f32 %v4676, %v5272
        %v5445 = vsub.f32 %v4789, %v5272
        %v5446 = vsub.f32 %v4679, %v5275
        %v5447 = vsub.f32 %v4792, %v5275
        %v5448 = vsub.f32 %v4682, %v5278
        %v5449 = vsub.f32 %v4795, %v5278
        %v5450 = vsub.f32 %v4685, %v5281
        %v5451 = vsub.f32 %v4798, %v5281
        %v5452 = vsub.f32 %v4688, %v5284
        %v5453 = vsub.f32 %v4801, %v5284
        %v5454 = vsub.f32 %v4691, %v5287
        %v5455 = vsub.f32 %v4804, %v5287
        %v5456 = vsub.f32 %v4694, %v5290
        %v5457 = vsub.f32 %v4807, %v5290
        %v5458 = vsub.f32 %v4697, %v5293
        %v5459 = vsub.f32 %v4810, %v5293
        %v5460 = vsub.f32 %v4700, %v5296
        %v5461 = vsub.f32 %v4813, %v5296
        %v5462 = vsub.f32 %v4703, %v5299
        %v5463 = vsub.f32 %v4816, %v5299
        %v5464 = vsub.f32 %v4706, %v5302
        %v5465 = vsub.f32 %v4819, %v5302
        %v5466 = vsub.f32 %v4709, %v5305
        %v5467 = vsub.f32 %v4822, %v5305
        %v5468 = vsub.f32 %v4712, %v5308
        %v5469 = vsub.f32 %v4825, %v5308
        %v5470 = vsub.f32 %v4715, %v5311
        %v5471 = vsub.f32 %v4828, %v5311
        %v5472 = vsub.f32 %v5008, %v5314
        %v5473 = vsub.f32 %v5121, %v5314
        %v5474 = vsub.f32 %v5011, %v5317
        %v5475 = vsub.f32 %v5124, %v5317
        %v5476 = vsub.f32 %v5014, %v5320
        %v5477 = vsub.f32 %v5127, %v5320
        %v5478 = vsub.f32 %v5017, %v5323
        %v5479 = vsub.f32 %v5130, %v5323
        %v5480 = vsub.f32 %v5020, %v5326
        %v5481 = vsub.f32 %v5133, %v5326
        %v5482 = vsub.f32 %v5023, %v5329
        %v5483 = vsub.f32 %v5136, %v5329
        %v5484 = vsub.f32 %v5026, %v5332
        %v5485 = vsub.f32 %v5139, %v5332
        %v5486 = vsub.f32 %v5029, %v5335
        %v5487 = vsub.f32 %v5142, %v5335
        %v5488 = vsub.f32 %v5032, %v5338
        %v5489 = vsub.f32 %v5145, %v5338
        %v5490 = vsub.f32 %v5035, %v5341
        %v5491 = vsub.f32 %v5148, %v5341
        %v5492 = vsub.f32 %v5038, %v5344
        %v5493 = vsub.f32 %v5151, %v5344
        %v5494 = vsub.f32 %v5041, %v5347
        %v5495 = vsub.f32 %v5154, %v5347
        %v5496 = vsub.f32 %v5044, %v5350
        %v5497 = vsub.f32 %v5157, %v5350
        %v5498 = vsub.f32 %v5047, %v5353
        %v5499 = vsub.f32 %v5160, %v5353
        %v5500 = vsub.f32 %v5050, %v5356
        %v5501 = vsub.f32 %v5163, %v5356
        %v5502 = vsub.f32 %v5053, %v5359
        %v5503 = vsub.f32 %v5166, %v5359
        %v5504 = vsub.f32 %v5056, %v5362
        %v5505 = vsub.f32 %v5169, %v5362
        %v5506 = vsub.f32 %v5059, %v5365
        %v5507 = vsub.f32 %v5172, %v5365
        %v5508 = vsub.f32 %v5062, %v5368
        %v5509 = vsub.f32 %v5175, %v5368
        %v5510 = vsub.f32 %v5065, %v5371
        %v5511 = vsub.f32 %v5178, %v5371
        %v5512 = vsub.f32 %v5068, %v5374
        %v5513 = vsub.f32 %v5181, %v5374
        %v5514 = vsub.f32 %v5071, %v5377
        %v5515 = vsub.f32 %v5184, %v5377
        %v5516 = vsub.f32 %v5074, %v5380
        %v5517 = vsub.f32 %v5187, %v5380
        %v5518 = vsub.f32 %v5077, %v5383
        %v5519 = vsub.f32 %v5190, %v5383
        %v5520 = vsub.f32 %v5080, %v5386
        %v5521 = vsub.f32 %v5193, %v5386
        %v5522 = vsub.f32 %v5083, %v5389
        %v5523 = vsub.f32 %v5196, %v5389
        %v5524 = vsub.f32 %v5086, %v5392
        %v5525 = vsub.f32 %v5199, %v5392
        %v5526 = vsub.f32 %v5089, %v5395
        %v5527 = vsub.f32 %v5202, %v5395
        %v5528 = vsub.f32 %v5092, %v5398
        %v5529 = vsub.f32 %v5205, %v5398
        %v5530 = vsub.f32 %v5095, %v5401
        %v5531 = vsub.f32 %v5208, %v5401
        %v5532 = vsub.f32 %v5098, %v5404
        %v5533 = vsub.f32 %v5211, %v5404
        %v5534 = vsub.f32 %v5101, %v5407
        %v5535 = vsub.f32 %v5214, %v5407
        %v5536 = vmul.f32 %v5408, 1.442695
        %v5537 = vpow.pop %v5536
        %v5538 = vmul.f32 %v5409, 1.442695
        %v5539 = vpow.pop %v5538
        %v5540 = vmul.f32 %v5410, 1.442695
        %v5541 = vpow.pop %v5540
        %v5542 = vmul.f32 %v5411, 1.442695
        %v5543 = vpow.pop %v5542
        %v5544 = vmul.f32 %v5412, 1.442695
        %v5545 = vpow.pop %v5544
        %v5546 = vmul.f32 %v5413, 1.442695
        %v5547 = vpow.pop %v5546
        %v5548 = vmul.f32 %v5414, 1.442695
        %v5549 = vpow.pop %v5548
        %v5550 = vmul.f32 %v5415, 1.442695
        %v5551 = vpow.pop %v5550
        %v5552 = vmul.f32 %v5416, 1.442695
        %v5553 = vpow.pop %v5552
        %v5554 = vmul.f32 %v5417, 1.442695
        %v5555 = vpow.pop %v5554
        %v5556 = vmul.f32 %v5418, 1.442695
        %v5557 = vpow.pop %v5556
        %v5558 = vmul.f32 %v5419, 1.442695
        %v5559 = vpow.pop %v5558
        %v5560 = vmul.f32 %v5420, 1.442695
        %v5561 = vpow.pop %v5560
        %v5562 = vmul.f32 %v5421, 1.442695
        %v5563 = vpow.pop %v5562
        %v5564 = vmul.f32 %v5422, 1.442695
        %v5565 = vpow.pop %v5564
        %v5566 = vmul.f32 %v5423, 1.442695
        %v5567 = vpow.pop %v5566
        %v5568 = vmul.f32 %v5424, 1.442695
        %v5569 = vpow.pop %v5568
        %v5570 = vmul.f32 %v5425, 1.442695
        %v5571 = vpow.pop %v5570
        %v5572 = vmul.f32 %v5426, 1.442695
        %v5573 = vpow.pop %v5572
        %v5574 = vmul.f32 %v5427, 1.442695
        %v5575 = vpow.pop %v5574
        %v5576 = vmul.f32 %v5428, 1.442695
        %v5577 = vpow.pop %v5576
        %v5578 = vmul.f32 %v5429, 1.442695
        %v5579 = vpow.pop %v5578
        %v5580 = vmul.f32 %v5430, 1.442695
        %v5581 = vpow.pop %v5580
        %v5582 = vmul.f32 %v5431, 1.442695
        %v5583 = vpow.pop %v5582
        %v5584 = vmul.f32 %v5432, 1.442695
        %v5585 = vpow.pop %v5584
        %v5586 = vmul.f32 %v5433, 1.442695
        %v5587 = vpow.pop %v5586
        %v5588 = vmul.f32 %v5434, 1.442695
        %v5589 = vpow.pop %v5588
        %v5590 = vmul.f32 %v5435, 1.442695
        %v5591 = vpow.pop %v5590
        %v5592 = vmul.f32 %v5436, 1.442695
        %v5593 = vpow.pop %v5592
        %v5594 = vmul.f32 %v5437, 1.442695
        %v5595 = vpow.pop %v5594
        %v5596 = vmul.f32 %v5438, 1.442695
        %v5597 = vpow.pop %v5596
        %v5598 = vmul.f32 %v5439, 1.442695
        %v5599 = vpow.pop %v5598
        %v5600 = vmul.f32 %v5440, 1.442695
        %v5601 = vpow.pop %v5600
        %v5602 = vmul.f32 %v5441, 1.442695
        %v5603 = vpow.pop %v5602
        %v5604 = vmul.f32 %v5442, 1.442695
        %v5605 = vpow.pop %v5604
        %v5606 = vmul.f32 %v5443, 1.442695
        %v5607 = vpow.pop %v5606
        %v5608 = vmul.f32 %v5444, 1.442695
        %v5609 = vpow.pop %v5608
        %v5610 = vmul.f32 %v5445, 1.442695
        %v5611 = vpow.pop %v5610
        %v5612 = vmul.f32 %v5446, 1.442695
        %v5613 = vpow.pop %v5612
        %v5614 = vmul.f32 %v5447, 1.442695
        %v5615 = vpow.pop %v5614
        %v5616 = vmul.f32 %v5448, 1.442695
        %v5617 = vpow.pop %v5616
        %v5618 = vmul.f32 %v5449, 1.442695
        %v5619 = vpow.pop %v5618
        %v5620 = vmul.f32 %v5450, 1.442695
        %v5621 = vpow.pop %v5620
        %v5622 = vmul.f32 %v5451, 1.442695
        %v5623 = vpow.pop %v5622
        %v5624 = vmul.f32 %v5452, 1.442695
        %v5625 = vpow.pop %v5624
        %v5626 = vmul.f32 %v5453, 1.442695
        %v5627 = vpow.pop %v5626
        %v5628 = vmul.f32 %v5454, 1.442695
        %v5629 = vpow.pop %v5628
        %v5630 = vmul.f32 %v5455, 1.442695
        %v5631 = vpow.pop %v5630
        %v5632 = vmul.f32 %v5456, 1.442695
        %v5633 = vpow.pop %v5632
        %v5634 = vmul.f32 %v5457, 1.442695
        %v5635 = vpow.pop %v5634
        %v5636 = vmul.f32 %v5458, 1.442695
        %v5637 = vpow.pop %v5636
        %v5638 = vmul.f32 %v5459, 1.442695
        %v5639 = vpow.pop %v5638
        %v5640 = vmul.f32 %v5460, 1.442695
        %v5641 = vpow.pop %v5640
        %v5642 = vmul.f32 %v5461, 1.442695
        %v5643 = vpow.pop %v5642
        %v5644 = vmul.f32 %v5462, 1.442695
        %v5645 = vpow.pop %v5644
        %v5646 = vmul.f32 %v5463, 1.442695
        %v5647 = vpow.pop %v5646
        %v5648 = vmul.f32 %v5464, 1.442695
        %v5649 = vpow.pop %v5648
        %v5650 = vmul.f32 %v5465, 1.442695
        %v5651 = vpow.pop %v5650
        %v5652 = vmul.f32 %v5466, 1.442695
        %v5653 = vpow.pop %v5652
        %v5654 = vmul.f32 %v5467, 1.442695
        %v5655 = vpow.pop %v5654
        %v5656 = vmul.f32 %v5468, 1.442695
        %v5657 = vpow.pop %v5656
        %v5658 = vmul.f32 %v5469, 1.442695
        %v5659 = vpow.pop %v5658
        %v5660 = vmul.f32 %v5470, 1.442695
        %v5661 = vpow.pop %v5660
        %v5662 = vmul.f32 %v5471, 1.442695
        %v5663 = vpow.pop %v5662
        %v5664 = vmul.f32 %v5472, 1.442695
        %v5665 = vpow.pop %v5664
        %v5666 = vmul.f32 %v5473, 1.442695
        %v5667 = vpow.pop %v5666
        %v5668 = vmul.f32 %v5474, 1.442695
        %v5669 = vpow.pop %v5668
        %v5670 = vmul.f32 %v5475, 1.442695
        %v5671 = vpow.pop %v5670
        %v5672 = vmul.f32 %v5476, 1.442695
        %v5673 = vpow.pop %v5672
        %v5674 = vmul.f32 %v5477, 1.442695
        %v5675 = vpow.pop %v5674
        %v5676 = vmul.f32 %v5478, 1.442695
        %v5677 = vpow.pop %v5676
        %v5678 = vmul.f32 %v5479, 1.442695
        %v5679 = vpow.pop %v5678
        %v5680 = vmul.f32 %v5480, 1.442695
        %v5681 = vpow.pop %v5680
        %v5682 = vmul.f32 %v5481, 1.442695
        %v5683 = vpow.pop %v5682
        %v5684 = vmul.f32 %v5482, 1.442695
        %v5685 = vpow.pop %v5684
        %v5686 = vmul.f32 %v5483, 1.442695
        %v5687 = vpow.pop %v5686
        %v5688 = vmul.f32 %v5484, 1.442695
        %v5689 = vpow.pop %v5688
        %v5690 = vmul.f32 %v5485, 1.442695
        %v5691 = vpow.pop %v5690
        %v5692 = vmul.f32 %v5486, 1.442695
        %v5693 = vpow.pop %v5692
        %v5694 = vmul.f32 %v5487, 1.442695
        %v5695 = vpow.pop %v5694
        %v5696 = vmul.f32 %v5488, 1.442695
        %v5697 = vpow.pop %v5696
        %v5698 = vmul.f32 %v5489, 1.442695
        %v5699 = vpow.pop %v5698
        %v5700 = vmul.f32 %v5490, 1.442695
        %v5701 = vpow.pop %v5700
        %v5702 = vmul.f32 %v5491, 1.442695
        %v5703 = vpow.pop %v5702
        %v5704 = vmul.f32 %v5492, 1.442695
        %v5705 = vpow.pop %v5704
        %v5706 = vmul.f32 %v5493, 1.442695
        %v5707 = vpow.pop %v5706
        %v5708 = vmul.f32 %v5494, 1.442695
        %v5709 = vpow.pop %v5708
        %v5710 = vmul.f32 %v5495, 1.442695
        %v5711 = vpow.pop %v5710
        %v5712 = vmul.f32 %v5496, 1.442695
        %v5713 = vpow.pop %v5712
        %v5714 = vmul.f32 %v5497, 1.442695
        %v5715 = vpow.pop %v5714
        %v5716 = vmul.f32 %v5498, 1.442695
        %v5717 = vpow.pop %v5716
        %v5718 = vmul.f32 %v5499, 1.442695
        %v5719 = vpow.pop %v5718
        %v5720 = vmul.f32 %v5500, 1.442695
        %v5721 = vpow.pop %v5720
        %v5722 = vmul.f32 %v5501, 1.442695
        %v5723 = vpow.pop %v5722
        %v5724 = vmul.f32 %v5502, 1.442695
        %v5725 = vpow.pop %v5724
        %v5726 = vmul.f32 %v5503, 1.442695
        %v5727 = vpow.pop %v5726
        %v5728 = vmul.f32 %v5504, 1.442695
        %v5729 = vpow.pop %v5728
        %v5730 = vmul.f32 %v5505, 1.442695
        %v5731 = vpow.pop %v5730
        %v5732 = vmul.f32 %v5506, 1.442695
        %v5733 = vpow.pop %v5732
        %v5734 = vmul.f32 %v5507, 1.442695
        %v5735 = vpow.pop %v5734
        %v5736 = vmul.f32 %v5508, 1.442695
        %v5737 = vpow.pop %v5736
        %v5738 = vmul.f32 %v5509, 1.442695
        %v5739 = vpow.pop %v5738
        %v5740 = vmul.f32 %v5510, 1.442695
        %v5741 = vpow.pop %v5740
        %v5742 = vmul.f32 %v5511, 1.442695
        %v5743 = vpow.pop %v5742
        %v5744 = vmul.f32 %v5512, 1.442695
        %v5745 = vpow.pop %v5744
        %v5746 = vmul.f32 %v5513, 1.442695
        %v5747 = vpow.pop %v5746
        %v5748 = vmul.f32 %v5514, 1.442695
        %v5749 = vpow.pop %v5748
        %v5750 = vmul.f32 %v5515, 1.442695
        %v5751 = vpow.pop %v5750
        %v5752 = vmul.f32 %v5516, 1.442695
        %v5753 = vpow.pop %v5752
        %v5754 = vmul.f32 %v5517, 1.442695
        %v5755 = vpow.pop %v5754
        %v5756 = vmul.f32 %v5518, 1.442695
        %v5757 = vpow.pop %v5756
        %v5758 = vmul.f32 %v5519, 1.442695
        %v5759 = vpow.pop %v5758
        %v5760 = vmul.f32 %v5520, 1.442695
        %v5761 = vpow.pop %v5760
        %v5762 = vmul.f32 %v5521, 1.442695
        %v5763 = vpow.pop %v5762
        %v5764 = vmul.f32 %v5522, 1.442695
        %v5765 = vpow.pop %v5764
        %v5766 = vmul.f32 %v5523, 1.442695
        %v5767 = vpow.pop %v5766
        %v5768 = vmul.f32 %v5524, 1.442695
        %v5769 = vpow.pop %v5768
        %v5770 = vmul.f32 %v5525, 1.442695
        %v5771 = vpow.pop %v5770
        %v5772 = vmul.f32 %v5526, 1.442695
        %v5773 = vpow.pop %v5772
        %v5774 = vmul.f32 %v5527, 1.442695
        %v5775 = vpow.pop %v5774
        %v5776 = vmul.f32 %v5528, 1.442695
        %v5777 = vpow.pop %v5776
        %v5778 = vmul.f32 %v5529, 1.442695
        %v5779 = vpow.pop %v5778
        %v5780 = vmul.f32 %v5530, 1.442695
        %v5781 = vpow.pop %v5780
        %v5782 = vmul.f32 %v5531, 1.442695
        %v5783 = vpow.pop %v5782
        %v5784 = vmul.f32 %v5532, 1.442695
        %v5785 = vpow.pop %v5784
        %v5786 = vmul.f32 %v5533, 1.442695
        %v5787 = vpow.pop %v5786
        %v5788 = vmul.f32 %v5534, 1.442695
        %v5789 = vpow.pop %v5788
        %v5790 = vmul.f32 %v5535, 1.442695
        %v5791 = vpow.pop %v5790
        %v5792 = vadd.f32 %v5537, %v5539
        %5793 = vadd.xlane.f32.xlu0 %v5792
        %v5794 = vpop.xlane.xlu0 %5793
        %v5795 = vadd.f32 %v5541, %v5543
        %5796 = vadd.xlane.f32.xlu0 %v5795
        %v5797 = vpop.xlane.xlu0 %5796
        %v5798 = vadd.f32 %v5545, %v5547
        %5799 = vadd.xlane.f32.xlu0 %v5798
        %v5800 = vpop.xlane.xlu0 %5799
        %v5801 = vadd.f32 %v5549, %v5551
        %5802 = vadd.xlane.f32.xlu0 %v5801
        %v5803 = vpop.xlane.xlu0 %5802
        %v5804 = vadd.f32 %v5553, %v5555
        %5805 = vadd.xlane.f32.xlu0 %v5804
        %v5806 = vpop.xlane.xlu0 %5805
        %v5807 = vadd.f32 %v5557, %v5559
        %5808 = vadd.xlane.f32.xlu0 %v5807
        %v5809 = vpop.xlane.xlu0 %5808
        %v5810 = vadd.f32 %v5561, %v5563
        %5811 = vadd.xlane.f32.xlu0 %v5810
        %v5812 = vpop.xlane.xlu0 %5811
        %v5813 = vadd.f32 %v5565, %v5567
        %5814 = vadd.xlane.f32.xlu0 %v5813
        %v5815 = vpop.xlane.xlu0 %5814
        %v5816 = vadd.f32 %v5569, %v5571
        %5817 = vadd.xlane.f32.xlu0 %v5816
        %v5818 = vpop.xlane.xlu0 %5817
        %v5819 = vadd.f32 %v5573, %v5575
        %5820 = vadd.xlane.f32.xlu0 %v5819
        %v5821 = vpop.xlane.xlu0 %5820
        %v5822 = vadd.f32 %v5577, %v5579
        %5823 = vadd.xlane.f32.xlu0 %v5822
        %v5824 = vpop.xlane.xlu0 %5823
        %v5825 = vadd.f32 %v5581, %v5583
        %5826 = vadd.xlane.f32.xlu0 %v5825
        %v5827 = vpop.xlane.xlu0 %5826
        %v5828 = vadd.f32 %v5585, %v5587
        %5829 = vadd.xlane.f32.xlu0 %v5828
        %v5830 = vpop.xlane.xlu0 %5829
        %v5831 = vadd.f32 %v5589, %v5591
        %5832 = vadd.xlane.f32.xlu0 %v5831
        %v5833 = vpop.xlane.xlu0 %5832
        %v5834 = vadd.f32 %v5593, %v5595
        %5835 = vadd.xlane.f32.xlu0 %v5834
        %v5836 = vpop.xlane.xlu0 %5835
        %v5837 = vadd.f32 %v5597, %v5599
        %5838 = vadd.xlane.f32.xlu0 %v5837
        %v5839 = vpop.xlane.xlu0 %5838
        %v5840 = vadd.f32 %v5601, %v5603
        %5841 = vadd.xlane.f32.xlu0 %v5840
        %v5842 = vpop.xlane.xlu0 %5841
        %v5843 = vadd.f32 %v5605, %v5607
        %5844 = vadd.xlane.f32.xlu0 %v5843
        %v5845 = vpop.xlane.xlu0 %5844
        %v5846 = vadd.f32 %v5609, %v5611
        %5847 = vadd.xlane.f32.xlu0 %v5846
        %v5848 = vpop.xlane.xlu0 %5847
        %v5849 = vadd.f32 %v5613, %v5615
        %5850 = vadd.xlane.f32.xlu0 %v5849
        %v5851 = vpop.xlane.xlu0 %5850
        %v5852 = vadd.f32 %v5617, %v5619
        %5853 = vadd.xlane.f32.xlu0 %v5852
        %v5854 = vpop.xlane.xlu0 %5853
        %v5855 = vadd.f32 %v5621, %v5623
        %5856 = vadd.xlane.f32.xlu0 %v5855
        %v5857 = vpop.xlane.xlu0 %5856
        %v5858 = vadd.f32 %v5625, %v5627
        %5859 = vadd.xlane.f32.xlu0 %v5858
        %v5860 = vpop.xlane.xlu0 %5859
        %v5861 = vadd.f32 %v5629, %v5631
        %5862 = vadd.xlane.f32.xlu0 %v5861
        %v5863 = vpop.xlane.xlu0 %5862
        %v5864 = vadd.f32 %v5633, %v5635
        %5865 = vadd.xlane.f32.xlu0 %v5864
        %v5866 = vpop.xlane.xlu0 %5865
        %v5867 = vadd.f32 %v5637, %v5639
        %5868 = vadd.xlane.f32.xlu0 %v5867
        %v5869 = vpop.xlane.xlu0 %5868
        %v5870 = vadd.f32 %v5641, %v5643
        %5871 = vadd.xlane.f32.xlu0 %v5870
        %v5872 = vpop.xlane.xlu0 %5871
        %v5873 = vadd.f32 %v5645, %v5647
        %5874 = vadd.xlane.f32.xlu0 %v5873
        %v5875 = vpop.xlane.xlu0 %5874
        %v5876 = vadd.f32 %v5649, %v5651
        %5877 = vadd.xlane.f32.xlu0 %v5876
        %v5878 = vpop.xlane.xlu0 %5877
        %v5879 = vadd.f32 %v5653, %v5655
        %5880 = vadd.xlane.f32.xlu0 %v5879
        %v5881 = vpop.xlane.xlu0 %5880
        %v5882 = vadd.f32 %v5657, %v5659
        %5883 = vadd.xlane.f32.xlu0 %v5882
        %v5884 = vpop.xlane.xlu0 %5883
        %v5885 = vadd.f32 %v5661, %v5663
        %5886 = vadd.xlane.f32.xlu0 %v5885
        %v5887 = vpop.xlane.xlu0 %5886
        %v5888 = vadd.f32 %v5665, %v5667
        %5889 = vadd.xlane.f32.xlu0 %v5888
        %v5890 = vpop.xlane.xlu0 %5889
        %v5891 = vadd.f32 %v5669, %v5671
        %5892 = vadd.xlane.f32.xlu0 %v5891
        %v5893 = vpop.xlane.xlu0 %5892
        %v5894 = vadd.f32 %v5673, %v5675
        %5895 = vadd.xlane.f32.xlu0 %v5894
        %v5896 = vpop.xlane.xlu0 %5895
        %v5897 = vadd.f32 %v5677, %v5679
        %5898 = vadd.xlane.f32.xlu0 %v5897
        %v5899 = vpop.xlane.xlu0 %5898
        %v5900 = vadd.f32 %v5681, %v5683
        %5901 = vadd.xlane.f32.xlu0 %v5900
        %v5902 = vpop.xlane.xlu0 %5901
        %v5903 = vadd.f32 %v5685, %v5687
        %5904 = vadd.xlane.f32.xlu0 %v5903
        %v5905 = vpop.xlane.xlu0 %5904
        %v5906 = vadd.f32 %v5689, %v5691
        %5907 = vadd.xlane.f32.xlu0 %v5906
        %v5908 = vpop.xlane.xlu0 %5907
        %v5909 = vadd.f32 %v5693, %v5695
        %5910 = vadd.xlane.f32.xlu0 %v5909
        %v5911 = vpop.xlane.xlu0 %5910
        %v5912 = vadd.f32 %v5697, %v5699
        %5913 = vadd.xlane.f32.xlu0 %v5912
        %v5914 = vpop.xlane.xlu0 %5913
        %v5915 = vadd.f32 %v5701, %v5703
        %5916 = vadd.xlane.f32.xlu0 %v5915
        %v5917 = vpop.xlane.xlu0 %5916
        %v5918 = vadd.f32 %v5705, %v5707
        %5919 = vadd.xlane.f32.xlu0 %v5918
        %v5920 = vpop.xlane.xlu0 %5919
        %v5921 = vadd.f32 %v5709, %v5711
        %5922 = vadd.xlane.f32.xlu0 %v5921
        %v5923 = vpop.xlane.xlu0 %5922
        %v5924 = vadd.f32 %v5713, %v5715
        %5925 = vadd.xlane.f32.xlu0 %v5924
        %v5926 = vpop.xlane.xlu0 %5925
        %v5927 = vadd.f32 %v5717, %v5719
        %5928 = vadd.xlane.f32.xlu0 %v5927
        %v5929 = vpop.xlane.xlu0 %5928
        %v5930 = vadd.f32 %v5721, %v5723
        %5931 = vadd.xlane.f32.xlu0 %v5930
        %v5932 = vpop.xlane.xlu0 %5931
        %v5933 = vadd.f32 %v5725, %v5727
        %5934 = vadd.xlane.f32.xlu0 %v5933
        %v5935 = vpop.xlane.xlu0 %5934
        %v5936 = vadd.f32 %v5729, %v5731
        %5937 = vadd.xlane.f32.xlu0 %v5936
        %v5938 = vpop.xlane.xlu0 %5937
        %v5939 = vadd.f32 %v5733, %v5735
        %5940 = vadd.xlane.f32.xlu0 %v5939
        %v5941 = vpop.xlane.xlu0 %5940
        %v5942 = vadd.f32 %v5737, %v5739
        %5943 = vadd.xlane.f32.xlu0 %v5942
        %v5944 = vpop.xlane.xlu0 %5943
        %v5945 = vadd.f32 %v5741, %v5743
        %5946 = vadd.xlane.f32.xlu0 %v5945
        %v5947 = vpop.xlane.xlu0 %5946
        %v5948 = vadd.f32 %v5745, %v5747
        %5949 = vadd.xlane.f32.xlu0 %v5948
        %v5950 = vpop.xlane.xlu0 %5949
        %v5951 = vadd.f32 %v5749, %v5751
        %5952 = vadd.xlane.f32.xlu0 %v5951
        %v5953 = vpop.xlane.xlu0 %5952
        %v5954 = vadd.f32 %v5753, %v5755
        %5955 = vadd.xlane.f32.xlu0 %v5954
        %v5956 = vpop.xlane.xlu0 %5955
        %v5957 = vadd.f32 %v5757, %v5759
        %5958 = vadd.xlane.f32.xlu0 %v5957
        %v5959 = vpop.xlane.xlu0 %5958
        %v5960 = vadd.f32 %v5761, %v5763
        %5961 = vadd.xlane.f32.xlu0 %v5960
        %v5962 = vpop.xlane.xlu0 %5961
        %v5963 = vadd.f32 %v5765, %v5767
        %5964 = vadd.xlane.f32.xlu0 %v5963
        %v5965 = vpop.xlane.xlu0 %5964
        %v5966 = vadd.f32 %v5769, %v5771
        %5967 = vadd.xlane.f32.xlu0 %v5966
        %v5968 = vpop.xlane.xlu0 %5967
        %v5969 = vadd.f32 %v5773, %v5775
        %5970 = vadd.xlane.f32.xlu0 %v5969
        %v5971 = vpop.xlane.xlu0 %5970
        %v5972 = vadd.f32 %v5777, %v5779
        %5973 = vadd.xlane.f32.xlu0 %v5972
        %v5974 = vpop.xlane.xlu0 %5973
        %v5975 = vadd.f32 %v5781, %v5783
        %5976 = vadd.xlane.f32.xlu0 %v5975
        %v5977 = vpop.xlane.xlu0 %5976
        %v5978 = vadd.f32 %v5785, %v5787
        %5979 = vadd.xlane.f32.xlu0 %v5978
        %v5980 = vpop.xlane.xlu0 %5979
        %v5981 = vadd.f32 %v5789, %v5791
        %5982 = vadd.xlane.f32.xlu0 %v5981
        %v5983 = vpop.xlane.xlu0 %5982
        %v5984 = vrcp.pop %v5794
        %v5985 = vrcp.pop %v5797
        %v5986 = vrcp.pop %v5800
        %v5987 = vrcp.pop %v5803
        %v5988 = vrcp.pop %v5806
        %v5989 = vrcp.pop %v5809
        %v5990 = vrcp.pop %v5812
        %v5991 = vrcp.pop %v5815
        %v5992 = vrcp.pop %v5818
        %v5993 = vrcp.pop %v5821
        %v5994 = vrcp.pop %v5824
        %v5995 = vrcp.pop %v5827
        %v5996 = vrcp.pop %v5830
        %v5997 = vrcp.pop %v5833
        %v5998 = vrcp.pop %v5836
        %v5999 = vrcp.pop %v5839
        %v6000 = vrcp.pop %v5842
        %v6001 = vrcp.pop %v5845
        %v6002 = vrcp.pop %v5848
        %v6003 = vrcp.pop %v5851
        %v6004 = vrcp.pop %v5854
        %v6005 = vrcp.pop %v5857
        %v6006 = vrcp.pop %v5860
        %v6007 = vrcp.pop %v5863
        %v6008 = vrcp.pop %v5866
        %v6009 = vrcp.pop %v5869
        %v6010 = vrcp.pop %v5872
        %v6011 = vrcp.pop %v5875
        %v6012 = vrcp.pop %v5878
        %v6013 = vrcp.pop %v5881
        %v6014 = vrcp.pop %v5884
        %v6015 = vrcp.pop %v5887
        %v6016 = vrcp.pop %v5890
        %v6017 = vrcp.pop %v5893
        %v6018 = vrcp.pop %v5896
        %v6019 = vrcp.pop %v5899
        %v6020 = vrcp.pop %v5902
        %v6021 = vrcp.pop %v5905
        %v6022 = vrcp.pop %v5908
        %v6023 = vrcp.pop %v5911
        %v6024 = vrcp.pop %v5914
        %v6025 = vrcp.pop %v5917
        %v6026 = vrcp.pop %v5920
        %v6027 = vrcp.pop %v5923
        %v6028 = vrcp.pop %v5926
        %v6029 = vrcp.pop %v5929
        %v6030 = vrcp.pop %v5932
        %v6031 = vrcp.pop %v5935
        %v6032 = vrcp.pop %v5938
        %v6033 = vrcp.pop %v5941
        %v6034 = vrcp.pop %v5944
        %v6035 = vrcp.pop %v5947
        %v6036 = vrcp.pop %v5950
        %v6037 = vrcp.pop %v5953
        %v6038 = vrcp.pop %v5956
        %v6039 = vrcp.pop %v5959
        %v6040 = vrcp.pop %v5962
        %v6041 = vrcp.pop %v5965
        %v6042 = vrcp.pop %v5968
        %v6043 = vrcp.pop %v5971
        %v6044 = vrcp.pop %v5974
        %v6045 = vrcp.pop %v5977
        %v6046 = vrcp.pop %v5980
        %v6047 = vrcp.pop %v5983
        %v6048 = vmul.f32 %v5537, %v5984
        %v6049 = vmul.f32 %v5539, %v5984
        %v6050 = vmul.f32 %v5541, %v5985
        %v6051 = vmul.f32 %v5543, %v5985
        %v6052 = vmul.f32 %v5545, %v5986
        %v6053 = vmul.f32 %v5547, %v5986
        %v6054 = vmul.f32 %v5549, %v5987
        %v6055 = vmul.f32 %v5551, %v5987
        %v6056 = vmul.f32 %v5553, %v5988
        %v6057 = vmul.f32 %v5555, %v5988
        %v6058 = vmul.f32 %v5557, %v5989
        %v6059 = vmul.f32 %v5559, %v5989
        %v6060 = vmul.f32 %v5561, %v5990
        %v6061 = vmul.f32 %v5563, %v5990
        %v6062 = vmul.f32 %v5565, %v5991
        %v6063 = vmul.f32 %v5567, %v5991
        %v6064 = vmul.f32 %v5569, %v5992
        %v6065 = vmul.f32 %v5571, %v5992
        %v6066 = vmul.f32 %v5573, %v5993
        %v6067 = vmul.f32 %v5575, %v5993
        %v6068 = vmul.f32 %v5577, %v5994
        %v6069 = vmul.f32 %v5579, %v5994
        %v6070 = vmul.f32 %v5581, %v5995
        %v6071 = vmul.f32 %v5583, %v5995
        %v6072 = vmul.f32 %v5585, %v5996
        %v6073 = vmul.f32 %v5587, %v5996
        %v6074 = vmul.f32 %v5589, %v5997
        %v6075 = vmul.f32 %v5591, %v5997
        %v6076 = vmul.f32 %v5593, %v5998
        %v6077 = vmul.f32 %v5595, %v5998
        %v6078 = vmul.f32 %v5597, %v5999
        %v6079 = vmul.f32 %v5599, %v5999
        %v6080 = vmul.f32 %v5601, %v6000
        %v6081 = vmul.f32 %v5603, %v6000
        %v6082 = vmul.f32 %v5605, %v6001
        %v6083 = vmul.f32 %v5607, %v6001
        %v6084 = vmul.f32 %v5609, %v6002
        %v6085 = vmul.f32 %v5611, %v6002
        %v6086 = vmul.f32 %v5613, %v6003
        %v6087 = vmul.f32 %v5615, %v6003
        %v6088 = vmul.f32 %v5617, %v6004
        %v6089 = vmul.f32 %v5619, %v6004
        %v6090 = vmul.f32 %v5621, %v6005
        %v6091 = vmul.f32 %v5623, %v6005
        %v6092 = vmul.f32 %v5625, %v6006
        %v6093 = vmul.f32 %v5627, %v6006
        %v6094 = vmul.f32 %v5629, %v6007
        %v6095 = vmul.f32 %v5631, %v6007
        %v6096 = vmul.f32 %v5633, %v6008
        %v6097 = vmul.f32 %v5635, %v6008
        %v6098 = vmul.f32 %v5637, %v6009
        %v6099 = vmul.f32 %v5639, %v6009
        %v6100 = vmul.f32 %v5641, %v6010
        %v6101 = vmul.f32 %v5643, %v6010
        %v6102 = vmul.f32 %v5645, %v6011
        %v6103 = vmul.f32 %v5647, %v6011
        %v6104 = vmul.f32 %v5649, %v6012
        %v6105 = vmul.f32 %v5651, %v6012
        %v6106 = vmul.f32 %v5653, %v6013
        %v6107 = vmul.f32 %v5655, %v6013
        %v6108 = vmul.f32 %v5657, %v6014
        %v6109 = vmul.f32 %v5659, %v6014
        %v6110 = vmul.f32 %v5661, %v6015
        %v6111 = vmul.f32 %v5663, %v6015
        %v6112 = vmul.f32 %v5665, %v6016
        %v6113 = vmul.f32 %v5667, %v6016
        %v6114 = vmul.f32 %v5669, %v6017
        %v6115 = vmul.f32 %v5671, %v6017
        %v6116 = vmul.f32 %v5673, %v6018
        %v6117 = vmul.f32 %v5675, %v6018
        %v6118 = vmul.f32 %v5677, %v6019
        %v6119 = vmul.f32 %v5679, %v6019
        %v6120 = vmul.f32 %v5681, %v6020
        %v6121 = vmul.f32 %v5683, %v6020
        %v6122 = vmul.f32 %v5685, %v6021
        %v6123 = vmul.f32 %v5687, %v6021
        %v6124 = vmul.f32 %v5689, %v6022
        %v6125 = vmul.f32 %v5691, %v6022
        %v6126 = vmul.f32 %v5693, %v6023
        %v6127 = vmul.f32 %v5695, %v6023
        %v6128 = vmul.f32 %v5697, %v6024
        %v6129 = vmul.f32 %v5699, %v6024
        %v6130 = vmul.f32 %v5701, %v6025
        %v6131 = vmul.f32 %v5703, %v6025
        %v6132 = vmul.f32 %v5705, %v6026
        %v6133 = vmul.f32 %v5707, %v6026
        %v6134 = vmul.f32 %v5709, %v6027
        %v6135 = vmul.f32 %v5711, %v6027
        %v6136 = vmul.f32 %v5713, %v6028
        %v6137 = vmul.f32 %v5715, %v6028
        %v6138 = vmul.f32 %v5717, %v6029
        %v6139 = vmul.f32 %v5719, %v6029
        %v6140 = vmul.f32 %v5721, %v6030
        %v6141 = vmul.f32 %v5723, %v6030
        %v6142 = vmul.f32 %v5725, %v6031
        %v6143 = vmul.f32 %v5727, %v6031
        %v6144 = vmul.f32 %v5729, %v6032
        %v6145 = vmul.f32 %v5731, %v6032
        %v6146 = vmul.f32 %v5733, %v6033
        %v6147 = vmul.f32 %v5735, %v6033
        %v6148 = vmul.f32 %v5737, %v6034
        %v6149 = vmul.f32 %v5739, %v6034
        %v6150 = vmul.f32 %v5741, %v6035
        %v6151 = vmul.f32 %v5743, %v6035
        %v6152 = vmul.f32 %v5745, %v6036
        %v6153 = vmul.f32 %v5747, %v6036
        %v6154 = vmul.f32 %v5749, %v6037
        %v6155 = vmul.f32 %v5751, %v6037
        %v6156 = vmul.f32 %v5753, %v6038
        %v6157 = vmul.f32 %v5755, %v6038
        %v6158 = vmul.f32 %v5757, %v6039
        %v6159 = vmul.f32 %v5759, %v6039
        %v6160 = vmul.f32 %v5761, %v6040
        %v6161 = vmul.f32 %v5763, %v6040
        %v6162 = vmul.f32 %v5765, %v6041
        %v6163 = vmul.f32 %v5767, %v6041
        %v6164 = vmul.f32 %v5769, %v6042
        %v6165 = vmul.f32 %v5771, %v6042
        %v6166 = vmul.f32 %v5773, %v6043
        %v6167 = vmul.f32 %v5775, %v6043
        %v6168 = vmul.f32 %v5777, %v6044
        %v6169 = vmul.f32 %v5779, %v6044
        %v6170 = vmul.f32 %v5781, %v6045
        %v6171 = vmul.f32 %v5783, %v6045
        %v6172 = vmul.f32 %v5785, %v6046
        %v6173 = vmul.f32 %v5787, %v6046
        %v6174 = vmul.f32 %v5789, %v6047
        %v6175 = vmul.f32 %v5791, %v6047
        %6176 = vmatpush.xpose.msra.mxu0 %v6078
        %6177 = vmatpush.xpose.msra.mxu0 %v6076
        %6178 = vmatpush.xpose.msra.mxu0 %v6074
        %6179 = vmatpush.xpose.msra.mxu0 %v6072
        %6180 = vmatpush.xpose.msra.mxu0 %v6070
        %6181 = vmatpush.xpose.msra.mxu0 %v6068
        %6182 = vmatpush.xpose.msra.mxu0 %v6066
        %6183 = vmatpush.xpose.msra.mxu0 %v6064
        %6184 = vmatpush.xpose.msra.mxu0 %v6062
        %6185 = vmatpush.xpose.msra.mxu0 %v6060
        %6186 = vmatpush.xpose.msra.mxu0 %v6058
        %6187 = vmatpush.xpose.msra.mxu0 %v6056
        %6188 = vmatpush.xpose.msra.mxu0 %v6054
        %6189 = vmatpush.xpose.msra.mxu0 %v6052
        %6190 = vmatpush.xpose.msra.mxu0 %v6050
        %6191 = vmatpush.xpose.msra.mxu0 %v6048
        %6192 = vmatmul.f32.gmra.mxu0 %v4404
        %v6193 = vpop.f32.mrf.mxu0
        %v6194 = vadd.f32 0.0, %v6193
        %6195 = vdwg.mxu0
        %6196 = vmatpush.xpose.msra.mxu0 %v6079
        %6197 = vmatpush.xpose.msra.mxu0 %v6077
        %6198 = vmatpush.xpose.msra.mxu0 %v6075
        %6199 = vmatpush.xpose.msra.mxu0 %v6073
        %6200 = vmatpush.xpose.msra.mxu0 %v6071
        %6201 = vmatpush.xpose.msra.mxu0 %v6069
        %6202 = vmatpush.xpose.msra.mxu0 %v6067
        %6203 = vmatpush.xpose.msra.mxu0 %v6065
        %6204 = vmatpush.xpose.msra.mxu0 %v6063
        %6205 = vmatpush.xpose.msra.mxu0 %v6061
        %6206 = vmatpush.xpose.msra.mxu0 %v6059
        %6207 = vmatpush.xpose.msra.mxu0 %v6057
        %6208 = vmatpush.xpose.msra.mxu0 %v6055
        %6209 = vmatpush.xpose.msra.mxu0 %v6053
        %6210 = vmatpush.xpose.msra.mxu0 %v6051
        %6211 = vmatpush.xpose.msra.mxu0 %v6049
        %6212 = vmatmul.f32.gmra.mxu0 %v4439
        %v6213 = vpop.f32.mrf.mxu0
        %v6214 = vadd.f32 %v6194, %v6213
        %6215 = vdwg.mxu0
        %6216 = vmatpush.xpose.msra.mxu0 %v6110
        %6217 = vmatpush.xpose.msra.mxu0 %v6108
        %6218 = vmatpush.xpose.msra.mxu0 %v6106
        %6219 = vmatpush.xpose.msra.mxu0 %v6104
        %6220 = vmatpush.xpose.msra.mxu0 %v6102
        %6221 = vmatpush.xpose.msra.mxu0 %v6100
        %6222 = vmatpush.xpose.msra.mxu0 %v6098
        %6223 = vmatpush.xpose.msra.mxu0 %v6096
        %6224 = vmatpush.xpose.msra.mxu0 %v6094
        %6225 = vmatpush.xpose.msra.mxu0 %v6092
        %6226 = vmatpush.xpose.msra.mxu0 %v6090
        %6227 = vmatpush.xpose.msra.mxu0 %v6088
        %6228 = vmatpush.xpose.msra.mxu0 %v6086
        %6229 = vmatpush.xpose.msra.mxu0 %v6084
        %6230 = vmatpush.xpose.msra.mxu0 %v6082
        %6231 = vmatpush.xpose.msra.mxu0 %v6080
        %6232 = vmatmul.f32.gmra.mxu0 %v4404
        %v6233 = vpop.f32.mrf.mxu0
        %v6234 = vadd.f32 0.0, %v6233
        %6235 = vdwg.mxu0
        %6236 = vmatpush.xpose.msra.mxu0 %v6111
        %6237 = vmatpush.xpose.msra.mxu0 %v6109
        %6238 = vmatpush.xpose.msra.mxu0 %v6107
        %6239 = vmatpush.xpose.msra.mxu0 %v6105
        %6240 = vmatpush.xpose.msra.mxu0 %v6103
        %6241 = vmatpush.xpose.msra.mxu0 %v6101
        %6242 = vmatpush.xpose.msra.mxu0 %v6099
        %6243 = vmatpush.xpose.msra.mxu0 %v6097
        %6244 = vmatpush.xpose.msra.mxu0 %v6095
        %6245 = vmatpush.xpose.msra.mxu0 %v6093
        %6246 = vmatpush.xpose.msra.mxu0 %v6091
        %6247 = vmatpush.xpose.msra.mxu0 %v6089
        %6248 = vmatpush.xpose.msra.mxu0 %v6087
        %6249 = vmatpush.xpose.msra.mxu0 %v6085
        %6250 = vmatpush.xpose.msra.mxu0 %v6083
        %6251 = vmatpush.xpose.msra.mxu0 %v6081
        %6252 = vmatmul.f32.gmra.mxu0 %v4439
        %v6253 = vpop.f32.mrf.mxu0
        %v6254 = vadd.f32 %v6234, %v6253
        %6255 = vdwg.mxu0
        %6256 = vmatpush.xpose.msra.mxu0 %v6142
        %6257 = vmatpush.xpose.msra.mxu0 %v6140
        %6258 = vmatpush.xpose.msra.mxu0 %v6138
        %6259 = vmatpush.xpose.msra.mxu0 %v6136
        %6260 = vmatpush.xpose.msra.mxu0 %v6134
        %6261 = vmatpush.xpose.msra.mxu0 %v6132
        %6262 = vmatpush.xpose.msra.mxu0 %v6130
        %6263 = vmatpush.xpose.msra.mxu0 %v6128
        %6264 = vmatpush.xpose.msra.mxu0 %v6126
        %6265 = vmatpush.xpose.msra.mxu0 %v6124
        %6266 = vmatpush.xpose.msra.mxu0 %v6122
        %6267 = vmatpush.xpose.msra.mxu0 %v6120
        %6268 = vmatpush.xpose.msra.mxu0 %v6118
        %6269 = vmatpush.xpose.msra.mxu0 %v6116
        %6270 = vmatpush.xpose.msra.mxu0 %v6114
        %6271 = vmatpush.xpose.msra.mxu0 %v6112
        %6272 = vmatmul.f32.gmra.mxu0 %v4407
        %v6273 = vpop.f32.mrf.mxu0
        %v6274 = vadd.f32 0.0, %v6273
        %6275 = vdwg.mxu0
        %6276 = vmatpush.xpose.msra.mxu0 %v6143
        %6277 = vmatpush.xpose.msra.mxu0 %v6141
        %6278 = vmatpush.xpose.msra.mxu0 %v6139
        %6279 = vmatpush.xpose.msra.mxu0 %v6137
        %6280 = vmatpush.xpose.msra.mxu0 %v6135
        %6281 = vmatpush.xpose.msra.mxu0 %v6133
        %6282 = vmatpush.xpose.msra.mxu0 %v6131
        %6283 = vmatpush.xpose.msra.mxu0 %v6129
        %6284 = vmatpush.xpose.msra.mxu0 %v6127
        %6285 = vmatpush.xpose.msra.mxu0 %v6125
        %6286 = vmatpush.xpose.msra.mxu0 %v6123
        %6287 = vmatpush.xpose.msra.mxu0 %v6121
        %6288 = vmatpush.xpose.msra.mxu0 %v6119
        %6289 = vmatpush.xpose.msra.mxu0 %v6117
        %6290 = vmatpush.xpose.msra.mxu0 %v6115
        %6291 = vmatpush.xpose.msra.mxu0 %v6113
        %6292 = vmatmul.f32.gmra.mxu0 %v4442
        %v6293 = vpop.f32.mrf.mxu0
        %v6294 = vadd.f32 %v6274, %v6293
        %6295 = vdwg.mxu0
        %6296 = vmatpush.xpose.msra.mxu0 %v6174
        %6297 = vmatpush.xpose.msra.mxu0 %v6172
        %6298 = vmatpush.xpose.msra.mxu0 %v6170
        %6299 = vmatpush.xpose.msra.mxu0 %v6168
        %6300 = vmatpush.xpose.msra.mxu0 %v6166
        %6301 = vmatpush.xpose.msra.mxu0 %v6164
        %6302 = vmatpush.xpose.msra.mxu0 %v6162
        %6303 = vmatpush.xpose.msra.mxu0 %v6160
        %6304 = vmatpush.xpose.msra.mxu0 %v6158
        %6305 = vmatpush.xpose.msra.mxu0 %v6156
        %6306 = vmatpush.xpose.msra.mxu0 %v6154
        %6307 = vmatpush.xpose.msra.mxu0 %v6152
        %6308 = vmatpush.xpose.msra.mxu0 %v6150
        %6309 = vmatpush.xpose.msra.mxu0 %v6148
        %6310 = vmatpush.xpose.msra.mxu0 %v6146
        %6311 = vmatpush.xpose.msra.mxu0 %v6144
        %6312 = vmatmul.f32.gmra.mxu0 %v4407
        %v6313 = vpop.f32.mrf.mxu0
        %v6314 = vadd.f32 0.0, %v6313
        %6315 = vdwg.mxu0
        %6316 = vmatpush.xpose.msra.mxu0 %v6175
        %6317 = vmatpush.xpose.msra.mxu0 %v6173
        %6318 = vmatpush.xpose.msra.mxu0 %v6171
        %6319 = vmatpush.xpose.msra.mxu0 %v6169
        %6320 = vmatpush.xpose.msra.mxu0 %v6167
        %6321 = vmatpush.xpose.msra.mxu0 %v6165
        %6322 = vmatpush.xpose.msra.mxu0 %v6163
        %6323 = vmatpush.xpose.msra.mxu0 %v6161
        %6324 = vmatpush.xpose.msra.mxu0 %v6159
        %6325 = vmatpush.xpose.msra.mxu0 %v6157
        %6326 = vmatpush.xpose.msra.mxu0 %v6155
        %6327 = vmatpush.xpose.msra.mxu0 %v6153
        %6328 = vmatpush.xpose.msra.mxu0 %v6151
        %6329 = vmatpush.xpose.msra.mxu0 %v6149
        %6330 = vmatpush.xpose.msra.mxu0 %v6147
        %6331 = vmatpush.xpose.msra.mxu0 %v6145
        %6332 = vmatmul.f32.gmra.mxu0 %v4442
        %v6333 = vpop.f32.mrf.mxu0
        %v6334 = vadd.f32 %v6314, %v6333
        %6335 = vdwg.mxu0
        %6336 = vmatpush.msra.mxu0 0.0
        %6337 = vmatpush.msra.mxu0 0.0
        %6338 = vmatpush.msra.mxu0 0.0
        %6339 = vmatpush.msra.mxu0 0.0
        %6340 = vmatpush.msra.mxu0 0.0
        %6341 = vmatpush.msra.mxu0 0.0
        %6342 = vmatpush.msra.mxu0 0.0
        %6343 = vmatpush.msra.mxu0 0.0
        %6344 = vmatpush.msra.mxu0 0.0
        %6345 = vmatpush.msra.mxu0 0.0
        %6346 = vmatpush.msra.mxu0 0.0
        %6347 = vmatpush.msra.mxu0 0.0
        %6348 = vmatpush.msra.mxu0 0.0
        %6349 = vmatpush.msra.mxu0 0.0
        %6350 = vmatpush.msra.mxu0 %v6294
        %6351 = vmatpush.msra.mxu0 %v6214
        %6352 = vmatmul.f32.gmra.mxu0 %v2283
        %v6353 = vpop.f32.mrf.mxu0
        %v6354 = vadd.f32 %v2279, %v6353
        %6355 = vdwg.mxu0
        %6356 = vmatpush.msra.mxu0 0.0
        %6357 = vmatpush.msra.mxu0 0.0
        %6358 = vmatpush.msra.mxu0 0.0
        %6359 = vmatpush.msra.mxu0 0.0
        %6360 = vmatpush.msra.mxu0 0.0
        %6361 = vmatpush.msra.mxu0 0.0
        %6362 = vmatpush.msra.mxu0 0.0
        %6363 = vmatpush.msra.mxu0 0.0
        %6364 = vmatpush.msra.mxu0 0.0
        %6365 = vmatpush.msra.mxu0 0.0
        %6366 = vmatpush.msra.mxu0 0.0
        %6367 = vmatpush.msra.mxu0 0.0
        %6368 = vmatpush.msra.mxu0 0.0
        %6369 = vmatpush.msra.mxu0 0.0
        %6370 = vmatpush.msra.mxu0 %v6334
        %6371 = vmatpush.msra.mxu0 %v6254
        %6372 = vmatmul.f32.gmra.mxu0 %v2283
        %v6373 = vpop.f32.mrf.mxu0
        %v6374 = vadd.f32 %v2279, %v6373
        %6375 = vdwg.mxu0
        %6376 = vst [vmem:[#allocation1] ss:$2 sm:$0xff] %v4365
        %v6377 = vld.sshfl [vmem:[#allocation1] sm:$0xff pattern:$0x75316420]
        %v6378 = vld.sshfl [vmem:[#allocation1 + $0x8] sm:$0xff pattern:$0x75316420]
        %v6381 = vadd.f32 %v6354, %v6377
        %v6382 = vadd.f32 %v6374, %v6378
        %v6385 = vrot.slane %v6382, 4
        %v6386 = vsel %vm308, %v6381, %v6385
        %s6388 = scalar_lea.vmem %s239, 16
        %6389 = vst [vmem:[%s6388] sm:$0xff] %v6386
        %s6390 = scalar_lea.vmem %s234, 24
        %v6391 = vld [vmem:[%s6390] sm:$0xff]
        %6393 = vst [vmem:[#allocation1] ss:$2 sm:$0xff] %v6391
        %v6394 = vld.sshfl [vmem:[#allocation1] sm:$0xff pattern:$0x75316420]
        %v6395 = vld.sshfl [vmem:[#allocation1 + $0x8] sm:$0xff pattern:$0x75316420]
        %v6396 = vsel %vm308, %v6394, 0
        %v6398 = vsel %vm308, %v6395, 0
        %6400 = vmatpush.msra.mxu0 0.0
        %6401 = vmatpush.msra.mxu0 0.0
        %6402 = vmatpush.msra.mxu0 0.0
        %6403 = vmatpush.msra.mxu0 0.0
        %6404 = vmatpush.msra.mxu0 0.0
        %6405 = vmatpush.msra.mxu0 0.0
        %6406 = vmatpush.msra.mxu0 0.0
        %6407 = vmatpush.msra.mxu0 0.0
        %6408 = vmatpush.msra.mxu0 0.0
        %6409 = vmatpush.msra.mxu0 0.0
        %6410 = vmatpush.msra.mxu0 0.0
        %6411 = vmatpush.msra.mxu0 0.0
        %6412 = vmatpush.msra.mxu0 0.0
        %6413 = vmatpush.msra.mxu0 0.0
        %6414 = vmatpush.msra.mxu0 0.0
        %6415 = vmatpush.msra.mxu0 %v6396
        %6416 = vmatmul.f32.gmra.mxu0 %v291
        %v6417 = vpop.f32.mrf.mxu0
        %v6418 = vadd.f32 %v258, %v6417
        %6419 = vmatmul.f32.gmra.mxu0 %v294
        %v6420 = vpop.f32.mrf.mxu0
        %v6421 = vadd.f32 %v263, %v6420
        %6422 = vmatmul.f32.gmra.mxu0 %v297
        %v6423 = vpop.f32.mrf.mxu0
        %v6424 = vadd.f32 %v268, %v6423
        %6425 = vmatmul.f32.gmra.mxu0 %v300
        %v6426 = vpop.f32.mrf.mxu0
        %v6427 = vadd.f32 %v273, %v6426
        %6428 = vmatmul.f32.gmra.mxu0 %v303
        %v6429 = vpop.f32.mrf.mxu0
        %v6430 = vadd.f32 %v278, %v6429
        %6431 = vmatmul.f32.gmra.mxu0 %v306
        %v6432 = vpop.f32.mrf.mxu0
        %v6433 = vadd.f32 %v283, %v6432
        %6434 = vdwg.mxu0
        %6435 = vmatpush.msra.mxu0 0.0
        %6436 = vmatpush.msra.mxu0 0.0
        %6437 = vmatpush.msra.mxu0 0.0
        %6438 = vmatpush.msra.mxu0 0.0
        %6439 = vmatpush.msra.mxu0 0.0
        %6440 = vmatpush.msra.mxu0 0.0
        %6441 = vmatpush.msra.mxu0 0.0
        %6442 = vmatpush.msra.mxu0 0.0
        %6443 = vmatpush.msra.mxu0 0.0
        %6444 = vmatpush.msra.mxu0 0.0
        %6445 = vmatpush.msra.mxu0 0.0
        %6446 = vmatpush.msra.mxu0 0.0
        %6447 = vmatpush.msra.mxu0 0.0
        %6448 = vmatpush.msra.mxu0 0.0
        %6449 = vmatpush.msra.mxu0 0.0
        %6450 = vmatpush.msra.mxu0 %v6398
        %6451 = vmatmul.f32.gmra.mxu0 %v291
        %v6452 = vpop.f32.mrf.mxu0
        %v6453 = vadd.f32 %v258, %v6452
        %6454 = vmatmul.f32.gmra.mxu0 %v294
        %v6455 = vpop.f32.mrf.mxu0
        %v6456 = vadd.f32 %v263, %v6455
        %6457 = vmatmul.f32.gmra.mxu0 %v297
        %v6458 = vpop.f32.mrf.mxu0
        %v6459 = vadd.f32 %v268, %v6458
        %6460 = vmatmul.f32.gmra.mxu0 %v300
        %v6461 = vpop.f32.mrf.mxu0
        %v6462 = vadd.f32 %v273, %v6461
        %6463 = vmatmul.f32.gmra.mxu0 %v303
        %v6464 = vpop.f32.mrf.mxu0
        %v6465 = vadd.f32 %v278, %v6464
        %6466 = vmatmul.f32.gmra.mxu0 %v306
        %v6467 = vpop.f32.mrf.mxu0
        %v6468 = vadd.f32 %v283, %v6467
        %6469 = vdwg.mxu0
        %6470 = vxpose.xlu0.b32.start [1/16] %v6418, 128
        %6471 = vxpose.xlu0.b32.cont [2/16] 0.0, 128
        %6472 = vxpose.xlu0.b32.cont [3/16] 0.0, 128
        %6473 = vxpose.xlu0.b32.cont [4/16] 0.0, 128
        %6474 = vxpose.xlu0.b32.cont [5/16] 0.0, 128
        %6475 = vxpose.xlu0.b32.cont [6/16] 0.0, 128
        %6476 = vxpose.xlu0.b32.cont [7/16] 0.0, 128
        %6477 = vxpose.xlu0.b32.cont [8/16] 0.0, 128
        %6478 = vxpose.xlu0.b32.cont [9/16] 0.0, 128
        %6479 = vxpose.xlu0.b32.cont [10/16] 0.0, 128
        %6480 = vxpose.xlu0.b32.cont [11/16] 0.0, 128
        %6481 = vxpose.xlu0.b32.cont [12/16] 0.0, 128
        %6482 = vxpose.xlu0.b32.cont [13/16] 0.0, 128
        %6483 = vxpose.xlu0.b32.cont [14/16] 0.0, 128
        %6484 = vxpose.xlu0.b32.cont [15/16] 0.0, 128
        %6485 = vxpose.xlu0.b32.end [16/16] 0.0, 128
        %v6486 = vpop.trf.xlu0
        %v6487 = vpop.trf.xlu0
        %v6488 = vpop.trf.xlu0
        %v6489 = vpop.trf.xlu0
        %v6490 = vpop.trf.xlu0
        %v6491 = vpop.trf.xlu0
        %v6492 = vpop.trf.xlu0
        %v6493 = vpop.trf.xlu0
        %v6494 = vpop.trf.xlu0
        %v6495 = vpop.trf.xlu0
        %v6496 = vpop.trf.xlu0
        %v6497 = vpop.trf.xlu0
        %v6498 = vpop.trf.xlu0
        %v6499 = vpop.trf.xlu0
        %v6500 = vpop.trf.xlu0
        %v6501 = vpop.trf.xlu0
        %6502 = vxpose.xlu0.b32.start [1/16] %v6453, 128
        %6503 = vxpose.xlu0.b32.cont [2/16] 0.0, 128
        %6504 = vxpose.xlu0.b32.cont [3/16] 0.0, 128
        %6505 = vxpose.xlu0.b32.cont [4/16] 0.0, 128
        %6506 = vxpose.xlu0.b32.cont [5/16] 0.0, 128
        %6507 = vxpose.xlu0.b32.cont [6/16] 0.0, 128
        %6508 = vxpose.xlu0.b32.cont [7/16] 0.0, 128
        %6509 = vxpose.xlu0.b32.cont [8/16] 0.0, 128
        %6510 = vxpose.xlu0.b32.cont [9/16] 0.0, 128
        %6511 = vxpose.xlu0.b32.cont [10/16] 0.0, 128
        %6512 = vxpose.xlu0.b32.cont [11/16] 0.0, 128
        %6513 = vxpose.xlu0.b32.cont [12/16] 0.0, 128
        %6514 = vxpose.xlu0.b32.cont [13/16] 0.0, 128
        %6515 = vxpose.xlu0.b32.cont [14/16] 0.0, 128
        %6516 = vxpose.xlu0.b32.cont [15/16] 0.0, 128
        %6517 = vxpose.xlu0.b32.end [16/16] 0.0, 128
        %v6518 = vpop.trf.xlu0
        %v6519 = vpop.trf.xlu0
        %v6520 = vpop.trf.xlu0
        %v6521 = vpop.trf.xlu0
        %v6522 = vpop.trf.xlu0
        %v6523 = vpop.trf.xlu0
        %v6524 = vpop.trf.xlu0
        %v6525 = vpop.trf.xlu0
        %v6526 = vpop.trf.xlu0
        %v6527 = vpop.trf.xlu0
        %v6528 = vpop.trf.xlu0
        %v6529 = vpop.trf.xlu0
        %v6530 = vpop.trf.xlu0
        %v6531 = vpop.trf.xlu0
        %v6532 = vpop.trf.xlu0
        %v6533 = vpop.trf.xlu0
        %v6535 = vsel %vm447, %v6486, 0
        %v6538 = vsel %vm447, %v6487, 0
        %v6541 = vsel %vm447, %v6488, 0
        %v6544 = vsel %vm447, %v6489, 0
        %v6547 = vsel %vm447, %v6490, 0
        %v6550 = vsel %vm447, %v6491, 0
        %v6553 = vsel %vm447, %v6492, 0
        %v6556 = vsel %vm447, %v6493, 0
        %v6559 = vsel %vm447, %v6494, 0
        %v6562 = vsel %vm447, %v6495, 0
        %v6565 = vsel %vm447, %v6496, 0
        %v6568 = vsel %vm447, %v6497, 0
        %v6571 = vsel %vm447, %v6498, 0
        %v6574 = vsel %vm447, %v6499, 0
        %v6577 = vsel %vm447, %v6500, 0
        %v6580 = vsel %vm447, %v6501, 0
        %v6583 = vsel %vm447, %v6518, 0
        %v6586 = vsel %vm447, %v6519, 0
        %v6589 = vsel %vm447, %v6520, 0
        %v6592 = vsel %vm447, %v6521, 0
        %v6595 = vsel %vm447, %v6522, 0
        %v6598 = vsel %vm447, %v6523, 0
        %v6601 = vsel %vm447, %v6524, 0
        %v6604 = vsel %vm447, %v6525, 0
        %v6607 = vsel %vm447, %v6526, 0
        %v6610 = vsel %vm447, %v6527, 0
        %v6613 = vsel %vm447, %v6528, 0
        %v6616 = vsel %vm447, %v6529, 0
        %v6619 = vsel %vm447, %v6530, 0
        %v6622 = vsel %vm447, %v6531, 0
        %v6625 = vsel %vm447, %v6532, 0
        %v6628 = vsel %vm447, %v6533, 0
        %6630 = vmatpush.msra.mxu0 0.0
        %6631 = vmatpush.msra.mxu0 0.0
        %6632 = vmatpush.msra.mxu0 0.0
        %6633 = vmatpush.msra.mxu0 0.0
        %6634 = vmatpush.msra.mxu0 0.0
        %6635 = vmatpush.msra.mxu0 0.0
        %6636 = vmatpush.msra.mxu0 0.0
        %6637 = vmatpush.msra.mxu0 0.0
        %6638 = vmatpush.msra.mxu0 0.0
        %6639 = vmatpush.msra.mxu0 0.0
        %6640 = vmatpush.msra.mxu0 0.0
        %6641 = vmatpush.msra.mxu0 0.0
        %6642 = vmatpush.msra.mxu0 0.0
        %6643 = vmatpush.msra.mxu0 0.0
        %6644 = vmatpush.msra.mxu0 0.0
        %6645 = vmatpush.msra.mxu0 %v6424
        %6646 = vmatmul.f32.gmra.mxu0 %v6535
        %v6647 = vpop.f32.mrf.mxu0
        %v6648 = vadd.f32 0.0, %v6647
        %6649 = vmatmul.f32.gmra.mxu0 %v6538
        %v6650 = vpop.f32.mrf.mxu0
        %v6651 = vadd.f32 0.0, %v6650
        %6652 = vmatmul.f32.gmra.mxu0 %v6541
        %v6653 = vpop.f32.mrf.mxu0
        %v6654 = vadd.f32 0.0, %v6653
        %6655 = vmatmul.f32.gmra.mxu0 %v6544
        %v6656 = vpop.f32.mrf.mxu0
        %v6657 = vadd.f32 0.0, %v6656
        %6658 = vmatmul.f32.gmra.mxu0 %v6547
        %v6659 = vpop.f32.mrf.mxu0
        %v6660 = vadd.f32 0.0, %v6659
        %6661 = vmatmul.f32.gmra.mxu0 %v6550
        %v6662 = vpop.f32.mrf.mxu0
        %v6663 = vadd.f32 0.0, %v6662
        %6664 = vmatmul.f32.gmra.mxu0 %v6553
        %v6665 = vpop.f32.mrf.mxu0
        %v6666 = vadd.f32 0.0, %v6665
        %6667 = vmatmul.f32.gmra.mxu0 %v6556
        %v6668 = vpop.f32.mrf.mxu0
        %v6669 = vadd.f32 0.0, %v6668
        %6670 = vmatmul.f32.gmra.mxu0 %v6559
        %v6671 = vpop.f32.mrf.mxu0
        %v6672 = vadd.f32 0.0, %v6671
        %6673 = vmatmul.f32.gmra.mxu0 %v6562
        %v6674 = vpop.f32.mrf.mxu0
        %v6675 = vadd.f32 0.0, %v6674
        %6676 = vmatmul.f32.gmra.mxu0 %v6565
        %v6677 = vpop.f32.mrf.mxu0
        %v6678 = vadd.f32 0.0, %v6677
        %6679 = vmatmul.f32.gmra.mxu0 %v6568
        %v6680 = vpop.f32.mrf.mxu0
        %v6681 = vadd.f32 0.0, %v6680
        %6682 = vmatmul.f32.gmra.mxu0 %v6571
        %v6683 = vpop.f32.mrf.mxu0
        %v6684 = vadd.f32 0.0, %v6683
        %6685 = vmatmul.f32.gmra.mxu0 %v6574
        %v6686 = vpop.f32.mrf.mxu0
        %v6687 = vadd.f32 0.0, %v6686
        %6688 = vmatmul.f32.gmra.mxu0 %v6577
        %v6689 = vpop.f32.mrf.mxu0
        %v6690 = vadd.f32 0.0, %v6689
        %6691 = vmatmul.f32.gmra.mxu0 %v6580
        %v6692 = vpop.f32.mrf.mxu0
        %v6693 = vadd.f32 0.0, %v6692
        %6694 = vmatmul.f32.gmra.mxu0 %v6583
        %v6695 = vpop.f32.mrf.mxu0
        %v6696 = vadd.f32 0.0, %v6695
        %6697 = vmatmul.f32.gmra.mxu0 %v6586
        %v6698 = vpop.f32.mrf.mxu0
        %v6699 = vadd.f32 0.0, %v6698
        %6700 = vmatmul.f32.gmra.mxu0 %v6589
        %v6701 = vpop.f32.mrf.mxu0
        %v6702 = vadd.f32 0.0, %v6701
        %6703 = vmatmul.f32.gmra.mxu0 %v6592
        %v6704 = vpop.f32.mrf.mxu0
        %v6705 = vadd.f32 0.0, %v6704
        %6706 = vmatmul.f32.gmra.mxu0 %v6595
        %v6707 = vpop.f32.mrf.mxu0
        %v6708 = vadd.f32 0.0, %v6707
        %6709 = vmatmul.f32.gmra.mxu0 %v6598
        %v6710 = vpop.f32.mrf.mxu0
        %v6711 = vadd.f32 0.0, %v6710
        %6712 = vmatmul.f32.gmra.mxu0 %v6601
        %v6713 = vpop.f32.mrf.mxu0
        %v6714 = vadd.f32 0.0, %v6713
        %6715 = vmatmul.f32.gmra.mxu0 %v6604
        %v6716 = vpop.f32.mrf.mxu0
        %v6717 = vadd.f32 0.0, %v6716
        %6718 = vmatmul.f32.gmra.mxu0 %v6607
        %v6719 = vpop.f32.mrf.mxu0
        %v6720 = vadd.f32 0.0, %v6719
        %6721 = vmatmul.f32.gmra.mxu0 %v6610
        %v6722 = vpop.f32.mrf.mxu0
        %v6723 = vadd.f32 0.0, %v6722
        %6724 = vmatmul.f32.gmra.mxu0 %v6613
        %v6725 = vpop.f32.mrf.mxu0
        %v6726 = vadd.f32 0.0, %v6725
        %6727 = vmatmul.f32.gmra.mxu0 %v6616
        %v6728 = vpop.f32.mrf.mxu0
        %v6729 = vadd.f32 0.0, %v6728
        %6730 = vmatmul.f32.gmra.mxu0 %v6619
        %v6731 = vpop.f32.mrf.mxu0
        %v6732 = vadd.f32 0.0, %v6731
        %6733 = vmatmul.f32.gmra.mxu0 %v6622
        %v6734 = vpop.f32.mrf.mxu0
        %v6735 = vadd.f32 0.0, %v6734
        %6736 = vmatmul.f32.gmra.mxu0 %v6625
        %v6737 = vpop.f32.mrf.mxu0
        %v6738 = vadd.f32 0.0, %v6737
        %6739 = vmatmul.f32.gmra.mxu0 %v6628
        %v6740 = vpop.f32.mrf.mxu0
        %v6741 = vadd.f32 0.0, %v6740
        %6742 = vdwg.mxu0
        %6743 = vmatpush.msra.mxu0 0.0
        %6744 = vmatpush.msra.mxu0 0.0
        %6745 = vmatpush.msra.mxu0 0.0
        %6746 = vmatpush.msra.mxu0 0.0
        %6747 = vmatpush.msra.mxu0 0.0
        %6748 = vmatpush.msra.mxu0 0.0
        %6749 = vmatpush.msra.mxu0 0.0
        %6750 = vmatpush.msra.mxu0 0.0
        %6751 = vmatpush.msra.mxu0 0.0
        %6752 = vmatpush.msra.mxu0 0.0
        %6753 = vmatpush.msra.mxu0 0.0
        %6754 = vmatpush.msra.mxu0 0.0
        %6755 = vmatpush.msra.mxu0 0.0
        %6756 = vmatpush.msra.mxu0 0.0
        %6757 = vmatpush.msra.mxu0 0.0
        %6758 = vmatpush.msra.mxu0 %v6459
        %6759 = vmatmul.f32.gmra.mxu0 %v6535
        %v6760 = vpop.f32.mrf.mxu0
        %v6761 = vadd.f32 0.0, %v6760
        %6762 = vmatmul.f32.gmra.mxu0 %v6538
        %v6763 = vpop.f32.mrf.mxu0
        %v6764 = vadd.f32 0.0, %v6763
        %6765 = vmatmul.f32.gmra.mxu0 %v6541
        %v6766 = vpop.f32.mrf.mxu0
        %v6767 = vadd.f32 0.0, %v6766
        %6768 = vmatmul.f32.gmra.mxu0 %v6544
        %v6769 = vpop.f32.mrf.mxu0
        %v6770 = vadd.f32 0.0, %v6769
        %6771 = vmatmul.f32.gmra.mxu0 %v6547
        %v6772 = vpop.f32.mrf.mxu0
        %v6773 = vadd.f32 0.0, %v6772
        %6774 = vmatmul.f32.gmra.mxu0 %v6550
        %v6775 = vpop.f32.mrf.mxu0
        %v6776 = vadd.f32 0.0, %v6775
        %6777 = vmatmul.f32.gmra.mxu0 %v6553
        %v6778 = vpop.f32.mrf.mxu0
        %v6779 = vadd.f32 0.0, %v6778
        %6780 = vmatmul.f32.gmra.mxu0 %v6556
        %v6781 = vpop.f32.mrf.mxu0
        %v6782 = vadd.f32 0.0, %v6781
        %6783 = vmatmul.f32.gmra.mxu0 %v6559
        %v6784 = vpop.f32.mrf.mxu0
        %v6785 = vadd.f32 0.0, %v6784
        %6786 = vmatmul.f32.gmra.mxu0 %v6562
        %v6787 = vpop.f32.mrf.mxu0
        %v6788 = vadd.f32 0.0, %v6787
        %6789 = vmatmul.f32.gmra.mxu0 %v6565
        %v6790 = vpop.f32.mrf.mxu0
        %v6791 = vadd.f32 0.0, %v6790
        %6792 = vmatmul.f32.gmra.mxu0 %v6568
        %v6793 = vpop.f32.mrf.mxu0
        %v6794 = vadd.f32 0.0, %v6793
        %6795 = vmatmul.f32.gmra.mxu0 %v6571
        %v6796 = vpop.f32.mrf.mxu0
        %v6797 = vadd.f32 0.0, %v6796
        %6798 = vmatmul.f32.gmra.mxu0 %v6574
        %v6799 = vpop.f32.mrf.mxu0
        %v6800 = vadd.f32 0.0, %v6799
        %6801 = vmatmul.f32.gmra.mxu0 %v6577
        %v6802 = vpop.f32.mrf.mxu0
        %v6803 = vadd.f32 0.0, %v6802
        %6804 = vmatmul.f32.gmra.mxu0 %v6580
        %v6805 = vpop.f32.mrf.mxu0
        %v6806 = vadd.f32 0.0, %v6805
        %6807 = vmatmul.f32.gmra.mxu0 %v6583
        %v6808 = vpop.f32.mrf.mxu0
        %v6809 = vadd.f32 0.0, %v6808
        %6810 = vmatmul.f32.gmra.mxu0 %v6586
        %v6811 = vpop.f32.mrf.mxu0
        %v6812 = vadd.f32 0.0, %v6811
        %6813 = vmatmul.f32.gmra.mxu0 %v6589
        %v6814 = vpop.f32.mrf.mxu0
        %v6815 = vadd.f32 0.0, %v6814
        %6816 = vmatmul.f32.gmra.mxu0 %v6592
        %v6817 = vpop.f32.mrf.mxu0
        %v6818 = vadd.f32 0.0, %v6817
        %6819 = vmatmul.f32.gmra.mxu0 %v6595
        %v6820 = vpop.f32.mrf.mxu0
        %v6821 = vadd.f32 0.0, %v6820
        %6822 = vmatmul.f32.gmra.mxu0 %v6598
        %v6823 = vpop.f32.mrf.mxu0
        %v6824 = vadd.f32 0.0, %v6823
        %6825 = vmatmul.f32.gmra.mxu0 %v6601
        %v6826 = vpop.f32.mrf.mxu0
        %v6827 = vadd.f32 0.0, %v6826
        %6828 = vmatmul.f32.gmra.mxu0 %v6604
        %v6829 = vpop.f32.mrf.mxu0
        %v6830 = vadd.f32 0.0, %v6829
        %6831 = vmatmul.f32.gmra.mxu0 %v6607
        %v6832 = vpop.f32.mrf.mxu0
        %v6833 = vadd.f32 0.0, %v6832
        %6834 = vmatmul.f32.gmra.mxu0 %v6610
        %v6835 = vpop.f32.mrf.mxu0
        %v6836 = vadd.f32 0.0, %v6835
        %6837 = vmatmul.f32.gmra.mxu0 %v6613
        %v6838 = vpop.f32.mrf.mxu0
        %v6839 = vadd.f32 0.0, %v6838
        %6840 = vmatmul.f32.gmra.mxu0 %v6616
        %v6841 = vpop.f32.mrf.mxu0
        %v6842 = vadd.f32 0.0, %v6841
        %6843 = vmatmul.f32.gmra.mxu0 %v6619
        %v6844 = vpop.f32.mrf.mxu0
        %v6845 = vadd.f32 0.0, %v6844
        %6846 = vmatmul.f32.gmra.mxu0 %v6622
        %v6847 = vpop.f32.mrf.mxu0
        %v6848 = vadd.f32 0.0, %v6847
        %6849 = vmatmul.f32.gmra.mxu0 %v6625
        %v6850 = vpop.f32.mrf.mxu0
        %v6851 = vadd.f32 0.0, %v6850
        %6852 = vmatmul.f32.gmra.mxu0 %v6628
        %v6853 = vpop.f32.mrf.mxu0
        %v6854 = vadd.f32 0.0, %v6853
        %6855 = vdwg.mxu0
        %6856 = vxpose.xlu0.b32.start [1/16] %v6421, 128
        %6857 = vxpose.xlu0.b32.cont [2/16] 0.0, 128
        %6858 = vxpose.xlu0.b32.cont [3/16] 0.0, 128
        %6859 = vxpose.xlu0.b32.cont [4/16] 0.0, 128
        %6860 = vxpose.xlu0.b32.cont [5/16] 0.0, 128
        %6861 = vxpose.xlu0.b32.cont [6/16] 0.0, 128
        %6862 = vxpose.xlu0.b32.cont [7/16] 0.0, 128
        %6863 = vxpose.xlu0.b32.cont [8/16] 0.0, 128
        %6864 = vxpose.xlu0.b32.cont [9/16] 0.0, 128
        %6865 = vxpose.xlu0.b32.cont [10/16] 0.0, 128
        %6866 = vxpose.xlu0.b32.cont [11/16] 0.0, 128
        %6867 = vxpose.xlu0.b32.cont [12/16] 0.0, 128
        %6868 = vxpose.xlu0.b32.cont [13/16] 0.0, 128
        %6869 = vxpose.xlu0.b32.cont [14/16] 0.0, 128
        %6870 = vxpose.xlu0.b32.cont [15/16] 0.0, 128
        %6871 = vxpose.xlu0.b32.end [16/16] 0.0, 128
        %v6872 = vpop.trf.xlu0
        %v6873 = vpop.trf.xlu0
        %v6874 = vpop.trf.xlu0
        %v6875 = vpop.trf.xlu0
        %v6876 = vpop.trf.xlu0
        %v6877 = vpop.trf.xlu0
        %v6878 = vpop.trf.xlu0
        %v6879 = vpop.trf.xlu0
        %v6880 = vpop.trf.xlu0
        %v6881 = vpop.trf.xlu0
        %v6882 = vpop.trf.xlu0
        %v6883 = vpop.trf.xlu0
        %v6884 = vpop.trf.xlu0
        %v6885 = vpop.trf.xlu0
        %v6886 = vpop.trf.xlu0
        %v6887 = vpop.trf.xlu0
        %6888 = vxpose.xlu0.b32.start [1/16] %v6456, 128
        %6889 = vxpose.xlu0.b32.cont [2/16] 0.0, 128
        %6890 = vxpose.xlu0.b32.cont [3/16] 0.0, 128
        %6891 = vxpose.xlu0.b32.cont [4/16] 0.0, 128
        %6892 = vxpose.xlu0.b32.cont [5/16] 0.0, 128
        %6893 = vxpose.xlu0.b32.cont [6/16] 0.0, 128
        %6894 = vxpose.xlu0.b32.cont [7/16] 0.0, 128
        %6895 = vxpose.xlu0.b32.cont [8/16] 0.0, 128
        %6896 = vxpose.xlu0.b32.cont [9/16] 0.0, 128
        %6897 = vxpose.xlu0.b32.cont [10/16] 0.0, 128
        %6898 = vxpose.xlu0.b32.cont [11/16] 0.0, 128
        %6899 = vxpose.xlu0.b32.cont [12/16] 0.0, 128
        %6900 = vxpose.xlu0.b32.cont [13/16] 0.0, 128
        %6901 = vxpose.xlu0.b32.cont [14/16] 0.0, 128
        %6902 = vxpose.xlu0.b32.cont [15/16] 0.0, 128
        %6903 = vxpose.xlu0.b32.end [16/16] 0.0, 128
        %v6904 = vpop.trf.xlu0
        %v6905 = vpop.trf.xlu0
        %v6906 = vpop.trf.xlu0
        %v6907 = vpop.trf.xlu0
        %v6908 = vpop.trf.xlu0
        %v6909 = vpop.trf.xlu0
        %v6910 = vpop.trf.xlu0
        %v6911 = vpop.trf.xlu0
        %v6912 = vpop.trf.xlu0
        %v6913 = vpop.trf.xlu0
        %v6914 = vpop.trf.xlu0
        %v6915 = vpop.trf.xlu0
        %v6916 = vpop.trf.xlu0
        %v6917 = vpop.trf.xlu0
        %v6918 = vpop.trf.xlu0
        %v6919 = vpop.trf.xlu0
        %v6921 = vsel %vm447, %v6872, 0
        %v6924 = vsel %vm447, %v6873, 0
        %v6927 = vsel %vm447, %v6874, 0
        %v6930 = vsel %vm447, %v6875, 0
        %v6933 = vsel %vm447, %v6876, 0
        %v6936 = vsel %vm447, %v6877, 0
        %v6939 = vsel %vm447, %v6878, 0
        %v6942 = vsel %vm447, %v6879, 0
        %v6945 = vsel %vm447, %v6880, 0
        %v6948 = vsel %vm447, %v6881, 0
        %v6951 = vsel %vm447, %v6882, 0
        %v6954 = vsel %vm447, %v6883, 0
        %v6957 = vsel %vm447, %v6884, 0
        %v6960 = vsel %vm447, %v6885, 0
        %v6963 = vsel %vm447, %v6886, 0
        %v6966 = vsel %vm447, %v6887, 0
        %v6969 = vsel %vm447, %v6904, 0
        %v6972 = vsel %vm447, %v6905, 0
        %v6975 = vsel %vm447, %v6906, 0
        %v6978 = vsel %vm447, %v6907, 0
        %v6981 = vsel %vm447, %v6908, 0
        %v6984 = vsel %vm447, %v6909, 0
        %v6987 = vsel %vm447, %v6910, 0
        %v6990 = vsel %vm447, %v6911, 0
        %v6993 = vsel %vm447, %v6912, 0
        %v6996 = vsel %vm447, %v6913, 0
        %v6999 = vsel %vm447, %v6914, 0
        %v7002 = vsel %vm447, %v6915, 0
        %v7005 = vsel %vm447, %v6916, 0
        %v7008 = vsel %vm447, %v6917, 0
        %v7011 = vsel %vm447, %v6918, 0
        %v7014 = vsel %vm447, %v6919, 0
        %7016 = vmatpush.msra.mxu0 0.0
        %7017 = vmatpush.msra.mxu0 0.0
        %7018 = vmatpush.msra.mxu0 0.0
        %7019 = vmatpush.msra.mxu0 0.0
        %7020 = vmatpush.msra.mxu0 0.0
        %7021 = vmatpush.msra.mxu0 0.0
        %7022 = vmatpush.msra.mxu0 0.0
        %7023 = vmatpush.msra.mxu0 0.0
        %7024 = vmatpush.msra.mxu0 0.0
        %7025 = vmatpush.msra.mxu0 0.0
        %7026 = vmatpush.msra.mxu0 0.0
        %7027 = vmatpush.msra.mxu0 0.0
        %7028 = vmatpush.msra.mxu0 0.0
        %7029 = vmatpush.msra.mxu0 0.0
        %7030 = vmatpush.msra.mxu0 0.0
        %7031 = vmatpush.msra.mxu0 %v6427
        %7032 = vmatmul.f32.gmra.mxu0 %v6921
        %v7033 = vpop.f32.mrf.mxu0
        %v7034 = vadd.f32 0.0, %v7033
        %7035 = vmatmul.f32.gmra.mxu0 %v6924
        %v7036 = vpop.f32.mrf.mxu0
        %v7037 = vadd.f32 0.0, %v7036
        %7038 = vmatmul.f32.gmra.mxu0 %v6927
        %v7039 = vpop.f32.mrf.mxu0
        %v7040 = vadd.f32 0.0, %v7039
        %7041 = vmatmul.f32.gmra.mxu0 %v6930
        %v7042 = vpop.f32.mrf.mxu0
        %v7043 = vadd.f32 0.0, %v7042
        %7044 = vmatmul.f32.gmra.mxu0 %v6933
        %v7045 = vpop.f32.mrf.mxu0
        %v7046 = vadd.f32 0.0, %v7045
        %7047 = vmatmul.f32.gmra.mxu0 %v6936
        %v7048 = vpop.f32.mrf.mxu0
        %v7049 = vadd.f32 0.0, %v7048
        %7050 = vmatmul.f32.gmra.mxu0 %v6939
        %v7051 = vpop.f32.mrf.mxu0
        %v7052 = vadd.f32 0.0, %v7051
        %7053 = vmatmul.f32.gmra.mxu0 %v6942
        %v7054 = vpop.f32.mrf.mxu0
        %v7055 = vadd.f32 0.0, %v7054
        %7056 = vmatmul.f32.gmra.mxu0 %v6945
        %v7057 = vpop.f32.mrf.mxu0
        %v7058 = vadd.f32 0.0, %v7057
        %7059 = vmatmul.f32.gmra.mxu0 %v6948
        %v7060 = vpop.f32.mrf.mxu0
        %v7061 = vadd.f32 0.0, %v7060
        %7062 = vmatmul.f32.gmra.mxu0 %v6951
        %v7063 = vpop.f32.mrf.mxu0
        %v7064 = vadd.f32 0.0, %v7063
        %7065 = vmatmul.f32.gmra.mxu0 %v6954
        %v7066 = vpop.f32.mrf.mxu0
        %v7067 = vadd.f32 0.0, %v7066
        %7068 = vmatmul.f32.gmra.mxu0 %v6957
        %v7069 = vpop.f32.mrf.mxu0
        %v7070 = vadd.f32 0.0, %v7069
        %7071 = vmatmul.f32.gmra.mxu0 %v6960
        %v7072 = vpop.f32.mrf.mxu0
        %v7073 = vadd.f32 0.0, %v7072
        %7074 = vmatmul.f32.gmra.mxu0 %v6963
        %v7075 = vpop.f32.mrf.mxu0
        %v7076 = vadd.f32 0.0, %v7075
        %7077 = vmatmul.f32.gmra.mxu0 %v6966
        %v7078 = vpop.f32.mrf.mxu0
        %v7079 = vadd.f32 0.0, %v7078
        %7080 = vmatmul.f32.gmra.mxu0 %v6969
        %v7081 = vpop.f32.mrf.mxu0
        %v7082 = vadd.f32 0.0, %v7081
        %7083 = vmatmul.f32.gmra.mxu0 %v6972
        %v7084 = vpop.f32.mrf.mxu0
        %v7085 = vadd.f32 0.0, %v7084
        %7086 = vmatmul.f32.gmra.mxu0 %v6975
        %v7087 = vpop.f32.mrf.mxu0
        %v7088 = vadd.f32 0.0, %v7087
        %7089 = vmatmul.f32.gmra.mxu0 %v6978
        %v7090 = vpop.f32.mrf.mxu0
        %v7091 = vadd.f32 0.0, %v7090
        %7092 = vmatmul.f32.gmra.mxu0 %v6981
        %v7093 = vpop.f32.mrf.mxu0
        %v7094 = vadd.f32 0.0, %v7093
        %7095 = vmatmul.f32.gmra.mxu0 %v6984
        %v7096 = vpop.f32.mrf.mxu0
        %v7097 = vadd.f32 0.0, %v7096
        %7098 = vmatmul.f32.gmra.mxu0 %v6987
        %v7099 = vpop.f32.mrf.mxu0
        %v7100 = vadd.f32 0.0, %v7099
        %7101 = vmatmul.f32.gmra.mxu0 %v6990
        %v7102 = vpop.f32.mrf.mxu0
        %v7103 = vadd.f32 0.0, %v7102
        %7104 = vmatmul.f32.gmra.mxu0 %v6993
        %v7105 = vpop.f32.mrf.mxu0
        %v7106 = vadd.f32 0.0, %v7105
        %7107 = vmatmul.f32.gmra.mxu0 %v6996
        %v7108 = vpop.f32.mrf.mxu0
        %v7109 = vadd.f32 0.0, %v7108
        %7110 = vmatmul.f32.gmra.mxu0 %v6999
        %v7111 = vpop.f32.mrf.mxu0
        %v7112 = vadd.f32 0.0, %v7111
        %7113 = vmatmul.f32.gmra.mxu0 %v7002
        %v7114 = vpop.f32.mrf.mxu0
        %v7115 = vadd.f32 0.0, %v7114
        %7116 = vmatmul.f32.gmra.mxu0 %v7005
        %v7117 = vpop.f32.mrf.mxu0
        %v7118 = vadd.f32 0.0, %v7117
        %7119 = vmatmul.f32.gmra.mxu0 %v7008
        %v7120 = vpop.f32.mrf.mxu0
        %v7121 = vadd.f32 0.0, %v7120
        %7122 = vmatmul.f32.gmra.mxu0 %v7011
        %v7123 = vpop.f32.mrf.mxu0
        %v7124 = vadd.f32 0.0, %v7123
        %7125 = vmatmul.f32.gmra.mxu0 %v7014
        %v7126 = vpop.f32.mrf.mxu0
        %v7127 = vadd.f32 0.0, %v7126
        %7128 = vdwg.mxu0
        %7129 = vmatpush.msra.mxu0 0.0
        %7130 = vmatpush.msra.mxu0 0.0
        %7131 = vmatpush.msra.mxu0 0.0
        %7132 = vmatpush.msra.mxu0 0.0
        %7133 = vmatpush.msra.mxu0 0.0
        %7134 = vmatpush.msra.mxu0 0.0
        %7135 = vmatpush.msra.mxu0 0.0
        %7136 = vmatpush.msra.mxu0 0.0
        %7137 = vmatpush.msra.mxu0 0.0
        %7138 = vmatpush.msra.mxu0 0.0
        %7139 = vmatpush.msra.mxu0 0.0
        %7140 = vmatpush.msra.mxu0 0.0
        %7141 = vmatpush.msra.mxu0 0.0
        %7142 = vmatpush.msra.mxu0 0.0
        %7143 = vmatpush.msra.mxu0 0.0
        %7144 = vmatpush.msra.mxu0 %v6462
        %7145 = vmatmul.f32.gmra.mxu0 %v6921
        %v7146 = vpop.f32.mrf.mxu0
        %v7147 = vadd.f32 0.0, %v7146
        %7148 = vmatmul.f32.gmra.mxu0 %v6924
        %v7149 = vpop.f32.mrf.mxu0
        %v7150 = vadd.f32 0.0, %v7149
        %7151 = vmatmul.f32.gmra.mxu0 %v6927
        %v7152 = vpop.f32.mrf.mxu0
        %v7153 = vadd.f32 0.0, %v7152
        %7154 = vmatmul.f32.gmra.mxu0 %v6930
        %v7155 = vpop.f32.mrf.mxu0
        %v7156 = vadd.f32 0.0, %v7155
        %7157 = vmatmul.f32.gmra.mxu0 %v6933
        %v7158 = vpop.f32.mrf.mxu0
        %v7159 = vadd.f32 0.0, %v7158
        %7160 = vmatmul.f32.gmra.mxu0 %v6936
        %v7161 = vpop.f32.mrf.mxu0
        %v7162 = vadd.f32 0.0, %v7161
        %7163 = vmatmul.f32.gmra.mxu0 %v6939
        %v7164 = vpop.f32.mrf.mxu0
        %v7165 = vadd.f32 0.0, %v7164
        %7166 = vmatmul.f32.gmra.mxu0 %v6942
        %v7167 = vpop.f32.mrf.mxu0
        %v7168 = vadd.f32 0.0, %v7167
        %7169 = vmatmul.f32.gmra.mxu0 %v6945
        %v7170 = vpop.f32.mrf.mxu0
        %v7171 = vadd.f32 0.0, %v7170
        %7172 = vmatmul.f32.gmra.mxu0 %v6948
        %v7173 = vpop.f32.mrf.mxu0
        %v7174 = vadd.f32 0.0, %v7173
        %7175 = vmatmul.f32.gmra.mxu0 %v6951
        %v7176 = vpop.f32.mrf.mxu0
        %v7177 = vadd.f32 0.0, %v7176
        %7178 = vmatmul.f32.gmra.mxu0 %v6954
        %v7179 = vpop.f32.mrf.mxu0
        %v7180 = vadd.f32 0.0, %v7179
        %7181 = vmatmul.f32.gmra.mxu0 %v6957
        %v7182 = vpop.f32.mrf.mxu0
        %v7183 = vadd.f32 0.0, %v7182
        %7184 = vmatmul.f32.gmra.mxu0 %v6960
        %v7185 = vpop.f32.mrf.mxu0
        %v7186 = vadd.f32 0.0, %v7185
        %7187 = vmatmul.f32.gmra.mxu0 %v6963
        %v7188 = vpop.f32.mrf.mxu0
        %v7189 = vadd.f32 0.0, %v7188
        %7190 = vmatmul.f32.gmra.mxu0 %v6966
        %v7191 = vpop.f32.mrf.mxu0
        %v7192 = vadd.f32 0.0, %v7191
        %7193 = vmatmul.f32.gmra.mxu0 %v6969
        %v7194 = vpop.f32.mrf.mxu0
        %v7195 = vadd.f32 0.0, %v7194
        %7196 = vmatmul.f32.gmra.mxu0 %v6972
        %v7197 = vpop.f32.mrf.mxu0
        %v7198 = vadd.f32 0.0, %v7197
        %7199 = vmatmul.f32.gmra.mxu0 %v6975
        %v7200 = vpop.f32.mrf.mxu0
        %v7201 = vadd.f32 0.0, %v7200
        %7202 = vmatmul.f32.gmra.mxu0 %v6978
        %v7203 = vpop.f32.mrf.mxu0
        %v7204 = vadd.f32 0.0, %v7203
        %7205 = vmatmul.f32.gmra.mxu0 %v6981
        %v7206 = vpop.f32.mrf.mxu0
        %v7207 = vadd.f32 0.0, %v7206
        %7208 = vmatmul.f32.gmra.mxu0 %v6984
        %v7209 = vpop.f32.mrf.mxu0
        %v7210 = vadd.f32 0.0, %v7209
        %7211 = vmatmul.f32.gmra.mxu0 %v6987
        %v7212 = vpop.f32.mrf.mxu0
        %v7213 = vadd.f32 0.0, %v7212
        %7214 = vmatmul.f32.gmra.mxu0 %v6990
        %v7215 = vpop.f32.mrf.mxu0
        %v7216 = vadd.f32 0.0, %v7215
        %7217 = vmatmul.f32.gmra.mxu0 %v6993
        %v7218 = vpop.f32.mrf.mxu0
        %v7219 = vadd.f32 0.0, %v7218
        %7220 = vmatmul.f32.gmra.mxu0 %v6996
        %v7221 = vpop.f32.mrf.mxu0
        %v7222 = vadd.f32 0.0, %v7221
        %7223 = vmatmul.f32.gmra.mxu0 %v6999
        %v7224 = vpop.f32.mrf.mxu0
        %v7225 = vadd.f32 0.0, %v7224
        %7226 = vmatmul.f32.gmra.mxu0 %v7002
        %v7227 = vpop.f32.mrf.mxu0
        %v7228 = vadd.f32 0.0, %v7227
        %7229 = vmatmul.f32.gmra.mxu0 %v7005
        %v7230 = vpop.f32.mrf.mxu0
        %v7231 = vadd.f32 0.0, %v7230
        %7232 = vmatmul.f32.gmra.mxu0 %v7008
        %v7233 = vpop.f32.mrf.mxu0
        %v7234 = vadd.f32 0.0, %v7233
        %7235 = vmatmul.f32.gmra.mxu0 %v7011
        %v7236 = vpop.f32.mrf.mxu0
        %v7237 = vadd.f32 0.0, %v7236
        %7238 = vmatmul.f32.gmra.mxu0 %v7014
        %v7239 = vpop.f32.mrf.mxu0
        %v7240 = vadd.f32 0.0, %v7239
        %7241 = vdwg.mxu0
        %v7242 = vmax.f32 %v6648, %v6761
        %7243 = vmax.xlane.f32.xlu0 %v7242
        %v7244 = vpop.xlane.xlu0 %7243
        %v7245 = vmax.f32 %v6651, %v6764
        %7246 = vmax.xlane.f32.xlu0 %v7245
        %v7247 = vpop.xlane.xlu0 %7246
        %v7248 = vmax.f32 %v6654, %v6767
        %7249 = vmax.xlane.f32.xlu0 %v7248
        %v7250 = vpop.xlane.xlu0 %7249
        %v7251 = vmax.f32 %v6657, %v6770
        %7252 = vmax.xlane.f32.xlu0 %v7251
        %v7253 = vpop.xlane.xlu0 %7252
        %v7254 = vmax.f32 %v6660, %v6773
        %7255 = vmax.xlane.f32.xlu0 %v7254
        %v7256 = vpop.xlane.xlu0 %7255
        %v7257 = vmax.f32 %v6663, %v6776
        %7258 = vmax.xlane.f32.xlu0 %v7257
        %v7259 = vpop.xlane.xlu0 %7258
        %v7260 = vmax.f32 %v6666, %v6779
        %7261 = vmax.xlane.f32.xlu0 %v7260
        %v7262 = vpop.xlane.xlu0 %7261
        %v7263 = vmax.f32 %v6669, %v6782
        %7264 = vmax.xlane.f32.xlu0 %v7263
        %v7265 = vpop.xlane.xlu0 %7264
        %v7266 = vmax.f32 %v6672, %v6785
        %7267 = vmax.xlane.f32.xlu0 %v7266
        %v7268 = vpop.xlane.xlu0 %7267
        %v7269 = vmax.f32 %v6675, %v6788
        %7270 = vmax.xlane.f32.xlu0 %v7269
        %v7271 = vpop.xlane.xlu0 %7270
        %v7272 = vmax.f32 %v6678, %v6791
        %7273 = vmax.xlane.f32.xlu0 %v7272
        %v7274 = vpop.xlane.xlu0 %7273
        %v7275 = vmax.f32 %v6681, %v6794
        %7276 = vmax.xlane.f32.xlu0 %v7275
        %v7277 = vpop.xlane.xlu0 %7276
        %v7278 = vmax.f32 %v6684, %v6797
        %7279 = vmax.xlane.f32.xlu0 %v7278
        %v7280 = vpop.xlane.xlu0 %7279
        %v7281 = vmax.f32 %v6687, %v6800
        %7282 = vmax.xlane.f32.xlu0 %v7281
        %v7283 = vpop.xlane.xlu0 %7282
        %v7284 = vmax.f32 %v6690, %v6803
        %7285 = vmax.xlane.f32.xlu0 %v7284
        %v7286 = vpop.xlane.xlu0 %7285
        %v7287 = vmax.f32 %v6693, %v6806
        %7288 = vmax.xlane.f32.xlu0 %v7287
        %v7289 = vpop.xlane.xlu0 %7288
        %v7290 = vmax.f32 %v6696, %v6809
        %7291 = vmax.xlane.f32.xlu0 %v7290
        %v7292 = vpop.xlane.xlu0 %7291
        %v7293 = vmax.f32 %v6699, %v6812
        %7294 = vmax.xlane.f32.xlu0 %v7293
        %v7295 = vpop.xlane.xlu0 %7294
        %v7296 = vmax.f32 %v6702, %v6815
        %7297 = vmax.xlane.f32.xlu0 %v7296
        %v7298 = vpop.xlane.xlu0 %7297
        %v7299 = vmax.f32 %v6705, %v6818
        %7300 = vmax.xlane.f32.xlu0 %v7299
        %v7301 = vpop.xlane.xlu0 %7300
        %v7302 = vmax.f32 %v6708, %v6821
        %7303 = vmax.xlane.f32.xlu0 %v7302
        %v7304 = vpop.xlane.xlu0 %7303
        %v7305 = vmax.f32 %v6711, %v6824
        %7306 = vmax.xlane.f32.xlu0 %v7305
        %v7307 = vpop.xlane.xlu0 %7306
        %v7308 = vmax.f32 %v6714, %v6827
        %7309 = vmax.xlane.f32.xlu0 %v7308
        %v7310 = vpop.xlane.xlu0 %7309
        %v7311 = vmax.f32 %v6717, %v6830
        %7312 = vmax.xlane.f32.xlu0 %v7311
        %v7313 = vpop.xlane.xlu0 %7312
        %v7314 = vmax.f32 %v6720, %v6833
        %7315 = vmax.xlane.f32.xlu0 %v7314
        %v7316 = vpop.xlane.xlu0 %7315
        %v7317 = vmax.f32 %v6723, %v6836
        %7318 = vmax.xlane.f32.xlu0 %v7317
        %v7319 = vpop.xlane.xlu0 %7318
        %v7320 = vmax.f32 %v6726, %v6839
        %7321 = vmax.xlane.f32.xlu0 %v7320
        %v7322 = vpop.xlane.xlu0 %7321
        %v7323 = vmax.f32 %v6729, %v6842
        %7324 = vmax.xlane.f32.xlu0 %v7323
        %v7325 = vpop.xlane.xlu0 %7324
        %v7326 = vmax.f32 %v6732, %v6845
        %7327 = vmax.xlane.f32.xlu0 %v7326
        %v7328 = vpop.xlane.xlu0 %7327
        %v7329 = vmax.f32 %v6735, %v6848
        %7330 = vmax.xlane.f32.xlu0 %v7329
        %v7331 = vpop.xlane.xlu0 %7330
        %v7332 = vmax.f32 %v6738, %v6851
        %7333 = vmax.xlane.f32.xlu0 %v7332
        %v7334 = vpop.xlane.xlu0 %7333
        %v7335 = vmax.f32 %v6741, %v6854
        %7336 = vmax.xlane.f32.xlu0 %v7335
        %v7337 = vpop.xlane.xlu0 %7336
        %v7338 = vmax.f32 %v7034, %v7147
        %7339 = vmax.xlane.f32.xlu0 %v7338
        %v7340 = vpop.xlane.xlu0 %7339
        %v7341 = vmax.f32 %v7037, %v7150
        %7342 = vmax.xlane.f32.xlu0 %v7341
        %v7343 = vpop.xlane.xlu0 %7342
        %v7344 = vmax.f32 %v7040, %v7153
        %7345 = vmax.xlane.f32.xlu0 %v7344
        %v7346 = vpop.xlane.xlu0 %7345
        %v7347 = vmax.f32 %v7043, %v7156
        %7348 = vmax.xlane.f32.xlu0 %v7347
        %v7349 = vpop.xlane.xlu0 %7348
        %v7350 = vmax.f32 %v7046, %v7159
        %7351 = vmax.xlane.f32.xlu0 %v7350
        %v7352 = vpop.xlane.xlu0 %7351
        %v7353 = vmax.f32 %v7049, %v7162
        %7354 = vmax.xlane.f32.xlu0 %v7353
        %v7355 = vpop.xlane.xlu0 %7354
        %v7356 = vmax.f32 %v7052, %v7165
        %7357 = vmax.xlane.f32.xlu0 %v7356
        %v7358 = vpop.xlane.xlu0 %7357
        %v7359 = vmax.f32 %v7055, %v7168
        %7360 = vmax.xlane.f32.xlu0 %v7359
        %v7361 = vpop.xlane.xlu0 %7360
        %v7362 = vmax.f32 %v7058, %v7171
        %7363 = vmax.xlane.f32.xlu0 %v7362
        %v7364 = vpop.xlane.xlu0 %7363
        %v7365 = vmax.f32 %v7061, %v7174
        %7366 = vmax.xlane.f32.xlu0 %v7365
        %v7367 = vpop.xlane.xlu0 %7366
        %v7368 = vmax.f32 %v7064, %v7177
        %7369 = vmax.xlane.f32.xlu0 %v7368
        %v7370 = vpop.xlane.xlu0 %7369
        %v7371 = vmax.f32 %v7067, %v7180
        %7372 = vmax.xlane.f32.xlu0 %v7371
        %v7373 = vpop.xlane.xlu0 %7372
        %v7374 = vmax.f32 %v7070, %v7183
        %7375 = vmax.xlane.f32.xlu0 %v7374
        %v7376 = vpop.xlane.xlu0 %7375
        %v7377 = vmax.f32 %v7073, %v7186
        %7378 = vmax.xlane.f32.xlu0 %v7377
        %v7379 = vpop.xlane.xlu0 %7378
        %v7380 = vmax.f32 %v7076, %v7189
        %7381 = vmax.xlane.f32.xlu0 %v7380
        %v7382 = vpop.xlane.xlu0 %7381
        %v7383 = vmax.f32 %v7079, %v7192
        %7384 = vmax.xlane.f32.xlu0 %v7383
        %v7385 = vpop.xlane.xlu0 %7384
        %v7386 = vmax.f32 %v7082, %v7195
        %7387 = vmax.xlane.f32.xlu0 %v7386
        %v7388 = vpop.xlane.xlu0 %7387
        %v7389 = vmax.f32 %v7085, %v7198
        %7390 = vmax.xlane.f32.xlu0 %v7389
        %v7391 = vpop.xlane.xlu0 %7390
        %v7392 = vmax.f32 %v7088, %v7201
        %7393 = vmax.xlane.f32.xlu0 %v7392
        %v7394 = vpop.xlane.xlu0 %7393
        %v7395 = vmax.f32 %v7091, %v7204
        %7396 = vmax.xlane.f32.xlu0 %v7395
        %v7397 = vpop.xlane.xlu0 %7396
        %v7398 = vmax.f32 %v7094, %v7207
        %7399 = vmax.xlane.f32.xlu0 %v7398
        %v7400 = vpop.xlane.xlu0 %7399
        %v7401 = vmax.f32 %v7097, %v7210
        %7402 = vmax.xlane.f32.xlu0 %v7401
        %v7403 = vpop.xlane.xlu0 %7402
        %v7404 = vmax.f32 %v7100, %v7213
        %7405 = vmax.xlane.f32.xlu0 %v7404
        %v7406 = vpop.xlane.xlu0 %7405
        %v7407 = vmax.f32 %v7103, %v7216
        %7408 = vmax.xlane.f32.xlu0 %v7407
        %v7409 = vpop.xlane.xlu0 %7408
        %v7410 = vmax.f32 %v7106, %v7219
        %7411 = vmax.xlane.f32.xlu0 %v7410
        %v7412 = vpop.xlane.xlu0 %7411
        %v7413 = vmax.f32 %v7109, %v7222
        %7414 = vmax.xlane.f32.xlu0 %v7413
        %v7415 = vpop.xlane.xlu0 %7414
        %v7416 = vmax.f32 %v7112, %v7225
        %7417 = vmax.xlane.f32.xlu0 %v7416
        %v7418 = vpop.xlane.xlu0 %7417
        %v7419 = vmax.f32 %v7115, %v7228
        %7420 = vmax.xlane.f32.xlu0 %v7419
        %v7421 = vpop.xlane.xlu0 %7420
        %v7422 = vmax.f32 %v7118, %v7231
        %7423 = vmax.xlane.f32.xlu0 %v7422
        %v7424 = vpop.xlane.xlu0 %7423
        %v7425 = vmax.f32 %v7121, %v7234
        %7426 = vmax.xlane.f32.xlu0 %v7425
        %v7427 = vpop.xlane.xlu0 %7426
        %v7428 = vmax.f32 %v7124, %v7237
        %7429 = vmax.xlane.f32.xlu0 %v7428
        %v7430 = vpop.xlane.xlu0 %7429
        %v7431 = vmax.f32 %v7127, %v7240
        %7432 = vmax.xlane.f32.xlu0 %v7431
        %v7433 = vpop.xlane.xlu0 %7432
        %v7434 = vsub.f32 %v6648, %v7244
        %v7435 = vsub.f32 %v6761, %v7244
        %v7436 = vsub.f32 %v6651, %v7247
        %v7437 = vsub.f32 %v6764, %v7247
        %v7438 = vsub.f32 %v6654, %v7250
        %v7439 = vsub.f32 %v6767, %v7250
        %v7440 = vsub.f32 %v6657, %v7253
        %v7441 = vsub.f32 %v6770, %v7253
        %v7442 = vsub.f32 %v6660, %v7256
        %v7443 = vsub.f32 %v6773, %v7256
        %v7444 = vsub.f32 %v6663, %v7259
        %v7445 = vsub.f32 %v6776, %v7259
        %v7446 = vsub.f32 %v6666, %v7262
        %v7447 = vsub.f32 %v6779, %v7262
        %v7448 = vsub.f32 %v6669, %v7265
        %v7449 = vsub.f32 %v6782, %v7265
        %v7450 = vsub.f32 %v6672, %v7268
        %v7451 = vsub.f32 %v6785, %v7268
        %v7452 = vsub.f32 %v6675, %v7271
        %v7453 = vsub.f32 %v6788, %v7271
        %v7454 = vsub.f32 %v6678, %v7274
        %v7455 = vsub.f32 %v6791, %v7274
        %v7456 = vsub.f32 %v6681, %v7277
        %v7457 = vsub.f32 %v6794, %v7277
        %v7458 = vsub.f32 %v6684, %v7280
        %v7459 = vsub.f32 %v6797, %v7280
        %v7460 = vsub.f32 %v6687, %v7283
        %v7461 = vsub.f32 %v6800, %v7283
        %v7462 = vsub.f32 %v6690, %v7286
        %v7463 = vsub.f32 %v6803, %v7286
        %v7464 = vsub.f32 %v6693, %v7289
        %v7465 = vsub.f32 %v6806, %v7289
        %v7466 = vsub.f32 %v6696, %v7292
        %v7467 = vsub.f32 %v6809, %v7292
        %v7468 = vsub.f32 %v6699, %v7295
        %v7469 = vsub.f32 %v6812, %v7295
        %v7470 = vsub.f32 %v6702, %v7298
        %v7471 = vsub.f32 %v6815, %v7298
        %v7472 = vsub.f32 %v6705, %v7301
        %v7473 = vsub.f32 %v6818, %v7301
        %v7474 = vsub.f32 %v6708, %v7304
        %v7475 = vsub.f32 %v6821, %v7304
        %v7476 = vsub.f32 %v6711, %v7307
        %v7477 = vsub.f32 %v6824, %v7307
        %v7478 = vsub.f32 %v6714, %v7310
        %v7479 = vsub.f32 %v6827, %v7310
        %v7480 = vsub.f32 %v6717, %v7313
        %v7481 = vsub.f32 %v6830, %v7313
        %v7482 = vsub.f32 %v6720, %v7316
        %v7483 = vsub.f32 %v6833, %v7316
        %v7484 = vsub.f32 %v6723, %v7319
        %v7485 = vsub.f32 %v6836, %v7319
        %v7486 = vsub.f32 %v6726, %v7322
        %v7487 = vsub.f32 %v6839, %v7322
        %v7488 = vsub.f32 %v6729, %v7325
        %v7489 = vsub.f32 %v6842, %v7325
        %v7490 = vsub.f32 %v6732, %v7328
        %v7491 = vsub.f32 %v6845, %v7328
        %v7492 = vsub.f32 %v6735, %v7331
        %v7493 = vsub.f32 %v6848, %v7331
        %v7494 = vsub.f32 %v6738, %v7334
        %v7495 = vsub.f32 %v6851, %v7334
        %v7496 = vsub.f32 %v6741, %v7337
        %v7497 = vsub.f32 %v6854, %v7337
        %v7498 = vsub.f32 %v7034, %v7340
        %v7499 = vsub.f32 %v7147, %v7340
        %v7500 = vsub.f32 %v7037, %v7343
        %v7501 = vsub.f32 %v7150, %v7343
        %v7502 = vsub.f32 %v7040, %v7346
        %v7503 = vsub.f32 %v7153, %v7346
        %v7504 = vsub.f32 %v7043, %v7349
        %v7505 = vsub.f32 %v7156, %v7349
        %v7506 = vsub.f32 %v7046, %v7352
        %v7507 = vsub.f32 %v7159, %v7352
        %v7508 = vsub.f32 %v7049, %v7355
        %v7509 = vsub.f32 %v7162, %v7355
        %v7510 = vsub.f32 %v7052, %v7358
        %v7511 = vsub.f32 %v7165, %v7358
        %v7512 = vsub.f32 %v7055, %v7361
        %v7513 = vsub.f32 %v7168, %v7361
        %v7514 = vsub.f32 %v7058, %v7364
        %v7515 = vsub.f32 %v7171, %v7364
        %v7516 = vsub.f32 %v7061, %v7367
        %v7517 = vsub.f32 %v7174, %v7367
        %v7518 = vsub.f32 %v7064, %v7370
        %v7519 = vsub.f32 %v7177, %v7370
        %v7520 = vsub.f32 %v7067, %v7373
        %v7521 = vsub.f32 %v7180, %v7373
        %v7522 = vsub.f32 %v7070, %v7376
        %v7523 = vsub.f32 %v7183, %v7376
        %v7524 = vsub.f32 %v7073, %v7379
        %v7525 = vsub.f32 %v7186, %v7379
        %v7526 = vsub.f32 %v7076, %v7382
        %v7527 = vsub.f32 %v7189, %v7382
        %v7528 = vsub.f32 %v7079, %v7385
        %v7529 = vsub.f32 %v7192, %v7385
        %v7530 = vsub.f32 %v7082, %v7388
        %v7531 = vsub.f32 %v7195, %v7388
        %v7532 = vsub.f32 %v7085, %v7391
        %v7533 = vsub.f32 %v7198, %v7391
        %v7534 = vsub.f32 %v7088, %v7394
        %v7535 = vsub.f32 %v7201, %v7394
        %v7536 = vsub.f32 %v7091, %v7397
        %v7537 = vsub.f32 %v7204, %v7397
        %v7538 = vsub.f32 %v7094, %v7400
        %v7539 = vsub.f32 %v7207, %v7400
        %v7540 = vsub.f32 %v7097, %v7403
        %v7541 = vsub.f32 %v7210, %v7403
        %v7542 = vsub.f32 %v7100, %v7406
        %v7543 = vsub.f32 %v7213, %v7406
        %v7544 = vsub.f32 %v7103, %v7409
        %v7545 = vsub.f32 %v7216, %v7409
        %v7546 = vsub.f32 %v7106, %v7412
        %v7547 = vsub.f32 %v7219, %v7412
        %v7548 = vsub.f32 %v7109, %v7415
        %v7549 = vsub.f32 %v7222, %v7415
        %v7550 = vsub.f32 %v7112, %v7418
        %v7551 = vsub.f32 %v7225, %v7418
        %v7552 = vsub.f32 %v7115, %v7421
        %v7553 = vsub.f32 %v7228, %v7421
        %v7554 = vsub.f32 %v7118, %v7424
        %v7555 = vsub.f32 %v7231, %v7424
        %v7556 = vsub.f32 %v7121, %v7427
        %v7557 = vsub.f32 %v7234, %v7427
        %v7558 = vsub.f32 %v7124, %v7430
        %v7559 = vsub.f32 %v7237, %v7430
        %v7560 = vsub.f32 %v7127, %v7433
        %v7561 = vsub.f32 %v7240, %v7433
        %v7562 = vmul.f32 %v7434, 1.442695
        %v7563 = vpow.pop %v7562
        %v7564 = vmul.f32 %v7435, 1.442695
        %v7565 = vpow.pop %v7564
        %v7566 = vmul.f32 %v7436, 1.442695
        %v7567 = vpow.pop %v7566
        %v7568 = vmul.f32 %v7437, 1.442695
        %v7569 = vpow.pop %v7568
        %v7570 = vmul.f32 %v7438, 1.442695
        %v7571 = vpow.pop %v7570
        %v7572 = vmul.f32 %v7439, 1.442695
        %v7573 = vpow.pop %v7572
        %v7574 = vmul.f32 %v7440, 1.442695
        %v7575 = vpow.pop %v7574
        %v7576 = vmul.f32 %v7441, 1.442695
        %v7577 = vpow.pop %v7576
        %v7578 = vmul.f32 %v7442, 1.442695
        %v7579 = vpow.pop %v7578
        %v7580 = vmul.f32 %v7443, 1.442695
        %v7581 = vpow.pop %v7580
        %v7582 = vmul.f32 %v7444, 1.442695
        %v7583 = vpow.pop %v7582
        %v7584 = vmul.f32 %v7445, 1.442695
        %v7585 = vpow.pop %v7584
        %v7586 = vmul.f32 %v7446, 1.442695
        %v7587 = vpow.pop %v7586
        %v7588 = vmul.f32 %v7447, 1.442695
        %v7589 = vpow.pop %v7588
        %v7590 = vmul.f32 %v7448, 1.442695
        %v7591 = vpow.pop %v7590
        %v7592 = vmul.f32 %v7449, 1.442695
        %v7593 = vpow.pop %v7592
        %v7594 = vmul.f32 %v7450, 1.442695
        %v7595 = vpow.pop %v7594
        %v7596 = vmul.f32 %v7451, 1.442695
        %v7597 = vpow.pop %v7596
        %v7598 = vmul.f32 %v7452, 1.442695
        %v7599 = vpow.pop %v7598
        %v7600 = vmul.f32 %v7453, 1.442695
        %v7601 = vpow.pop %v7600
        %v7602 = vmul.f32 %v7454, 1.442695
        %v7603 = vpow.pop %v7602
        %v7604 = vmul.f32 %v7455, 1.442695
        %v7605 = vpow.pop %v7604
        %v7606 = vmul.f32 %v7456, 1.442695
        %v7607 = vpow.pop %v7606
        %v7608 = vmul.f32 %v7457, 1.442695
        %v7609 = vpow.pop %v7608
        %v7610 = vmul.f32 %v7458, 1.442695
        %v7611 = vpow.pop %v7610
        %v7612 = vmul.f32 %v7459, 1.442695
        %v7613 = vpow.pop %v7612
        %v7614 = vmul.f32 %v7460, 1.442695
        %v7615 = vpow.pop %v7614
        %v7616 = vmul.f32 %v7461, 1.442695
        %v7617 = vpow.pop %v7616
        %v7618 = vmul.f32 %v7462, 1.442695
        %v7619 = vpow.pop %v7618
        %v7620 = vmul.f32 %v7463, 1.442695
        %v7621 = vpow.pop %v7620
        %v7622 = vmul.f32 %v7464, 1.442695
        %v7623 = vpow.pop %v7622
        %v7624 = vmul.f32 %v7465, 1.442695
        %v7625 = vpow.pop %v7624
        %v7626 = vmul.f32 %v7466, 1.442695
        %v7627 = vpow.pop %v7626
        %v7628 = vmul.f32 %v7467, 1.442695
        %v7629 = vpow.pop %v7628
        %v7630 = vmul.f32 %v7468, 1.442695
        %v7631 = vpow.pop %v7630
        %v7632 = vmul.f32 %v7469, 1.442695
        %v7633 = vpow.pop %v7632
        %v7634 = vmul.f32 %v7470, 1.442695
        %v7635 = vpow.pop %v7634
        %v7636 = vmul.f32 %v7471, 1.442695
        %v7637 = vpow.pop %v7636
        %v7638 = vmul.f32 %v7472, 1.442695
        %v7639 = vpow.pop %v7638
        %v7640 = vmul.f32 %v7473, 1.442695
        %v7641 = vpow.pop %v7640
        %v7642 = vmul.f32 %v7474, 1.442695
        %v7643 = vpow.pop %v7642
        %v7644 = vmul.f32 %v7475, 1.442695
        %v7645 = vpow.pop %v7644
        %v7646 = vmul.f32 %v7476, 1.442695
        %v7647 = vpow.pop %v7646
        %v7648 = vmul.f32 %v7477, 1.442695
        %v7649 = vpow.pop %v7648
        %v7650 = vmul.f32 %v7478, 1.442695
        %v7651 = vpow.pop %v7650
        %v7652 = vmul.f32 %v7479, 1.442695
        %v7653 = vpow.pop %v7652
        %v7654 = vmul.f32 %v7480, 1.442695
        %v7655 = vpow.pop %v7654
        %v7656 = vmul.f32 %v7481, 1.442695
        %v7657 = vpow.pop %v7656
        %v7658 = vmul.f32 %v7482, 1.442695
        %v7659 = vpow.pop %v7658
        %v7660 = vmul.f32 %v7483, 1.442695
        %v7661 = vpow.pop %v7660
        %v7662 = vmul.f32 %v7484, 1.442695
        %v7663 = vpow.pop %v7662
        %v7664 = vmul.f32 %v7485, 1.442695
        %v7665 = vpow.pop %v7664
        %v7666 = vmul.f32 %v7486, 1.442695
        %v7667 = vpow.pop %v7666
        %v7668 = vmul.f32 %v7487, 1.442695
        %v7669 = vpow.pop %v7668
        %v7670 = vmul.f32 %v7488, 1.442695
        %v7671 = vpow.pop %v7670
        %v7672 = vmul.f32 %v7489, 1.442695
        %v7673 = vpow.pop %v7672
        %v7674 = vmul.f32 %v7490, 1.442695
        %v7675 = vpow.pop %v7674
        %v7676 = vmul.f32 %v7491, 1.442695
        %v7677 = vpow.pop %v7676
        %v7678 = vmul.f32 %v7492, 1.442695
        %v7679 = vpow.pop %v7678
        %v7680 = vmul.f32 %v7493, 1.442695
        %v7681 = vpow.pop %v7680
        %v7682 = vmul.f32 %v7494, 1.442695
        %v7683 = vpow.pop %v7682
        %v7684 = vmul.f32 %v7495, 1.442695
        %v7685 = vpow.pop %v7684
        %v7686 = vmul.f32 %v7496, 1.442695
        %v7687 = vpow.pop %v7686
        %v7688 = vmul.f32 %v7497, 1.442695
        %v7689 = vpow.pop %v7688
        %v7690 = vmul.f32 %v7498, 1.442695
        %v7691 = vpow.pop %v7690
        %v7692 = vmul.f32 %v7499, 1.442695
        %v7693 = vpow.pop %v7692
        %v7694 = vmul.f32 %v7500, 1.442695
        %v7695 = vpow.pop %v7694
        %v7696 = vmul.f32 %v7501, 1.442695
        %v7697 = vpow.pop %v7696
        %v7698 = vmul.f32 %v7502, 1.442695
        %v7699 = vpow.pop %v7698
        %v7700 = vmul.f32 %v7503, 1.442695
        %v7701 = vpow.pop %v7700
        %v7702 = vmul.f32 %v7504, 1.442695
        %v7703 = vpow.pop %v7702
        %v7704 = vmul.f32 %v7505, 1.442695
        %v7705 = vpow.pop %v7704
        %v7706 = vmul.f32 %v7506, 1.442695
        %v7707 = vpow.pop %v7706
        %v7708 = vmul.f32 %v7507, 1.442695
        %v7709 = vpow.pop %v7708
        %v7710 = vmul.f32 %v7508, 1.442695
        %v7711 = vpow.pop %v7710
        %v7712 = vmul.f32 %v7509, 1.442695
        %v7713 = vpow.pop %v7712
        %v7714 = vmul.f32 %v7510, 1.442695
        %v7715 = vpow.pop %v7714
        %v7716 = vmul.f32 %v7511, 1.442695
        %v7717 = vpow.pop %v7716
        %v7718 = vmul.f32 %v7512, 1.442695
        %v7719 = vpow.pop %v7718
        %v7720 = vmul.f32 %v7513, 1.442695
        %v7721 = vpow.pop %v7720
        %v7722 = vmul.f32 %v7514, 1.442695
        %v7723 = vpow.pop %v7722
        %v7724 = vmul.f32 %v7515, 1.442695
        %v7725 = vpow.pop %v7724
        %v7726 = vmul.f32 %v7516, 1.442695
        %v7727 = vpow.pop %v7726
        %v7728 = vmul.f32 %v7517, 1.442695
        %v7729 = vpow.pop %v7728
        %v7730 = vmul.f32 %v7518, 1.442695
        %v7731 = vpow.pop %v7730
        %v7732 = vmul.f32 %v7519, 1.442695
        %v7733 = vpow.pop %v7732
        %v7734 = vmul.f32 %v7520, 1.442695
        %v7735 = vpow.pop %v7734
        %v7736 = vmul.f32 %v7521, 1.442695
        %v7737 = vpow.pop %v7736
        %v7738 = vmul.f32 %v7522, 1.442695
        %v7739 = vpow.pop %v7738
        %v7740 = vmul.f32 %v7523, 1.442695
        %v7741 = vpow.pop %v7740
        %v7742 = vmul.f32 %v7524, 1.442695
        %v7743 = vpow.pop %v7742
        %v7744 = vmul.f32 %v7525, 1.442695
        %v7745 = vpow.pop %v7744
        %v7746 = vmul.f32 %v7526, 1.442695
        %v7747 = vpow.pop %v7746
        %v7748 = vmul.f32 %v7527, 1.442695
        %v7749 = vpow.pop %v7748
        %v7750 = vmul.f32 %v7528, 1.442695
        %v7751 = vpow.pop %v7750
        %v7752 = vmul.f32 %v7529, 1.442695
        %v7753 = vpow.pop %v7752
        %v7754 = vmul.f32 %v7530, 1.442695
        %v7755 = vpow.pop %v7754
        %v7756 = vmul.f32 %v7531, 1.442695
        %v7757 = vpow.pop %v7756
        %v7758 = vmul.f32 %v7532, 1.442695
        %v7759 = vpow.pop %v7758
        %v7760 = vmul.f32 %v7533, 1.442695
        %v7761 = vpow.pop %v7760
        %v7762 = vmul.f32 %v7534, 1.442695
        %v7763 = vpow.pop %v7762
        %v7764 = vmul.f32 %v7535, 1.442695
        %v7765 = vpow.pop %v7764
        %v7766 = vmul.f32 %v7536, 1.442695
        %v7767 = vpow.pop %v7766
        %v7768 = vmul.f32 %v7537, 1.442695
        %v7769 = vpow.pop %v7768
        %v7770 = vmul.f32 %v7538, 1.442695
        %v7771 = vpow.pop %v7770
        %v7772 = vmul.f32 %v7539, 1.442695
        %v7773 = vpow.pop %v7772
        %v7774 = vmul.f32 %v7540, 1.442695
        %v7775 = vpow.pop %v7774
        %v7776 = vmul.f32 %v7541, 1.442695
        %v7777 = vpow.pop %v7776
        %v7778 = vmul.f32 %v7542, 1.442695
        %v7779 = vpow.pop %v7778
        %v7780 = vmul.f32 %v7543, 1.442695
        %v7781 = vpow.pop %v7780
        %v7782 = vmul.f32 %v7544, 1.442695
        %v7783 = vpow.pop %v7782
        %v7784 = vmul.f32 %v7545, 1.442695
        %v7785 = vpow.pop %v7784
        %v7786 = vmul.f32 %v7546, 1.442695
        %v7787 = vpow.pop %v7786
        %v7788 = vmul.f32 %v7547, 1.442695
        %v7789 = vpow.pop %v7788
        %v7790 = vmul.f32 %v7548, 1.442695
        %v7791 = vpow.pop %v7790
        %v7792 = vmul.f32 %v7549, 1.442695
        %v7793 = vpow.pop %v7792
        %v7794 = vmul.f32 %v7550, 1.442695
        %v7795 = vpow.pop %v7794
        %v7796 = vmul.f32 %v7551, 1.442695
        %v7797 = vpow.pop %v7796
        %v7798 = vmul.f32 %v7552, 1.442695
        %v7799 = vpow.pop %v7798
        %v7800 = vmul.f32 %v7553, 1.442695
        %v7801 = vpow.pop %v7800
        %v7802 = vmul.f32 %v7554, 1.442695
        %v7803 = vpow.pop %v7802
        %v7804 = vmul.f32 %v7555, 1.442695
        %v7805 = vpow.pop %v7804
        %v7806 = vmul.f32 %v7556, 1.442695
        %v7807 = vpow.pop %v7806
        %v7808 = vmul.f32 %v7557, 1.442695
        %v7809 = vpow.pop %v7808
        %v7810 = vmul.f32 %v7558, 1.442695
        %v7811 = vpow.pop %v7810
        %v7812 = vmul.f32 %v7559, 1.442695
        %v7813 = vpow.pop %v7812
        %v7814 = vmul.f32 %v7560, 1.442695
        %v7815 = vpow.pop %v7814
        %v7816 = vmul.f32 %v7561, 1.442695
        %v7817 = vpow.pop %v7816
        %v7818 = vadd.f32 %v7563, %v7565
        %7819 = vadd.xlane.f32.xlu0 %v7818
        %v7820 = vpop.xlane.xlu0 %7819
        %v7821 = vadd.f32 %v7567, %v7569
        %7822 = vadd.xlane.f32.xlu0 %v7821
        %v7823 = vpop.xlane.xlu0 %7822
        %v7824 = vadd.f32 %v7571, %v7573
        %7825 = vadd.xlane.f32.xlu0 %v7824
        %v7826 = vpop.xlane.xlu0 %7825
        %v7827 = vadd.f32 %v7575, %v7577
        %7828 = vadd.xlane.f32.xlu0 %v7827
        %v7829 = vpop.xlane.xlu0 %7828
        %v7830 = vadd.f32 %v7579, %v7581
        %7831 = vadd.xlane.f32.xlu0 %v7830
        %v7832 = vpop.xlane.xlu0 %7831
        %v7833 = vadd.f32 %v7583, %v7585
        %7834 = vadd.xlane.f32.xlu0 %v7833
        %v7835 = vpop.xlane.xlu0 %7834
        %v7836 = vadd.f32 %v7587, %v7589
        %7837 = vadd.xlane.f32.xlu0 %v7836
        %v7838 = vpop.xlane.xlu0 %7837
        %v7839 = vadd.f32 %v7591, %v7593
        %7840 = vadd.xlane.f32.xlu0 %v7839
        %v7841 = vpop.xlane.xlu0 %7840
        %v7842 = vadd.f32 %v7595, %v7597
        %7843 = vadd.xlane.f32.xlu0 %v7842
        %v7844 = vpop.xlane.xlu0 %7843
        %v7845 = vadd.f32 %v7599, %v7601
        %7846 = vadd.xlane.f32.xlu0 %v7845
        %v7847 = vpop.xlane.xlu0 %7846
        %v7848 = vadd.f32 %v7603, %v7605
        %7849 = vadd.xlane.f32.xlu0 %v7848
        %v7850 = vpop.xlane.xlu0 %7849
        %v7851 = vadd.f32 %v7607, %v7609
        %7852 = vadd.xlane.f32.xlu0 %v7851
        %v7853 = vpop.xlane.xlu0 %7852
        %v7854 = vadd.f32 %v7611, %v7613
        %7855 = vadd.xlane.f32.xlu0 %v7854
        %v7856 = vpop.xlane.xlu0 %7855
        %v7857 = vadd.f32 %v7615, %v7617
        %7858 = vadd.xlane.f32.xlu0 %v7857
        %v7859 = vpop.xlane.xlu0 %7858
        %v7860 = vadd.f32 %v7619, %v7621
        %7861 = vadd.xlane.f32.xlu0 %v7860
        %v7862 = vpop.xlane.xlu0 %7861
        %v7863 = vadd.f32 %v7623, %v7625
        %7864 = vadd.xlane.f32.xlu0 %v7863
        %v7865 = vpop.xlane.xlu0 %7864
        %v7866 = vadd.f32 %v7627, %v7629
        %7867 = vadd.xlane.f32.xlu0 %v7866
        %v7868 = vpop.xlane.xlu0 %7867
        %v7869 = vadd.f32 %v7631, %v7633
        %7870 = vadd.xlane.f32.xlu0 %v7869
        %v7871 = vpop.xlane.xlu0 %7870
        %v7872 = vadd.f32 %v7635, %v7637
        %7873 = vadd.xlane.f32.xlu0 %v7872
        %v7874 = vpop.xlane.xlu0 %7873
        %v7875 = vadd.f32 %v7639, %v7641
        %7876 = vadd.xlane.f32.xlu0 %v7875
        %v7877 = vpop.xlane.xlu0 %7876
        %v7878 = vadd.f32 %v7643, %v7645
        %7879 = vadd.xlane.f32.xlu0 %v7878
        %v7880 = vpop.xlane.xlu0 %7879
        %v7881 = vadd.f32 %v7647, %v7649
        %7882 = vadd.xlane.f32.xlu0 %v7881
        %v7883 = vpop.xlane.xlu0 %7882
        %v7884 = vadd.f32 %v7651, %v7653
        %7885 = vadd.xlane.f32.xlu0 %v7884
        %v7886 = vpop.xlane.xlu0 %7885
        %v7887 = vadd.f32 %v7655, %v7657
        %7888 = vadd.xlane.f32.xlu0 %v7887
        %v7889 = vpop.xlane.xlu0 %7888
        %v7890 = vadd.f32 %v7659, %v7661
        %7891 = vadd.xlane.f32.xlu0 %v7890
        %v7892 = vpop.xlane.xlu0 %7891
        %v7893 = vadd.f32 %v7663, %v7665
        %7894 = vadd.xlane.f32.xlu0 %v7893
        %v7895 = vpop.xlane.xlu0 %7894
        %v7896 = vadd.f32 %v7667, %v7669
        %7897 = vadd.xlane.f32.xlu0 %v7896
        %v7898 = vpop.xlane.xlu0 %7897
        %v7899 = vadd.f32 %v7671, %v7673
        %7900 = vadd.xlane.f32.xlu0 %v7899
        %v7901 = vpop.xlane.xlu0 %7900
        %v7902 = vadd.f32 %v7675, %v7677
        %7903 = vadd.xlane.f32.xlu0 %v7902
        %v7904 = vpop.xlane.xlu0 %7903
        %v7905 = vadd.f32 %v7679, %v7681
        %7906 = vadd.xlane.f32.xlu0 %v7905
        %v7907 = vpop.xlane.xlu0 %7906
        %v7908 = vadd.f32 %v7683, %v7685
        %7909 = vadd.xlane.f32.xlu0 %v7908
        %v7910 = vpop.xlane.xlu0 %7909
        %v7911 = vadd.f32 %v7687, %v7689
        %7912 = vadd.xlane.f32.xlu0 %v7911
        %v7913 = vpop.xlane.xlu0 %7912
        %v7914 = vadd.f32 %v7691, %v7693
        %7915 = vadd.xlane.f32.xlu0 %v7914
        %v7916 = vpop.xlane.xlu0 %7915
        %v7917 = vadd.f32 %v7695, %v7697
        %7918 = vadd.xlane.f32.xlu0 %v7917
        %v7919 = vpop.xlane.xlu0 %7918
        %v7920 = vadd.f32 %v7699, %v7701
        %7921 = vadd.xlane.f32.xlu0 %v7920
        %v7922 = vpop.xlane.xlu0 %7921
        %v7923 = vadd.f32 %v7703, %v7705
        %7924 = vadd.xlane.f32.xlu0 %v7923
        %v7925 = vpop.xlane.xlu0 %7924
        %v7926 = vadd.f32 %v7707, %v7709
        %7927 = vadd.xlane.f32.xlu0 %v7926
        %v7928 = vpop.xlane.xlu0 %7927
        %v7929 = vadd.f32 %v7711, %v7713
        %7930 = vadd.xlane.f32.xlu0 %v7929
        %v7931 = vpop.xlane.xlu0 %7930
        %v7932 = vadd.f32 %v7715, %v7717
        %7933 = vadd.xlane.f32.xlu0 %v7932
        %v7934 = vpop.xlane.xlu0 %7933
        %v7935 = vadd.f32 %v7719, %v7721
        %7936 = vadd.xlane.f32.xlu0 %v7935
        %v7937 = vpop.xlane.xlu0 %7936
        %v7938 = vadd.f32 %v7723, %v7725
        %7939 = vadd.xlane.f32.xlu0 %v7938
        %v7940 = vpop.xlane.xlu0 %7939
        %v7941 = vadd.f32 %v7727, %v7729
        %7942 = vadd.xlane.f32.xlu0 %v7941
        %v7943 = vpop.xlane.xlu0 %7942
        %v7944 = vadd.f32 %v7731, %v7733
        %7945 = vadd.xlane.f32.xlu0 %v7944
        %v7946 = vpop.xlane.xlu0 %7945
        %v7947 = vadd.f32 %v7735, %v7737
        %7948 = vadd.xlane.f32.xlu0 %v7947
        %v7949 = vpop.xlane.xlu0 %7948
        %v7950 = vadd.f32 %v7739, %v7741
        %7951 = vadd.xlane.f32.xlu0 %v7950
        %v7952 = vpop.xlane.xlu0 %7951
        %v7953 = vadd.f32 %v7743, %v7745
        %7954 = vadd.xlane.f32.xlu0 %v7953
        %v7955 = vpop.xlane.xlu0 %7954
        %v7956 = vadd.f32 %v7747, %v7749
        %7957 = vadd.xlane.f32.xlu0 %v7956
        %v7958 = vpop.xlane.xlu0 %7957
        %v7959 = vadd.f32 %v7751, %v7753
        %7960 = vadd.xlane.f32.xlu0 %v7959
        %v7961 = vpop.xlane.xlu0 %7960
        %v7962 = vadd.f32 %v7755, %v7757
        %7963 = vadd.xlane.f32.xlu0 %v7962
        %v7964 = vpop.xlane.xlu0 %7963
        %v7965 = vadd.f32 %v7759, %v7761
        %7966 = vadd.xlane.f32.xlu0 %v7965
        %v7967 = vpop.xlane.xlu0 %7966
        %v7968 = vadd.f32 %v7763, %v7765
        %7969 = vadd.xlane.f32.xlu0 %v7968
        %v7970 = vpop.xlane.xlu0 %7969
        %v7971 = vadd.f32 %v7767, %v7769
        %7972 = vadd.xlane.f32.xlu0 %v7971
        %v7973 = vpop.xlane.xlu0 %7972
        %v7974 = vadd.f32 %v7771, %v7773
        %7975 = vadd.xlane.f32.xlu0 %v7974
        %v7976 = vpop.xlane.xlu0 %7975
        %v7977 = vadd.f32 %v7775, %v7777
        %7978 = vadd.xlane.f32.xlu0 %v7977
        %v7979 = vpop.xlane.xlu0 %7978
        %v7980 = vadd.f32 %v7779, %v7781
        %7981 = vadd.xlane.f32.xlu0 %v7980
        %v7982 = vpop.xlane.xlu0 %7981
        %v7983 = vadd.f32 %v7783, %v7785
        %7984 = vadd.xlane.f32.xlu0 %v7983
        %v7985 = vpop.xlane.xlu0 %7984
        %v7986 = vadd.f32 %v7787, %v7789
        %7987 = vadd.xlane.f32.xlu0 %v7986
        %v7988 = vpop.xlane.xlu0 %7987
        %v7989 = vadd.f32 %v7791, %v7793
        %7990 = vadd.xlane.f32.xlu0 %v7989
        %v7991 = vpop.xlane.xlu0 %7990
        %v7992 = vadd.f32 %v7795, %v7797
        %7993 = vadd.xlane.f32.xlu0 %v7992
        %v7994 = vpop.xlane.xlu0 %7993
        %v7995 = vadd.f32 %v7799, %v7801
        %7996 = vadd.xlane.f32.xlu0 %v7995
        %v7997 = vpop.xlane.xlu0 %7996
        %v7998 = vadd.f32 %v7803, %v7805
        %7999 = vadd.xlane.f32.xlu0 %v7998
        %v8000 = vpop.xlane.xlu0 %7999
        %v8001 = vadd.f32 %v7807, %v7809
        %8002 = vadd.xlane.f32.xlu0 %v8001
        %v8003 = vpop.xlane.xlu0 %8002
        %v8004 = vadd.f32 %v7811, %v7813
        %8005 = vadd.xlane.f32.xlu0 %v8004
        %v8006 = vpop.xlane.xlu0 %8005
        %v8007 = vadd.f32 %v7815, %v7817
        %8008 = vadd.xlane.f32.xlu0 %v8007
        %v8009 = vpop.xlane.xlu0 %8008
        %v8010 = vrcp.pop %v7820
        %v8011 = vrcp.pop %v7823
        %v8012 = vrcp.pop %v7826
        %v8013 = vrcp.pop %v7829
        %v8014 = vrcp.pop %v7832
        %v8015 = vrcp.pop %v7835
        %v8016 = vrcp.pop %v7838
        %v8017 = vrcp.pop %v7841
        %v8018 = vrcp.pop %v7844
        %v8019 = vrcp.pop %v7847
        %v8020 = vrcp.pop %v7850
        %v8021 = vrcp.pop %v7853
        %v8022 = vrcp.pop %v7856
        %v8023 = vrcp.pop %v7859
        %v8024 = vrcp.pop %v7862
        %v8025 = vrcp.pop %v7865
        %v8026 = vrcp.pop %v7868
        %v8027 = vrcp.pop %v7871
        %v8028 = vrcp.pop %v7874
        %v8029 = vrcp.pop %v7877
        %v8030 = vrcp.pop %v7880
        %v8031 = vrcp.pop %v7883
        %v8032 = vrcp.pop %v7886
        %v8033 = vrcp.pop %v7889
        %v8034 = vrcp.pop %v7892
        %v8035 = vrcp.pop %v7895
        %v8036 = vrcp.pop %v7898
        %v8037 = vrcp.pop %v7901
        %v8038 = vrcp.pop %v7904
        %v8039 = vrcp.pop %v7907
        %v8040 = vrcp.pop %v7910
        %v8041 = vrcp.pop %v7913
        %v8042 = vrcp.pop %v7916
        %v8043 = vrcp.pop %v7919
        %v8044 = vrcp.pop %v7922
        %v8045 = vrcp.pop %v7925
        %v8046 = vrcp.pop %v7928
        %v8047 = vrcp.pop %v7931
        %v8048 = vrcp.pop %v7934
        %v8049 = vrcp.pop %v7937
        %v8050 = vrcp.pop %v7940
        %v8051 = vrcp.pop %v7943
        %v8052 = vrcp.pop %v7946
        %v8053 = vrcp.pop %v7949
        %v8054 = vrcp.pop %v7952
        %v8055 = vrcp.pop %v7955
        %v8056 = vrcp.pop %v7958
        %v8057 = vrcp.pop %v7961
        %v8058 = vrcp.pop %v7964
        %v8059 = vrcp.pop %v7967
        %v8060 = vrcp.pop %v7970
        %v8061 = vrcp.pop %v7973
        %v8062 = vrcp.pop %v7976
        %v8063 = vrcp.pop %v7979
        %v8064 = vrcp.pop %v7982
        %v8065 = vrcp.pop %v7985
        %v8066 = vrcp.pop %v7988
        %v8067 = vrcp.pop %v7991
        %v8068 = vrcp.pop %v7994
        %v8069 = vrcp.pop %v7997
        %v8070 = vrcp.pop %v8000
        %v8071 = vrcp.pop %v8003
        %v8072 = vrcp.pop %v8006
        %v8073 = vrcp.pop %v8009
        %v8074 = vmul.f32 %v7563, %v8010
        %v8075 = vmul.f32 %v7565, %v8010
        %v8076 = vmul.f32 %v7567, %v8011
        %v8077 = vmul.f32 %v7569, %v8011
        %v8078 = vmul.f32 %v7571, %v8012
        %v8079 = vmul.f32 %v7573, %v8012
        %v8080 = vmul.f32 %v7575, %v8013
        %v8081 = vmul.f32 %v7577, %v8013
        %v8082 = vmul.f32 %v7579, %v8014
        %v8083 = vmul.f32 %v7581, %v8014
        %v8084 = vmul.f32 %v7583, %v8015
        %v8085 = vmul.f32 %v7585, %v8015
        %v8086 = vmul.f32 %v7587, %v8016
        %v8087 = vmul.f32 %v7589, %v8016
        %v8088 = vmul.f32 %v7591, %v8017
        %v8089 = vmul.f32 %v7593, %v8017
        %v8090 = vmul.f32 %v7595, %v8018
        %v8091 = vmul.f32 %v7597, %v8018
        %v8092 = vmul.f32 %v7599, %v8019
        %v8093 = vmul.f32 %v7601, %v8019
        %v8094 = vmul.f32 %v7603, %v8020
        %v8095 = vmul.f32 %v7605, %v8020
        %v8096 = vmul.f32 %v7607, %v8021
        %v8097 = vmul.f32 %v7609, %v8021
        %v8098 = vmul.f32 %v7611, %v8022
        %v8099 = vmul.f32 %v7613, %v8022
        %v8100 = vmul.f32 %v7615, %v8023
        %v8101 = vmul.f32 %v7617, %v8023
        %v8102 = vmul.f32 %v7619, %v8024
        %v8103 = vmul.f32 %v7621, %v8024
        %v8104 = vmul.f32 %v7623, %v8025
        %v8105 = vmul.f32 %v7625, %v8025
        %v8106 = vmul.f32 %v7627, %v8026
        %v8107 = vmul.f32 %v7629, %v8026
        %v8108 = vmul.f32 %v7631, %v8027
        %v8109 = vmul.f32 %v7633, %v8027
        %v8110 = vmul.f32 %v7635, %v8028
        %v8111 = vmul.f32 %v7637, %v8028
        %v8112 = vmul.f32 %v7639, %v8029
        %v8113 = vmul.f32 %v7641, %v8029
        %v8114 = vmul.f32 %v7643, %v8030
        %v8115 = vmul.f32 %v7645, %v8030
        %v8116 = vmul.f32 %v7647, %v8031
        %v8117 = vmul.f32 %v7649, %v8031
        %v8118 = vmul.f32 %v7651, %v8032
        %v8119 = vmul.f32 %v7653, %v8032
        %v8120 = vmul.f32 %v7655, %v8033
        %v8121 = vmul.f32 %v7657, %v8033
        %v8122 = vmul.f32 %v7659, %v8034
        %v8123 = vmul.f32 %v7661, %v8034
        %v8124 = vmul.f32 %v7663, %v8035
        %v8125 = vmul.f32 %v7665, %v8035
        %v8126 = vmul.f32 %v7667, %v8036
        %v8127 = vmul.f32 %v7669, %v8036
        %v8128 = vmul.f32 %v7671, %v8037
        %v8129 = vmul.f32 %v7673, %v8037
        %v8130 = vmul.f32 %v7675, %v8038
        %v8131 = vmul.f32 %v7677, %v8038
        %v8132 = vmul.f32 %v7679, %v8039
        %v8133 = vmul.f32 %v7681, %v8039
        %v8134 = vmul.f32 %v7683, %v8040
        %v8135 = vmul.f32 %v7685, %v8040
        %v8136 = vmul.f32 %v7687, %v8041
        %v8137 = vmul.f32 %v7689, %v8041
        %v8138 = vmul.f32 %v7691, %v8042
        %v8139 = vmul.f32 %v7693, %v8042
        %v8140 = vmul.f32 %v7695, %v8043
        %v8141 = vmul.f32 %v7697, %v8043
        %v8142 = vmul.f32 %v7699, %v8044
        %v8143 = vmul.f32 %v7701, %v8044
        %v8144 = vmul.f32 %v7703, %v8045
        %v8145 = vmul.f32 %v7705, %v8045
        %v8146 = vmul.f32 %v7707, %v8046
        %v8147 = vmul.f32 %v7709, %v8046
        %v8148 = vmul.f32 %v7711, %v8047
        %v8149 = vmul.f32 %v7713, %v8047
        %v8150 = vmul.f32 %v7715, %v8048
        %v8151 = vmul.f32 %v7717, %v8048
        %v8152 = vmul.f32 %v7719, %v8049
        %v8153 = vmul.f32 %v7721, %v8049
        %v8154 = vmul.f32 %v7723, %v8050
        %v8155 = vmul.f32 %v7725, %v8050
        %v8156 = vmul.f32 %v7727, %v8051
        %v8157 = vmul.f32 %v7729, %v8051
        %v8158 = vmul.f32 %v7731, %v8052
        %v8159 = vmul.f32 %v7733, %v8052
        %v8160 = vmul.f32 %v7735, %v8053
        %v8161 = vmul.f32 %v7737, %v8053
        %v8162 = vmul.f32 %v7739, %v8054
        %v8163 = vmul.f32 %v7741, %v8054
        %v8164 = vmul.f32 %v7743, %v8055
        %v8165 = vmul.f32 %v7745, %v8055
        %v8166 = vmul.f32 %v7747, %v8056
        %v8167 = vmul.f32 %v7749, %v8056
        %v8168 = vmul.f32 %v7751, %v8057
        %v8169 = vmul.f32 %v7753, %v8057
        %v8170 = vmul.f32 %v7755, %v8058
        %v8171 = vmul.f32 %v7757, %v8058
        %v8172 = vmul.f32 %v7759, %v8059
        %v8173 = vmul.f32 %v7761, %v8059
        %v8174 = vmul.f32 %v7763, %v8060
        %v8175 = vmul.f32 %v7765, %v8060
        %v8176 = vmul.f32 %v7767, %v8061
        %v8177 = vmul.f32 %v7769, %v8061
        %v8178 = vmul.f32 %v7771, %v8062
        %v8179 = vmul.f32 %v7773, %v8062
        %v8180 = vmul.f32 %v7775, %v8063
        %v8181 = vmul.f32 %v7777, %v8063
        %v8182 = vmul.f32 %v7779, %v8064
        %v8183 = vmul.f32 %v7781, %v8064
        %v8184 = vmul.f32 %v7783, %v8065
        %v8185 = vmul.f32 %v7785, %v8065
        %v8186 = vmul.f32 %v7787, %v8066
        %v8187 = vmul.f32 %v7789, %v8066
        %v8188 = vmul.f32 %v7791, %v8067
        %v8189 = vmul.f32 %v7793, %v8067
        %v8190 = vmul.f32 %v7795, %v8068
        %v8191 = vmul.f32 %v7797, %v8068
        %v8192 = vmul.f32 %v7799, %v8069
        %v8193 = vmul.f32 %v7801, %v8069
        %v8194 = vmul.f32 %v7803, %v8070
        %v8195 = vmul.f32 %v7805, %v8070
        %v8196 = vmul.f32 %v7807, %v8071
        %v8197 = vmul.f32 %v7809, %v8071
        %v8198 = vmul.f32 %v7811, %v8072
        %v8199 = vmul.f32 %v7813, %v8072
        %v8200 = vmul.f32 %v7815, %v8073
        %v8201 = vmul.f32 %v7817, %v8073
        %8202 = vmatpush.xpose.msra.mxu0 %v8104
        %8203 = vmatpush.xpose.msra.mxu0 %v8102
        %8204 = vmatpush.xpose.msra.mxu0 %v8100
        %8205 = vmatpush.xpose.msra.mxu0 %v8098
        %8206 = vmatpush.xpose.msra.mxu0 %v8096
        %8207 = vmatpush.xpose.msra.mxu0 %v8094
        %8208 = vmatpush.xpose.msra.mxu0 %v8092
        %8209 = vmatpush.xpose.msra.mxu0 %v8090
        %8210 = vmatpush.xpose.msra.mxu0 %v8088
        %8211 = vmatpush.xpose.msra.mxu0 %v8086
        %8212 = vmatpush.xpose.msra.mxu0 %v8084
        %8213 = vmatpush.xpose.msra.mxu0 %v8082
        %8214 = vmatpush.xpose.msra.mxu0 %v8080
        %8215 = vmatpush.xpose.msra.mxu0 %v8078
        %8216 = vmatpush.xpose.msra.mxu0 %v8076
        %8217 = vmatpush.xpose.msra.mxu0 %v8074
        %8218 = vmatmul.f32.gmra.mxu0 %v6430
        %v8219 = vpop.f32.mrf.mxu0
        %v8220 = vadd.f32 0.0, %v8219
        %8221 = vdwg.mxu0
        %8222 = vmatpush.xpose.msra.mxu0 %v8105
        %8223 = vmatpush.xpose.msra.mxu0 %v8103
        %8224 = vmatpush.xpose.msra.mxu0 %v8101
        %8225 = vmatpush.xpose.msra.mxu0 %v8099
        %8226 = vmatpush.xpose.msra.mxu0 %v8097
        %8227 = vmatpush.xpose.msra.mxu0 %v8095
        %8228 = vmatpush.xpose.msra.mxu0 %v8093
        %8229 = vmatpush.xpose.msra.mxu0 %v8091
        %8230 = vmatpush.xpose.msra.mxu0 %v8089
        %8231 = vmatpush.xpose.msra.mxu0 %v8087
        %8232 = vmatpush.xpose.msra.mxu0 %v8085
        %8233 = vmatpush.xpose.msra.mxu0 %v8083
        %8234 = vmatpush.xpose.msra.mxu0 %v8081
        %8235 = vmatpush.xpose.msra.mxu0 %v8079
        %8236 = vmatpush.xpose.msra.mxu0 %v8077
        %8237 = vmatpush.xpose.msra.mxu0 %v8075
        %8238 = vmatmul.f32.gmra.mxu0 %v6465
        %v8239 = vpop.f32.mrf.mxu0
        %v8240 = vadd.f32 %v8220, %v8239
        %8241 = vdwg.mxu0
        %8242 = vmatpush.xpose.msra.mxu0 %v8136
        %8243 = vmatpush.xpose.msra.mxu0 %v8134
        %8244 = vmatpush.xpose.msra.mxu0 %v8132
        %8245 = vmatpush.xpose.msra.mxu0 %v8130
        %8246 = vmatpush.xpose.msra.mxu0 %v8128
        %8247 = vmatpush.xpose.msra.mxu0 %v8126
        %8248 = vmatpush.xpose.msra.mxu0 %v8124
        %8249 = vmatpush.xpose.msra.mxu0 %v8122
        %8250 = vmatpush.xpose.msra.mxu0 %v8120
        %8251 = vmatpush.xpose.msra.mxu0 %v8118
        %8252 = vmatpush.xpose.msra.mxu0 %v8116
        %8253 = vmatpush.xpose.msra.mxu0 %v8114
        %8254 = vmatpush.xpose.msra.mxu0 %v8112
        %8255 = vmatpush.xpose.msra.mxu0 %v8110
        %8256 = vmatpush.xpose.msra.mxu0 %v8108
        %8257 = vmatpush.xpose.msra.mxu0 %v8106
        %8258 = vmatmul.f32.gmra.mxu0 %v6430
        %v8259 = vpop.f32.mrf.mxu0
        %v8260 = vadd.f32 0.0, %v8259
        %8261 = vdwg.mxu0
        %8262 = vmatpush.xpose.msra.mxu0 %v8137
        %8263 = vmatpush.xpose.msra.mxu0 %v8135
        %8264 = vmatpush.xpose.msra.mxu0 %v8133
        %8265 = vmatpush.xpose.msra.mxu0 %v8131
        %8266 = vmatpush.xpose.msra.mxu0 %v8129
        %8267 = vmatpush.xpose.msra.mxu0 %v8127
        %8268 = vmatpush.xpose.msra.mxu0 %v8125
        %8269 = vmatpush.xpose.msra.mxu0 %v8123
        %8270 = vmatpush.xpose.msra.mxu0 %v8121
        %8271 = vmatpush.xpose.msra.mxu0 %v8119
        %8272 = vmatpush.xpose.msra.mxu0 %v8117
        %8273 = vmatpush.xpose.msra.mxu0 %v8115
        %8274 = vmatpush.xpose.msra.mxu0 %v8113
        %8275 = vmatpush.xpose.msra.mxu0 %v8111
        %8276 = vmatpush.xpose.msra.mxu0 %v8109
        %8277 = vmatpush.xpose.msra.mxu0 %v8107
        %8278 = vmatmul.f32.gmra.mxu0 %v6465
        %v8279 = vpop.f32.mrf.mxu0
        %v8280 = vadd.f32 %v8260, %v8279
        %8281 = vdwg.mxu0
        %8282 = vmatpush.xpose.msra.mxu0 %v8168
        %8283 = vmatpush.xpose.msra.mxu0 %v8166
        %8284 = vmatpush.xpose.msra.mxu0 %v8164
        %8285 = vmatpush.xpose.msra.mxu0 %v8162
        %8286 = vmatpush.xpose.msra.mxu0 %v8160
        %8287 = vmatpush.xpose.msra.mxu0 %v8158
        %8288 = vmatpush.xpose.msra.mxu0 %v8156
        %8289 = vmatpush.xpose.msra.mxu0 %v8154
        %8290 = vmatpush.xpose.msra.mxu0 %v8152
        %8291 = vmatpush.xpose.msra.mxu0 %v8150
        %8292 = vmatpush.xpose.msra.mxu0 %v8148
        %8293 = vmatpush.xpose.msra.mxu0 %v8146
        %8294 = vmatpush.xpose.msra.mxu0 %v8144
        %8295 = vmatpush.xpose.msra.mxu0 %v8142
        %8296 = vmatpush.xpose.msra.mxu0 %v8140
        %8297 = vmatpush.xpose.msra.mxu0 %v8138
        %8298 = vmatmul.f32.gmra.mxu0 %v6433
        %v8299 = vpop.f32.mrf.mxu0
        %v8300 = vadd.f32 0.0, %v8299
        %8301 = vdwg.mxu0
        %8302 = vmatpush.xpose.msra.mxu0 %v8169
        %8303 = vmatpush.xpose.msra.mxu0 %v8167
        %8304 = vmatpush.xpose.msra.mxu0 %v8165
        %8305 = vmatpush.xpose.msra.mxu0 %v8163
        %8306 = vmatpush.xpose.msra.mxu0 %v8161
        %8307 = vmatpush.xpose.msra.mxu0 %v8159
        %8308 = vmatpush.xpose.msra.mxu0 %v8157
        %8309 = vmatpush.xpose.msra.mxu0 %v8155
        %8310 = vmatpush.xpose.msra.mxu0 %v8153
        %8311 = vmatpush.xpose.msra.mxu0 %v8151
        %8312 = vmatpush.xpose.msra.mxu0 %v8149
        %8313 = vmatpush.xpose.msra.mxu0 %v8147
        %8314 = vmatpush.xpose.msra.mxu0 %v8145
        %8315 = vmatpush.xpose.msra.mxu0 %v8143
        %8316 = vmatpush.xpose.msra.mxu0 %v8141
        %8317 = vmatpush.xpose.msra.mxu0 %v8139
        %8318 = vmatmul.f32.gmra.mxu0 %v6468
        %v8319 = vpop.f32.mrf.mxu0
        %v8320 = vadd.f32 %v8300, %v8319
        %8321 = vdwg.mxu0
        %8322 = vmatpush.xpose.msra.mxu0 %v8200
        %8323 = vmatpush.xpose.msra.mxu0 %v8198
        %8324 = vmatpush.xpose.msra.mxu0 %v8196
        %8325 = vmatpush.xpose.msra.mxu0 %v8194
        %8326 = vmatpush.xpose.msra.mxu0 %v8192
        %8327 = vmatpush.xpose.msra.mxu0 %v8190
        %8328 = vmatpush.xpose.msra.mxu0 %v8188
        %8329 = vmatpush.xpose.msra.mxu0 %v8186
        %8330 = vmatpush.xpose.msra.mxu0 %v8184
        %8331 = vmatpush.xpose.msra.mxu0 %v8182
        %8332 = vmatpush.xpose.msra.mxu0 %v8180
        %8333 = vmatpush.xpose.msra.mxu0 %v8178
        %8334 = vmatpush.xpose.msra.mxu0 %v8176
        %8335 = vmatpush.xpose.msra.mxu0 %v8174
        %8336 = vmatpush.xpose.msra.mxu0 %v8172
        %8337 = vmatpush.xpose.msra.mxu0 %v8170
        %8338 = vmatmul.f32.gmra.mxu0 %v6433
        %v8339 = vpop.f32.mrf.mxu0
        %v8340 = vadd.f32 0.0, %v8339
        %8341 = vdwg.mxu0
        %8342 = vmatpush.xpose.msra.mxu0 %v8201
        %8343 = vmatpush.xpose.msra.mxu0 %v8199
        %8344 = vmatpush.xpose.msra.mxu0 %v8197
        %8345 = vmatpush.xpose.msra.mxu0 %v8195
        %8346 = vmatpush.xpose.msra.mxu0 %v8193
        %8347 = vmatpush.xpose.msra.mxu0 %v8191
        %8348 = vmatpush.xpose.msra.mxu0 %v8189
        %8349 = vmatpush.xpose.msra.mxu0 %v8187
        %8350 = vmatpush.xpose.msra.mxu0 %v8185
        %8351 = vmatpush.xpose.msra.mxu0 %v8183
        %8352 = vmatpush.xpose.msra.mxu0 %v8181
        %8353 = vmatpush.xpose.msra.mxu0 %v8179
        %8354 = vmatpush.xpose.msra.mxu0 %v8177
        %8355 = vmatpush.xpose.msra.mxu0 %v8175
        %8356 = vmatpush.xpose.msra.mxu0 %v8173
        %8357 = vmatpush.xpose.msra.mxu0 %v8171
        %8358 = vmatmul.f32.gmra.mxu0 %v6468
        %v8359 = vpop.f32.mrf.mxu0
        %v8360 = vadd.f32 %v8340, %v8359
        %8361 = vdwg.mxu0
        %8362 = vmatpush.msra.mxu0 0.0
        %8363 = vmatpush.msra.mxu0 0.0
        %8364 = vmatpush.msra.mxu0 0.0
        %8365 = vmatpush.msra.mxu0 0.0
        %8366 = vmatpush.msra.mxu0 0.0
        %8367 = vmatpush.msra.mxu0 0.0
        %8368 = vmatpush.msra.mxu0 0.0
        %8369 = vmatpush.msra.mxu0 0.0
        %8370 = vmatpush.msra.mxu0 0.0
        %8371 = vmatpush.msra.mxu0 0.0
        %8372 = vmatpush.msra.mxu0 0.0
        %8373 = vmatpush.msra.mxu0 0.0
        %8374 = vmatpush.msra.mxu0 0.0
        %8375 = vmatpush.msra.mxu0 0.0
        %8376 = vmatpush.msra.mxu0 %v8320
        %8377 = vmatpush.msra.mxu0 %v8240
        %8378 = vmatmul.f32.gmra.mxu0 %v2283
        %v8379 = vpop.f32.mrf.mxu0
        %v8380 = vadd.f32 %v2279, %v8379
        %8381 = vdwg.mxu0
        %8382 = vmatpush.msra.mxu0 0.0
        %8383 = vmatpush.msra.mxu0 0.0
        %8384 = vmatpush.msra.mxu0 0.0
        %8385 = vmatpush.msra.mxu0 0.0
        %8386 = vmatpush.msra.mxu0 0.0
        %8387 = vmatpush.msra.mxu0 0.0
        %8388 = vmatpush.msra.mxu0 0.0
        %8389 = vmatpush.msra.mxu0 0.0
        %8390 = vmatpush.msra.mxu0 0.0
        %8391 = vmatpush.msra.mxu0 0.0
        %8392 = vmatpush.msra.mxu0 0.0
        %8393 = vmatpush.msra.mxu0 0.0
        %8394 = vmatpush.msra.mxu0 0.0
        %8395 = vmatpush.msra.mxu0 0.0
        %8396 = vmatpush.msra.mxu0 %v8360
        %8397 = vmatpush.msra.mxu0 %v8280
        %8398 = vmatmul.f32.gmra.mxu0 %v2283
        %v8399 = vpop.f32.mrf.mxu0
        %v8400 = vadd.f32 %v2279, %v8399
        %8401 = vdwg.mxu0
        %8402 = vst [vmem:[#allocation1] ss:$2 sm:$0xff] %v6391
        %v8403 = vld.sshfl [vmem:[#allocation1] sm:$0xff pattern:$0x75316420]
        %v8404 = vld.sshfl [vmem:[#allocation1 + $0x8] sm:$0xff pattern:$0x75316420]
        %v8407 = vadd.f32 %v8380, %v8403
        %v8408 = vadd.f32 %v8400, %v8404
        %v8411 = vrot.slane %v8408, 4
        %v8412 = vsel %vm308, %v8407, %v8411
        %s8414 = scalar_lea.vmem %s239, 24
        %8415 = vst [vmem:[%s8414] sm:$0xff] %v8412
        %p8416 = scmp.lt.s32.totalorder %s17, 1
        %s8417 = scalar_select %p8416, %s17, 1
        %s8418 = smul.addr %s8417, 8
        %s8419 = smul.addr %s8418, 4
        %s8420 = scalar_lea.vmem %s5, %s8419
        // Predicated region
        $region45: #{vit_encoder_forward.2} parent=39 // pred_check
          %p8421 = pneg %p145
        $region46: #{vit_encoder_forward.2} parent=39 // pred_check_branch
          %8423 = sbr.rel (%p8421) target = $region48
        $region47: #{vit_encoder_forward.2} parent=39 // pred_region
          _
        $region48: #{vit_encoder_forward.2} parent=39 // pred_fallthru
          _
      $region40: #{vit_encoder_forward.2} parent=5 // pred_fallthru
        _
      %p8424 = scmp.le.s32.totalorder 2, %s12
      // Predicated region
      $region49: #{vit_encoder_forward.2} parent=5 // pred_check
        %p8425 = pneg %p8424
      $region50: #{vit_encoder_forward.2} parent=5 // pred_check_branch
        %8427 = sbr.rel (%p8425) target = $region52
      $region51: #{vit_encoder_forward.2} parent=5 // pred_region
        %s8428 = ssub.s32 %s12, 2
        // Predicated region
        $region53: #{vit_encoder_forward.2} parent=51 // pred_check
          %p8429 = pneg %p151
        $region54: #{vit_encoder_forward.2} parent=51 // pred_check_branch
          %8431 = sbr.rel (%p8429) target = $region56
        $region55: #{vit_encoder_forward.2} parent=51 // pred_region
          %p8432 = scmp.lt.s32.totalorder %s18, 1
          %s8433 = scalar_select %p8432, %s18, 1
          %s8434 = smul.addr %s8433, 8
          %s8435 = smul.addr %s8434, 4
          %s8436 = scalar_lea.vmem %s5, %s8435
        $region56: #{vit_encoder_forward.2} parent=51 // pred_fallthru
          _
      $region52: #{vit_encoder_forward.2} parent=5 // pred_fallthru
        _
    $region6: #{vit_encoder_forward.2} parent=1 // loop_footer
      %s16 = sadd.s32 1, %s12
    $region7: #{vit_encoder_forward.2} parent=1 // loop_footer_branch
      %11 = sbr.rel target = $region3
    $region8: #{vit_encoder_forward.2} parent=1 // loop_exit
      _
    %8437 = vsyncpa [#allocation3], 1
    %s8438 = scalar_lea.sflag [#allocation3], 1
    %8439 = vsyncpa %s8438, 1

// kernel: vit_encoder_forward.3
$region0: #{vit_encoder_forward.3}
  #allocation0 [shape = 'u32[]', space=smem, size = 0x4, offset = 0x4, fixed_abs, tag = 'smem constant byte address 0x4 - core index']
  #allocation1 [shape = 'u32[72,128]{1,0:T(1,128)}', space=vmem, size = 0x9000, scoped, tag = 'internal scratch']
  %s0 = inlined_call_operand.vmem [shape: f32[2,4,4,9,9,4], index: 0, kind: input, shape index: {}]
  %s1 = inlined_call_operand.vmem [shape: f32[4,36,16], index: 1, kind: input, shape index: {}]
  %s2 = inlined_call_operand.vmem [shape: f32[8,1], index: 2, kind: input, shape index: {}]
  %s3 = inlined_call_operand.vmem [shape: f32[4,8,64], index: 3, kind: input, shape index: {}]
  %s4 = inlined_call_operand.vmem [shape: f32[2,4,8,64], index: 4, kind: output, shape index: {}]
  %s5 = sld [smem:[#allocation0]]
  $region49: #{vit_encoder_forward.3} parent=0
    _
  %s7 = ssub.s32 1, %s5
  %s8 = scalar_select 0, %s7, %s5
  loop: start=0, step=1, limit=4
  $region2: #{vit_encoder_forward.3} parent=0 // loop_pre_header
    _
  $region3: #{vit_encoder_forward.3} parent=0 // loop_header
    %s10 = sphi 0, %s14
    %p11 = scmp.ge.s32.totalorder %s10, 4
    %s20 = sphi 0, %s22
    %s23 = sphi 0, %s20
    %s24 = sphi 0, %s23
    %s40 = sphi 0, %s24
    %s44 = sphi 0, %s44
    %s46 = sphi 0, %s44
    %s47 = sphi 0, %s46
    %s61 = sphi 0, %s47
    %s65 = sphi 0, %s65
    %s67 = sphi 0, %s65
    %s68 = sphi 0, %s67
    %s82 = sphi 0, %s68
    %s86 = sphi 0, %s86
    %s88 = sphi 0, %s86
    %s89 = sphi 0, %s88
    %s103 = sphi 0, %s89
    %s109 = sphi 0, %s111
    %s112 = sphi 0, %s109
    %s113 = sphi 0, %s112
    %s129 = sphi 0, %s113
  $region4: #{vit_encoder_forward.3} parent=0 // loop_header_branch
    %13 = sbr.rel (%p11) target = $region8
  $region5: #{vit_encoder_forward.3} parent=0 // loop_body
    %s15 = ssub.s32 %s10, 1
    %s16 = ssub.s32 %s10, 2
    %s17 = sadd.s32 %s10, 1
    %s18 = ssub.s32 %s10, %s17
    %p19 = scmp.eq.s32.totalorder %s18, 0
    %s21 = sadd.s32 %s20, 1
    %s22 = scalar_select %p19, %s20, %s21
    %p25 = pneg %p19
    %p26 = scmp.eq.s32.totalorder %s10, 1
    %p27 = por %p25, %p26
    %p28 = scmp.ne.s32.totalorder %s20, %s23
    %p29 = scmp.eq.s32.totalorder %s10, 0
    %p30 = por %p28, %p29
    %p31 = scmp.ne.s32.totalorder %s20, %s23
    %p32 = scmp.eq.s32.totalorder %s15, 1
    %p33 = por %p31, %p32
    %p34 = scmp.ne.s32.totalorder %s23, %s24
    %p35 = scmp.eq.s32.totalorder %s15, 0
    %p36 = por %p34, %p35
    %p37 = scmp.ne.s32.totalorder %s23, %s24
    %p38 = scmp.eq.s32.totalorder %s16, 1
    %p39 = por %p37, %p38
    %p41 = scmp.ne.s32.totalorder %s24, %s40
    %p42 = scmp.eq.s32.totalorder %s16, 0
    %p43 = por %p41, %p42
    %s45 = sadd.s32 %s44, 1
    %p48 = scmp.eq.s32.totalorder %s10, 1
    %p49 = scmp.ne.s32.totalorder %s44, %s46
    %p50 = scmp.eq.s32.totalorder %s10, 0
    %p51 = por %p49, %p50
    %p52 = scmp.ne.s32.totalorder %s44, %s46
    %p53 = scmp.eq.s32.totalorder %s15, 1
    %p54 = por %p52, %p53
    %p55 = scmp.ne.s32.totalorder %s46, %s47
    %p56 = scmp.eq.s32.totalorder %s15, 0
    %p57 = por %p55, %p56
    %p58 = scmp.ne.s32.totalorder %s46, %s47
    %p59 = scmp.eq.s32.totalorder %s16, 1
    %p60 = por %p58, %p59
    %p62 = scmp.ne.s32.totalorder %s47, %s61
    %p63 = scmp.eq.s32.totalorder %s16, 0
    %p64 = por %p62, %p63
    %s66 = sadd.s32 %s65, 1
    %p69 = scmp.eq.s32.totalorder %s10, 1
    %p70 = scmp.ne.s32.totalorder %s65, %s67
    %p71 = scmp.eq.s32.totalorder %s10, 0
    %p72 = por %p70, %p71
    %p73 = scmp.ne.s32.totalorder %s65, %s67
    %p74 = scmp.eq.s32.totalorder %s15, 1
    %p75 = por %p73, %p74
    %p76 = scmp.ne.s32.totalorder %s67, %s68
    %p77 = scmp.eq.s32.totalorder %s15, 0
    %p78 = por %p76, %p77
    %p79 = scmp.ne.s32.totalorder %s67, %s68
    %p80 = scmp.eq.s32.totalorder %s16, 1
    %p81 = por %p79, %p80
    %p83 = scmp.ne.s32.totalorder %s68, %s82
    %p84 = scmp.eq.s32.totalorder %s16, 0
    %p85 = por %p83, %p84
    %s87 = sadd.s32 %s86, 1
    %p90 = scmp.eq.s32.totalorder %s10, 1
    %p91 = scmp.ne.s32.totalorder %s86, %s88
    %p92 = scmp.eq.s32.totalorder %s10, 0
    %p93 = por %p91, %p92
    %p94 = scmp.ne.s32.totalorder %s86, %s88
    %p95 = scmp.eq.s32.totalorder %s15, 1
    %p96 = por %p94, %p95
    %p97 = scmp.ne.s32.totalorder %s88, %s89
    %p98 = scmp.eq.s32.totalorder %s15, 0
    %p99 = por %p97, %p98
    %p100 = scmp.ne.s32.totalorder %s88, %s89
    %p101 = scmp.eq.s32.totalorder %s16, 1
    %p102 = por %p100, %p101
    %p104 = scmp.ne.s32.totalorder %s89, %s103
    %p105 = scmp.eq.s32.totalorder %s16, 0
    %p106 = por %p104, %p105
    %s107 = ssub.s32 %s10, %s17
    %p108 = scmp.eq.s32.totalorder %s107, 0
    %s110 = sadd.s32 %s109, 1
    %s111 = scalar_select %p108, %s109, %s110
    %p114 = pneg %p108
    %p115 = scmp.eq.s32.totalorder %s10, 1
    %p116 = por %p114, %p115
    %p117 = scmp.ne.s32.totalorder %s109, %s112
    %p118 = scmp.eq.s32.totalorder %s10, 0
    %p119 = por %p117, %p118
    %p120 = scmp.ne.s32.totalorder %s109, %s112
    %p121 = scmp.eq.s32.totalorder %s15, 1
    %p122 = por %p120, %p121
    %p123 = scmp.ne.s32.totalorder %s112, %s113
    %p124 = scmp.eq.s32.totalorder %s15, 0
    %p125 = por %p123, %p124
    %p126 = scmp.ne.s32.totalorder %s112, %s113
    %p127 = scmp.eq.s32.totalorder %s16, 1
    %p128 = por %p126, %p127
    %p130 = scmp.ne.s32.totalorder %s113, %s129
    %p131 = scmp.eq.s32.totalorder %s16, 0
    %p132 = por %p130, %p131
    %p133 = scmp.le.s32.totalorder 1, %s10
    %p134 = scmp.lt.s32.totalorder %s10, 3
    %p135 = pnand %p133, %p134
    %p136 = pneg %p135
    // Predicated region
    $region9: #{vit_encoder_forward.3} parent=5 // pred_check
      _
    $region10: #{vit_encoder_forward.3} parent=5 // pred_check_branch
      %138 = sbr.rel (%p135) target = $region12
    $region11: #{vit_encoder_forward.3} parent=5 // pred_region
      %s139 = ssub.s32 %s10, 1
      // Predicated region
      $region13: #{vit_encoder_forward.3} parent=11 // pred_check
        %p140 = pneg %p57
      $region14: #{vit_encoder_forward.3} parent=11 // pred_check_branch
        %142 = sbr.rel (%p140) target = $region16
      $region15: #{vit_encoder_forward.3} parent=11 // pred_region
        _
      $region16: #{vit_encoder_forward.3} parent=11 // pred_fallthru
        _
      // Predicated region
      $region17: #{vit_encoder_forward.3} parent=11 // pred_check
        %p143 = pneg %p78
      $region18: #{vit_encoder_forward.3} parent=11 // pred_check_branch
        %145 = sbr.rel (%p143) target = $region20
      $region19: #{vit_encoder_forward.3} parent=11 // pred_region
        _
      $region20: #{vit_encoder_forward.3} parent=11 // pred_fallthru
        _
      // Predicated region
      $region21: #{vit_encoder_forward.3} parent=11 // pred_check
        %p146 = pneg %p99
      $region22: #{vit_encoder_forward.3} parent=11 // pred_check_branch
        %148 = sbr.rel (%p146) target = $region24
      $region23: #{vit_encoder_forward.3} parent=11 // pred_region
        _
      $region24: #{vit_encoder_forward.3} parent=11 // pred_fallthru
        _
    $region12: #{vit_encoder_forward.3} parent=5 // pred_fallthru
      _
    %p149 = scmp.lt.s32.totalorder %s10, 2
    // Predicated region
    $region25: #{vit_encoder_forward.3} parent=5 // pred_check
      %p150 = pneg %p149
    $region26: #{vit_encoder_forward.3} parent=5 // pred_check_branch
      %152 = sbr.rel (%p150) target = $region28
    $region27: #{vit_encoder_forward.3} parent=5 // pred_region
      // Predicated region
      $region29: #{vit_encoder_forward.3} parent=27 // pred_check
        %p153 = pneg %p30
      $region30: #{vit_encoder_forward.3} parent=27 // pred_check_branch
        %155 = sbr.rel (%p153) target = $region32
      $region31: #{vit_encoder_forward.3} parent=27 // pred_region
        %p156 = scmp.lt.s32.totalorder %s10, 1
        %s157 = scalar_select %p156, %s10, 1
        %s158 = smul.addr %s157, 288
        %s159 = smul.addr %s158, 8
        %s160 = scalar_lea.vmem %s0, %s159
      $region32: #{vit_encoder_forward.3} parent=27 // pred_fallthru
        _
    $region28: #{vit_encoder_forward.3} parent=5 // pred_fallthru
      _
    %p161 = scmp.le.s32.totalorder 1, %s10
    %p162 = scmp.lt.s32.totalorder %s10, 3
    %p163 = pnand %p161, %p162
    %p164 = pneg %p163
    // Predicated region
    $region33: #{vit_encoder_forward.3} parent=5 // pred_check
      _
    $region34: #{vit_encoder_forward.3} parent=5 // pred_check_branch
      %166 = sbr.rel (%p163) target = $region36
    $region35: #{vit_encoder_forward.3} parent=5 // pred_region
      %s167 = ssub.s32 %s10, 1
      %p168 = scmp.lt.s32.totalorder %s15, 1
      %s169 = scalar_select %p168, %s15, 1
      %s170 = smul.addr %s169, 288
      %s171 = smul.addr %s170, 8
      %s172 = scalar_lea.vmem %s0, %s171
      %p173 = pneg %p36
      %p174 = pneg %p33
      %p175 = pneg %p57
      %p176 = pneg %p54
      %p177 = pneg %p78
      %p178 = pneg %p75
      %p179 = pneg %p99
      %p180 = pneg %p96
      %p181 = pneg %p125
      %p182 = pneg %p122
      %p183 = scmp.lt.s32.totalorder %s15, 1
      %s184 = scalar_select %p183, %s15, 1
      %s185 = smul.addr %s184, 4
      %s186 = smul.addr %s185, 8
      %s187 = scalar_lea.vmem %s4, %s186
      %p188 = scmp.lt.s32.totalorder %s15, 1
      %s189 = scalar_select %p188, %s15, 1
      %s190 = smul.addr %s189, 288
      %s191 = smul.addr %s190, 8
      %s192 = scalar_lea.vmem %s0, %s191
      %p193 = scmp.lt.s32.totalorder %s15, 1
      %s194 = scalar_select %p193, %s15, 1
      %s195 = smul.addr %s194, 4
      %s196 = smul.addr %s195, 8
      %s197 = scalar_lea.vmem %s4, %s196
      %v198 = vld [vmem:[%s2] sm:$0xff]
      %v199 = vld [vmem:[%s192] sm:$0xff]
      %v200 = vld [vmem:[%s192 + $0x8] sm:$0x1]
      %v201 = vld [vmem:[%s192 + $0x10] sm:$0xff]
      %v202 = vld [vmem:[%s192 + $0x18] sm:$0x1]
      %v203 = vld [vmem:[%s192 + $0x20] sm:$0xff]
      %v204 = vld [vmem:[%s192 + $0x28] sm:$0x1]
      %v205 = vld [vmem:[%s192 + $0x30] sm:$0xff]
      %v206 = vld [vmem:[%s192 + $0x38] sm:$0x1]
      %v207 = vld [vmem:[%s192 + $0x40] sm:$0xff]
      %v208 = vld [vmem:[%s192 + $0x48] sm:$0x1]
      %v209 = vld [vmem:[%s192 + $0x50] sm:$0xff]
      %v210 = vld [vmem:[%s192 + $0x58] sm:$0x1]
      %v211 = vld [vmem:[%s192 + $0x60] sm:$0xff]
      %v212 = vld [vmem:[%s192 + $0x68] sm:$0x1]
      %v213 = vld [vmem:[%s192 + $0x70] sm:$0xff]
      %v214 = vld [vmem:[%s192 + $0x78] sm:$0x1]
      %v215 = vld [vmem:[%s192 + $0x80] sm:$0xff]
      %v216 = vld [vmem:[%s192 + $0x88] sm:$0x1]
      %v217 = vld [vmem:[%s192 + $0x90] sm:$0xff]
      %v218 = vld [vmem:[%s192 + $0xa0] sm:$0xff]
      %v219 = vld [vmem:[%s192 + $0xb0] sm:$0xff]
      %v220 = vld [vmem:[%s192 + $0xc0] sm:$0xff]
      %v221 = vld [vmem:[%s192 + $0xd0] sm:$0xff]
      %v222 = vld [vmem:[%s192 + $0xe0] sm:$0xff]
      %v223 = vld [vmem:[%s192 + $0xf0] sm:$0xff]
      %v224 = vld [vmem:[%s192 + $0x100] sm:$0xff]
      %v225 = vld [vmem:[%s192 + $0x110] sm:$0xff]
      %v226 = vld [vmem:[%s192 + $0x120] sm:$0xff]
      %v227 = vld [vmem:[%s192 + $0x128] sm:$0x1]
      %v228 = vld [vmem:[%s192 + $0x130] sm:$0xff]
      %v229 = vld [vmem:[%s192 + $0x138] sm:$0x1]
      %v230 = vld [vmem:[%s192 + $0x140] sm:$0xff]
      %v231 = vld [vmem:[%s192 + $0x148] sm:$0x1]
      %v232 = vld [vmem:[%s192 + $0x150] sm:$0xff]
      %v233 = vld [vmem:[%s192 + $0x158] sm:$0x1]
      %v234 = vld [vmem:[%s192 + $0x160] sm:$0xff]
      %v235 = vld [vmem:[%s192 + $0x168] sm:$0x1]
      %v236 = vld [vmem:[%s192 + $0x170] sm:$0xff]
      %v237 = vld [vmem:[%s192 + $0x178] sm:$0x1]
      %v238 = vld [vmem:[%s192 + $0x180] sm:$0xff]
      %v239 = vld [vmem:[%s192 + $0x188] sm:$0x1]
      %v240 = vld [vmem:[%s192 + $0x190] sm:$0xff]
      %v241 = vld [vmem:[%s192 + $0x198] sm:$0x1]
      %v242 = vld [vmem:[%s192 + $0x1b0] sm:$0xff]
      %v243 = vld [vmem:[%s192 + $0x1c0] sm:$0xff]
      %v244 = vld [vmem:[%s192 + $0x1d0] sm:$0xff]
      %v245 = vld [vmem:[%s192 + $0x1e0] sm:$0xff]
      %v246 = vld [vmem:[%s192 + $0x1f0] sm:$0xff]
      %v247 = vld [vmem:[%s192 + $0x200] sm:$0xff]
      %v248 = vld [vmem:[%s192 + $0x210] sm:$0xff]
      %v249 = vld [vmem:[%s192 + $0x220] sm:$0xff]
      %vm266 = vcmask 1046528
      %v267 = vrot.slane %v199, 1
      %v268 = vrot.slane %v200, 1
      %v269 = vsel %vm266, %v267, %v268
      %v270 = vrot.slane %v201, 1
      %v271 = vrot.slane %v202, 1
      %v272 = vsel %vm266, %v270, %v271
      %v273 = vrot.slane %v203, 1
      %v274 = vrot.slane %v204, 1
      %v275 = vsel %vm266, %v273, %v274
      %v276 = vrot.slane %v205, 1
      %v277 = vrot.slane %v206, 1
      %v278 = vsel %vm266, %v276, %v277
      %v279 = vrot.slane %v207, 1
      %v280 = vrot.slane %v208, 1
      %v281 = vsel %vm266, %v279, %v280
      %v282 = vrot.slane %v209, 1
      %v283 = vrot.slane %v210, 1
      %v284 = vsel %vm266, %v282, %v283
      %v285 = vrot.slane %v211, 1
      %v286 = vrot.slane %v212, 1
      %v287 = vsel %vm266, %v285, %v286
      %v288 = vrot.slane %v213, 1
      %v289 = vrot.slane %v214, 1
      %v290 = vsel %vm266, %v288, %v289
      %v307 = vrot.slane %v226, 1
      %v308 = vrot.slane %v227, 1
      %v309 = vsel %vm266, %v307, %v308
      %v310 = vrot.slane %v228, 1
      %v311 = vrot.slane %v229, 1
      %v312 = vsel %vm266, %v310, %v311
      %v313 = vrot.slane %v230, 1
      %v314 = vrot.slane %v231, 1
      %v315 = vsel %vm266, %v313, %v314
      %v316 = vrot.slane %v232, 1
      %v317 = vrot.slane %v233, 1
      %v318 = vsel %vm266, %v316, %v317
      %v319 = vrot.slane %v234, 1
      %v320 = vrot.slane %v235, 1
      %v321 = vsel %vm266, %v319, %v320
      %v322 = vrot.slane %v236, 1
      %v323 = vrot.slane %v237, 1
      %v324 = vsel %vm266, %v322, %v323
      %v325 = vrot.slane %v238, 1
      %v326 = vrot.slane %v239, 1
      %v327 = vsel %vm266, %v325, %v326
      %v328 = vrot.slane %v240, 1
      %v329 = vrot.slane %v241, 1
      %v330 = vsel %vm266, %v328, %v329
      %v333 = vrot.slane %v215, 1
      %v334 = vrot.slane %v216, 1
      %v335 = vsel %vm266, %v333, %v334
      %344 = vrot.lane.b32.xlu0 %v217, 4
      %v345 = vpop.permute.xlu0 %344
      %346 = vrot.lane.b32.xlu0 %v218, 4
      %v347 = vpop.permute.xlu0 %346
      %348 = vrot.lane.b32.xlu0 %v219, 4
      %v349 = vpop.permute.xlu0 %348
      %350 = vrot.lane.b32.xlu0 %v220, 4
      %v351 = vpop.permute.xlu0 %350
      %352 = vrot.lane.b32.xlu0 %v221, 4
      %v353 = vpop.permute.xlu0 %352
      %354 = vrot.lane.b32.xlu0 %v222, 4
      %v355 = vpop.permute.xlu0 %354
      %356 = vrot.lane.b32.xlu0 %v223, 4
      %v357 = vpop.permute.xlu0 %356
      %358 = vrot.lane.b32.xlu0 %v224, 4
      %v359 = vpop.permute.xlu0 %358
      %368 = vrot.lane.b32.xlu0 %v269, 8
      %v369 = vpop.permute.xlu0 %368
      %370 = vrot.lane.b32.xlu0 %v272, 8
      %v371 = vpop.permute.xlu0 %370
      %372 = vrot.lane.b32.xlu0 %v275, 8
      %v373 = vpop.permute.xlu0 %372
      %374 = vrot.lane.b32.xlu0 %v278, 8
      %v375 = vpop.permute.xlu0 %374
      %376 = vrot.lane.b32.xlu0 %v281, 8
      %v377 = vpop.permute.xlu0 %376
      %378 = vrot.lane.b32.xlu0 %v284, 8
      %v379 = vpop.permute.xlu0 %378
      %380 = vrot.lane.b32.xlu0 %v287, 8
      %v381 = vpop.permute.xlu0 %380
      %382 = vrot.lane.b32.xlu0 %v290, 8
      %v383 = vpop.permute.xlu0 %382
      %392 = vrot.lane.b32.xlu0 %v226, 12
      %v393 = vpop.permute.xlu0 %392
      %394 = vrot.lane.b32.xlu0 %v228, 12
      %v395 = vpop.permute.xlu0 %394
      %396 = vrot.lane.b32.xlu0 %v230, 12
      %v397 = vpop.permute.xlu0 %396
      %398 = vrot.lane.b32.xlu0 %v232, 12
      %v399 = vpop.permute.xlu0 %398
      %400 = vrot.lane.b32.xlu0 %v234, 12
      %v401 = vpop.permute.xlu0 %400
      %402 = vrot.lane.b32.xlu0 %v236, 12
      %v403 = vpop.permute.xlu0 %402
      %404 = vrot.lane.b32.xlu0 %v238, 12
      %v405 = vpop.permute.xlu0 %404
      %406 = vrot.lane.b32.xlu0 %v240, 12
      %v407 = vpop.permute.xlu0 %406
      %424 = vrot.lane.b32.xlu0 %v242, 16
      %v425 = vpop.permute.xlu0 %424
      %426 = vrot.lane.b32.xlu0 %v243, 16
      %v427 = vpop.permute.xlu0 %426
      %428 = vrot.lane.b32.xlu0 %v244, 16
      %v429 = vpop.permute.xlu0 %428
      %430 = vrot.lane.b32.xlu0 %v245, 16
      %v431 = vpop.permute.xlu0 %430
      %432 = vrot.lane.b32.xlu0 %v246, 16
      %v433 = vpop.permute.xlu0 %432
      %434 = vrot.lane.b32.xlu0 %v247, 16
      %v435 = vpop.permute.xlu0 %434
      %436 = vrot.lane.b32.xlu0 %v248, 16
      %v437 = vpop.permute.xlu0 %436
      %438 = vrot.lane.b32.xlu0 %v249, 16
      %v439 = vpop.permute.xlu0 %438
      %448 = vrot.lane.b32.xlu0 %v309, 20
      %v449 = vpop.permute.xlu0 %448
      %450 = vrot.lane.b32.xlu0 %v312, 20
      %v451 = vpop.permute.xlu0 %450
      %452 = vrot.lane.b32.xlu0 %v315, 20
      %v453 = vpop.permute.xlu0 %452
      %454 = vrot.lane.b32.xlu0 %v318, 20
      %v455 = vpop.permute.xlu0 %454
      %456 = vrot.lane.b32.xlu0 %v321, 20
      %v457 = vpop.permute.xlu0 %456
      %458 = vrot.lane.b32.xlu0 %v324, 20
      %v459 = vpop.permute.xlu0 %458
      %460 = vrot.lane.b32.xlu0 %v327, 20
      %v461 = vpop.permute.xlu0 %460
      %462 = vrot.lane.b32.xlu0 %v330, 20
      %v463 = vpop.permute.xlu0 %462
      %472 = vrot.lane.b32.xlu0 %v201, 24
      %v473 = vpop.permute.xlu0 %472
      %474 = vrot.lane.b32.xlu0 %v203, 24
      %v475 = vpop.permute.xlu0 %474
      %476 = vrot.lane.b32.xlu0 %v205, 24
      %v477 = vpop.permute.xlu0 %476
      %478 = vrot.lane.b32.xlu0 %v207, 24
      %v479 = vpop.permute.xlu0 %478
      %480 = vrot.lane.b32.xlu0 %v209, 24
      %v481 = vpop.permute.xlu0 %480
      %482 = vrot.lane.b32.xlu0 %v211, 24
      %v483 = vpop.permute.xlu0 %482
      %484 = vrot.lane.b32.xlu0 %v213, 24
      %v485 = vpop.permute.xlu0 %484
      %486 = vrot.lane.b32.xlu0 %v215, 24
      %v487 = vpop.permute.xlu0 %486
      %497 = vrot.lane.b32.xlu0 %v218, 28
      %v498 = vpop.permute.xlu0 %497
      %499 = vrot.lane.b32.xlu0 %v219, 28
      %v500 = vpop.permute.xlu0 %499
      %501 = vrot.lane.b32.xlu0 %v220, 28
      %v502 = vpop.permute.xlu0 %501
      %503 = vrot.lane.b32.xlu0 %v221, 28
      %v504 = vpop.permute.xlu0 %503
      %505 = vrot.lane.b32.xlu0 %v222, 28
      %v506 = vpop.permute.xlu0 %505
      %507 = vrot.lane.b32.xlu0 %v223, 28
      %v508 = vpop.permute.xlu0 %507
      %509 = vrot.lane.b32.xlu0 %v224, 28
      %v510 = vpop.permute.xlu0 %509
      %511 = vrot.lane.b32.xlu0 %v225, 28
      %v512 = vpop.permute.xlu0 %511
      %521 = vrot.lane.b32.xlu0 %v272, 32
      %v522 = vpop.permute.xlu0 %521
      %523 = vrot.lane.b32.xlu0 %v275, 32
      %v524 = vpop.permute.xlu0 %523
      %525 = vrot.lane.b32.xlu0 %v278, 32
      %v526 = vpop.permute.xlu0 %525
      %527 = vrot.lane.b32.xlu0 %v281, 32
      %v528 = vpop.permute.xlu0 %527
      %529 = vrot.lane.b32.xlu0 %v284, 32
      %v530 = vpop.permute.xlu0 %529
      %531 = vrot.lane.b32.xlu0 %v287, 32
      %v532 = vpop.permute.xlu0 %531
      %533 = vrot.lane.b32.xlu0 %v290, 32
      %v534 = vpop.permute.xlu0 %533
      %535 = vrot.lane.b32.xlu0 %v335, 32
      %v536 = vpop.permute.xlu0 %535
      %vm545 = vcmask 31744
      %v546 = vsel %vm545, %v199, %v345
      %v547 = vsel %vm545, %v201, %v347
      %v548 = vsel %vm545, %v203, %v349
      %v549 = vsel %vm545, %v205, %v351
      %v550 = vsel %vm545, %v207, %v353
      %v551 = vsel %vm545, %v209, %v355
      %v552 = vsel %vm545, %v211, %v357
      %v553 = vsel %vm545, %v213, %v359
      %vm554 = vcmask 64512
      %v555 = vsel %vm554, %v546, %v369
      %v556 = vsel %vm554, %v547, %v371
      %v557 = vsel %vm554, %v548, %v373
      %v558 = vsel %vm554, %v549, %v375
      %v559 = vsel %vm554, %v550, %v377
      %v560 = vsel %vm554, %v551, %v379
      %v561 = vsel %vm554, %v552, %v381
      %v562 = vsel %vm554, %v553, %v383
      %vm563 = vcmask 97280
      %v564 = vsel %vm563, %v555, %v393
      %v565 = vsel %vm563, %v556, %v395
      %v566 = vsel %vm563, %v557, %v397
      %v567 = vsel %vm563, %v558, %v399
      %v568 = vsel %vm563, %v559, %v401
      %v569 = vsel %vm563, %v560, %v403
      %v570 = vsel %vm563, %v561, %v405
      %v571 = vsel %vm563, %v562, %v407
      %vm572 = vcmask 130048
      %v573 = vsel %vm572, %v564, %v425
      %v574 = vsel %vm572, %v565, %v427
      %v575 = vsel %vm572, %v566, %v429
      %v576 = vsel %vm572, %v567, %v431
      %v577 = vsel %vm572, %v568, %v433
      %v578 = vsel %vm572, %v569, %v435
      %v579 = vsel %vm572, %v570, %v437
      %v580 = vsel %vm572, %v571, %v439
      %vm581 = vcmask 162816
      %v582 = vsel %vm581, %v573, %v449
      %v583 = vsel %vm581, %v574, %v451
      %v584 = vsel %vm581, %v575, %v453
      %v585 = vsel %vm581, %v576, %v455
      %v586 = vsel %vm581, %v577, %v457
      %v587 = vsel %vm581, %v578, %v459
      %v588 = vsel %vm581, %v579, %v461
      %v589 = vsel %vm581, %v580, %v463
      %vm590 = vcmask 195584
      %v591 = vsel %vm590, %v582, %v473
      %v592 = vsel %vm590, %v583, %v475
      %v593 = vsel %vm590, %v584, %v477
      %v594 = vsel %vm590, %v585, %v479
      %v595 = vsel %vm590, %v586, %v481
      %v596 = vsel %vm590, %v587, %v483
      %v597 = vsel %vm590, %v588, %v485
      %v598 = vsel %vm590, %v589, %v487
      %vm599 = vcmask 228352
      %v600 = vsel %vm599, %v591, %v498
      %v601 = vsel %vm599, %v592, %v500
      %v602 = vsel %vm599, %v593, %v502
      %v603 = vsel %vm599, %v594, %v504
      %v604 = vsel %vm599, %v595, %v506
      %v605 = vsel %vm599, %v596, %v508
      %v606 = vsel %vm599, %v597, %v510
      %v607 = vsel %vm599, %v598, %v512
      %vm608 = vcmask 261120
      %v609 = vsel %vm608, %v600, %v522
      %v610 = vsel %vm608, %v601, %v524
      %v611 = vsel %vm608, %v602, %v526
      %v612 = vsel %vm608, %v603, %v528
      %v613 = vsel %vm608, %v604, %v530
      %v614 = vsel %vm608, %v605, %v532
      %v615 = vsel %vm608, %v606, %v534
      %v616 = vsel %vm608, %v607, %v536
      %v617 = vld [vmem:[%s1] sm:$0xff]
      %v618 = vld [vmem:[%s1 + $0x8] sm:$0xff]
      %v619 = vld [vmem:[%s1 + $0x10] sm:$0xff]
      %v620 = vld [vmem:[%s1 + $0x18] sm:$0xff]
      %v621 = vld [vmem:[%s1 + $0x20] sm:$0xf]
      %vm622 = vcmask 293888
      %v624 = vsel %vm622, %v609, 0
      %v627 = vsel %vm622, %v610, 0
      %v630 = vsel %vm622, %v611, 0
      %v633 = vsel %vm622, %v612, 0
      %v636 = vsel %vm622, %v613, 0
      %v639 = vsel %vm622, %v614, 0
      %v642 = vsel %vm622, %v615, 0
      %v645 = vsel %vm622, %v616, 0
      %vm647 = vcmask 1043456
      %v649 = vsel %vm647, %v621, 0
      %651 = vmatpush.msra.mxu0 0.0
      %652 = vmatpush.msra.mxu0 0.0
      %653 = vmatpush.msra.mxu0 0.0
      %654 = vmatpush.msra.mxu0 0.0
      %655 = vmatpush.msra.mxu0 0.0
      %656 = vmatpush.msra.mxu0 0.0
      %657 = vmatpush.msra.mxu0 0.0
      %658 = vmatpush.msra.mxu0 0.0
      %659 = vmatpush.msra.mxu0 0.0
      %660 = vmatpush.msra.mxu0 0.0
      %661 = vmatpush.msra.mxu0 0.0
      %662 = vmatpush.msra.mxu0 %v649
      %663 = vmatpush.msra.mxu0 %v620
      %664 = vmatpush.msra.mxu0 %v619
      %665 = vmatpush.msra.mxu0 %v618
      %666 = vmatpush.msra.mxu0 %v617
      %667 = vmatmul.f32.gmra.mxu0 %v624
      %v668 = vpop.f32.mrf.mxu0
      %v669 = vadd.f32 0.0, %v668
      %670 = vmatmul.f32.gmra.mxu0 %v627
      %v671 = vpop.f32.mrf.mxu0
      %v672 = vadd.f32 0.0, %v671
      %673 = vmatmul.f32.gmra.mxu0 %v630
      %v674 = vpop.f32.mrf.mxu0
      %v675 = vadd.f32 0.0, %v674
      %676 = vmatmul.f32.gmra.mxu0 %v633
      %v677 = vpop.f32.mrf.mxu0
      %v678 = vadd.f32 0.0, %v677
      %679 = vmatmul.f32.gmra.mxu0 %v636
      %v680 = vpop.f32.mrf.mxu0
      %v681 = vadd.f32 0.0, %v680
      %682 = vmatmul.f32.gmra.mxu0 %v639
      %v683 = vpop.f32.mrf.mxu0
      %v684 = vadd.f32 0.0, %v683
      %685 = vmatmul.f32.gmra.mxu0 %v642
      %v686 = vpop.f32.mrf.mxu0
      %v687 = vadd.f32 0.0, %v686
      %688 = vmatmul.f32.gmra.mxu0 %v645
      %v689 = vpop.f32.mrf.mxu0
      %v690 = vadd.f32 0.0, %v689
      %691 = vdwg.mxu0
      %692 = vxpose.xlu0.b32.start [1/16] %v669, 128
      %693 = vxpose.xlu0.b32.cont [2/16] %v672, 128
      %694 = vxpose.xlu0.b32.cont [3/16] %v675, 128
      %695 = vxpose.xlu0.b32.cont [4/16] %v678, 128
      %696 = vxpose.xlu0.b32.cont [5/16] %v681, 128
      %697 = vxpose.xlu0.b32.cont [6/16] %v684, 128
      %698 = vxpose.xlu0.b32.cont [7/16] %v687, 128
      %699 = vxpose.xlu0.b32.cont [8/16] %v690, 128
      %700 = vxpose.xlu0.b32.cont [9/16] 0.0, 128
      %701 = vxpose.xlu0.b32.cont [10/16] 0.0, 128
      %702 = vxpose.xlu0.b32.cont [11/16] 0.0, 128
      %703 = vxpose.xlu0.b32.cont [12/16] 0.0, 128
      %704 = vxpose.xlu0.b32.cont [13/16] 0.0, 128
      %705 = vxpose.xlu0.b32.cont [14/16] 0.0, 128
      %706 = vxpose.xlu0.b32.cont [15/16] 0.0, 128
      %707 = vxpose.xlu0.b32.end [16/16] 0.0, 128
      %v708 = vpop.trf.xlu0
      %v709 = vpop.trf.xlu0
      %v710 = vpop.trf.xlu0
      %v711 = vpop.trf.xlu0
      %v712 = vpop.trf.xlu0
      %v713 = vpop.trf.xlu0
      %v714 = vpop.trf.xlu0
      %v715 = vpop.trf.xlu0
      %v716 = vpop.trf.xlu0
      %v717 = vpop.trf.xlu0
      %v718 = vpop.trf.xlu0
      %v719 = vpop.trf.xlu0
      %v720 = vpop.trf.xlu0
      %v721 = vpop.trf.xlu0
      %v722 = vpop.trf.xlu0
      %v723 = vpop.trf.xlu0
      %725 = vset.pattern.permute.xlu0 0
      %726 = vperm.xlu0 %725, %v198
      %v727 = vpop.permute.xlu0 %726
      %v729 = vadd.f32 %v708, %v727
      %v730 = vmax.f32 %v729, 0.0
      %v731 = vld [vmem:[%s3] sm:$0xff]
      %v732 = vadd.f32 %v709, %v731
      %v733 = vadd.f32 %v730, %v732
      %vm734 = vcmask 523264
      %735 = vst.msk [vmem:[%s197] sm:$0xff] %vm734, %v733
      %s736 = scalar_lea.vmem %s192, 576
      %v737 = vld [vmem:[%s736] sm:$0xff]
      %v738 = vld [vmem:[%s736 + $0x8] sm:$0x1]
      %v739 = vld [vmem:[%s736 + $0x10] sm:$0xff]
      %v740 = vld [vmem:[%s736 + $0x18] sm:$0x1]
      %v741 = vld [vmem:[%s736 + $0x20] sm:$0xff]
      %v742 = vld [vmem:[%s736 + $0x28] sm:$0x1]
      %v743 = vld [vmem:[%s736 + $0x30] sm:$0xff]
      %v744 = vld [vmem:[%s736 + $0x38] sm:$0x1]
      %v745 = vld [vmem:[%s736 + $0x40] sm:$0xff]
      %v746 = vld [vmem:[%s736 + $0x48] sm:$0x1]
      %v747 = vld [vmem:[%s736 + $0x50] sm:$0xff]
      %v748 = vld [vmem:[%s736 + $0x58] sm:$0x1]
      %v749 = vld [vmem:[%s736 + $0x60] sm:$0xff]
      %v750 = vld [vmem:[%s736 + $0x68] sm:$0x1]
      %v751 = vld [vmem:[%s736 + $0x70] sm:$0xff]
      %v752 = vld [vmem:[%s736 + $0x78] sm:$0x1]
      %v753 = vld [vmem:[%s736 + $0x80] sm:$0xff]
      %v754 = vld [vmem:[%s736 + $0x88] sm:$0x1]
      %v755 = vld [vmem:[%s736 + $0x90] sm:$0xff]
      %v756 = vld [vmem:[%s736 + $0xa0] sm:$0xff]
      %v757 = vld [vmem:[%s736 + $0xb0] sm:$0xff]
      %v758 = vld [vmem:[%s736 + $0xc0] sm:$0xff]
      %v759 = vld [vmem:[%s736 + $0xd0] sm:$0xff]
      %v760 = vld [vmem:[%s736 + $0xe0] sm:$0xff]
      %v761 = vld [vmem:[%s736 + $0xf0] sm:$0xff]
      %v762 = vld [vmem:[%s736 + $0x100] sm:$0xff]
      %v763 = vld [vmem:[%s736 + $0x110] sm:$0xff]
      %v764 = vld [vmem:[%s736 + $0x120] sm:$0xff]
      %v765 = vld [vmem:[%s736 + $0x128] sm:$0x1]
      %v766 = vld [vmem:[%s736 + $0x130] sm:$0xff]
      %v767 = vld [vmem:[%s736 + $0x138] sm:$0x1]
      %v768 = vld [vmem:[%s736 + $0x140] sm:$0xff]
      %v769 = vld [vmem:[%s736 + $0x148] sm:$0x1]
      %v770 = vld [vmem:[%s736 + $0x150] sm:$0xff]
      %v771 = vld [vmem:[%s736 + $0x158] sm:$0x1]
      %v772 = vld [vmem:[%s736 + $0x160] sm:$0xff]
      %v773 = vld [vmem:[%s736 + $0x168] sm:$0x1]
      %v774 = vld [vmem:[%s736 + $0x170] sm:$0xff]
      %v775 = vld [vmem:[%s736 + $0x178] sm:$0x1]
      %v776 = vld [vmem:[%s736 + $0x180] sm:$0xff]
      %v777 = vld [vmem:[%s736 + $0x188] sm:$0x1]
      %v778 = vld [vmem:[%s736 + $0x190] sm:$0xff]
      %v779 = vld [vmem:[%s736 + $0x198] sm:$0x1]
      %v780 = vld [vmem:[%s736 + $0x1b0] sm:$0xff]
      %v781 = vld [vmem:[%s736 + $0x1c0] sm:$0xff]
      %v782 = vld [vmem:[%s736 + $0x1d0] sm:$0xff]
      %v783 = vld [vmem:[%s736 + $0x1e0] sm:$0xff]
      %v784 = vld [vmem:[%s736 + $0x1f0] sm:$0xff]
      %v785 = vld [vmem:[%s736 + $0x200] sm:$0xff]
      %v786 = vld [vmem:[%s736 + $0x210] sm:$0xff]
      %v787 = vld [vmem:[%s736 + $0x220] sm:$0xff]
      %v804 = vrot.slane %v737, 1
      %v805 = vrot.slane %v738, 1
      %v806 = vsel %vm266, %v804, %v805
      %v807 = vrot.slane %v739, 1
      %v808 = vrot.slane %v740, 1
      %v809 = vsel %vm266, %v807, %v808
      %v810 = vrot.slane %v741, 1
      %v811 = vrot.slane %v742, 1
      %v812 = vsel %vm266, %v810, %v811
      %v813 = vrot.slane %v743, 1
      %v814 = vrot.slane %v744, 1
      %v815 = vsel %vm266, %v813, %v814
      %v816 = vrot.slane %v745, 1
      %v817 = vrot.slane %v746, 1
      %v818 = vsel %vm266, %v816, %v817
      %v819 = vrot.slane %v747, 1
      %v820 = vrot.slane %v748, 1
      %v821 = vsel %vm266, %v819, %v820
      %v822 = vrot.slane %v749, 1
      %v823 = vrot.slane %v750, 1
      %v824 = vsel %vm266, %v822, %v823
      %v825 = vrot.slane %v751, 1
      %v826 = vrot.slane %v752, 1
      %v827 = vsel %vm266, %v825, %v826
      %v844 = vrot.slane %v764, 1
      %v845 = vrot.slane %v765, 1
      %v846 = vsel %vm266, %v844, %v845
      %v847 = vrot.slane %v766, 1
      %v848 = vrot.slane %v767, 1
      %v849 = vsel %vm266, %v847, %v848
      %v850 = vrot.slane %v768, 1
      %v851 = vrot.slane %v769, 1
      %v852 = vsel %vm266, %v850, %v851
      %v853 = vrot.slane %v770, 1
      %v854 = vrot.slane %v771, 1
      %v855 = vsel %vm266, %v853, %v854
      %v856 = vrot.slane %v772, 1
      %v857 = vrot.slane %v773, 1
      %v858 = vsel %vm266, %v856, %v857
      %v859 = vrot.slane %v774, 1
      %v860 = vrot.slane %v775, 1
      %v861 = vsel %vm266, %v859, %v860
      %v862 = vrot.slane %v776, 1
      %v863 = vrot.slane %v777, 1
      %v864 = vsel %vm266, %v862, %v863
      %v865 = vrot.slane %v778, 1
      %v866 = vrot.slane %v779, 1
      %v867 = vsel %vm266, %v865, %v866
      %v870 = vrot.slane %v753, 1
      %v871 = vrot.slane %v754, 1
      %v872 = vsel %vm266, %v870, %v871
      %881 = vrot.lane.b32.xlu0 %v755, 4
      %v882 = vpop.permute.xlu0 %881
      %883 = vrot.lane.b32.xlu0 %v756, 4
      %v884 = vpop.permute.xlu0 %883
      %885 = vrot.lane.b32.xlu0 %v757, 4
      %v886 = vpop.permute.xlu0 %885
      %887 = vrot.lane.b32.xlu0 %v758, 4
      %v888 = vpop.permute.xlu0 %887
      %889 = vrot.lane.b32.xlu0 %v759, 4
      %v890 = vpop.permute.xlu0 %889
      %891 = vrot.lane.b32.xlu0 %v760, 4
      %v892 = vpop.permute.xlu0 %891
      %893 = vrot.lane.b32.xlu0 %v761, 4
      %v894 = vpop.permute.xlu0 %893
      %895 = vrot.lane.b32.xlu0 %v762, 4
      %v896 = vpop.permute.xlu0 %895
      %905 = vrot.lane.b32.xlu0 %v806, 8
      %v906 = vpop.permute.xlu0 %905
      %907 = vrot.lane.b32.xlu0 %v809, 8
      %v908 = vpop.permute.xlu0 %907
      %909 = vrot.lane.b32.xlu0 %v812, 8
      %v910 = vpop.permute.xlu0 %909
      %911 = vrot.lane.b32.xlu0 %v815, 8
      %v912 = vpop.permute.xlu0 %911
      %913 = vrot.lane.b32.xlu0 %v818, 8
      %v914 = vpop.permute.xlu0 %913
      %915 = vrot.lane.b32.xlu0 %v821, 8
      %v916 = vpop.permute.xlu0 %915
      %917 = vrot.lane.b32.xlu0 %v824, 8
      %v918 = vpop.permute.xlu0 %917
      %919 = vrot.lane.b32.xlu0 %v827, 8
      %v920 = vpop.permute.xlu0 %919
      %929 = vrot.lane.b32.xlu0 %v764, 12
      %v930 = vpop.permute.xlu0 %929
      %931 = vrot.lane.b32.xlu0 %v766, 12
      %v932 = vpop.permute.xlu0 %931
      %933 = vrot.lane.b32.xlu0 %v768, 12
      %v934 = vpop.permute.xlu0 %933
      %935 = vrot.lane.b32.xlu0 %v770, 12
      %v936 = vpop.permute.xlu0 %935
      %937 = vrot.lane.b32.xlu0 %v772, 12
      %v938 = vpop.permute.xlu0 %937
      %939 = vrot.lane.b32.xlu0 %v774, 12
      %v940 = vpop.permute.xlu0 %939
      %941 = vrot.lane.b32.xlu0 %v776, 12
      %v942 = vpop.permute.xlu0 %941
      %943 = vrot.lane.b32.xlu0 %v778, 12
      %v944 = vpop.permute.xlu0 %943
      %961 = vrot.lane.b32.xlu0 %v780, 16
      %v962 = vpop.permute.xlu0 %961
      %963 = vrot.lane.b32.xlu0 %v781, 16
      %v964 = vpop.permute.xlu0 %963
      %965 = vrot.lane.b32.xlu0 %v782, 16
      %v966 = vpop.permute.xlu0 %965
      %967 = vrot.lane.b32.xlu0 %v783, 16
      %v968 = vpop.permute.xlu0 %967
      %969 = vrot.lane.b32.xlu0 %v784, 16
      %v970 = vpop.permute.xlu0 %969
      %971 = vrot.lane.b32.xlu0 %v785, 16
      %v972 = vpop.permute.xlu0 %971
      %973 = vrot.lane.b32.xlu0 %v786, 16
      %v974 = vpop.permute.xlu0 %973
      %975 = vrot.lane.b32.xlu0 %v787, 16
      %v976 = vpop.permute.xlu0 %975
      %985 = vrot.lane.b32.xlu0 %v846, 20
      %v986 = vpop.permute.xlu0 %985
      %987 = vrot.lane.b32.xlu0 %v849, 20
      %v988 = vpop.permute.xlu0 %987
      %989 = vrot.lane.b32.xlu0 %v852, 20
      %v990 = vpop.permute.xlu0 %989
      %991 = vrot.lane.b32.xlu0 %v855, 20
      %v992 = vpop.permute.xlu0 %991
      %993 = vrot.lane.b32.xlu0 %v858, 20
      %v994 = vpop.permute.xlu0 %993
      %995 = vrot.lane.b32.xlu0 %v861, 20
      %v996 = vpop.permute.xlu0 %995
      %997 = vrot.lane.b32.xlu0 %v864, 20
      %v998 = vpop.permute.xlu0 %997
      %999 = vrot.lane.b32.xlu0 %v867, 20
      %v1000 = vpop.permute.xlu0 %999
      %1009 = vrot.lane.b32.xlu0 %v739, 24
      %v1010 = vpop.permute.xlu0 %1009
      %1011 = vrot.lane.b32.xlu0 %v741, 24
      %v1012 = vpop.permute.xlu0 %1011
      %1013 = vrot.lane.b32.xlu0 %v743, 24
      %v1014 = vpop.permute.xlu0 %1013
      %1015 = vrot.lane.b32.xlu0 %v745, 24
      %v1016 = vpop.permute.xlu0 %1015
      %1017 = vrot.lane.b32.xlu0 %v747, 24
      %v1018 = vpop.permute.xlu0 %1017
      %1019 = vrot.lane.b32.xlu0 %v749, 24
      %v1020 = vpop.permute.xlu0 %1019
      %1021 = vrot.lane.b32.xlu0 %v751, 24
      %v1022 = vpop.permute.xlu0 %1021
      %1023 = vrot.lane.b32.xlu0 %v753, 24
      %v1024 = vpop.permute.xlu0 %1023
      %1034 = vrot.lane.b32.xlu0 %v756, 28
      %v1035 = vpop.permute.xlu0 %1034
      %1036 = vrot.lane.b32.xlu0 %v757, 28
      %v1037 = vpop.permute.xlu0 %1036
      %1038 = vrot.lane.b32.xlu0 %v758, 28
      %v1039 = vpop.permute.xlu0 %1038
      %1040 = vrot.lane.b32.xlu0 %v759, 28
      %v1041 = vpop.permute.xlu0 %1040
      %1042 = vrot.lane.b32.xlu0 %v760, 28
      %v1043 = vpop.permute.xlu0 %1042
      %1044 = vrot.lane.b32.xlu0 %v761, 28
      %v1045 = vpop.permute.xlu0 %1044
      %1046 = vrot.lane.b32.xlu0 %v762, 28
      %v1047 = vpop.permute.xlu0 %1046
      %1048 = vrot.lane.b32.xlu0 %v763, 28
      %v1049 = vpop.permute.xlu0 %1048
      %1058 = vrot.lane.b32.xlu0 %v809, 32
      %v1059 = vpop.permute.xlu0 %1058
      %1060 = vrot.lane.b32.xlu0 %v812, 32
      %v1061 = vpop.permute.xlu0 %1060
      %1062 = vrot.lane.b32.xlu0 %v815, 32
      %v1063 = vpop.permute.xlu0 %1062
      %1064 = vrot.lane.b32.xlu0 %v818, 32
      %v1065 = vpop.permute.xlu0 %1064
      %1066 = vrot.lane.b32.xlu0 %v821, 32
      %v1067 = vpop.permute.xlu0 %1066
      %1068 = vrot.lane.b32.xlu0 %v824, 32
      %v1069 = vpop.permute.xlu0 %1068
      %1070 = vrot.lane.b32.xlu0 %v827, 32
      %v1071 = vpop.permute.xlu0 %1070
      %1072 = vrot.lane.b32.xlu0 %v872, 32
      %v1073 = vpop.permute.xlu0 %1072
      %v1082 = vsel %vm545, %v737, %v882
      %v1083 = vsel %vm545, %v739, %v884
      %v1084 = vsel %vm545, %v741, %v886
      %v1085 = vsel %vm545, %v743, %v888
      %v1086 = vsel %vm545, %v745, %v890
      %v1087 = vsel %vm545, %v747, %v892
      %v1088 = vsel %vm545, %v749, %v894
      %v1089 = vsel %vm545, %v751, %v896
      %v1090 = vsel %vm554, %v1082, %v906
      %v1091 = vsel %vm554, %v1083, %v908
      %v1092 = vsel %vm554, %v1084, %v910
      %v1093 = vsel %vm554, %v1085, %v912
      %v1094 = vsel %vm554, %v1086, %v914
      %v1095 = vsel %vm554, %v1087, %v916
      %v1096 = vsel %vm554, %v1088, %v918
      %v1097 = vsel %vm554, %v1089, %v920
      %v1098 = vsel %vm563, %v1090, %v930
      %v1099 = vsel %vm563, %v1091, %v932
      %v1100 = vsel %vm563, %v1092, %v934
      %v1101 = vsel %vm563, %v1093, %v936
      %v1102 = vsel %vm563, %v1094, %v938
      %v1103 = vsel %vm563, %v1095, %v940
      %v1104 = vsel %vm563, %v1096, %v942
      %v1105 = vsel %vm563, %v1097, %v944
      %v1106 = vsel %vm572, %v1098, %v962
      %v1107 = vsel %vm572, %v1099, %v964
      %v1108 = vsel %vm572, %v1100, %v966
      %v1109 = vsel %vm572, %v1101, %v968
      %v1110 = vsel %vm572, %v1102, %v970
      %v1111 = vsel %vm572, %v1103, %v972
      %v1112 = vsel %vm572, %v1104, %v974
      %v1113 = vsel %vm572, %v1105, %v976
      %v1114 = vsel %vm581, %v1106, %v986
      %v1115 = vsel %vm581, %v1107, %v988
      %v1116 = vsel %vm581, %v1108, %v990
      %v1117 = vsel %vm581, %v1109, %v992
      %v1118 = vsel %vm581, %v1110, %v994
      %v1119 = vsel %vm581, %v1111, %v996
      %v1120 = vsel %vm581, %v1112, %v998
      %v1121 = vsel %vm581, %v1113, %v1000
      %v1122 = vsel %vm590, %v1114, %v1010
      %v1123 = vsel %vm590, %v1115, %v1012
      %v1124 = vsel %vm590, %v1116, %v1014
      %v1125 = vsel %vm590, %v1117, %v1016
      %v1126 = vsel %vm590, %v1118, %v1018
      %v1127 = vsel %vm590, %v1119, %v1020
      %v1128 = vsel %vm590, %v1120, %v1022
      %v1129 = vsel %vm590, %v1121, %v1024
      %v1130 = vsel %vm599, %v1122, %v1035
      %v1131 = vsel %vm599, %v1123, %v1037
      %v1132 = vsel %vm599, %v1124, %v1039
      %v1133 = vsel %vm599, %v1125, %v1041
      %v1134 = vsel %vm599, %v1126, %v1043
      %v1135 = vsel %vm599, %v1127, %v1045
      %v1136 = vsel %vm599, %v1128, %v1047
      %v1137 = vsel %vm599, %v1129, %v1049
      %v1138 = vsel %vm608, %v1130, %v1059
      %v1139 = vsel %vm608, %v1131, %v1061
      %v1140 = vsel %vm608, %v1132, %v1063
      %v1141 = vsel %vm608, %v1133, %v1065
      %v1142 = vsel %vm608, %v1134, %v1067
      %v1143 = vsel %vm608, %v1135, %v1069
      %v1144 = vsel %vm608, %v1136, %v1071
      %v1145 = vsel %vm608, %v1137, %v1073
      %s1146 = scalar_lea.vmem %s1, 40
      %v1147 = vld [vmem:[%s1146] sm:$0xff]
      %v1148 = vld [vmem:[%s1146 + $0x8] sm:$0xff]
      %v1149 = vld [vmem:[%s1146 + $0x10] sm:$0xff]
      %v1150 = vld [vmem:[%s1146 + $0x18] sm:$0xff]
      %v1151 = vld [vmem:[%s1146 + $0x20] sm:$0xf]
      %v1153 = vsel %vm622, %v1138, 0
      %v1156 = vsel %vm622, %v1139, 0
      %v1159 = vsel %vm622, %v1140, 0
      %v1162 = vsel %vm622, %v1141, 0
      %v1165 = vsel %vm622, %v1142, 0
      %v1168 = vsel %vm622, %v1143, 0
      %v1171 = vsel %vm622, %v1144, 0
      %v1174 = vsel %vm622, %v1145, 0
      %v1177 = vsel %vm647, %v1151, 0
      %1179 = vmatpush.msra.mxu0 0.0
      %1180 = vmatpush.msra.mxu0 0.0
      %1181 = vmatpush.msra.mxu0 0.0
      %1182 = vmatpush.msra.mxu0 0.0
      %1183 = vmatpush.msra.mxu0 0.0
      %1184 = vmatpush.msra.mxu0 0.0
      %1185 = vmatpush.msra.mxu0 0.0
      %1186 = vmatpush.msra.mxu0 0.0
      %1187 = vmatpush.msra.mxu0 0.0
      %1188 = vmatpush.msra.mxu0 0.0
      %1189 = vmatpush.msra.mxu0 0.0
      %1190 = vmatpush.msra.mxu0 %v1177
      %1191 = vmatpush.msra.mxu0 %v1150
      %1192 = vmatpush.msra.mxu0 %v1149
      %1193 = vmatpush.msra.mxu0 %v1148
      %1194 = vmatpush.msra.mxu0 %v1147
      %1195 = vmatmul.f32.gmra.mxu0 %v1153
      %v1196 = vpop.f32.mrf.mxu0
      %v1197 = vadd.f32 0.0, %v1196
      %1198 = vmatmul.f32.gmra.mxu0 %v1156
      %v1199 = vpop.f32.mrf.mxu0
      %v1200 = vadd.f32 0.0, %v1199
      %1201 = vmatmul.f32.gmra.mxu0 %v1159
      %v1202 = vpop.f32.mrf.mxu0
      %v1203 = vadd.f32 0.0, %v1202
      %1204 = vmatmul.f32.gmra.mxu0 %v1162
      %v1205 = vpop.f32.mrf.mxu0
      %v1206 = vadd.f32 0.0, %v1205
      %1207 = vmatmul.f32.gmra.mxu0 %v1165
      %v1208 = vpop.f32.mrf.mxu0
      %v1209 = vadd.f32 0.0, %v1208
      %1210 = vmatmul.f32.gmra.mxu0 %v1168
      %v1211 = vpop.f32.mrf.mxu0
      %v1212 = vadd.f32 0.0, %v1211
      %1213 = vmatmul.f32.gmra.mxu0 %v1171
      %v1214 = vpop.f32.mrf.mxu0
      %v1215 = vadd.f32 0.0, %v1214
      %1216 = vmatmul.f32.gmra.mxu0 %v1174
      %v1217 = vpop.f32.mrf.mxu0
      %v1218 = vadd.f32 0.0, %v1217
      %1219 = vdwg.mxu0
      %1220 = vxpose.xlu0.b32.start [1/16] %v1197, 128
      %1221 = vxpose.xlu0.b32.cont [2/16] %v1200, 128
      %1222 = vxpose.xlu0.b32.cont [3/16] %v1203, 128
      %1223 = vxpose.xlu0.b32.cont [4/16] %v1206, 128
      %1224 = vxpose.xlu0.b32.cont [5/16] %v1209, 128
      %1225 = vxpose.xlu0.b32.cont [6/16] %v1212, 128
      %1226 = vxpose.xlu0.b32.cont [7/16] %v1215, 128
      %1227 = vxpose.xlu0.b32.cont [8/16] %v1218, 128
      %1228 = vxpose.xlu0.b32.cont [9/16] 0.0, 128
      %1229 = vxpose.xlu0.b32.cont [10/16] 0.0, 128
      %1230 = vxpose.xlu0.b32.cont [11/16] 0.0, 128
      %1231 = vxpose.xlu0.b32.cont [12/16] 0.0, 128
      %1232 = vxpose.xlu0.b32.cont [13/16] 0.0, 128
      %1233 = vxpose.xlu0.b32.cont [14/16] 0.0, 128
      %1234 = vxpose.xlu0.b32.cont [15/16] 0.0, 128
      %1235 = vxpose.xlu0.b32.end [16/16] 0.0, 128
      %v1236 = vpop.trf.xlu0
      %v1237 = vpop.trf.xlu0
      %v1238 = vpop.trf.xlu0
      %v1239 = vpop.trf.xlu0
      %v1240 = vpop.trf.xlu0
      %v1241 = vpop.trf.xlu0
      %v1242 = vpop.trf.xlu0
      %v1243 = vpop.trf.xlu0
      %v1244 = vpop.trf.xlu0
      %v1245 = vpop.trf.xlu0
      %v1246 = vpop.trf.xlu0
      %v1247 = vpop.trf.xlu0
      %v1248 = vpop.trf.xlu0
      %v1249 = vpop.trf.xlu0
      %v1250 = vpop.trf.xlu0
      %v1251 = vpop.trf.xlu0
      %v1252 = vadd.f32 %v1236, %v727
      %v1253 = vmax.f32 %v1252, 0.0
      %s1254 = scalar_lea.vmem %s3, 8
      %v1255 = vld [vmem:[%s1254] sm:$0xff]
      %v1256 = vadd.f32 %v1237, %v1255
      %v1257 = vadd.f32 %v1253, %v1256
      %s1258 = scalar_lea.vmem %s197, 8
      %1259 = vst.msk [vmem:[%s1258] sm:$0xff] %vm734, %v1257
      %s1260 = scalar_lea.vmem %s192, 1152
      %v1261 = vld [vmem:[%s1260] sm:$0xff]
      %v1262 = vld [vmem:[%s1260 + $0x8] sm:$0x1]
      %v1263 = vld [vmem:[%s1260 + $0x10] sm:$0xff]
      %v1264 = vld [vmem:[%s1260 + $0x18] sm:$0x1]
      %v1265 = vld [vmem:[%s1260 + $0x20] sm:$0xff]
      %v1266 = vld [vmem:[%s1260 + $0x28] sm:$0x1]
      %v1267 = vld [vmem:[%s1260 + $0x30] sm:$0xff]
      %v1268 = vld [vmem:[%s1260 + $0x38] sm:$0x1]
      %v1269 = vld [vmem:[%s1260 + $0x40] sm:$0xff]
      %v1270 = vld [vmem:[%s1260 + $0x48] sm:$0x1]
      %v1271 = vld [vmem:[%s1260 + $0x50] sm:$0xff]
      %v1272 = vld [vmem:[%s1260 + $0x58] sm:$0x1]
      %v1273 = vld [vmem:[%s1260 + $0x60] sm:$0xff]
      %v1274 = vld [vmem:[%s1260 + $0x68] sm:$0x1]
      %v1275 = vld [vmem:[%s1260 + $0x70] sm:$0xff]
      %v1276 = vld [vmem:[%s1260 + $0x78] sm:$0x1]
      %v1277 = vld [vmem:[%s1260 + $0x80] sm:$0xff]
      %v1278 = vld [vmem:[%s1260 + $0x88] sm:$0x1]
      %v1279 = vld [vmem:[%s1260 + $0x90] sm:$0xff]
      %v1280 = vld [vmem:[%s1260 + $0xa0] sm:$0xff]
      %v1281 = vld [vmem:[%s1260 + $0xb0] sm:$0xff]
      %v1282 = vld [vmem:[%s1260 + $0xc0] sm:$0xff]
      %v1283 = vld [vmem:[%s1260 + $0xd0] sm:$0xff]
      %v1284 = vld [vmem:[%s1260 + $0xe0] sm:$0xff]
      %v1285 = vld [vmem:[%s1260 + $0xf0] sm:$0xff]
      %v1286 = vld [vmem:[%s1260 + $0x100] sm:$0xff]
      %v1287 = vld [vmem:[%s1260 + $0x110] sm:$0xff]
      %v1288 = vld [vmem:[%s1260 + $0x120] sm:$0xff]
      %v1289 = vld [vmem:[%s1260 + $0x128] sm:$0x1]
      %v1290 = vld [vmem:[%s1260 + $0x130] sm:$0xff]
      %v1291 = vld [vmem:[%s1260 + $0x138] sm:$0x1]
      %v1292 = vld [vmem:[%s1260 + $0x140] sm:$0xff]
      %v1293 = vld [vmem:[%s1260 + $0x148] sm:$0x1]
      %v1294 = vld [vmem:[%s1260 + $0x150] sm:$0xff]
      %v1295 = vld [vmem:[%s1260 + $0x158] sm:$0x1]
      %v1296 = vld [vmem:[%s1260 + $0x160] sm:$0xff]
      %v1297 = vld [vmem:[%s1260 + $0x168] sm:$0x1]
      %v1298 = vld [vmem:[%s1260 + $0x170] sm:$0xff]
      %v1299 = vld [vmem:[%s1260 + $0x178] sm:$0x1]
      %v1300 = vld [vmem:[%s1260 + $0x180] sm:$0xff]
      %v1301 = vld [vmem:[%s1260 + $0x188] sm:$0x1]
      %v1302 = vld [vmem:[%s1260 + $0x190] sm:$0xff]
      %v1303 = vld [vmem:[%s1260 + $0x198] sm:$0x1]
      %v1304 = vld [vmem:[%s1260 + $0x1b0] sm:$0xff]
      %v1305 = vld [vmem:[%s1260 + $0x1c0] sm:$0xff]
      %v1306 = vld [vmem:[%s1260 + $0x1d0] sm:$0xff]
      %v1307 = vld [vmem:[%s1260 + $0x1e0] sm:$0xff]
      %v1308 = vld [vmem:[%s1260 + $0x1f0] sm:$0xff]
      %v1309 = vld [vmem:[%s1260 + $0x200] sm:$0xff]
      %v1310 = vld [vmem:[%s1260 + $0x210] sm:$0xff]
      %v1311 = vld [vmem:[%s1260 + $0x220] sm:$0xff]
      %v1328 = vrot.slane %v1261, 1
      %v1329 = vrot.slane %v1262, 1
      %v1330 = vsel %vm266, %v1328, %v1329
      %v1331 = vrot.slane %v1263, 1
      %v1332 = vrot.slane %v1264, 1
      %v1333 = vsel %vm266, %v1331, %v1332
      %v1334 = vrot.slane %v1265, 1
      %v1335 = vrot.slane %v1266, 1
      %v1336 = vsel %vm266, %v1334, %v1335
      %v1337 = vrot.slane %v1267, 1
      %v1338 = vrot.slane %v1268, 1
      %v1339 = vsel %vm266, %v1337, %v1338
      %v1340 = vrot.slane %v1269, 1
      %v1341 = vrot.slane %v1270, 1
      %v1342 = vsel %vm266, %v1340, %v1341
      %v1343 = vrot.slane %v1271, 1
      %v1344 = vrot.slane %v1272, 1
      %v1345 = vsel %vm266, %v1343, %v1344
      %v1346 = vrot.slane %v1273, 1
      %v1347 = vrot.slane %v1274, 1
      %v1348 = vsel %vm266, %v1346, %v1347
      %v1349 = vrot.slane %v1275, 1
      %v1350 = vrot.slane %v1276, 1
      %v1351 = vsel %vm266, %v1349, %v1350
      %v1368 = vrot.slane %v1288, 1
      %v1369 = vrot.slane %v1289, 1
      %v1370 = vsel %vm266, %v1368, %v1369
      %v1371 = vrot.slane %v1290, 1
      %v1372 = vrot.slane %v1291, 1
      %v1373 = vsel %vm266, %v1371, %v1372
      %v1374 = vrot.slane %v1292, 1
      %v1375 = vrot.slane %v1293, 1
      %v1376 = vsel %vm266, %v1374, %v1375
      %v1377 = vrot.slane %v1294, 1
      %v1378 = vrot.slane %v1295, 1
      %v1379 = vsel %vm266, %v1377, %v1378
      %v1380 = vrot.slane %v1296, 1
      %v1381 = vrot.slane %v1297, 1
      %v1382 = vsel %vm266, %v1380, %v1381
      %v1383 = vrot.slane %v1298, 1
      %v1384 = vrot.slane %v1299, 1
      %v1385 = vsel %vm266, %v1383, %v1384
      %v1386 = vrot.slane %v1300, 1
      %v1387 = vrot.slane %v1301, 1
      %v1388 = vsel %vm266, %v1386, %v1387
      %v1389 = vrot.slane %v1302, 1
      %v1390 = vrot.slane %v1303, 1
      %v1391 = vsel %vm266, %v1389, %v1390
      %v1394 = vrot.slane %v1277, 1
      %v1395 = vrot.slane %v1278, 1
      %v1396 = vsel %vm266, %v1394, %v1395
      %1405 = vrot.lane.b32.xlu0 %v1279, 4
      %v1406 = vpop.permute.xlu0 %1405
      %1407 = vrot.lane.b32.xlu0 %v1280, 4
      %v1408 = vpop.permute.xlu0 %1407
      %1409 = vrot.lane.b32.xlu0 %v1281, 4
      %v1410 = vpop.permute.xlu0 %1409
      %1411 = vrot.lane.b32.xlu0 %v1282, 4
      %v1412 = vpop.permute.xlu0 %1411
      %1413 = vrot.lane.b32.xlu0 %v1283, 4
      %v1414 = vpop.permute.xlu0 %1413
      %1415 = vrot.lane.b32.xlu0 %v1284, 4
      %v1416 = vpop.permute.xlu0 %1415
      %1417 = vrot.lane.b32.xlu0 %v1285, 4
      %v1418 = vpop.permute.xlu0 %1417
      %1419 = vrot.lane.b32.xlu0 %v1286, 4
      %v1420 = vpop.permute.xlu0 %1419
      %1429 = vrot.lane.b32.xlu0 %v1330, 8
      %v1430 = vpop.permute.xlu0 %1429
      %1431 = vrot.lane.b32.xlu0 %v1333, 8
      %v1432 = vpop.permute.xlu0 %1431
      %1433 = vrot.lane.b32.xlu0 %v1336, 8
      %v1434 = vpop.permute.xlu0 %1433
      %1435 = vrot.lane.b32.xlu0 %v1339, 8
      %v1436 = vpop.permute.xlu0 %1435
      %1437 = vrot.lane.b32.xlu0 %v1342, 8
      %v1438 = vpop.permute.xlu0 %1437
      %1439 = vrot.lane.b32.xlu0 %v1345, 8
      %v1440 = vpop.permute.xlu0 %1439
      %1441 = vrot.lane.b32.xlu0 %v1348, 8
      %v1442 = vpop.permute.xlu0 %1441
      %1443 = vrot.lane.b32.xlu0 %v1351, 8
      %v1444 = vpop.permute.xlu0 %1443
      %1453 = vrot.lane.b32.xlu0 %v1288, 12
      %v1454 = vpop.permute.xlu0 %1453
      %1455 = vrot.lane.b32.xlu0 %v1290, 12
      %v1456 = vpop.permute.xlu0 %1455
      %1457 = vrot.lane.b32.xlu0 %v1292, 12
      %v1458 = vpop.permute.xlu0 %1457
      %1459 = vrot.lane.b32.xlu0 %v1294, 12
      %v1460 = vpop.permute.xlu0 %1459
      %1461 = vrot.lane.b32.xlu0 %v1296, 12
      %v1462 = vpop.permute.xlu0 %1461
      %1463 = vrot.lane.b32.xlu0 %v1298, 12
      %v1464 = vpop.permute.xlu0 %1463
      %1465 = vrot.lane.b32.xlu0 %v1300, 12
      %v1466 = vpop.permute.xlu0 %1465
      %1467 = vrot.lane.b32.xlu0 %v1302, 12
      %v1468 = vpop.permute.xlu0 %1467
      %1485 = vrot.lane.b32.xlu0 %v1304, 16
      %v1486 = vpop.permute.xlu0 %1485
      %1487 = vrot.lane.b32.xlu0 %v1305, 16
      %v1488 = vpop.permute.xlu0 %1487
      %1489 = vrot.lane.b32.xlu0 %v1306, 16
      %v1490 = vpop.permute.xlu0 %1489
      %1491 = vrot.lane.b32.xlu0 %v1307, 16
      %v1492 = vpop.permute.xlu0 %1491
      %1493 = vrot.lane.b32.xlu0 %v1308, 16
      %v1494 = vpop.permute.xlu0 %1493
      %1495 = vrot.lane.b32.xlu0 %v1309, 16
      %v1496 = vpop.permute.xlu0 %1495
      %1497 = vrot.lane.b32.xlu0 %v1310, 16
      %v1498 = vpop.permute.xlu0 %1497
      %1499 = vrot.lane.b32.xlu0 %v1311, 16
      %v1500 = vpop.permute.xlu0 %1499
      %1509 = vrot.lane.b32.xlu0 %v1370, 20
      %v1510 = vpop.permute.xlu0 %1509
      %1511 = vrot.lane.b32.xlu0 %v1373, 20
      %v1512 = vpop.permute.xlu0 %1511
      %1513 = vrot.lane.b32.xlu0 %v1376, 20
      %v1514 = vpop.permute.xlu0 %1513
      %1515 = vrot.lane.b32.xlu0 %v1379, 20
      %v1516 = vpop.permute.xlu0 %1515
      %1517 = vrot.lane.b32.xlu0 %v1382, 20
      %v1518 = vpop.permute.xlu0 %1517
      %1519 = vrot.lane.b32.xlu0 %v1385, 20
      %v1520 = vpop.permute.xlu0 %1519
      %1521 = vrot.lane.b32.xlu0 %v1388, 20
      %v1522 = vpop.permute.xlu0 %1521
      %1523 = vrot.lane.b32.xlu0 %v1391, 20
      %v1524 = vpop.permute.xlu0 %1523
      %1533 = vrot.lane.b32.xlu0 %v1263, 24
      %v1534 = vpop.permute.xlu0 %1533
      %1535 = vrot.lane.b32.xlu0 %v1265, 24
      %v1536 = vpop.permute.xlu0 %1535
      %1537 = vrot.lane.b32.xlu0 %v1267, 24
      %v1538 = vpop.permute.xlu0 %1537
      %1539 = vrot.lane.b32.xlu0 %v1269, 24
      %v1540 = vpop.permute.xlu0 %1539
      %1541 = vrot.lane.b32.xlu0 %v1271, 24
      %v1542 = vpop.permute.xlu0 %1541
      %1543 = vrot.lane.b32.xlu0 %v1273, 24
      %v1544 = vpop.permute.xlu0 %1543
      %1545 = vrot.lane.b32.xlu0 %v1275, 24
      %v1546 = vpop.permute.xlu0 %1545
      %1547 = vrot.lane.b32.xlu0 %v1277, 24
      %v1548 = vpop.permute.xlu0 %1547
      %1558 = vrot.lane.b32.xlu0 %v1280, 28
      %v1559 = vpop.permute.xlu0 %1558
      %1560 = vrot.lane.b32.xlu0 %v1281, 28
      %v1561 = vpop.permute.xlu0 %1560
      %1562 = vrot.lane.b32.xlu0 %v1282, 28
      %v1563 = vpop.permute.xlu0 %1562
      %1564 = vrot.lane.b32.xlu0 %v1283, 28
      %v1565 = vpop.permute.xlu0 %1564
      %1566 = vrot.lane.b32.xlu0 %v1284, 28
      %v1567 = vpop.permute.xlu0 %1566
      %1568 = vrot.lane.b32.xlu0 %v1285, 28
      %v1569 = vpop.permute.xlu0 %1568
      %1570 = vrot.lane.b32.xlu0 %v1286, 28
      %v1571 = vpop.permute.xlu0 %1570
      %1572 = vrot.lane.b32.xlu0 %v1287, 28
      %v1573 = vpop.permute.xlu0 %1572
      %1582 = vrot.lane.b32.xlu0 %v1333, 32
      %v1583 = vpop.permute.xlu0 %1582
      %1584 = vrot.lane.b32.xlu0 %v1336, 32
      %v1585 = vpop.permute.xlu0 %1584
      %1586 = vrot.lane.b32.xlu0 %v1339, 32
      %v1587 = vpop.permute.xlu0 %1586
      %1588 = vrot.lane.b32.xlu0 %v1342, 32
      %v1589 = vpop.permute.xlu0 %1588
      %1590 = vrot.lane.b32.xlu0 %v1345, 32
      %v1591 = vpop.permute.xlu0 %1590
      %1592 = vrot.lane.b32.xlu0 %v1348, 32
      %v1593 = vpop.permute.xlu0 %1592
      %1594 = vrot.lane.b32.xlu0 %v1351, 32
      %v1595 = vpop.permute.xlu0 %1594
      %1596 = vrot.lane.b32.xlu0 %v1396, 32
      %v1597 = vpop.permute.xlu0 %1596
      %v1606 = vsel %vm545, %v1261, %v1406
      %v1607 = vsel %vm545, %v1263, %v1408
      %v1608 = vsel %vm545, %v1265, %v1410
      %v1609 = vsel %vm545, %v1267, %v1412
      %v1610 = vsel %vm545, %v1269, %v1414
      %v1611 = vsel %vm545, %v1271, %v1416
      %v1612 = vsel %vm545, %v1273, %v1418
      %v1613 = vsel %vm545, %v1275, %v1420
      %v1614 = vsel %vm554, %v1606, %v1430
      %v1615 = vsel %vm554, %v1607, %v1432
      %v1616 = vsel %vm554, %v1608, %v1434
      %v1617 = vsel %vm554, %v1609, %v1436
      %v1618 = vsel %vm554, %v1610, %v1438
      %v1619 = vsel %vm554, %v1611, %v1440
      %v1620 = vsel %vm554, %v1612, %v1442
      %v1621 = vsel %vm554, %v1613, %v1444
      %v1622 = vsel %vm563, %v1614, %v1454
      %v1623 = vsel %vm563, %v1615, %v1456
      %v1624 = vsel %vm563, %v1616, %v1458
      %v1625 = vsel %vm563, %v1617, %v1460
      %v1626 = vsel %vm563, %v1618, %v1462
      %v1627 = vsel %vm563, %v1619, %v1464
      %v1628 = vsel %vm563, %v1620, %v1466
      %v1629 = vsel %vm563, %v1621, %v1468
      %v1630 = vsel %vm572, %v1622, %v1486
      %v1631 = vsel %vm572, %v1623, %v1488
      %v1632 = vsel %vm572, %v1624, %v1490
      %v1633 = vsel %vm572, %v1625, %v1492
      %v1634 = vsel %vm572, %v1626, %v1494
      %v1635 = vsel %vm572, %v1627, %v1496
      %v1636 = vsel %vm572, %v1628, %v1498
      %v1637 = vsel %vm572, %v1629, %v1500
      %v1638 = vsel %vm581, %v1630, %v1510
      %v1639 = vsel %vm581, %v1631, %v1512
      %v1640 = vsel %vm581, %v1632, %v1514
      %v1641 = vsel %vm581, %v1633, %v1516
      %v1642 = vsel %vm581, %v1634, %v1518
      %v1643 = vsel %vm581, %v1635, %v1520
      %v1644 = vsel %vm581, %v1636, %v1522
      %v1645 = vsel %vm581, %v1637, %v1524
      %v1646 = vsel %vm590, %v1638, %v1534
      %v1647 = vsel %vm590, %v1639, %v1536
      %v1648 = vsel %vm590, %v1640, %v1538
      %v1649 = vsel %vm590, %v1641, %v1540
      %v1650 = vsel %vm590, %v1642, %v1542
      %v1651 = vsel %vm590, %v1643, %v1544
      %v1652 = vsel %vm590, %v1644, %v1546
      %v1653 = vsel %vm590, %v1645, %v1548
      %v1654 = vsel %vm599, %v1646, %v1559
      %v1655 = vsel %vm599, %v1647, %v1561
      %v1656 = vsel %vm599, %v1648, %v1563
      %v1657 = vsel %vm599, %v1649, %v1565
      %v1658 = vsel %vm599, %v1650, %v1567
      %v1659 = vsel %vm599, %v1651, %v1569
      %v1660 = vsel %vm599, %v1652, %v1571
      %v1661 = vsel %vm599, %v1653, %v1573
      %v1662 = vsel %vm608, %v1654, %v1583
      %v1663 = vsel %vm608, %v1655, %v1585
      %v1664 = vsel %vm608, %v1656, %v1587
      %v1665 = vsel %vm608, %v1657, %v1589
      %v1666 = vsel %vm608, %v1658, %v1591
      %v1667 = vsel %vm608, %v1659, %v1593
      %v1668 = vsel %vm608, %v1660, %v1595
      %v1669 = vsel %vm608, %v1661, %v1597
      %s1670 = scalar_lea.vmem %s1, 80
      %v1671 = vld [vmem:[%s1670] sm:$0xff]
      %v1672 = vld [vmem:[%s1670 + $0x8] sm:$0xff]
      %v1673 = vld [vmem:[%s1670 + $0x10] sm:$0xff]
      %v1674 = vld [vmem:[%s1670 + $0x18] sm:$0xff]
      %v1675 = vld [vmem:[%s1670 + $0x20] sm:$0xf]
      %v1677 = vsel %vm622, %v1662, 0
      %v1680 = vsel %vm622, %v1663, 0
      %v1683 = vsel %vm622, %v1664, 0
      %v1686 = vsel %vm622, %v1665, 0
      %v1689 = vsel %vm622, %v1666, 0
      %v1692 = vsel %vm622, %v1667, 0
      %v1695 = vsel %vm622, %v1668, 0
      %v1698 = vsel %vm622, %v1669, 0
      %v1701 = vsel %vm647, %v1675, 0
      %1703 = vmatpush.msra.mxu0 0.0
      %1704 = vmatpush.msra.mxu0 0.0
      %1705 = vmatpush.msra.mxu0 0.0
      %1706 = vmatpush.msra.mxu0 0.0
      %1707 = vmatpush.msra.mxu0 0.0
      %1708 = vmatpush.msra.mxu0 0.0
      %1709 = vmatpush.msra.mxu0 0.0
      %1710 = vmatpush.msra.mxu0 0.0
      %1711 = vmatpush.msra.mxu0 0.0
      %1712 = vmatpush.msra.mxu0 0.0
      %1713 = vmatpush.msra.mxu0 0.0
      %1714 = vmatpush.msra.mxu0 %v1701
      %1715 = vmatpush.msra.mxu0 %v1674
      %1716 = vmatpush.msra.mxu0 %v1673
      %1717 = vmatpush.msra.mxu0 %v1672
      %1718 = vmatpush.msra.mxu0 %v1671
      %1719 = vmatmul.f32.gmra.mxu0 %v1677
      %v1720 = vpop.f32.mrf.mxu0
      %v1721 = vadd.f32 0.0, %v1720
      %1722 = vmatmul.f32.gmra.mxu0 %v1680
      %v1723 = vpop.f32.mrf.mxu0
      %v1724 = vadd.f32 0.0, %v1723
      %1725 = vmatmul.f32.gmra.mxu0 %v1683
      %v1726 = vpop.f32.mrf.mxu0
      %v1727 = vadd.f32 0.0, %v1726
      %1728 = vmatmul.f32.gmra.mxu0 %v1686
      %v1729 = vpop.f32.mrf.mxu0
      %v1730 = vadd.f32 0.0, %v1729
      %1731 = vmatmul.f32.gmra.mxu0 %v1689
      %v1732 = vpop.f32.mrf.mxu0
      %v1733 = vadd.f32 0.0, %v1732
      %1734 = vmatmul.f32.gmra.mxu0 %v1692
      %v1735 = vpop.f32.mrf.mxu0
      %v1736 = vadd.f32 0.0, %v1735
      %1737 = vmatmul.f32.gmra.mxu0 %v1695
      %v1738 = vpop.f32.mrf.mxu0
      %v1739 = vadd.f32 0.0, %v1738
      %1740 = vmatmul.f32.gmra.mxu0 %v1698
      %v1741 = vpop.f32.mrf.mxu0
      %v1742 = vadd.f32 0.0, %v1741
      %1743 = vdwg.mxu0
      %1744 = vxpose.xlu0.b32.start [1/16] %v1721, 128
      %1745 = vxpose.xlu0.b32.cont [2/16] %v1724, 128
      %1746 = vxpose.xlu0.b32.cont [3/16] %v1727, 128
      %1747 = vxpose.xlu0.b32.cont [4/16] %v1730, 128
      %1748 = vxpose.xlu0.b32.cont [5/16] %v1733, 128
      %1749 = vxpose.xlu0.b32.cont [6/16] %v1736, 128
      %1750 = vxpose.xlu0.b32.cont [7/16] %v1739, 128
      %1751 = vxpose.xlu0.b32.cont [8/16] %v1742, 128
      %1752 = vxpose.xlu0.b32.cont [9/16] 0.0, 128
      %1753 = vxpose.xlu0.b32.cont [10/16] 0.0, 128
      %1754 = vxpose.xlu0.b32.cont [11/16] 0.0, 128
      %1755 = vxpose.xlu0.b32.cont [12/16] 0.0, 128
      %1756 = vxpose.xlu0.b32.cont [13/16] 0.0, 128
      %1757 = vxpose.xlu0.b32.cont [14/16] 0.0, 128
      %1758 = vxpose.xlu0.b32.cont [15/16] 0.0, 128
      %1759 = vxpose.xlu0.b32.end [16/16] 0.0, 128
      %v1760 = vpop.trf.xlu0
      %v1761 = vpop.trf.xlu0
      %v1762 = vpop.trf.xlu0
      %v1763 = vpop.trf.xlu0
      %v1764 = vpop.trf.xlu0
      %v1765 = vpop.trf.xlu0
      %v1766 = vpop.trf.xlu0
      %v1767 = vpop.trf.xlu0
      %v1768 = vpop.trf.xlu0
      %v1769 = vpop.trf.xlu0
      %v1770 = vpop.trf.xlu0
      %v1771 = vpop.trf.xlu0
      %v1772 = vpop.trf.xlu0
      %v1773 = vpop.trf.xlu0
      %v1774 = vpop.trf.xlu0
      %v1775 = vpop.trf.xlu0
      %v1776 = vadd.f32 %v1760, %v727
      %v1777 = vmax.f32 %v1776, 0.0
      %s1778 = scalar_lea.vmem %s3, 16
      %v1779 = vld [vmem:[%s1778] sm:$0xff]
      %v1780 = vadd.f32 %v1761, %v1779
      %v1781 = vadd.f32 %v1777, %v1780
      %s1782 = scalar_lea.vmem %s197, 16
      %1783 = vst.msk [vmem:[%s1782] sm:$0xff] %vm734, %v1781
      %s1784 = scalar_lea.vmem %s192, 1728
      %v1785 = vld [vmem:[%s1784] sm:$0xff]
      %v1786 = vld [vmem:[%s1784 + $0x8] sm:$0x1]
      %v1787 = vld [vmem:[%s1784 + $0x10] sm:$0xff]
      %v1788 = vld [vmem:[%s1784 + $0x18] sm:$0x1]
      %v1789 = vld [vmem:[%s1784 + $0x20] sm:$0xff]
      %v1790 = vld [vmem:[%s1784 + $0x28] sm:$0x1]
      %v1791 = vld [vmem:[%s1784 + $0x30] sm:$0xff]
      %v1792 = vld [vmem:[%s1784 + $0x38] sm:$0x1]
      %v1793 = vld [vmem:[%s1784 + $0x40] sm:$0xff]
      %v1794 = vld [vmem:[%s1784 + $0x48] sm:$0x1]
      %v1795 = vld [vmem:[%s1784 + $0x50] sm:$0xff]
      %v1796 = vld [vmem:[%s1784 + $0x58] sm:$0x1]
      %v1797 = vld [vmem:[%s1784 + $0x60] sm:$0xff]
      %v1798 = vld [vmem:[%s1784 + $0x68] sm:$0x1]
      %v1799 = vld [vmem:[%s1784 + $0x70] sm:$0xff]
      %v1800 = vld [vmem:[%s1784 + $0x78] sm:$0x1]
      %v1801 = vld [vmem:[%s1784 + $0x80] sm:$0xff]
      %v1802 = vld [vmem:[%s1784 + $0x88] sm:$0x1]
      %v1803 = vld [vmem:[%s1784 + $0x90] sm:$0xff]
      %v1804 = vld [vmem:[%s1784 + $0xa0] sm:$0xff]
      %v1805 = vld [vmem:[%s1784 + $0xb0] sm:$0xff]
      %v1806 = vld [vmem:[%s1784 + $0xc0] sm:$0xff]
      %v1807 = vld [vmem:[%s1784 + $0xd0] sm:$0xff]
      %v1808 = vld [vmem:[%s1784 + $0xe0] sm:$0xff]
      %v1809 = vld [vmem:[%s1784 + $0xf0] sm:$0xff]
      %v1810 = vld [vmem:[%s1784 + $0x100] sm:$0xff]
      %v1811 = vld [vmem:[%s1784 + $0x110] sm:$0xff]
      %v1812 = vld [vmem:[%s1784 + $0x120] sm:$0xff]
      %v1813 = vld [vmem:[%s1784 + $0x128] sm:$0x1]
      %v1814 = vld [vmem:[%s1784 + $0x130] sm:$0xff]
      %v1815 = vld [vmem:[%s1784 + $0x138] sm:$0x1]
      %v1816 = vld [vmem:[%s1784 + $0x140] sm:$0xff]
      %v1817 = vld [vmem:[%s1784 + $0x148] sm:$0x1]
      %v1818 = vld [vmem:[%s1784 + $0x150] sm:$0xff]
      %v1819 = vld [vmem:[%s1784 + $0x158] sm:$0x1]
      %v1820 = vld [vmem:[%s1784 + $0x160] sm:$0xff]
      %v1821 = vld [vmem:[%s1784 + $0x168] sm:$0x1]
      %v1822 = vld [vmem:[%s1784 + $0x170] sm:$0xff]
      %v1823 = vld [vmem:[%s1784 + $0x178] sm:$0x1]
      %v1824 = vld [vmem:[%s1784 + $0x180] sm:$0xff]
      %v1825 = vld [vmem:[%s1784 + $0x188] sm:$0x1]
      %v1826 = vld [vmem:[%s1784 + $0x190] sm:$0xff]
      %v1827 = vld [vmem:[%s1784 + $0x198] sm:$0x1]
      %v1828 = vld [vmem:[%s1784 + $0x1b0] sm:$0xff]
      %v1829 = vld [vmem:[%s1784 + $0x1c0] sm:$0xff]
      %v1830 = vld [vmem:[%s1784 + $0x1d0] sm:$0xff]
      %v1831 = vld [vmem:[%s1784 + $0x1e0] sm:$0xff]
      %v1832 = vld [vmem:[%s1784 + $0x1f0] sm:$0xff]
      %v1833 = vld [vmem:[%s1784 + $0x200] sm:$0xff]
      %v1834 = vld [vmem:[%s1784 + $0x210] sm:$0xff]
      %v1835 = vld [vmem:[%s1784 + $0x220] sm:$0xff]
      %v1852 = vrot.slane %v1785, 1
      %v1853 = vrot.slane %v1786, 1
      %v1854 = vsel %vm266, %v1852, %v1853
      %v1855 = vrot.slane %v1787, 1
      %v1856 = vrot.slane %v1788, 1
      %v1857 = vsel %vm266, %v1855, %v1856
      %v1858 = vrot.slane %v1789, 1
      %v1859 = vrot.slane %v1790, 1
      %v1860 = vsel %vm266, %v1858, %v1859
      %v1861 = vrot.slane %v1791, 1
      %v1862 = vrot.slane %v1792, 1
      %v1863 = vsel %vm266, %v1861, %v1862
      %v1864 = vrot.slane %v1793, 1
      %v1865 = vrot.slane %v1794, 1
      %v1866 = vsel %vm266, %v1864, %v1865
      %v1867 = vrot.slane %v1795, 1
      %v1868 = vrot.slane %v1796, 1
      %v1869 = vsel %vm266, %v1867, %v1868
      %v1870 = vrot.slane %v1797, 1
      %v1871 = vrot.slane %v1798, 1
      %v1872 = vsel %vm266, %v1870, %v1871
      %v1873 = vrot.slane %v1799, 1
      %v1874 = vrot.slane %v1800, 1
      %v1875 = vsel %vm266, %v1873, %v1874
      %v1892 = vrot.slane %v1812, 1
      %v1893 = vrot.slane %v1813, 1
      %v1894 = vsel %vm266, %v1892, %v1893
      %v1895 = vrot.slane %v1814, 1
      %v1896 = vrot.slane %v1815, 1
      %v1897 = vsel %vm266, %v1895, %v1896
      %v1898 = vrot.slane %v1816, 1
      %v1899 = vrot.slane %v1817, 1
      %v1900 = vsel %vm266, %v1898, %v1899
      %v1901 = vrot.slane %v1818, 1
      %v1902 = vrot.slane %v1819, 1
      %v1903 = vsel %vm266, %v1901, %v1902
      %v1904 = vrot.slane %v1820, 1
      %v1905 = vrot.slane %v1821, 1
      %v1906 = vsel %vm266, %v1904, %v1905
      %v1907 = vrot.slane %v1822, 1
      %v1908 = vrot.slane %v1823, 1
      %v1909 = vsel %vm266, %v1907, %v1908
      %v1910 = vrot.slane %v1824, 1
      %v1911 = vrot.slane %v1825, 1
      %v1912 = vsel %vm266, %v1910, %v1911
      %v1913 = vrot.slane %v1826, 1
      %v1914 = vrot.slane %v1827, 1
      %v1915 = vsel %vm266, %v1913, %v1914
      %v1918 = vrot.slane %v1801, 1
      %v1919 = vrot.slane %v1802, 1
      %v1920 = vsel %vm266, %v1918, %v1919
      %1929 = vrot.lane.b32.xlu0 %v1803, 4
      %v1930 = vpop.permute.xlu0 %1929
      %1931 = vrot.lane.b32.xlu0 %v1804, 4
      %v1932 = vpop.permute.xlu0 %1931
      %1933 = vrot.lane.b32.xlu0 %v1805, 4
      %v1934 = vpop.permute.xlu0 %1933
      %1935 = vrot.lane.b32.xlu0 %v1806, 4
      %v1936 = vpop.permute.xlu0 %1935
      %1937 = vrot.lane.b32.xlu0 %v1807, 4
      %v1938 = vpop.permute.xlu0 %1937
      %1939 = vrot.lane.b32.xlu0 %v1808, 4
      %v1940 = vpop.permute.xlu0 %1939
      %1941 = vrot.lane.b32.xlu0 %v1809, 4
      %v1942 = vpop.permute.xlu0 %1941
      %1943 = vrot.lane.b32.xlu0 %v1810, 4
      %v1944 = vpop.permute.xlu0 %1943
      %1953 = vrot.lane.b32.xlu0 %v1854, 8
      %v1954 = vpop.permute.xlu0 %1953
      %1955 = vrot.lane.b32.xlu0 %v1857, 8
      %v1956 = vpop.permute.xlu0 %1955
      %1957 = vrot.lane.b32.xlu0 %v1860, 8
      %v1958 = vpop.permute.xlu0 %1957
      %1959 = vrot.lane.b32.xlu0 %v1863, 8
      %v1960 = vpop.permute.xlu0 %1959
      %1961 = vrot.lane.b32.xlu0 %v1866, 8
      %v1962 = vpop.permute.xlu0 %1961
      %1963 = vrot.lane.b32.xlu0 %v1869, 8
      %v1964 = vpop.permute.xlu0 %1963
      %1965 = vrot.lane.b32.xlu0 %v1872, 8
      %v1966 = vpop.permute.xlu0 %1965
      %1967 = vrot.lane.b32.xlu0 %v1875, 8
      %v1968 = vpop.permute.xlu0 %1967
      %1977 = vrot.lane.b32.xlu0 %v1812, 12
      %v1978 = vpop.permute.xlu0 %1977
      %1979 = vrot.lane.b32.xlu0 %v1814, 12
      %v1980 = vpop.permute.xlu0 %1979
      %1981 = vrot.lane.b32.xlu0 %v1816, 12
      %v1982 = vpop.permute.xlu0 %1981
      %1983 = vrot.lane.b32.xlu0 %v1818, 12
      %v1984 = vpop.permute.xlu0 %1983
      %1985 = vrot.lane.b32.xlu0 %v1820, 12
      %v1986 = vpop.permute.xlu0 %1985
      %1987 = vrot.lane.b32.xlu0 %v1822, 12
      %v1988 = vpop.permute.xlu0 %1987
      %1989 = vrot.lane.b32.xlu0 %v1824, 12
      %v1990 = vpop.permute.xlu0 %1989
      %1991 = vrot.lane.b32.xlu0 %v1826, 12
      %v1992 = vpop.permute.xlu0 %1991
      %2009 = vrot.lane.b32.xlu0 %v1828, 16
      %v2010 = vpop.permute.xlu0 %2009
      %2011 = vrot.lane.b32.xlu0 %v1829, 16
      %v2012 = vpop.permute.xlu0 %2011
      %2013 = vrot.lane.b32.xlu0 %v1830, 16
      %v2014 = vpop.permute.xlu0 %2013
      %2015 = vrot.lane.b32.xlu0 %v1831, 16
      %v2016 = vpop.permute.xlu0 %2015
      %2017 = vrot.lane.b32.xlu0 %v1832, 16
      %v2018 = vpop.permute.xlu0 %2017
      %2019 = vrot.lane.b32.xlu0 %v1833, 16
      %v2020 = vpop.permute.xlu0 %2019
      %2021 = vrot.lane.b32.xlu0 %v1834, 16
      %v2022 = vpop.permute.xlu0 %2021
      %2023 = vrot.lane.b32.xlu0 %v1835, 16
      %v2024 = vpop.permute.xlu0 %2023
      %2033 = vrot.lane.b32.xlu0 %v1894, 20
      %v2034 = vpop.permute.xlu0 %2033
      %2035 = vrot.lane.b32.xlu0 %v1897, 20
      %v2036 = vpop.permute.xlu0 %2035
      %2037 = vrot.lane.b32.xlu0 %v1900, 20
      %v2038 = vpop.permute.xlu0 %2037
      %2039 = vrot.lane.b32.xlu0 %v1903, 20
      %v2040 = vpop.permute.xlu0 %2039
      %2041 = vrot.lane.b32.xlu0 %v1906, 20
      %v2042 = vpop.permute.xlu0 %2041
      %2043 = vrot.lane.b32.xlu0 %v1909, 20
      %v2044 = vpop.permute.xlu0 %2043
      %2045 = vrot.lane.b32.xlu0 %v1912, 20
      %v2046 = vpop.permute.xlu0 %2045
      %2047 = vrot.lane.b32.xlu0 %v1915, 20
      %v2048 = vpop.permute.xlu0 %2047
      %2057 = vrot.lane.b32.xlu0 %v1787, 24
      %v2058 = vpop.permute.xlu0 %2057
      %2059 = vrot.lane.b32.xlu0 %v1789, 24
      %v2060 = vpop.permute.xlu0 %2059
      %2061 = vrot.lane.b32.xlu0 %v1791, 24
      %v2062 = vpop.permute.xlu0 %2061
      %2063 = vrot.lane.b32.xlu0 %v1793, 24
      %v2064 = vpop.permute.xlu0 %2063
      %2065 = vrot.lane.b32.xlu0 %v1795, 24
      %v2066 = vpop.permute.xlu0 %2065
      %2067 = vrot.lane.b32.xlu0 %v1797, 24
      %v2068 = vpop.permute.xlu0 %2067
      %2069 = vrot.lane.b32.xlu0 %v1799, 24
      %v2070 = vpop.permute.xlu0 %2069
      %2071 = vrot.lane.b32.xlu0 %v1801, 24
      %v2072 = vpop.permute.xlu0 %2071
      %2082 = vrot.lane.b32.xlu0 %v1804, 28
      %v2083 = vpop.permute.xlu0 %2082
      %2084 = vrot.lane.b32.xlu0 %v1805, 28
      %v2085 = vpop.permute.xlu0 %2084
      %2086 = vrot.lane.b32.xlu0 %v1806, 28
      %v2087 = vpop.permute.xlu0 %2086
      %2088 = vrot.lane.b32.xlu0 %v1807, 28
      %v2089 = vpop.permute.xlu0 %2088
      %2090 = vrot.lane.b32.xlu0 %v1808, 28
      %v2091 = vpop.permute.xlu0 %2090
      %2092 = vrot.lane.b32.xlu0 %v1809, 28
      %v2093 = vpop.permute.xlu0 %2092
      %2094 = vrot.lane.b32.xlu0 %v1810, 28
      %v2095 = vpop.permute.xlu0 %2094
      %2096 = vrot.lane.b32.xlu0 %v1811, 28
      %v2097 = vpop.permute.xlu0 %2096
      %2106 = vrot.lane.b32.xlu0 %v1857, 32
      %v2107 = vpop.permute.xlu0 %2106
      %2108 = vrot.lane.b32.xlu0 %v1860, 32
      %v2109 = vpop.permute.xlu0 %2108
      %2110 = vrot.lane.b32.xlu0 %v1863, 32
      %v2111 = vpop.permute.xlu0 %2110
      %2112 = vrot.lane.b32.xlu0 %v1866, 32
      %v2113 = vpop.permute.xlu0 %2112
      %2114 = vrot.lane.b32.xlu0 %v1869, 32
      %v2115 = vpop.permute.xlu0 %2114
      %2116 = vrot.lane.b32.xlu0 %v1872, 32
      %v2117 = vpop.permute.xlu0 %2116
      %2118 = vrot.lane.b32.xlu0 %v1875, 32
      %v2119 = vpop.permute.xlu0 %2118
      %2120 = vrot.lane.b32.xlu0 %v1920, 32
      %v2121 = vpop.permute.xlu0 %2120
      %v2130 = vsel %vm545, %v1785, %v1930
      %v2131 = vsel %vm545, %v1787, %v1932
      %v2132 = vsel %vm545, %v1789, %v1934
      %v2133 = vsel %vm545, %v1791, %v1936
      %v2134 = vsel %vm545, %v1793, %v1938
      %v2135 = vsel %vm545, %v1795, %v1940
      %v2136 = vsel %vm545, %v1797, %v1942
      %v2137 = vsel %vm545, %v1799, %v1944
      %v2138 = vsel %vm554, %v2130, %v1954
      %v2139 = vsel %vm554, %v2131, %v1956
      %v2140 = vsel %vm554, %v2132, %v1958
      %v2141 = vsel %vm554, %v2133, %v1960
      %v2142 = vsel %vm554, %v2134, %v1962
      %v2143 = vsel %vm554, %v2135, %v1964
      %v2144 = vsel %vm554, %v2136, %v1966
      %v2145 = vsel %vm554, %v2137, %v1968
      %v2146 = vsel %vm563, %v2138, %v1978
      %v2147 = vsel %vm563, %v2139, %v1980
      %v2148 = vsel %vm563, %v2140, %v1982
      %v2149 = vsel %vm563, %v2141, %v1984
      %v2150 = vsel %vm563, %v2142, %v1986
      %v2151 = vsel %vm563, %v2143, %v1988
      %v2152 = vsel %vm563, %v2144, %v1990
      %v2153 = vsel %vm563, %v2145, %v1992
      %v2154 = vsel %vm572, %v2146, %v2010
      %v2155 = vsel %vm572, %v2147, %v2012
      %v2156 = vsel %vm572, %v2148, %v2014
      %v2157 = vsel %vm572, %v2149, %v2016
      %v2158 = vsel %vm572, %v2150, %v2018
      %v2159 = vsel %vm572, %v2151, %v2020
      %v2160 = vsel %vm572, %v2152, %v2022
      %v2161 = vsel %vm572, %v2153, %v2024
      %v2162 = vsel %vm581, %v2154, %v2034
      %v2163 = vsel %vm581, %v2155, %v2036
      %v2164 = vsel %vm581, %v2156, %v2038
      %v2165 = vsel %vm581, %v2157, %v2040
      %v2166 = vsel %vm581, %v2158, %v2042
      %v2167 = vsel %vm581, %v2159, %v2044
      %v2168 = vsel %vm581, %v2160, %v2046
      %v2169 = vsel %vm581, %v2161, %v2048
      %v2170 = vsel %vm590, %v2162, %v2058
      %v2171 = vsel %vm590, %v2163, %v2060
      %v2172 = vsel %vm590, %v2164, %v2062
      %v2173 = vsel %vm590, %v2165, %v2064
      %v2174 = vsel %vm590, %v2166, %v2066
      %v2175 = vsel %vm590, %v2167, %v2068
      %v2176 = vsel %vm590, %v2168, %v2070
      %v2177 = vsel %vm590, %v2169, %v2072
      %v2178 = vsel %vm599, %v2170, %v2083
      %v2179 = vsel %vm599, %v2171, %v2085
      %v2180 = vsel %vm599, %v2172, %v2087
      %v2181 = vsel %vm599, %v2173, %v2089
      %v2182 = vsel %vm599, %v2174, %v2091
      %v2183 = vsel %vm599, %v2175, %v2093
      %v2184 = vsel %vm599, %v2176, %v2095
      %v2185 = vsel %vm599, %v2177, %v2097
      %v2186 = vsel %vm608, %v2178, %v2107
      %v2187 = vsel %vm608, %v2179, %v2109
      %v2188 = vsel %vm608, %v2180, %v2111
      %v2189 = vsel %vm608, %v2181, %v2113
      %v2190 = vsel %vm608, %v2182, %v2115
      %v2191 = vsel %vm608, %v2183, %v2117
      %v2192 = vsel %vm608, %v2184, %v2119
      %v2193 = vsel %vm608, %v2185, %v2121
      %s2194 = scalar_lea.vmem %s1, 120
      %v2195 = vld [vmem:[%s2194] sm:$0xff]
      %v2196 = vld [vmem:[%s2194 + $0x8] sm:$0xff]
      %v2197 = vld [vmem:[%s2194 + $0x10] sm:$0xff]
      %v2198 = vld [vmem:[%s2194 + $0x18] sm:$0xff]
      %v2199 = vld [vmem:[%s2194 + $0x20] sm:$0xf]
      %v2201 = vsel %vm622, %v2186, 0
      %v2204 = vsel %vm622, %v2187, 0
      %v2207 = vsel %vm622, %v2188, 0
      %v2210 = vsel %vm622, %v2189, 0
      %v2213 = vsel %vm622, %v2190, 0
      %v2216 = vsel %vm622, %v2191, 0
      %v2219 = vsel %vm622, %v2192, 0
      %v2222 = vsel %vm622, %v2193, 0
      %v2225 = vsel %vm647, %v2199, 0
      %2227 = vmatpush.msra.mxu0 0.0
      %2228 = vmatpush.msra.mxu0 0.0
      %2229 = vmatpush.msra.mxu0 0.0
      %2230 = vmatpush.msra.mxu0 0.0
      %2231 = vmatpush.msra.mxu0 0.0
      %2232 = vmatpush.msra.mxu0 0.0
      %2233 = vmatpush.msra.mxu0 0.0
      %2234 = vmatpush.msra.mxu0 0.0
      %2235 = vmatpush.msra.mxu0 0.0
      %2236 = vmatpush.msra.mxu0 0.0
      %2237 = vmatpush.msra.mxu0 0.0
      %2238 = vmatpush.msra.mxu0 %v2225
      %2239 = vmatpush.msra.mxu0 %v2198
      %2240 = vmatpush.msra.mxu0 %v2197
      %2241 = vmatpush.msra.mxu0 %v2196
      %2242 = vmatpush.msra.mxu0 %v2195
      %2243 = vmatmul.f32.gmra.mxu0 %v2201
      %v2244 = vpop.f32.mrf.mxu0
      %v2245 = vadd.f32 0.0, %v2244
      %2246 = vmatmul.f32.gmra.mxu0 %v2204
      %v2247 = vpop.f32.mrf.mxu0
      %v2248 = vadd.f32 0.0, %v2247
      %2249 = vmatmul.f32.gmra.mxu0 %v2207
      %v2250 = vpop.f32.mrf.mxu0
      %v2251 = vadd.f32 0.0, %v2250
      %2252 = vmatmul.f32.gmra.mxu0 %v2210
      %v2253 = vpop.f32.mrf.mxu0
      %v2254 = vadd.f32 0.0, %v2253
      %2255 = vmatmul.f32.gmra.mxu0 %v2213
      %v2256 = vpop.f32.mrf.mxu0
      %v2257 = vadd.f32 0.0, %v2256
      %2258 = vmatmul.f32.gmra.mxu0 %v2216
      %v2259 = vpop.f32.mrf.mxu0
      %v2260 = vadd.f32 0.0, %v2259
      %2261 = vmatmul.f32.gmra.mxu0 %v2219
      %v2262 = vpop.f32.mrf.mxu0
      %v2263 = vadd.f32 0.0, %v2262
      %2264 = vmatmul.f32.gmra.mxu0 %v2222
      %v2265 = vpop.f32.mrf.mxu0
      %v2266 = vadd.f32 0.0, %v2265
      %2267 = vdwg.mxu0
      %2268 = vxpose.xlu0.b32.start [1/16] %v2245, 128
      %2269 = vxpose.xlu0.b32.cont [2/16] %v2248, 128
      %2270 = vxpose.xlu0.b32.cont [3/16] %v2251, 128
      %2271 = vxpose.xlu0.b32.cont [4/16] %v2254, 128
      %2272 = vxpose.xlu0.b32.cont [5/16] %v2257, 128
      %2273 = vxpose.xlu0.b32.cont [6/16] %v2260, 128
      %2274 = vxpose.xlu0.b32.cont [7/16] %v2263, 128
      %2275 = vxpose.xlu0.b32.cont [8/16] %v2266, 128
      %2276 = vxpose.xlu0.b32.cont [9/16] 0.0, 128
      %2277 = vxpose.xlu0.b32.cont [10/16] 0.0, 128
      %2278 = vxpose.xlu0.b32.cont [11/16] 0.0, 128
      %2279 = vxpose.xlu0.b32.cont [12/16] 0.0, 128
      %2280 = vxpose.xlu0.b32.cont [13/16] 0.0, 128
      %2281 = vxpose.xlu0.b32.cont [14/16] 0.0, 128
      %2282 = vxpose.xlu0.b32.cont [15/16] 0.0, 128
      %2283 = vxpose.xlu0.b32.end [16/16] 0.0, 128
      %v2284 = vpop.trf.xlu0
      %v2285 = vpop.trf.xlu0
      %v2286 = vpop.trf.xlu0
      %v2287 = vpop.trf.xlu0
      %v2288 = vpop.trf.xlu0
      %v2289 = vpop.trf.xlu0
      %v2290 = vpop.trf.xlu0
      %v2291 = vpop.trf.xlu0
      %v2292 = vpop.trf.xlu0
      %v2293 = vpop.trf.xlu0
      %v2294 = vpop.trf.xlu0
      %v2295 = vpop.trf.xlu0
      %v2296 = vpop.trf.xlu0
      %v2297 = vpop.trf.xlu0
      %v2298 = vpop.trf.xlu0
      %v2299 = vpop.trf.xlu0
      %v2300 = vadd.f32 %v2284, %v727
      %v2301 = vmax.f32 %v2300, 0.0
      %s2302 = scalar_lea.vmem %s3, 24
      %v2303 = vld [vmem:[%s2302] sm:$0xff]
      %v2304 = vadd.f32 %v2285, %v2303
      %v2305 = vadd.f32 %v2301, %v2304
      %s2306 = scalar_lea.vmem %s197, 24
      %2307 = vst.msk [vmem:[%s2306] sm:$0xff] %vm734, %v2305
      %p2308 = scmp.lt.s32.totalorder %s15, 1
      %s2309 = scalar_select %p2308, %s15, 1
      %s2310 = smul.addr %s2309, 4
      %s2311 = smul.addr %s2310, 8
      %s2312 = scalar_lea.vmem %s4, %s2311
      // Predicated region
      $region37: #{vit_encoder_forward.3} parent=35 // pred_check
        %p2313 = pneg %p122
      $region38: #{vit_encoder_forward.3} parent=35 // pred_check_branch
        %2315 = sbr.rel (%p2313) target = $region40
      $region39: #{vit_encoder_forward.3} parent=35 // pred_region
        _
      $region40: #{vit_encoder_forward.3} parent=35 // pred_fallthru
        _
    $region36: #{vit_encoder_forward.3} parent=5 // pred_fallthru
      _
    %p2316 = scmp.le.s32.totalorder 2, %s10
    // Predicated region
    $region41: #{vit_encoder_forward.3} parent=5 // pred_check
      %p2317 = pneg %p2316
    $region42: #{vit_encoder_forward.3} parent=5 // pred_check_branch
      %2319 = sbr.rel (%p2317) target = $region44
    $region43: #{vit_encoder_forward.3} parent=5 // pred_region
      %s2320 = ssub.s32 %s10, 2
      // Predicated region
      $region45: #{vit_encoder_forward.3} parent=43 // pred_check
        %p2321 = pneg %p128
      $region46: #{vit_encoder_forward.3} parent=43 // pred_check_branch
        %2323 = sbr.rel (%p2321) target = $region48
      $region47: #{vit_encoder_forward.3} parent=43 // pred_region
        %p2324 = scmp.lt.s32.totalorder %s16, 1
        %s2325 = scalar_select %p2324, %s16, 1
        %s2326 = smul.addr %s2325, 4
        %s2327 = smul.addr %s2326, 8
        %s2328 = scalar_lea.vmem %s4, %s2327
      $region48: #{vit_encoder_forward.3} parent=43 // pred_fallthru
        _
    $region44: #{vit_encoder_forward.3} parent=5 // pred_fallthru
      _
  $region6: #{vit_encoder_forward.3} parent=0 // loop_footer
    %s14 = sadd.s32 1, %s10
  $region7: #{vit_encoder_forward.3} parent=0 // loop_footer_branch
    %9 = sbr.rel target = $region3
  $region8: #{vit_encoder_forward.3} parent=0 // loop_exit
    _

</llo_original>
